<compile_context>
chip_gen: v6e
topology: v6e:2x2x1
jax: 0.10.0
libtpu: 0.0.40
codegen_flags: <defaults>
</compile_context>

<pallas_src>
from functools import partial

import jax
import jax.numpy as jnp
from jax.experimental import pallas as pl
from jax.experimental.pallas import tpu as pltpu


# ---------------------------------------------------------------------------
# Conv(3x3, stride 1, pad 1) + bias + ReLU + MaxPool(2x2) fused kernel
# ---------------------------------------------------------------------------
def _conv_relu_pool_kernel(x_ref, w_ref, b_ref, o_ref, pad_ref, *, H, W, bn):
    # x_ref:   (bn, H, W, Cin)          bf16  unpadded images
    # w_ref:   (9*Cin, Cout)            bf16  taps flattened (dy, dx, cin)-major
    # b_ref:   (1, Cout)                f32
    # o_ref:   (bn, H//2, (W//2)*Cout)  bf16  lane-dense pooled output
    # pad_ref: (bn, (H+3)*(W+2), Cin)   bf16  zero-padded image, spatial
    #          flattened with row stride Wp = W+2 (1px halo + slack rows)
    Wp = W + 2
    nrows = H * Wp
    Cin = x_ref.shape[-1]
    Cout = w_ref.shape[-1]
    Ho, Wo, half = H // 2, W // 2, Wp // 2

    # Build the zero-padded image in VMEM (halo rows/cols stay zero); this
    # replaces the wrapper-side jnp.pad + extra HBM pass of a padded copy.
    pad_ref[...] = jnp.zeros_like(pad_ref)
    for h in range(H):
        r = (h + 1) * Wp + 1
        pad_ref[:, r:r + W, :] = x_ref[:, h, :, :]

    # im2col on the flat spatial layout: the (dy, dx) tap of output pixel
    # m = h*Wp + w lives at flat row m + dy*Wp + dx.  Concatenating the nine
    # shifted row-slices on the lane axis gives one (bn*nrows, 9*Cin) operand,
    # so the whole conv is a single MXU matmul with K = 9*Cin instead of nine
    # tiny-K matmuls plus eight full-size f32 accumulate passes.
    taps = [pad_ref[:, dy * Wp + dx:dy * Wp + dx + nrows, :]
            for dy in range(3) for dx in range(3)]
    lhs = jnp.concatenate(taps, axis=-1).reshape(bn * nrows, 9 * Cin)
    y = jnp.dot(lhs, w_ref[...], preferred_element_type=jnp.float32)

    y = jnp.maximum(y + b_ref[...], 0.0)                          # bias + ReLU

    # Fused 2x2 max-pool (stride 2).  Flat columns w >= W are halo garbage and
    # are dropped by the final slice.
    #  (a) columns: flat rows (2m, 2m+1) are horizontal neighbours (Wp even,
    #      nrows even, so pairs never straddle rows or images).
    y = jnp.max(y.reshape(bn * nrows // 2, 2, Cout), axis=1)      # (bn*H*half, C)
    #  (b) rows: slab row i now holds image rows 2i | 2i+1 side by side.
    y = y.reshape(bn, Ho, Wp, Cout)
    y = jnp.maximum(y[:, :, :Wo, :], y[:, :, half:half + Wo, :])  # (bn,Ho,Wo,C)

    # Lane-dense store: (bn, Ho, Wo*Cout) -> 256/512-wide unmasked stores.
    o_ref[...] = y.reshape(bn, Ho, Wo * Cout).astype(o_ref.dtype)


def conv3x3_relu_maxpool(x, w_hwio, b, *, bn=8):
    # x: (N, H, W, Cin), H and W even  ->  (N, H//2, W//2, Cout) bf16
    N, H, W, Cin = x.shape
    assert H % 2 == 0 and W % 2 == 0, "2x2/2 max-pool needs even H and W"
    Cout = w_hwio.shape[-1]
    Ho, Wo = H // 2, W // 2
    Wp = W + 2
    Lp = (H + 3) * Wp      # flat padded length; covers every shifted tap slice

    bn = min(bn, N)
    Np = pl.cdiv(N, bn) * bn
    xb = x.astype(jnp.bfloat16)
    if Np != N:
        xb = jnp.pad(xb, ((0, Np - N), (0, 0), (0, 0), (0, 0)))
    wf = w_hwio.astype(jnp.bfloat16).reshape(9 * Cin, Cout)
    b2 = b.astype(jnp.float32).reshape(1, Cout)

    kern = partial(_conv_relu_pool_kernel, H=H, W=W, bn=bn)
    # TODO(synk): for large images, tile the row dimension with halo'd blocks
    # (re-budget for v7x's 64 MiB VMEM) and pack small-Cin inputs lane-dense;
    # unnecessary at these sizes (per-step working set is a few MB).
    out = pl.pallas_call(
        kern,
        out_shape=jax.ShapeDtypeStruct((Np, Ho, Wo * Cout), jnp.bfloat16),
        grid_spec=pltpu.PrefetchScalarGridSpec(
            num_scalar_prefetch=0,
            grid=(Np // bn,),
            in_specs=[
                pl.BlockSpec((bn, H, W, Cin), lambda n: (n, 0, 0, 0)),
                pl.BlockSpec((9 * Cin, Cout), lambda n: (0, 0)),
                pl.BlockSpec((1, Cout), lambda n: (0, 0)),
            ],
            out_specs=pl.BlockSpec((bn, Ho, Wo * Cout), lambda n: (n, 0, 0)),
            scratch_shapes=[pltpu.VMEM((bn, Lp, Cin), jnp.bfloat16)],
        ),
        compiler_params=pltpu.CompilerParams(
            dimension_semantics=("parallel",),
            vmem_limit_bytes=32 * 1024 * 1024),
    )(xb, wf, b2)
    if Np != N:
        out = out[:N]
    return out.reshape(N, Ho, Wo, Cout)       # free HBM-side reshape


# ---------------------------------------------------------------------------
# AdaptiveAvgPool2d (PyTorch semantics) — XLA-glue fallback only.  For the
# shipped config the pool is pure replication and is folded into w_fc1.
# ---------------------------------------------------------------------------
# TODO(synk): general adaptive avg-pool stays as XLA glue; the window
# arithmetic is static and the tensors are a few KB per image.
def adaptive_avg_pool_2d(x, out_size):
    # x: (N, H, W, C) -> (N, out_size, out_size, C)
    def pool_axis(a, axis):
        in_size = a.shape[axis]
        pieces = []
        for i in range(out_size):
            s = (i * in_size) // out_size
            e = -((-(i + 1) * in_size) // out_size)  # ceil((i+1)*in/out)
            pieces.append(jnp.mean(jax.lax.slice_in_dim(a, s, e, axis=axis),
                                   axis=axis, keepdims=True))
        return jnp.concatenate(pieces, axis=axis)

    return pool_axis(pool_axis(x, 1), 2)


# ---------------------------------------------------------------------------
# fc1 + ReLU + fc2 fused MLP kernel (K-tiled, bf16 MXU, f32 accumulate)
# ---------------------------------------------------------------------------
def _mlp_kernel(x_ref, w1_ref, b1_ref, w2_ref, b2_ref, o_ref, acc_ref):
    k = pl.program_id(1)

    @pl.when(k == 0)
    def _():
        acc_ref[...] = jnp.zeros_like(acc_ref)

    acc_ref[...] += jnp.dot(x_ref[...], w1_ref[...],
                            preferred_element_type=jnp.float32)

    @pl.when(k == pl.num_programs(1) - 1)
    def _():
        h = jnp.maximum(acc_ref[...] + b1_ref[...], 0.0)        # fc1 bias+ReLU
        o = jnp.dot(h.astype(jnp.bfloat16), w2_ref[...],
                    preferred_element_type=jnp.float32) + b2_ref[...]
        o_ref[...] = o.astype(o_ref.dtype)


def mlp(x, w1, b1, w2, b2, *, tk=8192, bn=256):
    # x: (N, K) -> logits (N, ncls).  fc1 K-tiled on the grid with a VMEM f32
    # accumulator; logits padded to a 128-lane slab and sliced outside.
    N, K = x.shape
    Hdim = w1.shape[1]                       # 128
    ncls = w2.shape[1]
    P = max(128, pl.cdiv(ncls, 128) * 128)   # lane-padded logits width

    # bn must be a multiple of 8 (tile constraint); w1 is re-streamed once per
    # batch block, so keep bn as large as the batch allows.
    # TODO(synk): at tiny batch (a single batch block) v7x's second TensorCore
    # idles on the MLP; split K across cores with a partial-sum combine if the
    # MLP ever dominates.
    bn = min(bn, max(8, pl.cdiv(N, 8) * 8))
    Np = pl.cdiv(N, bn) * bn
    tk = min(tk, K)
    Kp = pl.cdiv(K, tk) * tk

    xb = x.astype(jnp.bfloat16)
    if (Np, Kp) != (N, K):
        xb = jnp.pad(xb, ((0, Np - N), (0, Kp - K)))
    w1b = w1.astype(jnp.bfloat16)
    if Kp != K:
        w1b = jnp.pad(w1b, ((0, Kp - K), (0, 0)))
    w2b = jnp.pad(w2.astype(jnp.bfloat16), ((0, 0), (0, P - ncls)))
    b1r = b1.astype(jnp.float32).reshape(1, Hdim)
    b2r = jnp.pad(b2.astype(jnp.float32), ((0, P - ncls),)).reshape(1, P)

    out = pl.pallas_call(
        _mlp_kernel,
        out_shape=jax.ShapeDtypeStruct((Np, P), jnp.float32),
        grid_spec=pltpu.PrefetchScalarGridSpec(
            num_scalar_prefetch=0,
            grid=(Np // bn, Kp // tk),
            in_specs=[
                pl.BlockSpec((bn, tk), lambda i, k: (i, k)),
                pl.BlockSpec((tk, Hdim), lambda i, k: (k, 0)),
                pl.BlockSpec((1, Hdim), lambda i, k: (0, 0)),
                pl.BlockSpec((Hdim, P), lambda i, k: (0, 0)),
                pl.BlockSpec((1, P), lambda i, k: (0, 0)),
            ],
            out_specs=pl.BlockSpec((bn, P), lambda i, k: (i, 0)),
            scratch_shapes=[pltpu.VMEM((bn, Hdim), jnp.float32)],
        ),
        compiler_params=pltpu.CompilerParams(
            dimension_semantics=("parallel", "arbitrary"),
            vmem_limit_bytes=32 * 1024 * 1024),
    )(xb, w1b, b1r, w2b, b2r)
    return out[:N, :ncls]


# ---------------------------------------------------------------------------
# Full forward pass (mirrors CustomCNN.forward)
# ---------------------------------------------------------------------------
def custom_cnn_forward(x_nchw, params):
    # x_nchw: (N, Cin, H, W) float32, same convention as the PyTorch module.
    x = jnp.transpose(x_nchw, (0, 2, 3, 1))                       # -> NHWC
    x = conv3x3_relu_maxpool(x, params["w_conv1"], params["b_conv1"])
    x = conv3x3_relu_maxpool(x, params["w_conv2"], params["b_conv2"])
    n, h, w, c = x.shape
    if h * w * c != params["w_fc1"].shape[0]:
        # Fallback: AdaptiveAvgPool2d(16) was not foldable into w_fc1.
        x = adaptive_avg_pool_2d(x, 16)
    # NHWC flatten only; the NCHW permutation (and, when applicable, the
    # replication pool) was folded into w_fc1 by prepare_params.
    x = x.reshape(n, -1)
    return mlp(x, params["w_fc1"], params["b_fc1"],
               params["w_fc2"], params["b_fc2"])


# ---------------------------------------------------------------------------
# Parameters: torch-layout init + one-time kernel-ready transform
# ---------------------------------------------------------------------------
def init_params(key, input_channels, num_classes, number_channels=64):
    # Torch-layout parameters: conv (O, I, 3, 3), linear (out, in).
    ks = jax.random.split(key, 8)

    def u(k, shape, fan_in):
        bound = 1.0 / (float(fan_in) ** 0.5)
        return jax.random.uniform(k, shape, jnp.float32, -bound, bound)

    p = {}
    p["w_conv1"] = u(ks[0], (32, input_channels, 3, 3), 9 * input_channels)
    p["b_conv1"] = u(ks[1], (32,), 9 * input_channels)
    p["w_conv2"] = u(ks[2], (64, 32, 3, 3), 9 * 32)
    p["b_conv2"] = u(ks[3], (64,), 9 * 32)
    fc1_in = number_channels * 16 * 16
    p["w_fc1"] = u(ks[4], (128, fc1_in), fc1_in)
    p["b_fc1"] = u(ks[5], (128,), fc1_in)
    p["w_fc2"] = u(ks[6], (num_classes, 128), 128)
    p["b_fc2"] = u(ks[7], (num_classes,), 128)
    return p


def prepare_params(raw, input_hw):
    # One-time transform of torch-layout params into kernel-ready params:
    #  * conv weights -> HWIO bf16 (wrapper flattens to (9*Cin, Cout))
    #  * w_fc1 rows permuted from NCHW-flat to NHWC-flat order, and (when the
    #    AdaptiveAvgPool2d(16) input size divides 16 -> pure replication) the
    #    pool's replication sum folded in, shrinking fc1's K.
    H, W = input_hw
    assert H % 4 == 0 and W % 4 == 0, "two 2x2 pools need H, W divisible by 4"
    Hs, Ws = H // 4, W // 4              # spatial size entering the avg pool
    C = raw["w_conv2"].shape[0]          # post-conv2 channels (64)
    assert raw["w_fc1"].shape[1] == C * 16 * 16, (
        "fc1 is only shape-consistent when number_channels == post-conv2 "
        "channels (64)")

    p = {}
    p["w_conv1"] = jnp.transpose(raw["w_conv1"], (2, 3, 1, 0)).astype(jnp.bfloat16)
    p["b_conv1"] = raw["b_conv1"].astype(jnp.float32)
    p["w_conv2"] = jnp.transpose(raw["w_conv2"], (2, 3, 1, 0)).astype(jnp.bfloat16)
    p["b_conv2"] = raw["b_conv2"].astype(jnp.float32)

    w1t = raw["w_fc1"].astype(jnp.float32).T             # (C*16*16, 128), NCHW-flat rows
    if 16 % Hs == 0 and 16 % Ws == 0:
        rh, rw = 16 // Hs, 16 // Ws
        w1 = w1t.reshape(C, Hs, rh, Ws, rw, 128).sum(axis=(2, 4))  # (C, Hs, Ws, 128)
    else:
        w1 = w1t.reshape(C, 16, 16, 128)                 # keep runtime pool
    w1 = jnp.transpose(w1, (1, 2, 0, 3)).reshape(-1, 128)  # NHWC-flat rows
    p["w_fc1"] = w1.astype(jnp.bfloat16)
    p["b_fc1"] = raw["b_fc1"].astype(jnp.float32)
    p["w_fc2"] = raw["w_fc2"].astype(jnp.float32).T.astype(jnp.bfloat16)  # (128, ncls)
    p["b_fc2"] = raw["b_fc2"].astype(jnp.float32)
    return p


# ---------------------------------------------------------------------------
# Pure-JAX f32 reference (PyTorch semantics, incl. NCHW flatten) for checking
# ---------------------------------------------------------------------------
def _ref_conv_relu_pool(x_nhwc, w_oihw, b):
    w = jnp.transpose(w_oihw, (2, 3, 1, 0)).astype(jnp.float32)   # OIHW -> HWIO
    y = jax.lax.conv_general_dilated(
        x_nhwc, w, window_strides=(1, 1), padding=((1, 1), (1, 1)),
        dimension_numbers=("NHWC", "HWIO", "NHWC"))
    y = jnp.maximum(y + b.astype(jnp.float32), 0.0)
    return jax.lax.reduce_window(y, -jnp.inf, jax.lax.max,
                                 (1, 2, 2, 1), (1, 2, 2, 1), "VALID")


def reference_forward(x_nchw, raw):
    x = jnp.transpose(x_nchw, (0, 2, 3, 1))
    x = _ref_conv_relu_pool(x, raw["w_conv1"], raw["b_conv1"])
    x = _ref_conv_relu_pool(x, raw["w_conv2"], raw["b_conv2"])
    x = adaptive_avg_pool_2d(x, 16)
    n = x.shape[0]
    x = jnp.transpose(x, (0, 3, 1, 2)).reshape(n, -1)             # NCHW flatten
    h = jnp.maximum(x @ raw["w_fc1"].astype(jnp.float32).T + raw["b_fc1"], 0.0)
    return h @ raw["w_fc2"].astype(jnp.float32).T + raw["b_fc2"]


if __name__ == "__main__":
    key = jax.random.PRNGKey(0)
    pkey, xkey = jax.random.split(key)

    N, Cin, H, W = 2, 4, 16, 16
    num_classes = 10
    raw = init_params(pkey, Cin, num_classes, number_channels=64)
    params = prepare_params(raw, (H, W))          # one-time weight transform
    x = jax.random.normal(xkey, (N, Cin, H, W), jnp.float32)

    out = jax.jit(custom_cnn_forward)(x, params)
    out = jax.block_until_ready(out)
    assert out.shape == (N, num_classes)
    assert bool(jnp.all(jnp.isfinite(out)))

    # f32 reference of the PyTorch module (validates the bf16 Pallas path and
    # the pool/flatten weight folds).  Tolerance is loose for mixed precision.
    ref = reference_forward(x, raw)
    assert bool(jnp.allclose(out, ref, atol=5e-2, rtol=5e-2)), (
        "max abs err %f" % float(jnp.max(jnp.abs(out - ref))))

    print("KERNEL_OK")
</pallas_src>

<mosaic_0001>
module attributes {stable_mosaic.version = 11 : i64} {
  func.func @_conv_relu_pool_kernel(%arg0: i32, %arg1: memref<2x16x16x4xbf16, #tpu.memory_space<vmem>>, %arg2: memref<36x32xbf16, #tpu.memory_space<vmem>>, %arg3: memref<1x32xf32, #tpu.memory_space<vmem>>, %arg4: memref<2x8x256xbf16, #tpu.memory_space<vmem>>, %arg5: memref<2x342x4xbf16, #tpu.memory_space<vmem>>) attributes {dimension_semantics = [#tpu.dimension_semantics<parallel>], iteration_bounds = array<i64: 1>, scalar_prefetch = 0 : i64, scratch_operands = 1 : i64, tpu.core_type = #tpu.core_type<tc>, window_params = [{transform_indices = @transform_0, window_bounds = array<i64: 2, 16, 16, 4>}, {pipeline_mode = #tpu.pipeline_mode<synchronous>, transform_indices = @transform_1, window_bounds = array<i64: 36, 32>}, {pipeline_mode = #tpu.pipeline_mode<synchronous>, transform_indices = @transform_2, window_bounds = array<i64: 1, 32>}, {transform_indices = @transform_3, window_bounds = array<i64: 2, 8, 256>}]} {
    %cst = arith.constant 0.000000e+00 : bf16
    %0 = vector.broadcast %cst : bf16 to vector<2x342x4xbf16>
    %c0 = arith.constant 0 : index
    %c0_0 = arith.constant 0 : index
    %c0_1 = arith.constant 0 : index
    %1 = vector.load %arg5[%c0, %c0_0, %c0_1] : memref<2x342x4xbf16, #tpu.memory_space<vmem>>, vector<2x342x4xbf16>
    tpu.vector_store %arg5[%c0, %c0_0, %c0_1], %0 {strides = array<i32>} : memref<2x342x4xbf16, #tpu.memory_space<vmem>>, vector<2x342x4xbf16>,
    %c0_2 = arith.constant 0 : index
    %c0_3 = arith.constant 0 : index
    %c0_4 = arith.constant 0 : index
    %c0_5 = arith.constant 0 : index
    %2 = vector.load %arg1[%c0_2, %c0_3, %c0_4, %c0_5] : memref<2x16x16x4xbf16, #tpu.memory_space<vmem>>, vector<2x1x16x4xbf16>
    %3 = vector.shape_cast %2 : vector<2x1x16x4xbf16> to vector<2x16x4xbf16>
    %c0_6 = arith.constant 0 : index
    %c19 = arith.constant 19 : index
    %c0_7 = arith.constant 0 : index
    %4 = vector.load %arg5[%c0_6, %c19, %c0_7] : memref<2x342x4xbf16, #tpu.memory_space<vmem>>, vector<2x16x4xbf16>
    tpu.vector_store %arg5[%c0_6, %c19, %c0_7], %3 {strides = array<i32>} : memref<2x342x4xbf16, #tpu.memory_space<vmem>>, vector<2x16x4xbf16>,
    %c0_8 = arith.constant 0 : index
    %c1 = arith.constant 1 : index
    %c0_9 = arith.constant 0 : index
    %c0_10 = arith.constant 0 : index
    %5 = vector.load %arg1[%c0_8, %c1, %c0_9, %c0_10] : memref<2x16x16x4xbf16, #tpu.memory_space<vmem>>, vector<2x1x16x4xbf16>
    %6 = vector.shape_cast %5 : vector<2x1x16x4xbf16> to vector<2x16x4xbf16>
    %c0_11 = arith.constant 0 : index
    %c37 = arith.constant 37 : index
    %c0_12 = arith.constant 0 : index
    %7 = vector.load %arg5[%c0_11, %c37, %c0_12] : memref<2x342x4xbf16, #tpu.memory_space<vmem>>, vector<2x16x4xbf16>
    tpu.vector_store %arg5[%c0_11, %c37, %c0_12], %6 {strides = array<i32>} : memref<2x342x4xbf16, #tpu.memory_space<vmem>>, vector<2x16x4xbf16>,
    %c0_13 = arith.constant 0 : index
    %c2 = arith.constant 2 : index
    %c0_14 = arith.constant 0 : index
    %c0_15 = arith.constant 0 : index
    %8 = vector.load %arg1[%c0_13, %c2, %c0_14, %c0_15] : memref<2x16x16x4xbf16, #tpu.memory_space<vmem>>, vector<2x1x16x4xbf16>
    %9 = vector.shape_cast %8 : vector<2x1x16x4xbf16> to vector<2x16x4xbf16>
    %c0_16 = arith.constant 0 : index
    %c55 = arith.constant 55 : index
    %c0_17 = arith.constant 0 : index
    %10 = vector.load %arg5[%c0_16, %c55, %c0_17] : memref<2x342x4xbf16, #tpu.memory_space<vmem>>, vector<2x16x4xbf16>
    tpu.vector_store %arg5[%c0_16, %c55, %c0_17], %9 {strides = array<i32>} : memref<2x342x4xbf16, #tpu.memory_space<vmem>>, vector<2x16x4xbf16>,
    %c0_18 = arith.constant 0 : index
    %c3 = arith.constant 3 : index
    %c0_19 = arith.constant 0 : index
    %c0_20 = arith.constant 0 : index
    %11 = vector.load %arg1[%c0_18, %c3, %c0_19, %c0_20] : memref<2x16x16x4xbf16, #tpu.memory_space<vmem>>, vector<2x1x16x4xbf16>
    %12 = vector.shape_cast %11 : vector<2x1x16x4xbf16> to vector<2x16x4xbf16>
    %c0_21 = arith.constant 0 : index
    %c73 = arith.constant 73 : index
    %c0_22 = arith.constant 0 : index
    %13 = vector.load %arg5[%c0_21, %c73, %c0_22] : memref<2x342x4xbf16, #tpu.memory_space<vmem>>, vector<2x16x4xbf16>
    tpu.vector_store %arg5[%c0_21, %c73, %c0_22], %12 {strides = array<i32>} : memref<2x342x4xbf16, #tpu.memory_space<vmem>>, vector<2x16x4xbf16>,
    %c0_23 = arith.constant 0 : index
    %c4 = arith.constant 4 : index
    %c0_24 = arith.constant 0 : index
    %c0_25 = arith.constant 0 : index
    %14 = vector.load %arg1[%c0_23, %c4, %c0_24, %c0_25] : memref<2x16x16x4xbf16, #tpu.memory_space<vmem>>, vector<2x1x16x4xbf16>
    %15 = vector.shape_cast %14 : vector<2x1x16x4xbf16> to vector<2x16x4xbf16>
    %c0_26 = arith.constant 0 : index
    %c91 = arith.constant 91 : index
    %c0_27 = arith.constant 0 : index
    %16 = vector.load %arg5[%c0_26, %c91, %c0_27] : memref<2x342x4xbf16, #tpu.memory_space<vmem>>, vector<2x16x4xbf16>
    tpu.vector_store %arg5[%c0_26, %c91, %c0_27], %15 {strides = array<i32>} : memref<2x342x4xbf16, #tpu.memory_space<vmem>>, vector<2x16x4xbf16>,
    %c0_28 = arith.constant 0 : index
    %c5 = arith.constant 5 : index
    %c0_29 = arith.constant 0 : index
    %c0_30 = arith.constant 0 : index
    %17 = vector.load %arg1[%c0_28, %c5, %c0_29, %c0_30] : memref<2x16x16x4xbf16, #tpu.memory_space<vmem>>, vector<2x1x16x4xbf16>
    %18 = vector.shape_cast %17 : vector<2x1x16x4xbf16> to vector<2x16x4xbf16>
    %c0_31 = arith.constant 0 : index
    %c109 = arith.constant 109 : index
    %c0_32 = arith.constant 0 : index
    %19 = vector.load %arg5[%c0_31, %c109, %c0_32] : memref<2x342x4xbf16, #tpu.memory_space<vmem>>, vector<2x16x4xbf16>
    tpu.vector_store %arg5[%c0_31, %c109, %c0_32], %18 {strides = array<i32>} : memref<2x342x4xbf16, #tpu.memory_space<vmem>>, vector<2x16x4xbf16>,
    %c0_33 = arith.constant 0 : index
    %c6 = arith.constant 6 : index
    %c0_34 = arith.constant 0 : index
    %c0_35 = arith.constant 0 : index
    %20 = vector.load %arg1[%c0_33, %c6, %c0_34, %c0_35] : memref<2x16x16x4xbf16, #tpu.memory_space<vmem>>, vector<2x1x16x4xbf16>
    %21 = vector.shape_cast %20 : vector<2x1x16x4xbf16> to vector<2x16x4xbf16>
    %c0_36 = arith.constant 0 : index
    %c127 = arith.constant 127 : index
    %c0_37 = arith.constant 0 : index
    %22 = vector.load %arg5[%c0_36, %c127, %c0_37] : memref<2x342x4xbf16, #tpu.memory_space<vmem>>, vector<2x16x4xbf16>
    tpu.vector_store %arg5[%c0_36, %c127, %c0_37], %21 {strides = array<i32>} : memref<2x342x4xbf16, #tpu.memory_space<vmem>>, vector<2x16x4xbf16>,
    %c0_38 = arith.constant 0 : index
    %c7 = arith.constant 7 : index
    %c0_39 = arith.constant 0 : index
    %c0_40 = arith.constant 0 : index
    %23 = vector.load %arg1[%c0_38, %c7, %c0_39, %c0_40] : memref<2x16x16x4xbf16, #tpu.memory_space<vmem>>, vector<2x1x16x4xbf16>
    %24 = vector.shape_cast %23 : vector<2x1x16x4xbf16> to vector<2x16x4xbf16>
    %c0_41 = arith.constant 0 : index
    %c145 = arith.constant 145 : index
    %c0_42 = arith.constant 0 : index
    %25 = vector.load %arg5[%c0_41, %c145, %c0_42] : memref<2x342x4xbf16, #tpu.memory_space<vmem>>, vector<2x16x4xbf16>
    tpu.vector_store %arg5[%c0_41, %c145, %c0_42], %24 {strides = array<i32>} : memref<2x342x4xbf16, #tpu.memory_space<vmem>>, vector<2x16x4xbf16>,
    %c0_43 = arith.constant 0 : index
    %c8 = arith.constant 8 : index
    %c0_44 = arith.constant 0 : index
    %c0_45 = arith.constant 0 : index
    %26 = vector.load %arg1[%c0_43, %c8, %c0_44, %c0_45] : memref<2x16x16x4xbf16, #tpu.memory_space<vmem>>, vector<2x1x16x4xbf16>
    %27 = vector.shape_cast %26 : vector<2x1x16x4xbf16> to vector<2x16x4xbf16>
    %c0_46 = arith.constant 0 : index
    %c163 = arith.constant 163 : index
    %c0_47 = arith.constant 0 : index
    %28 = vector.load %arg5[%c0_46, %c163, %c0_47] : memref<2x342x4xbf16, #tpu.memory_space<vmem>>, vector<2x16x4xbf16>
    tpu.vector_store %arg5[%c0_46, %c163, %c0_47], %27 {strides = array<i32>} : memref<2x342x4xbf16, #tpu.memory_space<vmem>>, vector<2x16x4xbf16>,
    %c0_48 = arith.constant 0 : index
    %c9 = arith.constant 9 : index
    %c0_49 = arith.constant 0 : index
    %c0_50 = arith.constant 0 : index
    %29 = vector.load %arg1[%c0_48, %c9, %c0_49, %c0_50] : memref<2x16x16x4xbf16, #tpu.memory_space<vmem>>, vector<2x1x16x4xbf16>
    %30 = vector.shape_cast %29 : vector<2x1x16x4xbf16> to vector<2x16x4xbf16>
    %c0_51 = arith.constant 0 : index
    %c181 = arith.constant 181 : index
    %c0_52 = arith.constant 0 : index
    %31 = vector.load %arg5[%c0_51, %c181, %c0_52] : memref<2x342x4xbf16, #tpu.memory_space<vmem>>, vector<2x16x4xbf16>
    tpu.vector_store %arg5[%c0_51, %c181, %c0_52], %30 {strides = array<i32>} : memref<2x342x4xbf16, #tpu.memory_space<vmem>>, vector<2x16x4xbf16>,
    %c0_53 = arith.constant 0 : index
    %c10 = arith.constant 10 : index
    %c0_54 = arith.constant 0 : index
    %c0_55 = arith.constant 0 : index
    %32 = vector.load %arg1[%c0_53, %c10, %c0_54, %c0_55] : memref<2x16x16x4xbf16, #tpu.memory_space<vmem>>, vector<2x1x16x4xbf16>
    %33 = vector.shape_cast %32 : vector<2x1x16x4xbf16> to vector<2x16x4xbf16>
    %c0_56 = arith.constant 0 : index
    %c199 = arith.constant 199 : index
    %c0_57 = arith.constant 0 : index
    %34 = vector.load %arg5[%c0_56, %c199, %c0_57] : memref<2x342x4xbf16, #tpu.memory_space<vmem>>, vector<2x16x4xbf16>
    tpu.vector_store %arg5[%c0_56, %c199, %c0_57], %33 {strides = array<i32>} : memref<2x342x4xbf16, #tpu.memory_space<vmem>>, vector<2x16x4xbf16>,
    %c0_58 = arith.constant 0 : index
    %c11 = arith.constant 11 : index
    %c0_59 = arith.constant 0 : index
    %c0_60 = arith.constant 0 : index
    %35 = vector.load %arg1[%c0_58, %c11, %c0_59, %c0_60] : memref<2x16x16x4xbf16, #tpu.memory_space<vmem>>, vector<2x1x16x4xbf16>
    %36 = vector.shape_cast %35 : vector<2x1x16x4xbf16> to vector<2x16x4xbf16>
    %c0_61 = arith.constant 0 : index
    %c217 = arith.constant 217 : index
    %c0_62 = arith.constant 0 : index
    %37 = vector.load %arg5[%c0_61, %c217, %c0_62] : memref<2x342x4xbf16, #tpu.memory_space<vmem>>, vector<2x16x4xbf16>
    tpu.vector_store %arg5[%c0_61, %c217, %c0_62], %36 {strides = array<i32>} : memref<2x342x4xbf16, #tpu.memory_space<vmem>>, vector<2x16x4xbf16>,
    %c0_63 = arith.constant 0 : index
    %c12 = arith.constant 12 : index
    %c0_64 = arith.constant 0 : index
    %c0_65 = arith.constant 0 : index
    %38 = vector.load %arg1[%c0_63, %c12, %c0_64, %c0_65] : memref<2x16x16x4xbf16, #tpu.memory_space<vmem>>, vector<2x1x16x4xbf16>
    %39 = vector.shape_cast %38 : vector<2x1x16x4xbf16> to vector<2x16x4xbf16>
    %c0_66 = arith.constant 0 : index
    %c235 = arith.constant 235 : index
    %c0_67 = arith.constant 0 : index
    %40 = vector.load %arg5[%c0_66, %c235, %c0_67] : memref<2x342x4xbf16, #tpu.memory_space<vmem>>, vector<2x16x4xbf16>
    tpu.vector_store %arg5[%c0_66, %c235, %c0_67], %39 {strides = array<i32>} : memref<2x342x4xbf16, #tpu.memory_space<vmem>>, vector<2x16x4xbf16>,
    %c0_68 = arith.constant 0 : index
    %c13 = arith.constant 13 : index
    %c0_69 = arith.constant 0 : index
    %c0_70 = arith.constant 0 : index
    %41 = vector.load %arg1[%c0_68, %c13, %c0_69, %c0_70] : memref<2x16x16x4xbf16, #tpu.memory_space<vmem>>, vector<2x1x16x4xbf16>
    %42 = vector.shape_cast %41 : vector<2x1x16x4xbf16> to vector<2x16x4xbf16>
    %c0_71 = arith.constant 0 : index
    %c253 = arith.constant 253 : index
    %c0_72 = arith.constant 0 : index
    %43 = vector.load %arg5[%c0_71, %c253, %c0_72] : memref<2x342x4xbf16, #tpu.memory_space<vmem>>, vector<2x16x4xbf16>
    tpu.vector_store %arg5[%c0_71, %c253, %c0_72], %42 {strides = array<i32>} : memref<2x342x4xbf16, #tpu.memory_space<vmem>>, vector<2x16x4xbf16>,
    %c0_73 = arith.constant 0 : index
    %c14 = arith.constant 14 : index
    %c0_74 = arith.constant 0 : index
    %c0_75 = arith.constant 0 : index
    %44 = vector.load %arg1[%c0_73, %c14, %c0_74, %c0_75] : memref<2x16x16x4xbf16, #tpu.memory_space<vmem>>, vector<2x1x16x4xbf16>
    %45 = vector.shape_cast %44 : vector<2x1x16x4xbf16> to vector<2x16x4xbf16>
    %c0_76 = arith.constant 0 : index
    %c271 = arith.constant 271 : index
    %c0_77 = arith.constant 0 : index
    %46 = vector.load %arg5[%c0_76, %c271, %c0_77] : memref<2x342x4xbf16, #tpu.memory_space<vmem>>, vector<2x16x4xbf16>
    tpu.vector_store %arg5[%c0_76, %c271, %c0_77], %45 {strides = array<i32>} : memref<2x342x4xbf16, #tpu.memory_space<vmem>>, vector<2x16x4xbf16>,
    %c0_78 = arith.constant 0 : index
    %c15 = arith.constant 15 : index
    %c0_79 = arith.constant 0 : index
    %c0_80 = arith.constant 0 : index
    %47 = vector.load %arg1[%c0_78, %c15, %c0_79, %c0_80] : memref<2x16x16x4xbf16, #tpu.memory_space<vmem>>, vector<2x1x16x4xbf16>
    %48 = vector.shape_cast %47 : vector<2x1x16x4xbf16> to vector<2x16x4xbf16>
    %c0_81 = arith.constant 0 : index
    %c289 = arith.constant 289 : index
    %c0_82 = arith.constant 0 : index
    %49 = vector.load %arg5[%c0_81, %c289, %c0_82] : memref<2x342x4xbf16, #tpu.memory_space<vmem>>, vector<2x16x4xbf16>
    tpu.vector_store %arg5[%c0_81, %c289, %c0_82], %48 {strides = array<i32>} : memref<2x342x4xbf16, #tpu.memory_space<vmem>>, vector<2x16x4xbf16>,
    %c0_83 = arith.constant 0 : index
    %c0_84 = arith.constant 0 : index
    %c0_85 = arith.constant 0 : index
    %50 = vector.load %arg5[%c0_83, %c0_84, %c0_85] : memref<2x342x4xbf16, #tpu.memory_space<vmem>>, vector<2x288x4xbf16>
    %c0_86 = arith.constant 0 : index
    %c1_87 = arith.constant 1 : index
    %c0_88 = arith.constant 0 : index
    %51 = vector.load %arg5[%c0_86, %c1_87, %c0_88] : memref<2x342x4xbf16, #tpu.memory_space<vmem>>, vector<2x288x4xbf16>
    %c0_89 = arith.constant 0 : index
    %c2_90 = arith.constant 2 : index
    %c0_91 = arith.constant 0 : index
    %52 = vector.load %arg5[%c0_89, %c2_90, %c0_91] : memref<2x342x4xbf16, #tpu.memory_space<vmem>>, vector<2x288x4xbf16>
    %c0_92 = arith.constant 0 : index
    %c18 = arith.constant 18 : index
    %c0_93 = arith.constant 0 : index
    %53 = vector.load %arg5[%c0_92, %c18, %c0_93] : memref<2x342x4xbf16, #tpu.memory_space<vmem>>, vector<2x288x4xbf16>
    %c0_94 = arith.constant 0 : index
    %c19_95 = arith.constant 19 : index
    %c0_96 = arith.constant 0 : index
    %54 = vector.load %arg5[%c0_94, %c19_95, %c0_96] : memref<2x342x4xbf16, #tpu.memory_space<vmem>>, vector<2x288x4xbf16>
    %c0_97 = arith.constant 0 : index
    %c20 = arith.constant 20 : index
    %c0_98 = arith.constant 0 : index
    %55 = vector.load %arg5[%c0_97, %c20, %c0_98] : memref<2x342x4xbf16, #tpu.memory_space<vmem>>, vector<2x288x4xbf16>
    %c0_99 = arith.constant 0 : index
    %c36 = arith.constant 36 : index
    %c0_100 = arith.constant 0 : index
    %56 = vector.load %arg5[%c0_99, %c36, %c0_100] : memref<2x342x4xbf16, #tpu.memory_space<vmem>>, vector<2x288x4xbf16>
    %c0_101 = arith.constant 0 : index
    %c37_102 = arith.constant 37 : index
    %c0_103 = arith.constant 0 : index
    %57 = vector.load %arg5[%c0_101, %c37_102, %c0_103] : memref<2x342x4xbf16, #tpu.memory_space<vmem>>, vector<2x288x4xbf16>
    %c0_104 = arith.constant 0 : index
    %c38 = arith.constant 38 : index
    %c0_105 = arith.constant 0 : index
    %58 = vector.load %arg5[%c0_104, %c38, %c0_105] : memref<2x342x4xbf16, #tpu.memory_space<vmem>>, vector<2x288x4xbf16>
    %59 = tpu.concatenate %50, %51, %52, %53, %54, %55, %56, %57, %58 in 2 : vector<2x288x4xbf16>, vector<2x288x4xbf16>, vector<2x288x4xbf16>, vector<2x288x4xbf16>, vector<2x288x4xbf16>, vector<2x288x4xbf16>, vector<2x288x4xbf16>, vector<2x288x4xbf16>, vector<2x288x4xbf16> -> vector<2x288x36xbf16>
    %60 = vector.shape_cast %59 : vector<2x288x36xbf16> to vector<576x36xbf16>
    %c0_106 = arith.constant 0 : index
    %c0_107 = arith.constant 0 : index
    %61 = vector.load %arg2[%c0_106, %c0_107] : memref<36x32xbf16, #tpu.memory_space<vmem>>, vector<36x32xbf16>
    %cst_108 = arith.constant dense<0.000000e+00> : vector<576x32xf32>
    %62 = tpu.matmul %60, %61, %cst_108 {dimension_numbers = #tpu.dot_dimension_numbers<[1], [0], [0], [1], [0, 0, 1, 1], [], []>} : vector<576x36xbf16>, vector<36x32xbf16>, vector<576x32xf32> -> vector<576x32xf32>
    %c0_109 = arith.constant 0 : index
    %c0_110 = arith.constant 0 : index
    %63 = vector.load %arg3[%c0_109, %c0_110] : memref<1x32xf32, #tpu.memory_space<vmem>>, vector<1x32xf32>
    %64 = vector.broadcast %63 : vector<1x32xf32> to vector<576x32xf32>
    %65 = arith.addf %62, %64 : vector<576x32xf32>
    %cst_111 = arith.constant 0.000000e+00 : f32
    %66 = vector.broadcast %cst_111 : f32 to vector<576x32xf32>
    %67 = arith.maximumf %65, %66 : vector<576x32xf32>
    %68 = vector.shape_cast %67 : vector<576x32xf32> to vector<288x2x32xf32>
    %cst_112 = arith.constant dense<0xFF800000> : vector<288x32xf32>
    %69 = vector.multi_reduction <maximumf>, %68, %cst_112 [1] : vector<288x2x32xf32> to vector<288x32xf32>
    %70 = vector.shape_cast %69 : vector<288x32xf32> to vector<2x8x18x32xf32>
    %71 = vector.extract_strided_slice %70 {offsets = [0, 0, 0, 0], sizes = [2, 8, 8, 32], strides = [1, 1, 1, 1]} : vector<2x8x18x32xf32> to vector<2x8x8x32xf32>
    %72 = vector.extract_strided_slice %70 {offsets = [0, 0, 9, 0], sizes = [2, 8, 8, 32], strides = [1, 1, 1, 1]} : vector<2x8x18x32xf32> to vector<2x8x8x32xf32>
    %73 = arith.maximumf %71, %72 : vector<2x8x8x32xf32>
    %74 = vector.shape_cast %73 : vector<2x8x8x32xf32> to vector<2x8x256xf32>
    %75 = arith.truncf %74 : vector<2x8x256xf32> to vector<2x8x256xbf16>
    %c0_113 = arith.constant 0 : index
    %c0_114 = arith.constant 0 : index
    %c0_115 = arith.constant 0 : index
    %76 = vector.load %arg4[%c0_113, %c0_114, %c0_115] : memref<2x8x256xbf16, #tpu.memory_space<vmem>>, vector<2x8x256xbf16>
    tpu.vector_store %arg4[%c0_113, %c0_114, %c0_115], %75 {strides = array<i32>} : memref<2x8x256xbf16, #tpu.memory_space<vmem>>, vector<2x8x256xbf16>,
    return
  }
  func.func @transform_0(%arg0: i32) -> (i32, i32, i32, i32) {
    %c0_i32 = arith.constant 0 : i32
    %c0_i32_0 = arith.constant 0 : i32
    %c0_i32_1 = arith.constant 0 : i32
    %c0_i32_2 = arith.constant 0 : i32
    return %arg0, %c0_i32, %c0_i32_0, %c0_i32_1 : i32, i32, i32, i32
  }
  func.func @transform_1(%arg0: i32) -> (i32, i32) {
    %c0_i32 = arith.constant 0 : i32
    %c0_i32_0 = arith.constant 0 : i32
    %c0_i32_1 = arith.constant 0 : i32
    return %c0_i32, %c0_i32_0 : i32, i32
  }
  func.func @transform_2(%arg0: i32) -> (i32, i32) {
    %c0_i32 = arith.constant 0 : i32
    %c0_i32_0 = arith.constant 0 : i32
    %c0_i32_1 = arith.constant 0 : i32
    return %c0_i32, %c0_i32_0 : i32, i32
  }
  func.func @transform_3(%arg0: i32) -> (i32, i32, i32) {
    %c0_i32 = arith.constant 0 : i32
    %c0_i32_0 = arith.constant 0 : i32
    %c0_i32_1 = arith.constant 0 : i32
    return %arg0, %c0_i32, %c0_i32_0 : i32, i32, i32
  }
}

module attributes {stable_mosaic.version = 11 : i64} {
  func.func @_mlp_kernel(%arg0: i32, %arg1: i32, %arg2: memref<8x1024xbf16, #tpu.memory_space<vmem>>, %arg3: memref<1024x128xbf16, #tpu.memory_space<vmem>>, %arg4: memref<1x128xf32, #tpu.memory_space<vmem>>, %arg5: memref<128x128xbf16, #tpu.memory_space<vmem>>, %arg6: memref<1x128xf32, #tpu.memory_space<vmem>>, %arg7: memref<8x128xf32, #tpu.memory_space<vmem>>, %arg8: memref<8x128xf32, #tpu.memory_space<vmem>>) attributes {dimension_semantics = [#tpu.dimension_semantics<parallel>, #tpu.dimension_semantics<arbitrary>], iteration_bounds = array<i64: 1, 1>, scalar_prefetch = 0 : i64, scratch_operands = 1 : i64, tpu.core_type = #tpu.core_type<tc>, window_params = [{transform_indices = @transform_0, window_bounds = array<i64: 8, 1024>}, {transform_indices = @transform_1, window_bounds = array<i64: 1024, 128>}, {pipeline_mode = #tpu.pipeline_mode<synchronous>, transform_indices = @transform_2, window_bounds = array<i64: 1, 128>}, {pipeline_mode = #tpu.pipeline_mode<synchronous>, transform_indices = @transform_3, window_bounds = array<i64: 128, 128>}, {pipeline_mode = #tpu.pipeline_mode<synchronous>, transform_indices = @transform_4, window_bounds = array<i64: 1, 128>}, {transform_indices = @transform_5, window_bounds = array<i64: 8, 128>}]} {
    %c0_i32 = arith.constant 0 : i32
    %0 = arith.cmpi eq, %arg1, %c0_i32 : i32
    %1 = arith.extui %0 : i1 to i32
    %c0_i32_0 = arith.constant 0 : i32
    %2 = arith.cmpi ne, %1, %c0_i32_0 : i32
    scf.if %2 {
      %cst_10 = arith.constant 0.000000e+00 : f32
      %12 = vector.broadcast %cst_10 : f32 to vector<8x128xf32>
      %c0_11 = arith.constant 0 : index
      %c0_12 = arith.constant 0 : index
      %13 = vector.load %arg8[%c0_11, %c0_12] : memref<8x128xf32, #tpu.memory_space<vmem>>, vector<8x128xf32>
      tpu.vector_store %arg8[%c0_11, %c0_12], %12 {strides = array<i32>} : memref<8x128xf32, #tpu.memory_space<vmem>>, vector<8x128xf32>,
    } else {
    }
    %c0 = arith.constant 0 : index
    %c0_1 = arith.constant 0 : index
    %3 = vector.load %arg8[%c0, %c0_1] : memref<8x128xf32, #tpu.memory_space<vmem>>, vector<8x128xf32>
    %c0_2 = arith.constant 0 : index
    %c0_3 = arith.constant 0 : index
    %4 = vector.load %arg2[%c0_2, %c0_3] : memref<8x1024xbf16, #tpu.memory_space<vmem>>, vector<8x1024xbf16>
    %c0_4 = arith.constant 0 : index
    %c0_5 = arith.constant 0 : index
    %5 = vector.load %arg3[%c0_4, %c0_5] : memref<1024x128xbf16, #tpu.memory_space<vmem>>, vector<1024x128xbf16>
    %cst = arith.constant dense<0.000000e+00> : vector<8x128xf32>
    %6 = tpu.matmul %4, %5, %cst {dimension_numbers = #tpu.dot_dimension_numbers<[1], [0], [0], [1], [0, 0, 1, 1], [], []>} : vector<8x1024xbf16>, vector<1024x128xbf16>, vector<8x128xf32> -> vector<8x128xf32>
    %7 = arith.addf %3, %6 : vector<8x128xf32>
    %c0_6 = arith.constant 0 : index
    %c0_7 = arith.constant 0 : index
    %8 = vector.load %arg8[%c0_6, %c0_7] : memref<8x128xf32, #tpu.memory_space<vmem>>, vector<8x128xf32>
    tpu.vector_store %arg8[%c0_6, %c0_7], %7 {strides = array<i32>} : memref<8x128xf32, #tpu.memory_space<vmem>>, vector<8x128xf32>,
    %c0_i32_8 = arith.constant 0 : i32
    %9 = arith.cmpi eq, %arg1, %c0_i32_8 : i32
    %10 = arith.extui %9 : i1 to i32
    %c0_i32_9 = arith.constant 0 : i32
    %11 = arith.cmpi ne, %10, %c0_i32_9 : i32
    scf.if %11 {
      %c0_10 = arith.constant 0 : index
      %c0_11 = arith.constant 0 : index
      %12 = vector.load %arg8[%c0_10, %c0_11] : memref<8x128xf32, #tpu.memory_space<vmem>>, vector<8x128xf32>
      %c0_12 = arith.constant 0 : index
      %c0_13 = arith.constant 0 : index
      %13 = vector.load %arg4[%c0_12, %c0_13] : memref<1x128xf32, #tpu.memory_space<vmem>>, vector<1x128xf32>
      %14 = vector.broadcast %13 : vector<1x128xf32> to vector<8x128xf32>
      %15 = arith.addf %12, %14 : vector<8x128xf32>
      %cst_14 = arith.constant 0.000000e+00 : f32
      %16 = vector.broadcast %cst_14 : f32 to vector<8x128xf32>
      %17 = arith.maximumf %15, %16 : vector<8x128xf32>
      %18 = arith.truncf %17 : vector<8x128xf32> to vector<8x128xbf16>
      %c0_15 = arith.constant 0 : index
      %c0_16 = arith.constant 0 : index
      %19 = vector.load %arg5[%c0_15, %c0_16] : memref<128x128xbf16, #tpu.memory_space<vmem>>, vector<128x128xbf16>
      %cst_17 = arith.constant dense<0.000000e+00> : vector<8x128xf32>
      %20 = tpu.matmul %18, %19, %cst_17 {dimension_numbers = #tpu.dot_dimension_numbers<[1], [0], [0], [1], [0, 0, 1, 1], [], []>} : vector<8x128xbf16>, vector<128x128xbf16>, vector<8x128xf32> -> vector<8x128xf32>
      %c0_18 = arith.constant 0 : index
      %c0_19 = arith.constant 0 : index
      %21 = vector.load %arg6[%c0_18, %c0_19] : memref<1x128xf32, #tpu.memory_space<vmem>>, vector<1x128xf32>
      %22 = vector.broadcast %21 : vector<1x128xf32> to vector<8x128xf32>
      %23 = arith.addf %20, %22 : vector<8x128xf32>
      %c0_20 = arith.constant 0 : index
      %c0_21 = arith.constant 0 : index
      %24 = vector.load %arg7[%c0_20, %c0_21] : memref<8x128xf32, #tpu.memory_space<vmem>>, vector<8x128xf32>
      tpu.vector_store %arg7[%c0_20, %c0_21], %23 {strides = array<i32>} : memref<8x128xf32, #tpu.memory_space<vmem>>, vector<8x128xf32>,
    } else {
    }
    return
  }
  func.func @transform_0(%arg0: i32, %arg1: i32) -> (i32, i32) {
    %c0_i32 = arith.constant 0 : i32
    return %arg0, %arg1 : i32, i32
  }
  func.func @transform_1(%arg0: i32, %arg1: i32) -> (i32, i32) {
    %c0_i32 = arith.constant 0 : i32
    %c0_i32_0 = arith.constant 0 : i32
    return %arg1, %c0_i32 : i32, i32
  }
  func.func @transform_2(%arg0: i32, %arg1: i32) -> (i32, i32) {
    %c0_i32 = arith.constant 0 : i32
    %c0_i32_0 = arith.constant 0 : i32
    %c0_i32_1 = arith.constant 0 : i32
    return %c0_i32, %c0_i32_0 : i32, i32
  }
  func.func @transform_3(%arg0: i32, %arg1: i32) -> (i32, i32) {
    %c0_i32 = arith.constant 0 : i32
    %c0_i32_0 = arith.constant 0 : i32
    %c0_i32_1 = arith.constant 0 : i32
    return %c0_i32, %c0_i32_0 : i32, i32
  }
  func.func @transform_4(%arg0: i32, %arg1: i32) -> (i32, i32) {
    %c0_i32 = arith.constant 0 : i32
    %c0_i32_0 = arith.constant 0 : i32
    %c0_i32_1 = arith.constant 0 : i32
    return %c0_i32, %c0_i32_0 : i32, i32
  }
  func.func @transform_5(%arg0: i32, %arg1: i32) -> (i32, i32) {
    %c0_i32 = arith.constant 0 : i32
    %c0_i32_0 = arith.constant 0 : i32
    return %arg0, %c0_i32 : i32, i32
  }
}

module attributes {stable_mosaic.version = 11 : i64} {
  func.func @_conv_relu_pool_kernel(%arg0: i32, %arg1: memref<2x8x8x32xbf16, #tpu.memory_space<vmem>>, %arg2: memref<288x64xbf16, #tpu.memory_space<vmem>>, %arg3: memref<1x64xf32, #tpu.memory_space<vmem>>, %arg4: memref<2x4x256xbf16, #tpu.memory_space<vmem>>, %arg5: memref<2x110x32xbf16, #tpu.memory_space<vmem>>) attributes {dimension_semantics = [#tpu.dimension_semantics<parallel>], iteration_bounds = array<i64: 1>, scalar_prefetch = 0 : i64, scratch_operands = 1 : i64, tpu.core_type = #tpu.core_type<tc>, window_params = [{transform_indices = @transform_0, window_bounds = array<i64: 2, 8, 8, 32>}, {pipeline_mode = #tpu.pipeline_mode<synchronous>, transform_indices = @transform_1, window_bounds = array<i64: 288, 64>}, {pipeline_mode = #tpu.pipeline_mode<synchronous>, transform_indices = @transform_2, window_bounds = array<i64: 1, 64>}, {transform_indices = @transform_3, window_bounds = array<i64: 2, 4, 256>}]} {
    %cst = arith.constant 0.000000e+00 : bf16
    %0 = vector.broadcast %cst : bf16 to vector<2x110x32xbf16>
    %c0 = arith.constant 0 : index
    %c0_0 = arith.constant 0 : index
    %c0_1 = arith.constant 0 : index
    %1 = vector.load %arg5[%c0, %c0_0, %c0_1] : memref<2x110x32xbf16, #tpu.memory_space<vmem>>, vector<2x110x32xbf16>
    tpu.vector_store %arg5[%c0, %c0_0, %c0_1], %0 {strides = array<i32>} : memref<2x110x32xbf16, #tpu.memory_space<vmem>>, vector<2x110x32xbf16>,
    %c0_2 = arith.constant 0 : index
    %c0_3 = arith.constant 0 : index
    %c0_4 = arith.constant 0 : index
    %c0_5 = arith.constant 0 : index
    %2 = vector.load %arg1[%c0_2, %c0_3, %c0_4, %c0_5] : memref<2x8x8x32xbf16, #tpu.memory_space<vmem>>, vector<2x1x8x32xbf16>
    %3 = vector.shape_cast %2 : vector<2x1x8x32xbf16> to vector<2x8x32xbf16>
    %c0_6 = arith.constant 0 : index
    %c11 = arith.constant 11 : index
    %c0_7 = arith.constant 0 : index
    %4 = vector.load %arg5[%c0_6, %c11, %c0_7] : memref<2x110x32xbf16, #tpu.memory_space<vmem>>, vector<2x8x32xbf16>
    tpu.vector_store %arg5[%c0_6, %c11, %c0_7], %3 {strides = array<i32>} : memref<2x110x32xbf16, #tpu.memory_space<vmem>>, vector<2x8x32xbf16>,
    %c0_8 = arith.constant 0 : index
    %c1 = arith.constant 1 : index
    %c0_9 = arith.constant 0 : index
    %c0_10 = arith.constant 0 : index
    %5 = vector.load %arg1[%c0_8, %c1, %c0_9, %c0_10] : memref<2x8x8x32xbf16, #tpu.memory_space<vmem>>, vector<2x1x8x32xbf16>
    %6 = vector.shape_cast %5 : vector<2x1x8x32xbf16> to vector<2x8x32xbf16>
    %c0_11 = arith.constant 0 : index
    %c21 = arith.constant 21 : index
    %c0_12 = arith.constant 0 : index
    %7 = vector.load %arg5[%c0_11, %c21, %c0_12] : memref<2x110x32xbf16, #tpu.memory_space<vmem>>, vector<2x8x32xbf16>
    tpu.vector_store %arg5[%c0_11, %c21, %c0_12], %6 {strides = array<i32>} : memref<2x110x32xbf16, #tpu.memory_space<vmem>>, vector<2x8x32xbf16>,
    %c0_13 = arith.constant 0 : index
    %c2 = arith.constant 2 : index
    %c0_14 = arith.constant 0 : index
    %c0_15 = arith.constant 0 : index
    %8 = vector.load %arg1[%c0_13, %c2, %c0_14, %c0_15] : memref<2x8x8x32xbf16, #tpu.memory_space<vmem>>, vector<2x1x8x32xbf16>
    %9 = vector.shape_cast %8 : vector<2x1x8x32xbf16> to vector<2x8x32xbf16>
    %c0_16 = arith.constant 0 : index
    %c31 = arith.constant 31 : index
    %c0_17 = arith.constant 0 : index
    %10 = vector.load %arg5[%c0_16, %c31, %c0_17] : memref<2x110x32xbf16, #tpu.memory_space<vmem>>, vector<2x8x32xbf16>
    tpu.vector_store %arg5[%c0_16, %c31, %c0_17], %9 {strides = array<i32>} : memref<2x110x32xbf16, #tpu.memory_space<vmem>>, vector<2x8x32xbf16>,
    %c0_18 = arith.constant 0 : index
    %c3 = arith.constant 3 : index
    %c0_19 = arith.constant 0 : index
    %c0_20 = arith.constant 0 : index
    %11 = vector.load %arg1[%c0_18, %c3, %c0_19, %c0_20] : memref<2x8x8x32xbf16, #tpu.memory_space<vmem>>, vector<2x1x8x32xbf16>
    %12 = vector.shape_cast %11 : vector<2x1x8x32xbf16> to vector<2x8x32xbf16>
    %c0_21 = arith.constant 0 : index
    %c41 = arith.constant 41 : index
    %c0_22 = arith.constant 0 : index
    %13 = vector.load %arg5[%c0_21, %c41, %c0_22] : memref<2x110x32xbf16, #tpu.memory_space<vmem>>, vector<2x8x32xbf16>
    tpu.vector_store %arg5[%c0_21, %c41, %c0_22], %12 {strides = array<i32>} : memref<2x110x32xbf16, #tpu.memory_space<vmem>>, vector<2x8x32xbf16>,
    %c0_23 = arith.constant 0 : index
    %c4 = arith.constant 4 : index
    %c0_24 = arith.constant 0 : index
    %c0_25 = arith.constant 0 : index
    %14 = vector.load %arg1[%c0_23, %c4, %c0_24, %c0_25] : memref<2x8x8x32xbf16, #tpu.memory_space<vmem>>, vector<2x1x8x32xbf16>
    %15 = vector.shape_cast %14 : vector<2x1x8x32xbf16> to vector<2x8x32xbf16>
    %c0_26 = arith.constant 0 : index
    %c51 = arith.constant 51 : index
    %c0_27 = arith.constant 0 : index
    %16 = vector.load %arg5[%c0_26, %c51, %c0_27] : memref<2x110x32xbf16, #tpu.memory_space<vmem>>, vector<2x8x32xbf16>
    tpu.vector_store %arg5[%c0_26, %c51, %c0_27], %15 {strides = array<i32>} : memref<2x110x32xbf16, #tpu.memory_space<vmem>>, vector<2x8x32xbf16>,
    %c0_28 = arith.constant 0 : index
    %c5 = arith.constant 5 : index
    %c0_29 = arith.constant 0 : index
    %c0_30 = arith.constant 0 : index
    %17 = vector.load %arg1[%c0_28, %c5, %c0_29, %c0_30] : memref<2x8x8x32xbf16, #tpu.memory_space<vmem>>, vector<2x1x8x32xbf16>
    %18 = vector.shape_cast %17 : vector<2x1x8x32xbf16> to vector<2x8x32xbf16>
    %c0_31 = arith.constant 0 : index
    %c61 = arith.constant 61 : index
    %c0_32 = arith.constant 0 : index
    %19 = vector.load %arg5[%c0_31, %c61, %c0_32] : memref<2x110x32xbf16, #tpu.memory_space<vmem>>, vector<2x8x32xbf16>
    tpu.vector_store %arg5[%c0_31, %c61, %c0_32], %18 {strides = array<i32>} : memref<2x110x32xbf16, #tpu.memory_space<vmem>>, vector<2x8x32xbf16>,
    %c0_33 = arith.constant 0 : index
    %c6 = arith.constant 6 : index
    %c0_34 = arith.constant 0 : index
    %c0_35 = arith.constant 0 : index
    %20 = vector.load %arg1[%c0_33, %c6, %c0_34, %c0_35] : memref<2x8x8x32xbf16, #tpu.memory_space<vmem>>, vector<2x1x8x32xbf16>
    %21 = vector.shape_cast %20 : vector<2x1x8x32xbf16> to vector<2x8x32xbf16>
    %c0_36 = arith.constant 0 : index
    %c71 = arith.constant 71 : index
    %c0_37 = arith.constant 0 : index
    %22 = vector.load %arg5[%c0_36, %c71, %c0_37] : memref<2x110x32xbf16, #tpu.memory_space<vmem>>, vector<2x8x32xbf16>
    tpu.vector_store %arg5[%c0_36, %c71, %c0_37], %21 {strides = array<i32>} : memref<2x110x32xbf16, #tpu.memory_space<vmem>>, vector<2x8x32xbf16>,
    %c0_38 = arith.constant 0 : index
    %c7 = arith.constant 7 : index
    %c0_39 = arith.constant 0 : index
    %c0_40 = arith.constant 0 : index
    %23 = vector.load %arg1[%c0_38, %c7, %c0_39, %c0_40] : memref<2x8x8x32xbf16, #tpu.memory_space<vmem>>, vector<2x1x8x32xbf16>
    %24 = vector.shape_cast %23 : vector<2x1x8x32xbf16> to vector<2x8x32xbf16>
    %c0_41 = arith.constant 0 : index
    %c81 = arith.constant 81 : index
    %c0_42 = arith.constant 0 : index
    %25 = vector.load %arg5[%c0_41, %c81, %c0_42] : memref<2x110x32xbf16, #tpu.memory_space<vmem>>, vector<2x8x32xbf16>
    tpu.vector_store %arg5[%c0_41, %c81, %c0_42], %24 {strides = array<i32>} : memref<2x110x32xbf16, #tpu.memory_space<vmem>>, vector<2x8x32xbf16>,
    %c0_43 = arith.constant 0 : index
    %c0_44 = arith.constant 0 : index
    %c0_45 = arith.constant 0 : index
    %26 = vector.load %arg5[%c0_43, %c0_44, %c0_45] : memref<2x110x32xbf16, #tpu.memory_space<vmem>>, vector<2x80x32xbf16>
    %c0_46 = arith.constant 0 : index
    %c1_47 = arith.constant 1 : index
    %c0_48 = arith.constant 0 : index
    %27 = vector.load %arg5[%c0_46, %c1_47, %c0_48] : memref<2x110x32xbf16, #tpu.memory_space<vmem>>, vector<2x80x32xbf16>
    %c0_49 = arith.constant 0 : index
    %c2_50 = arith.constant 2 : index
    %c0_51 = arith.constant 0 : index
    %28 = vector.load %arg5[%c0_49, %c2_50, %c0_51] : memref<2x110x32xbf16, #tpu.memory_space<vmem>>, vector<2x80x32xbf16>
    %c0_52 = arith.constant 0 : index
    %c10 = arith.constant 10 : index
    %c0_53 = arith.constant 0 : index
    %29 = vector.load %arg5[%c0_52, %c10, %c0_53] : memref<2x110x32xbf16, #tpu.memory_space<vmem>>, vector<2x80x32xbf16>
    %c0_54 = arith.constant 0 : index
    %c11_55 = arith.constant 11 : index
    %c0_56 = arith.constant 0 : index
    %30 = vector.load %arg5[%c0_54, %c11_55, %c0_56] : memref<2x110x32xbf16, #tpu.memory_space<vmem>>, vector<2x80x32xbf16>
    %c0_57 = arith.constant 0 : index
    %c12 = arith.constant 12 : index
    %c0_58 = arith.constant 0 : index
    %31 = vector.load %arg5[%c0_57, %c12, %c0_58] : memref<2x110x32xbf16, #tpu.memory_space<vmem>>, vector<2x80x32xbf16>
    %c0_59 = arith.constant 0 : index
    %c20 = arith.constant 20 : index
    %c0_60 = arith.constant 0 : index
    %32 = vector.load %arg5[%c0_59, %c20, %c0_60] : memref<2x110x32xbf16, #tpu.memory_space<vmem>>, vector<2x80x32xbf16>
    %c0_61 = arith.constant 0 : index
    %c21_62 = arith.constant 21 : index
    %c0_63 = arith.constant 0 : index
    %33 = vector.load %arg5[%c0_61, %c21_62, %c0_63] : memref<2x110x32xbf16, #tpu.memory_space<vmem>>, vector<2x80x32xbf16>
    %c0_64 = arith.constant 0 : index
    %c22 = arith.constant 22 : index
    %c0_65 = arith.constant 0 : index
    %34 = vector.load %arg5[%c0_64, %c22, %c0_65] : memref<2x110x32xbf16, #tpu.memory_space<vmem>>, vector<2x80x32xbf16>
    %35 = tpu.concatenate %26, %27, %28, %29, %30, %31, %32, %33, %34 in 2 : vector<2x80x32xbf16>, vector<2x80x32xbf16>, vector<2x80x32xbf16>, vector<2x80x32xbf16>, vector<2x80x32xbf16>, vector<2x80x32xbf16>, vector<2x80x32xbf16>, vector<2x80x32xbf16>, vector<2x80x32xbf16> -> vector<2x80x288xbf16>
    %36 = vector.shape_cast %35 : vector<2x80x288xbf16> to vector<160x288xbf16>
    %c0_66 = arith.constant 0 : index
    %c0_67 = arith.constant 0 : index
    %37 = vector.load %arg2[%c0_66, %c0_67] : memref<288x64xbf16, #tpu.memory_space<vmem>>, vector<288x64xbf16>
    %cst_68 = arith.constant dense<0.000000e+00> : vector<160x64xf32>
    %38 = tpu.matmul %36, %37, %cst_68 {dimension_numbers = #tpu.dot_dimension_numbers<[1], [0], [0], [1], [0, 0, 1, 1], [], []>} : vector<160x288xbf16>, vector<288x64xbf16>, vector<160x64xf32> -> vector<160x64xf32>
    %c0_69 = arith.constant 0 : index
    %c0_70 = arith.constant 0 : index
    %39 = vector.load %arg3[%c0_69, %c0_70] : memref<1x64xf32, #tpu.memory_space<vmem>>, vector<1x64xf32>
    %40 = vector.broadcast %39 : vector<1x64xf32> to vector<160x64xf32>
    %41 = arith.addf %38, %40 : vector<160x64xf32>
    %cst_71 = arith.constant 0.000000e+00 : f32
    %42 = vector.broadcast %cst_71 : f32 to vector<160x64xf32>
    %43 = arith.maximumf %41, %42 : vector<160x64xf32>
    %44 = vector.shape_cast %43 : vector<160x64xf32> to vector<80x2x64xf32>
    %cst_72 = arith.constant dense<0xFF800000> : vector<80x64xf32>
    %45 = vector.multi_reduction <maximumf>, %44, %cst_72 [1] : vector<80x2x64xf32> to vector<80x64xf32>
    %46 = vector.shape_cast %45 : vector<80x64xf32> to vector<2x4x10x64xf32>
    %47 = vector.extract_strided_slice %46 {offsets = [0, 0, 0, 0], sizes = [2, 4, 4, 64], strides = [1, 1, 1, 1]} : vector<2x4x10x64xf32> to vector<2x4x4x64xf32>
    %48 = vector.extract_strided_slice %46 {offsets = [0, 0, 5, 0], sizes = [2, 4, 4, 64], strides = [1, 1, 1, 1]} : vector<2x4x10x64xf32> to vector<2x4x4x64xf32>
    %49 = arith.maximumf %47, %48 : vector<2x4x4x64xf32>
    %50 = vector.shape_cast %49 : vector<2x4x4x64xf32> to vector<2x4x256xf32>
    %51 = arith.truncf %50 : vector<2x4x256xf32> to vector<2x4x256xbf16>
    %c0_73 = arith.constant 0 : index
    %c0_74 = arith.constant 0 : index
    %c0_75 = arith.constant 0 : index
    %52 = vector.load %arg4[%c0_73, %c0_74, %c0_75] : memref<2x4x256xbf16, #tpu.memory_space<vmem>>, vector<2x4x256xbf16>
    tpu.vector_store %arg4[%c0_73, %c0_74, %c0_75], %51 {strides = array<i32>} : memref<2x4x256xbf16, #tpu.memory_space<vmem>>, vector<2x4x256xbf16>,
    return
  }
  func.func @transform_0(%arg0: i32) -> (i32, i32, i32, i32) {
    %c0_i32 = arith.constant 0 : i32
    %c0_i32_0 = arith.constant 0 : i32
    %c0_i32_1 = arith.constant 0 : i32
    %c0_i32_2 = arith.constant 0 : i32
    return %arg0, %c0_i32, %c0_i32_0, %c0_i32_1 : i32, i32, i32, i32
  }
  func.func @transform_1(%arg0: i32) -> (i32, i32) {
    %c0_i32 = arith.constant 0 : i32
    %c0_i32_0 = arith.constant 0 : i32
    %c0_i32_1 = arith.constant 0 : i32
    return %c0_i32, %c0_i32_0 : i32, i32
  }
  func.func @transform_2(%arg0: i32) -> (i32, i32) {
    %c0_i32 = arith.constant 0 : i32
    %c0_i32_0 = arith.constant 0 : i32
    %c0_i32_1 = arith.constant 0 : i32
    return %c0_i32, %c0_i32_0 : i32, i32
  }
  func.func @transform_3(%arg0: i32) -> (i32, i32, i32) {
    %c0_i32 = arith.constant 0 : i32
    %c0_i32_0 = arith.constant 0 : i32
    %c0_i32_1 = arith.constant 0 : i32
    return %arg0, %c0_i32, %c0_i32_0 : i32, i32, i32
  }
}

</mosaic_0001>

<llo_original>
// kernel: custom_cnn_forward.5
$region0: #{custom_cnn_forward.5}
  #allocation0 [shape = 'u32[]', space=smem, size = 0x4, offset = 0x4, fixed_abs, tag = 'smem constant byte address 0x4 - core index']
  #allocation1 [shape = 'u32[144,128]{1,0:T(1,128)}', space=vmem, size = 0x12000, scoped, tag = 'internal scratch']
  #allocation2 [shape = 'f32[8,128]{1,0:T(8,128)}', space=vmem, size = 0x1000, scoped, tag = 'scratch operand']
  %s0 = inlined_call_operand.vmem [shape: bf16[8,1024], index: 0, kind: input, shape index: {}]
  %s1 = inlined_call_operand.vmem [shape: bf16[1024,128], index: 1, kind: input, shape index: {}]
  %s2 = inlined_call_operand.vmem [shape: f32[1,128], index: 2, kind: input, shape index: {}]
  %s3 = inlined_call_operand.vmem [shape: bf16[128,128], index: 3, kind: input, shape index: {}]
  %s4 = inlined_call_operand.vmem [shape: f32[1,128], index: 4, kind: input, shape index: {}]
  %s5 = inlined_call_operand.vmem [shape: f32[8,128], index: 5, kind: output, shape index: {}]
  %s6 = sld [smem:[#allocation0]]
  $region38: #{custom_cnn_forward.5} parent=0
    _
  %s8 = ssub.s32 1, %s6
  %s9 = scalar_select 0, %s8, %s6
  // Predicated region
  $region2: #{custom_cnn_forward.5} parent=0 // pred_check
    _
  $region3: #{custom_cnn_forward.5} parent=0 // pred_check_branch
    %11 = sbr.rel (0) target = $region5
  $region4: #{custom_cnn_forward.5} parent=0 // pred_region
    _
  $region5: #{custom_cnn_forward.5} parent=0 // pred_fallthru
    _
  // Predicated region
  $region6: #{custom_cnn_forward.5} parent=0 // pred_check
    _
  $region7: #{custom_cnn_forward.5} parent=0 // pred_check_branch
    %13 = sbr.rel (0) target = $region9
  $region8: #{custom_cnn_forward.5} parent=0 // pred_region
    _
  $region9: #{custom_cnn_forward.5} parent=0 // pred_fallthru
    _
  // Predicated region
  $region10: #{custom_cnn_forward.5} parent=0 // pred_check
    _
  $region11: #{custom_cnn_forward.5} parent=0 // pred_check_branch
    %15 = sbr.rel (0) target = $region13
  $region12: #{custom_cnn_forward.5} parent=0 // pred_region
    _
  $region13: #{custom_cnn_forward.5} parent=0 // pred_fallthru
    _
  // Predicated region
  $region14: #{custom_cnn_forward.5} parent=0 // pred_check
    _
  $region15: #{custom_cnn_forward.5} parent=0 // pred_check_branch
    %17 = sbr.rel (0) target = $region17
  $region16: #{custom_cnn_forward.5} parent=0 // pred_region
    _
  $region17: #{custom_cnn_forward.5} parent=0 // pred_fallthru
    _
  // Predicated region
  $region18: #{custom_cnn_forward.5} parent=0 // pred_check
    _
  $region19: #{custom_cnn_forward.5} parent=0 // pred_check_branch
    %19 = sbr.rel (0) target = $region21
  $region20: #{custom_cnn_forward.5} parent=0 // pred_region
    _
  $region21: #{custom_cnn_forward.5} parent=0 // pred_fallthru
    _
  %p21 = scmp.eq.s32.totalorder 0, 0
  // Predicated region
  $region22: #{custom_cnn_forward.5} parent=0 // pred_check
    %p22 = pneg %p21
  $region23: #{custom_cnn_forward.5} parent=0 // pred_check_branch
    %24 = sbr.rel (%p22) target = $region25
  $region24: #{custom_cnn_forward.5} parent=0 // pred_region
    %25 = vst [vmem:[#allocation2] sm:$0xff] 0.0
  $region25: #{custom_cnn_forward.5} parent=0 // pred_fallthru
    _
  %v26 = vld [vmem:[#allocation2] sm:$0xff]
  %v27 = vld [vmem:[%s0] sm:$0xff]
  %v28 = vld [vmem:[%s0 + $0x8] sm:$0xff]
  %v29 = vld [vmem:[%s0 + $0x10] sm:$0xff]
  %v30 = vld [vmem:[%s0 + $0x18] sm:$0xff]
  %v31 = vld [vmem:[%s1] sm:$0xf]
  %v32 = vld [vmem:[%s1 + $0x4] sm:$0xf]
  %v33 = vld [vmem:[%s1 + $0x8] sm:$0xf]
  %v34 = vld [vmem:[%s1 + $0xc] sm:$0xf]
  %v35 = vld [vmem:[%s1 + $0x10] sm:$0xf]
  %v36 = vld [vmem:[%s1 + $0x14] sm:$0xf]
  %v37 = vld [vmem:[%s1 + $0x18] sm:$0xf]
  %v38 = vld [vmem:[%s1 + $0x1c] sm:$0xf]
  %v39 = vld [vmem:[%s1 + $0x20] sm:$0xf]
  %v40 = vld [vmem:[%s1 + $0x24] sm:$0xf]
  %v41 = vld [vmem:[%s1 + $0x28] sm:$0xf]
  %v42 = vld [vmem:[%s1 + $0x2c] sm:$0xf]
  %v43 = vld [vmem:[%s1 + $0x30] sm:$0xf]
  %v44 = vld [vmem:[%s1 + $0x34] sm:$0xf]
  %v45 = vld [vmem:[%s1 + $0x38] sm:$0xf]
  %v46 = vld [vmem:[%s1 + $0x3c] sm:$0xf]
  %v47 = vld [vmem:[%s1 + $0x40] sm:$0xf]
  %v48 = vld [vmem:[%s1 + $0x44] sm:$0xf]
  %v49 = vld [vmem:[%s1 + $0x48] sm:$0xf]
  %v50 = vld [vmem:[%s1 + $0x4c] sm:$0xf]
  %v51 = vld [vmem:[%s1 + $0x50] sm:$0xf]
  %v52 = vld [vmem:[%s1 + $0x54] sm:$0xf]
  %v53 = vld [vmem:[%s1 + $0x58] sm:$0xf]
  %v54 = vld [vmem:[%s1 + $0x5c] sm:$0xf]
  %v55 = vld [vmem:[%s1 + $0x60] sm:$0xf]
  %v56 = vld [vmem:[%s1 + $0x64] sm:$0xf]
  %v57 = vld [vmem:[%s1 + $0x68] sm:$0xf]
  %v58 = vld [vmem:[%s1 + $0x6c] sm:$0xf]
  %v59 = vld [vmem:[%s1 + $0x70] sm:$0xf]
  %v60 = vld [vmem:[%s1 + $0x74] sm:$0xf]
  %v61 = vld [vmem:[%s1 + $0x78] sm:$0xf]
  %v62 = vld [vmem:[%s1 + $0x7c] sm:$0xf]
  %v63 = vld [vmem:[%s1 + $0x80] sm:$0xf]
  %v64 = vld [vmem:[%s1 + $0x84] sm:$0xf]
  %v65 = vld [vmem:[%s1 + $0x88] sm:$0xf]
  %v66 = vld [vmem:[%s1 + $0x8c] sm:$0xf]
  %v67 = vld [vmem:[%s1 + $0x90] sm:$0xf]
  %v68 = vld [vmem:[%s1 + $0x94] sm:$0xf]
  %v69 = vld [vmem:[%s1 + $0x98] sm:$0xf]
  %v70 = vld [vmem:[%s1 + $0x9c] sm:$0xf]
  %v71 = vld [vmem:[%s1 + $0xa0] sm:$0xf]
  %v72 = vld [vmem:[%s1 + $0xa4] sm:$0xf]
  %v73 = vld [vmem:[%s1 + $0xa8] sm:$0xf]
  %v74 = vld [vmem:[%s1 + $0xac] sm:$0xf]
  %v75 = vld [vmem:[%s1 + $0xb0] sm:$0xf]
  %v76 = vld [vmem:[%s1 + $0xb4] sm:$0xf]
  %v77 = vld [vmem:[%s1 + $0xb8] sm:$0xf]
  %v78 = vld [vmem:[%s1 + $0xbc] sm:$0xf]
  %v79 = vld [vmem:[%s1 + $0xc0] sm:$0xf]
  %v80 = vld [vmem:[%s1 + $0xc4] sm:$0xf]
  %v81 = vld [vmem:[%s1 + $0xc8] sm:$0xf]
  %v82 = vld [vmem:[%s1 + $0xcc] sm:$0xf]
  %v83 = vld [vmem:[%s1 + $0xd0] sm:$0xf]
  %v84 = vld [vmem:[%s1 + $0xd4] sm:$0xf]
  %v85 = vld [vmem:[%s1 + $0xd8] sm:$0xf]
  %v86 = vld [vmem:[%s1 + $0xdc] sm:$0xf]
  %v87 = vld [vmem:[%s1 + $0xe0] sm:$0xf]
  %v88 = vld [vmem:[%s1 + $0xe4] sm:$0xf]
  %v89 = vld [vmem:[%s1 + $0xe8] sm:$0xf]
  %v90 = vld [vmem:[%s1 + $0xec] sm:$0xf]
  %v91 = vld [vmem:[%s1 + $0xf0] sm:$0xf]
  %v92 = vld [vmem:[%s1 + $0xf4] sm:$0xf]
  %v93 = vld [vmem:[%s1 + $0xf8] sm:$0xf]
  %v94 = vld [vmem:[%s1 + $0xfc] sm:$0xf]
  %v95 = vld [vmem:[%s1 + $0x100] sm:$0xf]
  %v96 = vld [vmem:[%s1 + $0x104] sm:$0xf]
  %v97 = vld [vmem:[%s1 + $0x108] sm:$0xf]
  %v98 = vld [vmem:[%s1 + $0x10c] sm:$0xf]
  %v99 = vld [vmem:[%s1 + $0x110] sm:$0xf]
  %v100 = vld [vmem:[%s1 + $0x114] sm:$0xf]
  %v101 = vld [vmem:[%s1 + $0x118] sm:$0xf]
  %v102 = vld [vmem:[%s1 + $0x11c] sm:$0xf]
  %v103 = vld [vmem:[%s1 + $0x120] sm:$0xf]
  %v104 = vld [vmem:[%s1 + $0x124] sm:$0xf]
  %v105 = vld [vmem:[%s1 + $0x128] sm:$0xf]
  %v106 = vld [vmem:[%s1 + $0x12c] sm:$0xf]
  %v107 = vld [vmem:[%s1 + $0x130] sm:$0xf]
  %v108 = vld [vmem:[%s1 + $0x134] sm:$0xf]
  %v109 = vld [vmem:[%s1 + $0x138] sm:$0xf]
  %v110 = vld [vmem:[%s1 + $0x13c] sm:$0xf]
  %v111 = vld [vmem:[%s1 + $0x140] sm:$0xf]
  %v112 = vld [vmem:[%s1 + $0x144] sm:$0xf]
  %v113 = vld [vmem:[%s1 + $0x148] sm:$0xf]
  %v114 = vld [vmem:[%s1 + $0x14c] sm:$0xf]
  %v115 = vld [vmem:[%s1 + $0x150] sm:$0xf]
  %v116 = vld [vmem:[%s1 + $0x154] sm:$0xf]
  %v117 = vld [vmem:[%s1 + $0x158] sm:$0xf]
  %v118 = vld [vmem:[%s1 + $0x15c] sm:$0xf]
  %v119 = vld [vmem:[%s1 + $0x160] sm:$0xf]
  %v120 = vld [vmem:[%s1 + $0x164] sm:$0xf]
  %v121 = vld [vmem:[%s1 + $0x168] sm:$0xf]
  %v122 = vld [vmem:[%s1 + $0x16c] sm:$0xf]
  %v123 = vld [vmem:[%s1 + $0x170] sm:$0xf]
  %v124 = vld [vmem:[%s1 + $0x174] sm:$0xf]
  %v125 = vld [vmem:[%s1 + $0x178] sm:$0xf]
  %v126 = vld [vmem:[%s1 + $0x17c] sm:$0xf]
  %v127 = vld [vmem:[%s1 + $0x180] sm:$0xf]
  %v128 = vld [vmem:[%s1 + $0x184] sm:$0xf]
  %v129 = vld [vmem:[%s1 + $0x188] sm:$0xf]
  %v130 = vld [vmem:[%s1 + $0x18c] sm:$0xf]
  %v131 = vld [vmem:[%s1 + $0x190] sm:$0xf]
  %v132 = vld [vmem:[%s1 + $0x194] sm:$0xf]
  %v133 = vld [vmem:[%s1 + $0x198] sm:$0xf]
  %v134 = vld [vmem:[%s1 + $0x19c] sm:$0xf]
  %v135 = vld [vmem:[%s1 + $0x1a0] sm:$0xf]
  %v136 = vld [vmem:[%s1 + $0x1a4] sm:$0xf]
  %v137 = vld [vmem:[%s1 + $0x1a8] sm:$0xf]
  %v138 = vld [vmem:[%s1 + $0x1ac] sm:$0xf]
  %v139 = vld [vmem:[%s1 + $0x1b0] sm:$0xf]
  %v140 = vld [vmem:[%s1 + $0x1b4] sm:$0xf]
  %v141 = vld [vmem:[%s1 + $0x1b8] sm:$0xf]
  %v142 = vld [vmem:[%s1 + $0x1bc] sm:$0xf]
  %v143 = vld [vmem:[%s1 + $0x1c0] sm:$0xf]
  %v144 = vld [vmem:[%s1 + $0x1c4] sm:$0xf]
  %v145 = vld [vmem:[%s1 + $0x1c8] sm:$0xf]
  %v146 = vld [vmem:[%s1 + $0x1cc] sm:$0xf]
  %v147 = vld [vmem:[%s1 + $0x1d0] sm:$0xf]
  %v148 = vld [vmem:[%s1 + $0x1d4] sm:$0xf]
  %v149 = vld [vmem:[%s1 + $0x1d8] sm:$0xf]
  %v150 = vld [vmem:[%s1 + $0x1dc] sm:$0xf]
  %v151 = vld [vmem:[%s1 + $0x1e0] sm:$0xf]
  %v152 = vld [vmem:[%s1 + $0x1e4] sm:$0xf]
  %v153 = vld [vmem:[%s1 + $0x1e8] sm:$0xf]
  %v154 = vld [vmem:[%s1 + $0x1ec] sm:$0xf]
  %v155 = vld [vmem:[%s1 + $0x1f0] sm:$0xf]
  %v156 = vld [vmem:[%s1 + $0x1f4] sm:$0xf]
  %v157 = vld [vmem:[%s1 + $0x1f8] sm:$0xf]
  %v158 = vld [vmem:[%s1 + $0x1fc] sm:$0xf]
  %v163 = vunpack.c.l.b16 %v27
  %v164 = vunpack.c.h.b16 %v27
  %v165 = vunpack.c.l.b16 %v28
  %v166 = vunpack.c.h.b16 %v28
  %v167 = vunpack.c.l.b16 %v29
  %v168 = vunpack.c.h.b16 %v29
  %v169 = vunpack.c.l.b16 %v30
  %v170 = vunpack.c.h.b16 %v30
  %v171 = vpack.c.b16 %v163, %v163
  %v172 = vpack.c.b16 %v164, %v164
  %v173 = vpack.c.b16 %v165, %v165
  %v174 = vpack.c.b16 %v166, %v166
  %v175 = vpack.c.b16 %v167, %v167
  %v176 = vpack.c.b16 %v168, %v168
  %v177 = vpack.c.b16 %v169, %v169
  %v178 = vpack.c.b16 %v170, %v170
  %v315 = vunpack.c.l.b16 %v31
  %v316 = vunpack.c.l.b16 %v32
  %v317 = vunpack.c.l.b16 %v33
  %v318 = vunpack.c.l.b16 %v34
  %v319 = vunpack.c.l.b16 %v35
  %v320 = vunpack.c.l.b16 %v36
  %v321 = vunpack.c.l.b16 %v37
  %v322 = vunpack.c.l.b16 %v38
  %v323 = vunpack.c.l.b16 %v39
  %v324 = vunpack.c.l.b16 %v40
  %v325 = vunpack.c.l.b16 %v41
  %v326 = vunpack.c.l.b16 %v42
  %v327 = vunpack.c.l.b16 %v43
  %v328 = vunpack.c.l.b16 %v44
  %v329 = vunpack.c.l.b16 %v45
  %v330 = vunpack.c.l.b16 %v46
  %v331 = vunpack.c.l.b16 %v47
  %v332 = vunpack.c.l.b16 %v48
  %v333 = vunpack.c.l.b16 %v49
  %v334 = vunpack.c.l.b16 %v50
  %v335 = vunpack.c.l.b16 %v51
  %v336 = vunpack.c.l.b16 %v52
  %v337 = vunpack.c.l.b16 %v53
  %v338 = vunpack.c.l.b16 %v54
  %v339 = vunpack.c.l.b16 %v55
  %v340 = vunpack.c.l.b16 %v56
  %v341 = vunpack.c.l.b16 %v57
  %v342 = vunpack.c.l.b16 %v58
  %v343 = vunpack.c.l.b16 %v59
  %v344 = vunpack.c.l.b16 %v60
  %v345 = vunpack.c.l.b16 %v61
  %v346 = vunpack.c.l.b16 %v62
  %v347 = vunpack.c.l.b16 %v63
  %v348 = vunpack.c.l.b16 %v64
  %v349 = vunpack.c.l.b16 %v65
  %v350 = vunpack.c.l.b16 %v66
  %v351 = vunpack.c.l.b16 %v67
  %v352 = vunpack.c.l.b16 %v68
  %v353 = vunpack.c.l.b16 %v69
  %v354 = vunpack.c.l.b16 %v70
  %v355 = vunpack.c.l.b16 %v71
  %v356 = vunpack.c.l.b16 %v72
  %v357 = vunpack.c.l.b16 %v73
  %v358 = vunpack.c.l.b16 %v74
  %v359 = vunpack.c.l.b16 %v75
  %v360 = vunpack.c.l.b16 %v76
  %v361 = vunpack.c.l.b16 %v77
  %v362 = vunpack.c.l.b16 %v78
  %v363 = vunpack.c.l.b16 %v79
  %v364 = vunpack.c.l.b16 %v80
  %v365 = vunpack.c.l.b16 %v81
  %v366 = vunpack.c.l.b16 %v82
  %v367 = vunpack.c.l.b16 %v83
  %v368 = vunpack.c.l.b16 %v84
  %v369 = vunpack.c.l.b16 %v85
  %v370 = vunpack.c.l.b16 %v86
  %v371 = vunpack.c.l.b16 %v87
  %v372 = vunpack.c.l.b16 %v88
  %v373 = vunpack.c.l.b16 %v89
  %v374 = vunpack.c.l.b16 %v90
  %v375 = vunpack.c.l.b16 %v91
  %v376 = vunpack.c.l.b16 %v92
  %v377 = vunpack.c.l.b16 %v93
  %v378 = vunpack.c.l.b16 %v94
  %v379 = vunpack.c.l.b16 %v95
  %v380 = vunpack.c.l.b16 %v96
  %v381 = vunpack.c.l.b16 %v97
  %v382 = vunpack.c.l.b16 %v98
  %v383 = vunpack.c.l.b16 %v99
  %v384 = vunpack.c.l.b16 %v100
  %v385 = vunpack.c.l.b16 %v101
  %v386 = vunpack.c.l.b16 %v102
  %v387 = vunpack.c.l.b16 %v103
  %v388 = vunpack.c.l.b16 %v104
  %v389 = vunpack.c.l.b16 %v105
  %v390 = vunpack.c.l.b16 %v106
  %v391 = vunpack.c.l.b16 %v107
  %v392 = vunpack.c.l.b16 %v108
  %v393 = vunpack.c.l.b16 %v109
  %v394 = vunpack.c.l.b16 %v110
  %v395 = vunpack.c.l.b16 %v111
  %v396 = vunpack.c.l.b16 %v112
  %v397 = vunpack.c.l.b16 %v113
  %v398 = vunpack.c.l.b16 %v114
  %v399 = vunpack.c.l.b16 %v115
  %v400 = vunpack.c.l.b16 %v116
  %v401 = vunpack.c.l.b16 %v117
  %v402 = vunpack.c.l.b16 %v118
  %v403 = vunpack.c.l.b16 %v119
  %v404 = vunpack.c.l.b16 %v120
  %v405 = vunpack.c.l.b16 %v121
  %v406 = vunpack.c.l.b16 %v122
  %v407 = vunpack.c.l.b16 %v123
  %v408 = vunpack.c.l.b16 %v124
  %v409 = vunpack.c.l.b16 %v125
  %v410 = vunpack.c.l.b16 %v126
  %v411 = vunpack.c.l.b16 %v127
  %v412 = vunpack.c.l.b16 %v128
  %v413 = vunpack.c.l.b16 %v129
  %v414 = vunpack.c.l.b16 %v130
  %v415 = vunpack.c.l.b16 %v131
  %v416 = vunpack.c.l.b16 %v132
  %v417 = vunpack.c.l.b16 %v133
  %v418 = vunpack.c.l.b16 %v134
  %v419 = vunpack.c.l.b16 %v135
  %v420 = vunpack.c.l.b16 %v136
  %v421 = vunpack.c.l.b16 %v137
  %v422 = vunpack.c.l.b16 %v138
  %v423 = vunpack.c.l.b16 %v139
  %v424 = vunpack.c.l.b16 %v140
  %v425 = vunpack.c.l.b16 %v141
  %v426 = vunpack.c.l.b16 %v142
  %v427 = vunpack.c.l.b16 %v143
  %v428 = vunpack.c.l.b16 %v144
  %v429 = vunpack.c.l.b16 %v145
  %v430 = vunpack.c.l.b16 %v146
  %v431 = vunpack.c.l.b16 %v147
  %v432 = vunpack.c.l.b16 %v148
  %v433 = vunpack.c.l.b16 %v149
  %v434 = vunpack.c.l.b16 %v150
  %v435 = vunpack.c.l.b16 %v151
  %v436 = vunpack.c.l.b16 %v152
  %v437 = vunpack.c.l.b16 %v153
  %v438 = vunpack.c.l.b16 %v154
  %v439 = vunpack.c.l.b16 %v155
  %v440 = vunpack.c.l.b16 %v156
  %v441 = vunpack.c.l.b16 %v157
  %v442 = vunpack.c.l.b16 %v158
  %v443 = vpack.c.b16 %v316, %v315
  %v444 = vpack.c.b16 %v318, %v317
  %v445 = vpack.c.b16 %v320, %v319
  %v446 = vpack.c.b16 %v322, %v321
  %v447 = vpack.c.b16 %v324, %v323
  %v448 = vpack.c.b16 %v326, %v325
  %v449 = vpack.c.b16 %v328, %v327
  %v450 = vpack.c.b16 %v330, %v329
  %v451 = vpack.c.b16 %v332, %v331
  %v452 = vpack.c.b16 %v334, %v333
  %v453 = vpack.c.b16 %v336, %v335
  %v454 = vpack.c.b16 %v338, %v337
  %v455 = vpack.c.b16 %v340, %v339
  %v456 = vpack.c.b16 %v342, %v341
  %v457 = vpack.c.b16 %v344, %v343
  %v458 = vpack.c.b16 %v346, %v345
  %v459 = vpack.c.b16 %v348, %v347
  %v460 = vpack.c.b16 %v350, %v349
  %v461 = vpack.c.b16 %v352, %v351
  %v462 = vpack.c.b16 %v354, %v353
  %v463 = vpack.c.b16 %v356, %v355
  %v464 = vpack.c.b16 %v358, %v357
  %v465 = vpack.c.b16 %v360, %v359
  %v466 = vpack.c.b16 %v362, %v361
  %v467 = vpack.c.b16 %v364, %v363
  %v468 = vpack.c.b16 %v366, %v365
  %v469 = vpack.c.b16 %v368, %v367
  %v470 = vpack.c.b16 %v370, %v369
  %v471 = vpack.c.b16 %v372, %v371
  %v472 = vpack.c.b16 %v374, %v373
  %v473 = vpack.c.b16 %v376, %v375
  %v474 = vpack.c.b16 %v378, %v377
  %v475 = vpack.c.b16 %v380, %v379
  %v476 = vpack.c.b16 %v382, %v381
  %v477 = vpack.c.b16 %v384, %v383
  %v478 = vpack.c.b16 %v386, %v385
  %v479 = vpack.c.b16 %v388, %v387
  %v480 = vpack.c.b16 %v390, %v389
  %v481 = vpack.c.b16 %v392, %v391
  %v482 = vpack.c.b16 %v394, %v393
  %v483 = vpack.c.b16 %v396, %v395
  %v484 = vpack.c.b16 %v398, %v397
  %v485 = vpack.c.b16 %v400, %v399
  %v486 = vpack.c.b16 %v402, %v401
  %v487 = vpack.c.b16 %v404, %v403
  %v488 = vpack.c.b16 %v406, %v405
  %v489 = vpack.c.b16 %v408, %v407
  %v490 = vpack.c.b16 %v410, %v409
  %v491 = vpack.c.b16 %v412, %v411
  %v492 = vpack.c.b16 %v414, %v413
  %v493 = vpack.c.b16 %v416, %v415
  %v494 = vpack.c.b16 %v418, %v417
  %v495 = vpack.c.b16 %v420, %v419
  %v496 = vpack.c.b16 %v422, %v421
  %v497 = vpack.c.b16 %v424, %v423
  %v498 = vpack.c.b16 %v426, %v425
  %v499 = vpack.c.b16 %v428, %v427
  %v500 = vpack.c.b16 %v430, %v429
  %v501 = vpack.c.b16 %v432, %v431
  %v502 = vpack.c.b16 %v434, %v433
  %v503 = vpack.c.b16 %v436, %v435
  %v504 = vpack.c.b16 %v438, %v437
  %v505 = vpack.c.b16 %v440, %v439
  %v506 = vpack.c.b16 %v442, %v441
  %571 = vmatprep.subr.bf16.mxu0 0
  %572 = vmatpush1.bf16.msra.mxu0 %v450
  %573 = vmatprep.subr.bf16.mxu0 0
  %574 = vmatpush1.bf16.msra.mxu0 %v449
  %575 = vmatprep.subr.bf16.mxu0 0
  %576 = vmatpush1.bf16.msra.mxu0 %v448
  %577 = vmatprep.subr.bf16.mxu0 0
  %578 = vmatpush1.bf16.msra.mxu0 %v447
  %579 = vmatprep.subr.bf16.mxu0 0
  %580 = vmatpush1.bf16.msra.mxu0 %v446
  %581 = vmatprep.subr.bf16.mxu0 0
  %582 = vmatpush1.bf16.msra.mxu0 %v445
  %583 = vmatprep.subr.bf16.mxu0 0
  %584 = vmatpush1.bf16.msra.mxu0 %v444
  %585 = vmatprep.subr.bf16.mxu0 0
  %586 = vmatpush1.bf16.msra.mxu0 %v443
  %587 = vmatprep.subr.bf16.mxu0 0
  %588 = vmatpush2.bf16.msra.mxu0 %v458
  %589 = vmatprep.subr.bf16.mxu0 0
  %590 = vmatpush2.bf16.msra.mxu0 %v457
  %591 = vmatprep.subr.bf16.mxu0 0
  %592 = vmatpush2.bf16.msra.mxu0 %v456
  %593 = vmatprep.subr.bf16.mxu0 0
  %594 = vmatpush2.bf16.msra.mxu0 %v455
  %595 = vmatprep.subr.bf16.mxu0 0
  %596 = vmatpush2.bf16.msra.mxu0 %v454
  %597 = vmatprep.subr.bf16.mxu0 0
  %598 = vmatpush2.bf16.msra.mxu0 %v453
  %599 = vmatprep.subr.bf16.mxu0 0
  %600 = vmatpush2.bf16.msra.mxu0 %v452
  %601 = vmatprep.subr.bf16.mxu0 0
  %602 = vmatpush2.bf16.msra.mxu0 %v451
  %603 = vmatprep.mubr.bf16.mxu0 %v172
  %604 = vmatmul.mubr.bf16.gmra.mxu0 %v171
  %v605 = vpop.f32.mrf.mxu0
  %v606 = vadd.f32 0.0, %v605
  %v607 = vpop.f32.mrf.mxu0
  %v608 = vpop.f32.mrf.mxu0
  %v609 = vpop.f32.mrf.mxu0
  %610 = vdwg.mxu0
  %611 = vmatprep.subr.bf16.mxu0 0
  %612 = vmatpush1.bf16.msra.mxu0 %v466
  %613 = vmatprep.subr.bf16.mxu0 0
  %614 = vmatpush1.bf16.msra.mxu0 %v465
  %615 = vmatprep.subr.bf16.mxu0 0
  %616 = vmatpush1.bf16.msra.mxu0 %v464
  %617 = vmatprep.subr.bf16.mxu0 0
  %618 = vmatpush1.bf16.msra.mxu0 %v463
  %619 = vmatprep.subr.bf16.mxu0 0
  %620 = vmatpush1.bf16.msra.mxu0 %v462
  %621 = vmatprep.subr.bf16.mxu0 0
  %622 = vmatpush1.bf16.msra.mxu0 %v461
  %623 = vmatprep.subr.bf16.mxu0 0
  %624 = vmatpush1.bf16.msra.mxu0 %v460
  %625 = vmatprep.subr.bf16.mxu0 0
  %626 = vmatpush1.bf16.msra.mxu0 %v459
  %627 = vmatprep.subr.bf16.mxu0 0
  %628 = vmatpush2.bf16.msra.mxu0 %v474
  %629 = vmatprep.subr.bf16.mxu0 0
  %630 = vmatpush2.bf16.msra.mxu0 %v473
  %631 = vmatprep.subr.bf16.mxu0 0
  %632 = vmatpush2.bf16.msra.mxu0 %v472
  %633 = vmatprep.subr.bf16.mxu0 0
  %634 = vmatpush2.bf16.msra.mxu0 %v471
  %635 = vmatprep.subr.bf16.mxu0 0
  %636 = vmatpush2.bf16.msra.mxu0 %v470
  %637 = vmatprep.subr.bf16.mxu0 0
  %638 = vmatpush2.bf16.msra.mxu0 %v469
  %639 = vmatprep.subr.bf16.mxu0 0
  %640 = vmatpush2.bf16.msra.mxu0 %v468
  %641 = vmatprep.subr.bf16.mxu0 0
  %642 = vmatpush2.bf16.msra.mxu0 %v467
  %643 = vmatprep.mubr.bf16.mxu0 %v174
  %644 = vmatmul.mubr.bf16.gmra.mxu0 %v173
  %v645 = vpop.f32.mrf.mxu0
  %v646 = vadd.f32 %v606, %v645
  %v647 = vpop.f32.mrf.mxu0
  %v648 = vpop.f32.mrf.mxu0
  %v649 = vpop.f32.mrf.mxu0
  %650 = vdwg.mxu0
  %651 = vmatprep.subr.bf16.mxu0 0
  %652 = vmatpush1.bf16.msra.mxu0 %v482
  %653 = vmatprep.subr.bf16.mxu0 0
  %654 = vmatpush1.bf16.msra.mxu0 %v481
  %655 = vmatprep.subr.bf16.mxu0 0
  %656 = vmatpush1.bf16.msra.mxu0 %v480
  %657 = vmatprep.subr.bf16.mxu0 0
  %658 = vmatpush1.bf16.msra.mxu0 %v479
  %659 = vmatprep.subr.bf16.mxu0 0
  %660 = vmatpush1.bf16.msra.mxu0 %v478
  %661 = vmatprep.subr.bf16.mxu0 0
  %662 = vmatpush1.bf16.msra.mxu0 %v477
  %663 = vmatprep.subr.bf16.mxu0 0
  %664 = vmatpush1.bf16.msra.mxu0 %v476
  %665 = vmatprep.subr.bf16.mxu0 0
  %666 = vmatpush1.bf16.msra.mxu0 %v475
  %667 = vmatprep.subr.bf16.mxu0 0
  %668 = vmatpush2.bf16.msra.mxu0 %v490
  %669 = vmatprep.subr.bf16.mxu0 0
  %670 = vmatpush2.bf16.msra.mxu0 %v489
  %671 = vmatprep.subr.bf16.mxu0 0
  %672 = vmatpush2.bf16.msra.mxu0 %v488
  %673 = vmatprep.subr.bf16.mxu0 0
  %674 = vmatpush2.bf16.msra.mxu0 %v487
  %675 = vmatprep.subr.bf16.mxu0 0
  %676 = vmatpush2.bf16.msra.mxu0 %v486
  %677 = vmatprep.subr.bf16.mxu0 0
  %678 = vmatpush2.bf16.msra.mxu0 %v485
  %679 = vmatprep.subr.bf16.mxu0 0
  %680 = vmatpush2.bf16.msra.mxu0 %v484
  %681 = vmatprep.subr.bf16.mxu0 0
  %682 = vmatpush2.bf16.msra.mxu0 %v483
  %683 = vmatprep.mubr.bf16.mxu0 %v176
  %684 = vmatmul.mubr.bf16.gmra.mxu0 %v175
  %v685 = vpop.f32.mrf.mxu0
  %v686 = vadd.f32 %v646, %v685
  %v687 = vpop.f32.mrf.mxu0
  %v688 = vpop.f32.mrf.mxu0
  %v689 = vpop.f32.mrf.mxu0
  %690 = vdwg.mxu0
  %691 = vmatprep.subr.bf16.mxu0 0
  %692 = vmatpush1.bf16.msra.mxu0 %v498
  %693 = vmatprep.subr.bf16.mxu0 0
  %694 = vmatpush1.bf16.msra.mxu0 %v497
  %695 = vmatprep.subr.bf16.mxu0 0
  %696 = vmatpush1.bf16.msra.mxu0 %v496
  %697 = vmatprep.subr.bf16.mxu0 0
  %698 = vmatpush1.bf16.msra.mxu0 %v495
  %699 = vmatprep.subr.bf16.mxu0 0
  %700 = vmatpush1.bf16.msra.mxu0 %v494
  %701 = vmatprep.subr.bf16.mxu0 0
  %702 = vmatpush1.bf16.msra.mxu0 %v493
  %703 = vmatprep.subr.bf16.mxu0 0
  %704 = vmatpush1.bf16.msra.mxu0 %v492
  %705 = vmatprep.subr.bf16.mxu0 0
  %706 = vmatpush1.bf16.msra.mxu0 %v491
  %707 = vmatprep.subr.bf16.mxu0 0
  %708 = vmatpush2.bf16.msra.mxu0 %v506
  %709 = vmatprep.subr.bf16.mxu0 0
  %710 = vmatpush2.bf16.msra.mxu0 %v505
  %711 = vmatprep.subr.bf16.mxu0 0
  %712 = vmatpush2.bf16.msra.mxu0 %v504
  %713 = vmatprep.subr.bf16.mxu0 0
  %714 = vmatpush2.bf16.msra.mxu0 %v503
  %715 = vmatprep.subr.bf16.mxu0 0
  %716 = vmatpush2.bf16.msra.mxu0 %v502
  %717 = vmatprep.subr.bf16.mxu0 0
  %718 = vmatpush2.bf16.msra.mxu0 %v501
  %719 = vmatprep.subr.bf16.mxu0 0
  %720 = vmatpush2.bf16.msra.mxu0 %v500
  %721 = vmatprep.subr.bf16.mxu0 0
  %722 = vmatpush2.bf16.msra.mxu0 %v499
  %723 = vmatprep.mubr.bf16.mxu0 %v178
  %724 = vmatmul.mubr.bf16.gmra.mxu0 %v177
  %v725 = vpop.f32.mrf.mxu0
  %v726 = vadd.f32 %v686, %v725
  %v727 = vpop.f32.mrf.mxu0
  %v728 = vpop.f32.mrf.mxu0
  %v729 = vpop.f32.mrf.mxu0
  %730 = vdwg.mxu0
  %v731 = vadd.f32 %v26, %v726
  %732 = vst [vmem:[#allocation2] sm:$0xff] %v731
  // Predicated region
  $region26: #{custom_cnn_forward.5} parent=0 // pred_check
    %p733 = pneg %p21
  $region27: #{custom_cnn_forward.5} parent=0 // pred_check_branch
    %735 = sbr.rel (%p733) target = $region29
  $region28: #{custom_cnn_forward.5} parent=0 // pred_region
    %v736 = vld [vmem:[#allocation2] sm:$0xff]
    %v737 = vld [vmem:[%s2] sm:$0x1]
    %v739 = vlaneseq
    %v740 = vshrl.u32 %v739, 7
    %v741 = vsub.s32 0, %v740
    %v742 = vrot.slane %v737, %v741
    %v744 = vadd.f32 %v736, %v742
    %v745 = vmax.f32 %v744, 0.0
    %v746 = vpack.c.bf16 %v745, %v745
    %v747 = vld [vmem:[%s3] sm:$0xf]
    %v748 = vld [vmem:[%s3 + $0x4] sm:$0xf]
    %v749 = vld [vmem:[%s3 + $0x8] sm:$0xf]
    %v750 = vld [vmem:[%s3 + $0xc] sm:$0xf]
    %v751 = vld [vmem:[%s3 + $0x10] sm:$0xf]
    %v752 = vld [vmem:[%s3 + $0x14] sm:$0xf]
    %v753 = vld [vmem:[%s3 + $0x18] sm:$0xf]
    %v754 = vld [vmem:[%s3 + $0x1c] sm:$0xf]
    %v755 = vld [vmem:[%s3 + $0x20] sm:$0xf]
    %v756 = vld [vmem:[%s3 + $0x24] sm:$0xf]
    %v757 = vld [vmem:[%s3 + $0x28] sm:$0xf]
    %v758 = vld [vmem:[%s3 + $0x2c] sm:$0xf]
    %v759 = vld [vmem:[%s3 + $0x30] sm:$0xf]
    %v760 = vld [vmem:[%s3 + $0x34] sm:$0xf]
    %v761 = vld [vmem:[%s3 + $0x38] sm:$0xf]
    %v762 = vld [vmem:[%s3 + $0x3c] sm:$0xf]
    %v763 = vld [vmem:[%s4] sm:$0x1]
    %v765 = vlaneseq
    %v766 = vshrl.u32 %v765, 7
    %v767 = vsub.s32 0, %v766
    %v768 = vrot.slane %v763, %v767
    %v786 = vunpack.c.l.b16 %v747
    %v787 = vunpack.c.l.b16 %v748
    %v788 = vunpack.c.l.b16 %v749
    %v789 = vunpack.c.l.b16 %v750
    %v790 = vunpack.c.l.b16 %v751
    %v791 = vunpack.c.l.b16 %v752
    %v792 = vunpack.c.l.b16 %v753
    %v793 = vunpack.c.l.b16 %v754
    %v794 = vunpack.c.l.b16 %v755
    %v795 = vunpack.c.l.b16 %v756
    %v796 = vunpack.c.l.b16 %v757
    %v797 = vunpack.c.l.b16 %v758
    %v798 = vunpack.c.l.b16 %v759
    %v799 = vunpack.c.l.b16 %v760
    %v800 = vunpack.c.l.b16 %v761
    %v801 = vunpack.c.l.b16 %v762
    %v802 = vpack.c.b16 %v787, %v786
    %v803 = vpack.c.b16 %v789, %v788
    %v804 = vpack.c.b16 %v791, %v790
    %v805 = vpack.c.b16 %v793, %v792
    %v806 = vpack.c.b16 %v795, %v794
    %v807 = vpack.c.b16 %v797, %v796
    %v808 = vpack.c.b16 %v799, %v798
    %v809 = vpack.c.b16 %v801, %v800
    %818 = vmatprep.subr.bf16.mxu0 0
    %819 = vmatpush1.bf16.msra.mxu0 %v809
    %820 = vmatprep.subr.bf16.mxu0 0
    %821 = vmatpush1.bf16.msra.mxu0 %v808
    %822 = vmatprep.subr.bf16.mxu0 0
    %823 = vmatpush1.bf16.msra.mxu0 %v807
    %824 = vmatprep.subr.bf16.mxu0 0
    %825 = vmatpush1.bf16.msra.mxu0 %v806
    %826 = vmatprep.subr.bf16.mxu0 0
    %827 = vmatpush1.bf16.msra.mxu0 %v805
    %828 = vmatprep.subr.bf16.mxu0 0
    %829 = vmatpush1.bf16.msra.mxu0 %v804
    %830 = vmatprep.subr.bf16.mxu0 0
    %831 = vmatpush1.bf16.msra.mxu0 %v803
    %832 = vmatprep.subr.bf16.mxu0 0
    %833 = vmatpush1.bf16.msra.mxu0 %v802
    %834 = vmatprep.subr.bf16.mxu0 0
    %835 = vmatpush2.bf16.msra.mxu0 0
    %836 = vmatprep.subr.bf16.mxu0 0
    %837 = vmatpush2.bf16.msra.mxu0 0
    %838 = vmatprep.subr.bf16.mxu0 0
    %839 = vmatpush2.bf16.msra.mxu0 0
    %840 = vmatprep.subr.bf16.mxu0 0
    %841 = vmatpush2.bf16.msra.mxu0 0
    %842 = vmatprep.subr.bf16.mxu0 0
    %843 = vmatpush2.bf16.msra.mxu0 0
    %844 = vmatprep.subr.bf16.mxu0 0
    %845 = vmatpush2.bf16.msra.mxu0 0
    %846 = vmatprep.subr.bf16.mxu0 0
    %847 = vmatpush2.bf16.msra.mxu0 0
    %848 = vmatprep.subr.bf16.mxu0 0
    %849 = vmatpush2.bf16.msra.mxu0 0
    %850 = vmatprep.mubr.bf16.mxu0 0
    %851 = vmatmul.mubr.bf16.gmra.mxu0 %v746
    %v852 = vpop.f32.mrf.mxu0
    %v853 = vadd.f32 %v768, %v852
    %v854 = vpop.f32.mrf.mxu0
    %v855 = vpop.f32.mrf.mxu0
    %v856 = vpop.f32.mrf.mxu0
    %857 = vdwg.mxu0
    %858 = vst [vmem:[%s5] sm:$0xff] %v853
  $region29: #{custom_cnn_forward.5} parent=0 // pred_fallthru
    _
  // Predicated region
  $region30: #{custom_cnn_forward.5} parent=0 // pred_check
    _
  $region31: #{custom_cnn_forward.5} parent=0 // pred_check_branch
    %860 = sbr.rel (0) target = $region33
  $region32: #{custom_cnn_forward.5} parent=0 // pred_region
    _
  $region33: #{custom_cnn_forward.5} parent=0 // pred_fallthru
    _
  // Predicated region
  $region34: #{custom_cnn_forward.5} parent=0 // pred_check
    _
  $region35: #{custom_cnn_forward.5} parent=0 // pred_check_branch
    %862 = sbr.rel (0) target = $region37
  $region36: #{custom_cnn_forward.5} parent=0 // pred_region
    _
  $region37: #{custom_cnn_forward.5} parent=0 // pred_fallthru
    _

// kernel: custom_cnn_forward.4
$region0: #{custom_cnn_forward.4}
  #allocation0 [shape = 'u32[]', space=smem, size = 0x4, offset = 0x4, fixed_abs, tag = 'smem constant byte address 0x4 - core index']
  #allocation1 [shape = 'u32[144,128]{1,0:T(1,128)}', space=vmem, size = 0x12000, scoped, tag = 'internal scratch']
  #allocation2 [shape = 'bf16[2,110,32]{2,1,0:T(8,128)(2,1)}', space=vmem, size = 0xe000, scoped, tag = 'scratch operand']
  %s0 = inlined_call_operand.vmem [shape: bf16[2,8,8,32], index: 0, kind: input, shape index: {}]
  %s1 = inlined_call_operand.vmem [shape: bf16[288,64], index: 1, kind: input, shape index: {}]
  %s2 = inlined_call_operand.vmem [shape: f32[1,64], index: 2, kind: input, shape index: {}]
  %s3 = inlined_call_operand.vmem [shape: bf16[2,4,256], index: 3, kind: output, shape index: {}]
  %s4 = sld [smem:[#allocation0]]
  $region22: #{custom_cnn_forward.4} parent=0
    _
  %s6 = ssub.s32 1, %s4
  %s7 = scalar_select 0, %s6, %s4
  // Predicated region
  $region2: #{custom_cnn_forward.4} parent=0 // pred_check
    _
  $region3: #{custom_cnn_forward.4} parent=0 // pred_check_branch
    %9 = sbr.rel (0) target = $region5
  $region4: #{custom_cnn_forward.4} parent=0 // pred_region
    _
  $region5: #{custom_cnn_forward.4} parent=0 // pred_fallthru
    _
  // Predicated region
  $region6: #{custom_cnn_forward.4} parent=0 // pred_check
    _
  $region7: #{custom_cnn_forward.4} parent=0 // pred_check_branch
    %11 = sbr.rel (0) target = $region9
  $region8: #{custom_cnn_forward.4} parent=0 // pred_region
    _
  $region9: #{custom_cnn_forward.4} parent=0 // pred_fallthru
    _
  // Predicated region
  $region10: #{custom_cnn_forward.4} parent=0 // pred_check
    _
  $region11: #{custom_cnn_forward.4} parent=0 // pred_check_branch
    %13 = sbr.rel (0) target = $region13
  $region12: #{custom_cnn_forward.4} parent=0 // pred_region
    _
  $region13: #{custom_cnn_forward.4} parent=0 // pred_fallthru
    _
  %vm15 = vcmask 257024
  %16 = vst.msk [vmem:[#allocation2] sm:$0xf] %vm15, 0
  %17 = vst.msk [vmem:[#allocation2 + $0x4] sm:$0xf] %vm15, 0
  %18 = vst.msk [vmem:[#allocation2 + $0x8] sm:$0xf] %vm15, 0
  %19 = vst.msk [vmem:[#allocation2 + $0xc] sm:$0xf] %vm15, 0
  %20 = vst.msk [vmem:[#allocation2 + $0x10] sm:$0xf] %vm15, 0
  %21 = vst.msk [vmem:[#allocation2 + $0x14] sm:$0xf] %vm15, 0
  %22 = vst.msk [vmem:[#allocation2 + $0x18] sm:$0xf] %vm15, 0
  %23 = vst.msk [vmem:[#allocation2 + $0x1c] sm:$0xf] %vm15, 0
  %24 = vst.msk [vmem:[#allocation2 + $0x20] sm:$0xf] %vm15, 0
  %25 = vst.msk [vmem:[#allocation2 + $0x24] sm:$0xf] %vm15, 0
  %26 = vst.msk [vmem:[#allocation2 + $0x28] sm:$0xf] %vm15, 0
  %27 = vst.msk [vmem:[#allocation2 + $0x2c] sm:$0xf] %vm15, 0
  %28 = vst.msk [vmem:[#allocation2 + $0x30] sm:$0xf] %vm15, 0
  %vm29 = vcmask 256000
  %30 = vst.msk [vmem:[#allocation2 + $0x34] sm:$0x7] %vm29, 0
  %31 = vst.msk [vmem:[#allocation2 + $0x38] sm:$0xf] %vm15, 0
  %32 = vst.msk [vmem:[#allocation2 + $0x3c] sm:$0xf] %vm15, 0
  %33 = vst.msk [vmem:[#allocation2 + $0x40] sm:$0xf] %vm15, 0
  %34 = vst.msk [vmem:[#allocation2 + $0x44] sm:$0xf] %vm15, 0
  %35 = vst.msk [vmem:[#allocation2 + $0x48] sm:$0xf] %vm15, 0
  %36 = vst.msk [vmem:[#allocation2 + $0x4c] sm:$0xf] %vm15, 0
  %37 = vst.msk [vmem:[#allocation2 + $0x50] sm:$0xf] %vm15, 0
  %38 = vst.msk [vmem:[#allocation2 + $0x54] sm:$0xf] %vm15, 0
  %39 = vst.msk [vmem:[#allocation2 + $0x58] sm:$0xf] %vm15, 0
  %40 = vst.msk [vmem:[#allocation2 + $0x5c] sm:$0xf] %vm15, 0
  %41 = vst.msk [vmem:[#allocation2 + $0x60] sm:$0xf] %vm15, 0
  %42 = vst.msk [vmem:[#allocation2 + $0x64] sm:$0xf] %vm15, 0
  %43 = vst.msk [vmem:[#allocation2 + $0x68] sm:$0xf] %vm15, 0
  %44 = vst.msk [vmem:[#allocation2 + $0x6c] sm:$0x7] %vm29, 0
  %v45 = vld [vmem:[%s0] sm:$0xf]
  %v46 = vld [vmem:[%s0 + $0x20] sm:$0xf]
  %v48 = vshrl.u32 %v45, 16
  %v50 = vrot.slane %v48, 6
  %v51 = vshll.u32 %v45, 16
  %v53 = vrot.slane %v51, 7
  %v54 = vor.u32 %v50, %v53
  %v55 = vrot.slane %v54, 4
  %v57 = vshrl.u32 %v46, 16
  %v59 = vrot.slane %v57, 6
  %v60 = vshll.u32 %v46, 16
  %v62 = vrot.slane %v60, 7
  %v63 = vor.u32 %v59, %v62
  %v64 = vrot.slane %v63, 4
  %vm69 = vcmask 257025
  %vm70 = vsmask.f32 7942
  %vm71 = vmand %vm69, %vm70
  %v72 = vld [vmem:[#allocation2 + $0x4] sm:$0xe]
  %v73 = vsel %vm71, %v54, %v72
  %74 = vst [vmem:[#allocation2 + $0x4] sm:$0xe] %v73
  %vm75 = vcmask 254976
  %vm76 = vsmask.f32 1280
  %vm77 = vmand %vm75, %vm76
  %v78 = vld [vmem:[#allocation2 + $0x8] sm:$0x3]
  %v79 = vsel %vm77, %v55, %v78
  %80 = vst [vmem:[#allocation2 + $0x8] sm:$0x3] %v79
  %v81 = vld [vmem:[#allocation2 + $0x3c] sm:$0xe]
  %v82 = vsel %vm71, %v63, %v81
  %83 = vst [vmem:[#allocation2 + $0x3c] sm:$0xe] %v82
  %v84 = vld [vmem:[#allocation2 + $0x40] sm:$0x3]
  %v85 = vsel %vm77, %v64, %v84
  %86 = vst [vmem:[#allocation2 + $0x40] sm:$0x3] %v85
  %s87 = scalar_lea.vmem %s0, 4
  %v88 = vld [vmem:[%s87] sm:$0xf]
  %v89 = vld [vmem:[%s87 + $0x20] sm:$0xf]
  %v91 = vshrl.u32 %v88, 16
  %v93 = vrot.slane %v91, 5
  %v94 = vshll.u32 %v88, 16
  %v96 = vrot.slane %v94, 6
  %v97 = vor.u32 %v93, %v96
  %v98 = vrot.slane %v97, 4
  %v100 = vshrl.u32 %v89, 16
  %v102 = vrot.slane %v100, 5
  %v103 = vshll.u32 %v89, 16
  %v105 = vrot.slane %v103, 6
  %v106 = vor.u32 %v102, %v105
  %v107 = vrot.slane %v106, 4
  %vm112 = vcmask 257026
  %vm113 = vsmask.f32 7946
  %vm114 = vmand %vm112, %vm113
  %v115 = vld [vmem:[#allocation2 + $0x8] sm:$0xc]
  %v116 = vsel %vm114, %v97, %v115
  %117 = vst [vmem:[#allocation2 + $0x8] sm:$0xc] %v116
  %vm118 = vcmask 256000
  %vm119 = vsmask.f32 2304
  %vm120 = vmand %vm118, %vm119
  %v121 = vld [vmem:[#allocation2 + $0xc] sm:$0x7]
  %v122 = vsel %vm120, %v98, %v121
  %123 = vst [vmem:[#allocation2 + $0xc] sm:$0x7] %v122
  %v124 = vld [vmem:[#allocation2 + $0x40] sm:$0xc]
  %v125 = vsel %vm114, %v106, %v124
  %126 = vst [vmem:[#allocation2 + $0x40] sm:$0xc] %v125
  %v127 = vld [vmem:[#allocation2 + $0x44] sm:$0x7]
  %v128 = vsel %vm120, %v107, %v127
  %129 = vst [vmem:[#allocation2 + $0x44] sm:$0x7] %v128
  %s130 = scalar_lea.vmem %s0, 8
  %v131 = vld [vmem:[%s130] sm:$0xf]
  %v132 = vld [vmem:[%s130 + $0x20] sm:$0xf]
  %v134 = vshll.u32 %v131, 16
  %v136 = vrot.slane %v134, 5
  %v137 = vshrl.u32 %v131, 16
  %v139 = vrot.slane %v137, 4
  %v140 = vor.u32 %v139, %v136
  %v141 = vrot.slane %v140, 4
  %v143 = vshll.u32 %v132, 16
  %v145 = vrot.slane %v143, 5
  %v146 = vshrl.u32 %v132, 16
  %v148 = vrot.slane %v146, 4
  %v149 = vor.u32 %v148, %v145
  %v150 = vrot.slane %v149, 4
  %vm155 = vcmask 257027
  %vm156 = vsmask.f32 7950
  %vm157 = vmand %vm155, %vm156
  %v158 = vld [vmem:[#allocation2 + $0xc] sm:$0x8]
  %v159 = vsel %vm157, %v136, %v158
  %160 = vst [vmem:[#allocation2 + $0xc] sm:$0x8] %v159
  %vm161 = vcmask 257024
  %vm162 = vsmask.f32 3328
  %vm163 = vmand %vm161, %vm162
  %v164 = vld [vmem:[#allocation2 + $0x10] sm:$0xf]
  %v165 = vsel %vm163, %v141, %v164
  %166 = vst [vmem:[#allocation2 + $0x10] sm:$0xf] %v165
  %v167 = vld [vmem:[#allocation2 + $0x44] sm:$0x8]
  %v168 = vsel %vm157, %v145, %v167
  %169 = vst [vmem:[#allocation2 + $0x44] sm:$0x8] %v168
  %v170 = vld [vmem:[#allocation2 + $0x48] sm:$0xf]
  %v171 = vsel %vm163, %v150, %v170
  %172 = vst [vmem:[#allocation2 + $0x48] sm:$0xf] %v171
  %s173 = scalar_lea.vmem %s0, 12
  %v174 = vld [vmem:[%s173] sm:$0xf]
  %v175 = vld [vmem:[%s173 + $0x20] sm:$0xf]
  %v177 = vshrl.u32 %v174, 16
  %v179 = vrot.slane %v177, 7
  %v180 = vshll.u32 %v174, 16
  %v182 = vor.u32 %v179, %v180
  %v183 = vrot.slane %v179, 4
  %v185 = vshrl.u32 %v175, 16
  %v187 = vrot.slane %v185, 7
  %v188 = vshll.u32 %v175, 16
  %v190 = vor.u32 %v187, %v188
  %v191 = vrot.slane %v187, 4
  %vm196 = vsmask.f32 7938
  %vm197 = vmand %vm161, %vm196
  %v198 = vld [vmem:[#allocation2 + $0x14] sm:$0xf]
  %v199 = vsel %vm197, %v182, %v198
  %200 = vst [vmem:[#allocation2 + $0x14] sm:$0xf] %v199
  %vm201 = vcmask 253952
  %vm202 = vsmask.f32 256
  %vm203 = vmand %vm201, %vm202
  %v204 = vld [vmem:[#allocation2 + $0x18] sm:$0x1]
  %v205 = vsel %vm203, %v183, %v204
  %206 = vst [vmem:[#allocation2 + $0x18] sm:$0x1] %v205
  %v207 = vld [vmem:[#allocation2 + $0x4c] sm:$0xf]
  %v208 = vsel %vm197, %v190, %v207
  %209 = vst [vmem:[#allocation2 + $0x4c] sm:$0xf] %v208
  %v210 = vld [vmem:[#allocation2 + $0x50] sm:$0x1]
  %v211 = vsel %vm203, %v191, %v210
  %212 = vst [vmem:[#allocation2 + $0x50] sm:$0x1] %v211
  %s213 = scalar_lea.vmem %s0, 16
  %v214 = vld [vmem:[%s213] sm:$0xf]
  %v215 = vld [vmem:[%s213 + $0x20] sm:$0xf]
  %v217 = vshrl.u32 %v214, 16
  %v219 = vrot.slane %v217, 6
  %v220 = vshll.u32 %v214, 16
  %v222 = vrot.slane %v220, 7
  %v223 = vor.u32 %v219, %v222
  %v224 = vrot.slane %v223, 4
  %v226 = vshrl.u32 %v215, 16
  %v228 = vrot.slane %v226, 6
  %v229 = vshll.u32 %v215, 16
  %v231 = vrot.slane %v229, 7
  %v232 = vor.u32 %v228, %v231
  %v233 = vrot.slane %v232, 4
  %v238 = vld [vmem:[#allocation2 + $0x18] sm:$0xe]
  %v239 = vsel %vm71, %v223, %v238
  %240 = vst [vmem:[#allocation2 + $0x18] sm:$0xe] %v239
  %v241 = vld [vmem:[#allocation2 + $0x1c] sm:$0x3]
  %v242 = vsel %vm77, %v224, %v241
  %243 = vst [vmem:[#allocation2 + $0x1c] sm:$0x3] %v242
  %v244 = vld [vmem:[#allocation2 + $0x50] sm:$0xe]
  %v245 = vsel %vm71, %v232, %v244
  %246 = vst [vmem:[#allocation2 + $0x50] sm:$0xe] %v245
  %v247 = vld [vmem:[#allocation2 + $0x54] sm:$0x3]
  %v248 = vsel %vm77, %v233, %v247
  %249 = vst [vmem:[#allocation2 + $0x54] sm:$0x3] %v248
  %s250 = scalar_lea.vmem %s0, 20
  %v251 = vld [vmem:[%s250] sm:$0xf]
  %v252 = vld [vmem:[%s250 + $0x20] sm:$0xf]
  %v254 = vshrl.u32 %v251, 16
  %v256 = vrot.slane %v254, 5
  %v257 = vshll.u32 %v251, 16
  %v259 = vrot.slane %v257, 6
  %v260 = vor.u32 %v256, %v259
  %v261 = vrot.slane %v260, 4
  %v263 = vshrl.u32 %v252, 16
  %v265 = vrot.slane %v263, 5
  %v266 = vshll.u32 %v252, 16
  %v268 = vrot.slane %v266, 6
  %v269 = vor.u32 %v265, %v268
  %v270 = vrot.slane %v269, 4
  %v275 = vld [vmem:[#allocation2 + $0x1c] sm:$0xc]
  %v276 = vsel %vm114, %v260, %v275
  %277 = vst [vmem:[#allocation2 + $0x1c] sm:$0xc] %v276
  %v278 = vld [vmem:[#allocation2 + $0x20] sm:$0x7]
  %v279 = vsel %vm120, %v261, %v278
  %280 = vst [vmem:[#allocation2 + $0x20] sm:$0x7] %v279
  %v281 = vld [vmem:[#allocation2 + $0x54] sm:$0xc]
  %v282 = vsel %vm114, %v269, %v281
  %283 = vst [vmem:[#allocation2 + $0x54] sm:$0xc] %v282
  %v284 = vld [vmem:[#allocation2 + $0x58] sm:$0x7]
  %v285 = vsel %vm120, %v270, %v284
  %286 = vst [vmem:[#allocation2 + $0x58] sm:$0x7] %v285
  %s287 = scalar_lea.vmem %s0, 24
  %v288 = vld [vmem:[%s287] sm:$0xf]
  %v289 = vld [vmem:[%s287 + $0x20] sm:$0xf]
  %v291 = vshll.u32 %v288, 16
  %v293 = vrot.slane %v291, 5
  %v294 = vshrl.u32 %v288, 16
  %v296 = vrot.slane %v294, 4
  %v297 = vor.u32 %v296, %v293
  %v298 = vrot.slane %v297, 4
  %v300 = vshll.u32 %v289, 16
  %v302 = vrot.slane %v300, 5
  %v303 = vshrl.u32 %v289, 16
  %v305 = vrot.slane %v303, 4
  %v306 = vor.u32 %v305, %v302
  %v307 = vrot.slane %v306, 4
  %v312 = vld [vmem:[#allocation2 + $0x20] sm:$0x8]
  %v313 = vsel %vm157, %v293, %v312
  %314 = vst [vmem:[#allocation2 + $0x20] sm:$0x8] %v313
  %v315 = vld [vmem:[#allocation2 + $0x24] sm:$0xf]
  %v316 = vsel %vm163, %v298, %v315
  %317 = vst [vmem:[#allocation2 + $0x24] sm:$0xf] %v316
  %v318 = vld [vmem:[#allocation2 + $0x58] sm:$0x8]
  %v319 = vsel %vm157, %v302, %v318
  %320 = vst [vmem:[#allocation2 + $0x58] sm:$0x8] %v319
  %v321 = vld [vmem:[#allocation2 + $0x5c] sm:$0xf]
  %v322 = vsel %vm163, %v307, %v321
  %323 = vst [vmem:[#allocation2 + $0x5c] sm:$0xf] %v322
  %s324 = scalar_lea.vmem %s0, 28
  %v325 = vld [vmem:[%s324] sm:$0xf]
  %v326 = vld [vmem:[%s324 + $0x20] sm:$0xf]
  %v328 = vshrl.u32 %v325, 16
  %v330 = vrot.slane %v328, 7
  %v331 = vshll.u32 %v325, 16
  %v333 = vor.u32 %v330, %v331
  %v334 = vrot.slane %v330, 4
  %v336 = vshrl.u32 %v326, 16
  %v338 = vrot.slane %v336, 7
  %v339 = vshll.u32 %v326, 16
  %v341 = vor.u32 %v338, %v339
  %v342 = vrot.slane %v338, 4
  %v347 = vld [vmem:[#allocation2 + $0x28] sm:$0xf]
  %v348 = vsel %vm197, %v333, %v347
  %349 = vst [vmem:[#allocation2 + $0x28] sm:$0xf] %v348
  %v350 = vld [vmem:[#allocation2 + $0x2c] sm:$0x1]
  %v351 = vsel %vm203, %v334, %v350
  %352 = vst [vmem:[#allocation2 + $0x2c] sm:$0x1] %v351
  %v353 = vld [vmem:[#allocation2 + $0x60] sm:$0xf]
  %v354 = vsel %vm197, %v341, %v353
  %355 = vst [vmem:[#allocation2 + $0x60] sm:$0xf] %v354
  %v356 = vld [vmem:[#allocation2 + $0x64] sm:$0x1]
  %v357 = vsel %vm203, %v342, %v356
  %358 = vst [vmem:[#allocation2 + $0x64] sm:$0x1] %v357
  %v359 = vld [vmem:[#allocation2] sm:$0xf]
  %v360 = vld [vmem:[#allocation2 + $0x4] sm:$0xf]
  %v361 = vld [vmem:[#allocation2 + $0x8] sm:$0xf]
  %v362 = vld [vmem:[#allocation2 + $0xc] sm:$0xf]
  %v363 = vld [vmem:[#allocation2 + $0x10] sm:$0xf]
  %v364 = vld [vmem:[#allocation2 + $0x14] sm:$0xf]
  %v365 = vld [vmem:[#allocation2 + $0x18] sm:$0xf]
  %v366 = vld [vmem:[#allocation2 + $0x1c] sm:$0xf]
  %v367 = vld [vmem:[#allocation2 + $0x20] sm:$0xf]
  %v368 = vld [vmem:[#allocation2 + $0x24] sm:$0xf]
  %v369 = vld [vmem:[#allocation2 + $0x38] sm:$0xf]
  %v370 = vld [vmem:[#allocation2 + $0x3c] sm:$0xf]
  %v371 = vld [vmem:[#allocation2 + $0x40] sm:$0xf]
  %v372 = vld [vmem:[#allocation2 + $0x44] sm:$0xf]
  %v373 = vld [vmem:[#allocation2 + $0x48] sm:$0xf]
  %v374 = vld [vmem:[#allocation2 + $0x4c] sm:$0xf]
  %v375 = vld [vmem:[#allocation2 + $0x50] sm:$0xf]
  %v376 = vld [vmem:[#allocation2 + $0x54] sm:$0xf]
  %v377 = vld [vmem:[#allocation2 + $0x58] sm:$0xf]
  %v378 = vld [vmem:[#allocation2 + $0x5c] sm:$0xf]
  %v379 = vld [vmem:[#allocation2 + $0x28] sm:$0x1]
  %v380 = vld [vmem:[#allocation2 + $0x60] sm:$0x1]
  %v381 = vld [vmem:[#allocation2] sm:$0xe]
  %v382 = vld [vmem:[#allocation2 + $0x38] sm:$0xe]
  %v383 = vld [vmem:[#allocation2 + $0x4] sm:$0xe]
  %v384 = vld [vmem:[#allocation2 + $0x28] sm:$0xf]
  %v385 = vld [vmem:[#allocation2 + $0x2c] sm:$0x1]
  %v386 = vld [vmem:[#allocation2 + $0x3c] sm:$0xe]
  %v387 = vld [vmem:[#allocation2 + $0x60] sm:$0xf]
  %v388 = vld [vmem:[#allocation2 + $0x64] sm:$0x1]
  %v389 = vld [vmem:[#allocation2 + $0x2c] sm:$0x3]
  %v390 = vld [vmem:[#allocation2 + $0x64] sm:$0x3]
  %v391 = vld [vmem:[#allocation2 + $0x4] sm:$0xc]
  %v392 = vld [vmem:[#allocation2 + $0x3c] sm:$0xc]
  %v393 = vld [vmem:[#allocation2 + $0x8] sm:$0xc]
  %v394 = vld [vmem:[#allocation2 + $0x2c] sm:$0xf]
  %v395 = vld [vmem:[#allocation2 + $0x30] sm:$0x3]
  %v396 = vld [vmem:[#allocation2 + $0x40] sm:$0xc]
  %v397 = vld [vmem:[#allocation2 + $0x64] sm:$0xf]
  %v398 = vld [vmem:[#allocation2 + $0x68] sm:$0x3]
  %v399 = vld [vmem:[#allocation2 + $0x30] sm:$0x7]
  %v400 = vld [vmem:[#allocation2 + $0x68] sm:$0x7]
  %v401 = vld [vmem:[#allocation2 + $0x8] sm:$0x8]
  %v402 = vld [vmem:[#allocation2 + $0x40] sm:$0x8]
  %v423 = vunpack.c.l.b16 %v359
  %v424 = vunpack.c.l.b16 %v360
  %v425 = vunpack.c.l.b16 %v361
  %v426 = vunpack.c.l.b16 %v362
  %v427 = vunpack.c.l.b16 %v363
  %v428 = vunpack.c.l.b16 %v364
  %v429 = vunpack.c.l.b16 %v365
  %v430 = vunpack.c.l.b16 %v366
  %v431 = vunpack.c.l.b16 %v367
  %v432 = vunpack.c.l.b16 %v368
  %v433 = vunpack.c.l.b16 %v369
  %v434 = vunpack.c.l.b16 %v370
  %v435 = vunpack.c.l.b16 %v371
  %v436 = vunpack.c.l.b16 %v372
  %v437 = vunpack.c.l.b16 %v373
  %v438 = vunpack.c.l.b16 %v374
  %v439 = vunpack.c.l.b16 %v375
  %v440 = vunpack.c.l.b16 %v376
  %v441 = vunpack.c.l.b16 %v377
  %v442 = vunpack.c.l.b16 %v378
  %v443 = vpack.c.b16 %v424, %v423
  %v444 = vpack.c.b16 %v426, %v425
  %v445 = vpack.c.b16 %v428, %v427
  %v446 = vpack.c.b16 %v430, %v429
  %v447 = vpack.c.b16 %v432, %v431
  %v448 = vpack.c.b16 %v434, %v433
  %v449 = vpack.c.b16 %v436, %v435
  %v450 = vpack.c.b16 %v438, %v437
  %v451 = vpack.c.b16 %v440, %v439
  %v452 = vpack.c.b16 %v442, %v441
  %v455 = vunpack.c.l.b16 %v379
  %v456 = vunpack.c.l.b16 %v380
  %v457 = vpack.c.b16 %v455, %v455
  %v458 = vpack.c.b16 %v456, %v456
  %vm459 = vsmask.f32 7424
  %v461 = vshrl.u32 %v443, 16
  %v463 = vshll.u32 %v443, 16
  %v465 = vrot.slane %v463, 1
  %v466 = vor.u32 %v461, %v465
  %v468 = vshll.u32 %v444, 16
  %v470 = vrot.slane %v468, 1
  %v471 = vsel %vm459, %v466, %v470
  %v472 = vshrl.u32 %v444, 16
  %v474 = vor.u32 %v472, %v470
  %v476 = vshll.u32 %v445, 16
  %v478 = vrot.slane %v476, 1
  %v479 = vsel %vm459, %v474, %v478
  %v480 = vshrl.u32 %v445, 16
  %v482 = vor.u32 %v480, %v478
  %v484 = vshll.u32 %v446, 16
  %v486 = vrot.slane %v484, 1
  %v487 = vsel %vm459, %v482, %v486
  %v488 = vshrl.u32 %v446, 16
  %v490 = vor.u32 %v488, %v486
  %v492 = vshll.u32 %v447, 16
  %v494 = vrot.slane %v492, 1
  %v495 = vsel %vm459, %v490, %v494
  %v496 = vshrl.u32 %v447, 16
  %v498 = vor.u32 %v496, %v494
  %v500 = vshll.u32 %v457, 16
  %v502 = vrot.slane %v500, 1
  %v503 = vsel %vm459, %v498, %v502
  %v505 = vshrl.u32 %v448, 16
  %v507 = vshll.u32 %v448, 16
  %v509 = vrot.slane %v507, 1
  %v510 = vor.u32 %v505, %v509
  %v512 = vshll.u32 %v449, 16
  %v514 = vrot.slane %v512, 1
  %v515 = vsel %vm459, %v510, %v514
  %v516 = vshrl.u32 %v449, 16
  %v518 = vor.u32 %v516, %v514
  %v520 = vshll.u32 %v450, 16
  %v522 = vrot.slane %v520, 1
  %v523 = vsel %vm459, %v518, %v522
  %v524 = vshrl.u32 %v450, 16
  %v526 = vor.u32 %v524, %v522
  %v528 = vshll.u32 %v451, 16
  %v530 = vrot.slane %v528, 1
  %v531 = vsel %vm459, %v526, %v530
  %v532 = vshrl.u32 %v451, 16
  %v534 = vor.u32 %v532, %v530
  %v536 = vshll.u32 %v452, 16
  %v538 = vrot.slane %v536, 1
  %v539 = vsel %vm459, %v534, %v538
  %v540 = vshrl.u32 %v452, 16
  %v542 = vor.u32 %v540, %v538
  %v544 = vshll.u32 %v458, 16
  %v546 = vrot.slane %v544, 1
  %v547 = vsel %vm459, %v542, %v546
  %548 = vrot.lane.b32.xlu0 %v471, 32
  %v549 = vpop.permute.xlu0 %548
  %550 = vrot.lane.b32.xlu0 %v479, 32
  %v551 = vpop.permute.xlu0 %550
  %552 = vrot.lane.b32.xlu0 %v487, 32
  %v553 = vpop.permute.xlu0 %552
  %554 = vrot.lane.b32.xlu0 %v495, 32
  %v555 = vpop.permute.xlu0 %554
  %556 = vrot.lane.b32.xlu0 %v503, 32
  %v557 = vpop.permute.xlu0 %556
  %558 = vrot.lane.b32.xlu0 %v515, 32
  %v559 = vpop.permute.xlu0 %558
  %560 = vrot.lane.b32.xlu0 %v523, 32
  %v561 = vpop.permute.xlu0 %560
  %562 = vrot.lane.b32.xlu0 %v531, 32
  %v563 = vpop.permute.xlu0 %562
  %564 = vrot.lane.b32.xlu0 %v539, 32
  %v565 = vpop.permute.xlu0 %564
  %566 = vrot.lane.b32.xlu0 %v547, 32
  %v567 = vpop.permute.xlu0 %566
  %v570 = vunpack.c.l.b16 %v381
  %v571 = vunpack.c.l.b16 %v382
  %v572 = vpack.c.b16 %v424, %v570
  %v573 = vpack.c.b16 %v434, %v571
  %vm574 = vcmask 1046528
  %v575 = vrot.slane %v572, 1
  %v576 = vrot.slane %v444, 1
  %v577 = vsel %vm574, %v575, %v576
  %v578 = vrot.slane %v445, 1
  %v579 = vsel %vm574, %v576, %v578
  %v580 = vrot.slane %v446, 1
  %v581 = vsel %vm574, %v578, %v580
  %v582 = vrot.slane %v447, 1
  %v583 = vsel %vm574, %v580, %v582
  %v584 = vrot.slane %v457, 1
  %v585 = vsel %vm574, %v582, %v584
  %v586 = vrot.slane %v573, 1
  %v587 = vrot.slane %v449, 1
  %v588 = vsel %vm574, %v586, %v587
  %v589 = vrot.slane %v450, 1
  %v590 = vsel %vm574, %v587, %v589
  %v591 = vrot.slane %v451, 1
  %v592 = vsel %vm574, %v589, %v591
  %v593 = vrot.slane %v452, 1
  %v594 = vsel %vm574, %v591, %v593
  %v595 = vrot.slane %v458, 1
  %v596 = vsel %vm574, %v593, %v595
  %597 = vrot.lane.b32.xlu0 %v577, 64
  %v598 = vpop.permute.xlu0 %597
  %599 = vrot.lane.b32.xlu0 %v579, 64
  %v600 = vpop.permute.xlu0 %599
  %601 = vrot.lane.b32.xlu0 %v581, 64
  %v602 = vpop.permute.xlu0 %601
  %603 = vrot.lane.b32.xlu0 %v583, 64
  %v604 = vpop.permute.xlu0 %603
  %605 = vrot.lane.b32.xlu0 %v585, 64
  %v606 = vpop.permute.xlu0 %605
  %607 = vrot.lane.b32.xlu0 %v588, 64
  %v608 = vpop.permute.xlu0 %607
  %609 = vrot.lane.b32.xlu0 %v590, 64
  %v610 = vpop.permute.xlu0 %609
  %611 = vrot.lane.b32.xlu0 %v592, 64
  %v612 = vpop.permute.xlu0 %611
  %613 = vrot.lane.b32.xlu0 %v594, 64
  %v614 = vpop.permute.xlu0 %613
  %615 = vrot.lane.b32.xlu0 %v596, 64
  %v616 = vpop.permute.xlu0 %615
  %v623 = vunpack.c.l.b16 %v383
  %v624 = vunpack.c.l.b16 %v384
  %v625 = vunpack.c.l.b16 %v385
  %v626 = vunpack.c.l.b16 %v386
  %v627 = vunpack.c.l.b16 %v387
  %v628 = vunpack.c.l.b16 %v388
  %v629 = vpack.c.b16 %v425, %v623
  %v630 = vpack.c.b16 %v427, %v426
  %v631 = vpack.c.b16 %v429, %v428
  %v632 = vpack.c.b16 %v431, %v430
  %v633 = vpack.c.b16 %v624, %v432
  %v634 = vpack.c.b16 %v625, %v625
  %v635 = vpack.c.b16 %v435, %v626
  %v636 = vpack.c.b16 %v437, %v436
  %v637 = vpack.c.b16 %v439, %v438
  %v638 = vpack.c.b16 %v441, %v440
  %v639 = vpack.c.b16 %v627, %v442
  %v640 = vpack.c.b16 %v628, %v628
  %v641 = vrot.slane %v629, 1
  %v642 = vrot.slane %v630, 1
  %v643 = vsel %vm574, %v641, %v642
  %v644 = vrot.slane %v631, 1
  %v645 = vsel %vm574, %v642, %v644
  %v646 = vrot.slane %v632, 1
  %v647 = vsel %vm574, %v644, %v646
  %v648 = vrot.slane %v633, 1
  %v649 = vsel %vm574, %v646, %v648
  %v650 = vrot.slane %v634, 1
  %v651 = vsel %vm574, %v648, %v650
  %v652 = vrot.slane %v635, 1
  %v653 = vrot.slane %v636, 1
  %v654 = vsel %vm574, %v652, %v653
  %v655 = vrot.slane %v637, 1
  %v656 = vsel %vm574, %v653, %v655
  %v657 = vrot.slane %v638, 1
  %v658 = vsel %vm574, %v655, %v657
  %v659 = vrot.slane %v639, 1
  %v660 = vsel %vm574, %v657, %v659
  %v661 = vrot.slane %v640, 1
  %v662 = vsel %vm574, %v659, %v661
  %663 = vrot.lane.b32.xlu0 %v643, 96
  %v664 = vpop.permute.xlu0 %663
  %665 = vrot.lane.b32.xlu0 %v645, 96
  %v666 = vpop.permute.xlu0 %665
  %667 = vrot.lane.b32.xlu0 %v647, 96
  %v668 = vpop.permute.xlu0 %667
  %669 = vrot.lane.b32.xlu0 %v649, 96
  %v670 = vpop.permute.xlu0 %669
  %671 = vrot.lane.b32.xlu0 %v651, 96
  %v672 = vpop.permute.xlu0 %671
  %673 = vrot.lane.b32.xlu0 %v654, 96
  %v674 = vpop.permute.xlu0 %673
  %675 = vrot.lane.b32.xlu0 %v656, 96
  %v676 = vpop.permute.xlu0 %675
  %677 = vrot.lane.b32.xlu0 %v658, 96
  %v678 = vpop.permute.xlu0 %677
  %679 = vrot.lane.b32.xlu0 %v660, 96
  %v680 = vpop.permute.xlu0 %679
  %681 = vrot.lane.b32.xlu0 %v662, 96
  %v682 = vpop.permute.xlu0 %681
  %v685 = vunpack.c.l.b16 %v389
  %v686 = vunpack.c.l.b16 %v390
  %v687 = vpack.c.b16 %v685, %v685
  %v688 = vpack.c.b16 %v686, %v686
  %vm689 = vsmask.f32 6400
  %v691 = vshrl.u32 %v629, 16
  %v693 = vrot.slane %v691, 1
  %v694 = vshll.u32 %v629, 16
  %v696 = vrot.slane %v694, 2
  %v697 = vor.u32 %v693, %v696
  %v699 = vshrl.u32 %v630, 16
  %v701 = vrot.slane %v699, 1
  %v702 = vshll.u32 %v630, 16
  %v704 = vrot.slane %v702, 2
  %v705 = vor.u32 %v701, %v704
  %v706 = vsel %vm689, %v697, %v705
  %v708 = vshrl.u32 %v631, 16
  %v710 = vrot.slane %v708, 1
  %v711 = vshll.u32 %v631, 16
  %v713 = vrot.slane %v711, 2
  %v714 = vor.u32 %v710, %v713
  %v715 = vsel %vm689, %v705, %v714
  %v717 = vshrl.u32 %v632, 16
  %v719 = vrot.slane %v717, 1
  %v720 = vshll.u32 %v632, 16
  %v722 = vrot.slane %v720, 2
  %v723 = vor.u32 %v719, %v722
  %v724 = vsel %vm689, %v714, %v723
  %v726 = vshrl.u32 %v633, 16
  %v728 = vrot.slane %v726, 1
  %v729 = vshll.u32 %v633, 16
  %v731 = vrot.slane %v729, 2
  %v732 = vor.u32 %v728, %v731
  %v733 = vsel %vm689, %v723, %v732
  %v735 = vshrl.u32 %v687, 16
  %v737 = vrot.slane %v735, 1
  %v738 = vshll.u32 %v687, 16
  %v740 = vrot.slane %v738, 2
  %v741 = vor.u32 %v737, %v740
  %v742 = vsel %vm689, %v732, %v741
  %v744 = vshrl.u32 %v635, 16
  %v746 = vrot.slane %v744, 1
  %v747 = vshll.u32 %v635, 16
  %v749 = vrot.slane %v747, 2
  %v750 = vor.u32 %v746, %v749
  %v752 = vshrl.u32 %v636, 16
  %v754 = vrot.slane %v752, 1
  %v755 = vshll.u32 %v636, 16
  %v757 = vrot.slane %v755, 2
  %v758 = vor.u32 %v754, %v757
  %v759 = vsel %vm689, %v750, %v758
  %v761 = vshrl.u32 %v637, 16
  %v763 = vrot.slane %v761, 1
  %v764 = vshll.u32 %v637, 16
  %v766 = vrot.slane %v764, 2
  %v767 = vor.u32 %v763, %v766
  %v768 = vsel %vm689, %v758, %v767
  %v770 = vshrl.u32 %v638, 16
  %v772 = vrot.slane %v770, 1
  %v773 = vshll.u32 %v638, 16
  %v775 = vrot.slane %v773, 2
  %v776 = vor.u32 %v772, %v775
  %v777 = vsel %vm689, %v767, %v776
  %v779 = vshrl.u32 %v639, 16
  %v781 = vrot.slane %v779, 1
  %v782 = vshll.u32 %v639, 16
  %v784 = vrot.slane %v782, 2
  %v785 = vor.u32 %v781, %v784
  %v786 = vsel %vm689, %v776, %v785
  %v788 = vshrl.u32 %v688, 16
  %v790 = vrot.slane %v788, 1
  %v791 = vshll.u32 %v688, 16
  %v793 = vrot.slane %v791, 2
  %v794 = vor.u32 %v790, %v793
  %v795 = vsel %vm689, %v785, %v794
  %v798 = vunpack.c.l.b16 %v391
  %v799 = vunpack.c.l.b16 %v392
  %v800 = vpack.c.b16 %v425, %v798
  %v801 = vpack.c.b16 %v435, %v799
  %vm802 = vcmask 1045504
  %v803 = vrot.slane %v800, 2
  %v804 = vrot.slane %v630, 2
  %v805 = vsel %vm802, %v803, %v804
  %v806 = vrot.slane %v631, 2
  %v807 = vsel %vm802, %v804, %v806
  %v808 = vrot.slane %v632, 2
  %v809 = vsel %vm802, %v806, %v808
  %v810 = vrot.slane %v633, 2
  %v811 = vsel %vm802, %v808, %v810
  %v812 = vrot.slane %v687, 2
  %v813 = vsel %vm802, %v810, %v812
  %v814 = vrot.slane %v801, 2
  %v815 = vrot.slane %v636, 2
  %v816 = vsel %vm802, %v814, %v815
  %v817 = vrot.slane %v637, 2
  %v818 = vsel %vm802, %v815, %v817
  %v819 = vrot.slane %v638, 2
  %v820 = vsel %vm802, %v817, %v819
  %v821 = vrot.slane %v639, 2
  %v822 = vsel %vm802, %v819, %v821
  %v823 = vrot.slane %v688, 2
  %v824 = vsel %vm802, %v821, %v823
  %825 = vrot.lane.b32.xlu0 %v805, 32
  %v826 = vpop.permute.xlu0 %825
  %827 = vrot.lane.b32.xlu0 %v807, 32
  %v828 = vpop.permute.xlu0 %827
  %829 = vrot.lane.b32.xlu0 %v809, 32
  %v830 = vpop.permute.xlu0 %829
  %831 = vrot.lane.b32.xlu0 %v811, 32
  %v832 = vpop.permute.xlu0 %831
  %833 = vrot.lane.b32.xlu0 %v813, 32
  %v834 = vpop.permute.xlu0 %833
  %835 = vrot.lane.b32.xlu0 %v816, 32
  %v836 = vpop.permute.xlu0 %835
  %837 = vrot.lane.b32.xlu0 %v818, 32
  %v838 = vpop.permute.xlu0 %837
  %839 = vrot.lane.b32.xlu0 %v820, 32
  %v840 = vpop.permute.xlu0 %839
  %841 = vrot.lane.b32.xlu0 %v822, 32
  %v842 = vpop.permute.xlu0 %841
  %843 = vrot.lane.b32.xlu0 %v824, 32
  %v844 = vpop.permute.xlu0 %843
  %v851 = vunpack.c.l.b16 %v393
  %v852 = vunpack.c.l.b16 %v394
  %v853 = vunpack.c.l.b16 %v395
  %v854 = vunpack.c.l.b16 %v396
  %v855 = vunpack.c.l.b16 %v397
  %v856 = vunpack.c.l.b16 %v398
  %v857 = vpack.c.b16 %v426, %v851
  %v858 = vpack.c.b16 %v852, %v624
  %v859 = vpack.c.b16 %v853, %v853
  %v860 = vpack.c.b16 %v436, %v854
  %v861 = vpack.c.b16 %v855, %v627
  %v862 = vpack.c.b16 %v856, %v856
  %v863 = vrot.slane %v857, 2
  %v864 = vrot.slane %v445, 2
  %v865 = vsel %vm802, %v863, %v864
  %v866 = vrot.slane %v446, 2
  %v867 = vsel %vm802, %v864, %v866
  %v868 = vrot.slane %v447, 2
  %v869 = vsel %vm802, %v866, %v868
  %v870 = vrot.slane %v858, 2
  %v871 = vsel %vm802, %v868, %v870
  %v872 = vrot.slane %v859, 2
  %v873 = vsel %vm802, %v870, %v872
  %v874 = vrot.slane %v860, 2
  %v875 = vrot.slane %v450, 2
  %v876 = vsel %vm802, %v874, %v875
  %v877 = vrot.slane %v451, 2
  %v878 = vsel %vm802, %v875, %v877
  %v879 = vrot.slane %v452, 2
  %v880 = vsel %vm802, %v877, %v879
  %v881 = vrot.slane %v861, 2
  %v882 = vsel %vm802, %v879, %v881
  %v883 = vrot.slane %v862, 2
  %v884 = vsel %vm802, %v881, %v883
  %885 = vrot.lane.b32.xlu0 %v865, 64
  %v886 = vpop.permute.xlu0 %885
  %887 = vrot.lane.b32.xlu0 %v867, 64
  %v888 = vpop.permute.xlu0 %887
  %889 = vrot.lane.b32.xlu0 %v869, 64
  %v890 = vpop.permute.xlu0 %889
  %891 = vrot.lane.b32.xlu0 %v871, 64
  %v892 = vpop.permute.xlu0 %891
  %893 = vrot.lane.b32.xlu0 %v873, 64
  %v894 = vpop.permute.xlu0 %893
  %895 = vrot.lane.b32.xlu0 %v876, 64
  %v896 = vpop.permute.xlu0 %895
  %897 = vrot.lane.b32.xlu0 %v878, 64
  %v898 = vpop.permute.xlu0 %897
  %899 = vrot.lane.b32.xlu0 %v880, 64
  %v900 = vpop.permute.xlu0 %899
  %901 = vrot.lane.b32.xlu0 %v882, 64
  %v902 = vpop.permute.xlu0 %901
  %903 = vrot.lane.b32.xlu0 %v884, 64
  %v904 = vpop.permute.xlu0 %903
  %v907 = vunpack.c.l.b16 %v399
  %v908 = vunpack.c.l.b16 %v400
  %v909 = vpack.c.b16 %v907, %v907
  %v910 = vpack.c.b16 %v908, %v908
  %vm911 = vsmask.f32 5376
  %v913 = vshrl.u32 %v857, 16
  %v915 = vrot.slane %v913, 2
  %v916 = vshll.u32 %v857, 16
  %v918 = vrot.slane %v916, 3
  %v919 = vor.u32 %v915, %v918
  %v920 = vrot.slane %v480, 2
  %v921 = vrot.slane %v476, 3
  %v922 = vor.u32 %v920, %v921
  %v923 = vsel %vm911, %v919, %v922
  %v924 = vrot.slane %v488, 2
  %v925 = vrot.slane %v484, 3
  %v926 = vor.u32 %v924, %v925
  %v927 = vsel %vm911, %v922, %v926
  %v928 = vrot.slane %v496, 2
  %v929 = vrot.slane %v492, 3
  %v930 = vor.u32 %v928, %v929
  %v931 = vsel %vm911, %v926, %v930
  %v933 = vshrl.u32 %v858, 16
  %v935 = vrot.slane %v933, 2
  %v936 = vshll.u32 %v858, 16
  %v938 = vrot.slane %v936, 3
  %v939 = vor.u32 %v935, %v938
  %v940 = vsel %vm911, %v930, %v939
  %v942 = vshrl.u32 %v909, 16
  %v944 = vrot.slane %v942, 2
  %v945 = vshll.u32 %v909, 16
  %v947 = vrot.slane %v945, 3
  %v948 = vor.u32 %v944, %v947
  %v949 = vsel %vm911, %v939, %v948
  %v951 = vshrl.u32 %v860, 16
  %v953 = vrot.slane %v951, 2
  %v954 = vshll.u32 %v860, 16
  %v956 = vrot.slane %v954, 3
  %v957 = vor.u32 %v953, %v956
  %v958 = vrot.slane %v524, 2
  %v959 = vrot.slane %v520, 3
  %v960 = vor.u32 %v958, %v959
  %v961 = vsel %vm911, %v957, %v960
  %v962 = vrot.slane %v532, 2
  %v963 = vrot.slane %v528, 3
  %v964 = vor.u32 %v962, %v963
  %v965 = vsel %vm911, %v960, %v964
  %v966 = vrot.slane %v540, 2
  %v967 = vrot.slane %v536, 3
  %v968 = vor.u32 %v966, %v967
  %v969 = vsel %vm911, %v964, %v968
  %v971 = vshrl.u32 %v861, 16
  %v973 = vrot.slane %v971, 2
  %v974 = vshll.u32 %v861, 16
  %v976 = vrot.slane %v974, 3
  %v977 = vor.u32 %v973, %v976
  %v978 = vsel %vm911, %v968, %v977
  %v980 = vshrl.u32 %v910, 16
  %v982 = vrot.slane %v980, 2
  %v983 = vshll.u32 %v910, 16
  %v985 = vrot.slane %v983, 3
  %v986 = vor.u32 %v982, %v985
  %v987 = vsel %vm911, %v977, %v986
  %988 = vrot.lane.b32.xlu0 %v923, 96
  %v989 = vpop.permute.xlu0 %988
  %990 = vrot.lane.b32.xlu0 %v927, 96
  %v991 = vpop.permute.xlu0 %990
  %992 = vrot.lane.b32.xlu0 %v931, 96
  %v993 = vpop.permute.xlu0 %992
  %994 = vrot.lane.b32.xlu0 %v940, 96
  %v995 = vpop.permute.xlu0 %994
  %996 = vrot.lane.b32.xlu0 %v949, 96
  %v997 = vpop.permute.xlu0 %996
  %998 = vrot.lane.b32.xlu0 %v961, 96
  %v999 = vpop.permute.xlu0 %998
  %1000 = vrot.lane.b32.xlu0 %v965, 96
  %v1001 = vpop.permute.xlu0 %1000
  %1002 = vrot.lane.b32.xlu0 %v969, 96
  %v1003 = vpop.permute.xlu0 %1002
  %1004 = vrot.lane.b32.xlu0 %v978, 96
  %v1005 = vpop.permute.xlu0 %1004
  %1006 = vrot.lane.b32.xlu0 %v987, 96
  %v1007 = vpop.permute.xlu0 %1006
  %v1010 = vunpack.c.l.b16 %v401
  %v1011 = vunpack.c.l.b16 %v402
  %v1012 = vpack.c.b16 %v426, %v1010
  %v1013 = vpack.c.b16 %v436, %v1011
  %vm1014 = vcmask 1044480
  %v1015 = vrot.slane %v1012, 3
  %v1016 = vrot.slane %v445, 3
  %v1017 = vsel %vm1014, %v1015, %v1016
  %v1018 = vrot.slane %v446, 3
  %v1019 = vsel %vm1014, %v1016, %v1018
  %v1020 = vrot.slane %v447, 3
  %v1021 = vsel %vm1014, %v1018, %v1020
  %v1022 = vrot.slane %v858, 3
  %v1023 = vsel %vm1014, %v1020, %v1022
  %v1024 = vrot.slane %v909, 3
  %v1025 = vsel %vm1014, %v1022, %v1024
  %v1026 = vrot.slane %v1013, 3
  %v1027 = vrot.slane %v450, 3
  %v1028 = vsel %vm1014, %v1026, %v1027
  %v1029 = vrot.slane %v451, 3
  %v1030 = vsel %vm1014, %v1027, %v1029
  %v1031 = vrot.slane %v452, 3
  %v1032 = vsel %vm1014, %v1029, %v1031
  %v1033 = vrot.slane %v861, 3
  %v1034 = vsel %vm1014, %v1031, %v1033
  %v1035 = vrot.slane %v910, 3
  %v1036 = vsel %vm1014, %v1033, %v1035
  %vm1037 = vcmask 261120
  %v1039 = vsel %vm1037, %v443, %v549
  %v1041 = vsel %vm1037, %v444, %v551
  %v1043 = vsel %vm1037, %v445, %v553
  %v1045 = vsel %vm1037, %v446, %v555
  %v1047 = vsel %vm1037, %v447, %v557
  %v1049 = vsel %vm1037, %v448, %v559
  %v1051 = vsel %vm1037, %v449, %v561
  %v1053 = vsel %vm1037, %v450, %v563
  %v1055 = vsel %vm1037, %v451, %v565
  %v1057 = vsel %vm1037, %v452, %v567
  %vm1058 = vcmask 523264
  %v1060 = vsel %vm1058, %v1039, %v598
  %v1062 = vsel %vm1058, %v1041, %v600
  %v1064 = vsel %vm1058, %v1043, %v602
  %v1066 = vsel %vm1058, %v1045, %v604
  %v1068 = vsel %vm1058, %v1047, %v606
  %v1070 = vsel %vm1058, %v1049, %v608
  %v1072 = vsel %vm1058, %v1051, %v610
  %v1074 = vsel %vm1058, %v1053, %v612
  %v1076 = vsel %vm1058, %v1055, %v614
  %v1078 = vsel %vm1058, %v1057, %v616
  %vm1079 = vcmask 785408
  %v1081 = vsel %vm1079, %v1060, %v664
  %v1084 = vsel %vm1079, %v1062, %v666
  %v1087 = vsel %vm1079, %v1064, %v668
  %v1090 = vsel %vm1079, %v1066, %v670
  %v1093 = vsel %vm1079, %v1068, %v672
  %v1096 = vsel %vm1079, %v1070, %v674
  %v1099 = vsel %vm1079, %v1072, %v676
  %v1102 = vsel %vm1079, %v1074, %v678
  %v1105 = vsel %vm1079, %v1076, %v680
  %v1108 = vsel %vm1079, %v1078, %v682
  %v1112 = vsel %vm1037, %v706, %v826
  %v1115 = vsel %vm1037, %v715, %v828
  %v1118 = vsel %vm1037, %v724, %v830
  %v1121 = vsel %vm1037, %v733, %v832
  %v1124 = vsel %vm1037, %v742, %v834
  %v1127 = vsel %vm1037, %v759, %v836
  %v1130 = vsel %vm1037, %v768, %v838
  %v1133 = vsel %vm1037, %v777, %v840
  %v1136 = vsel %vm1037, %v786, %v842
  %v1139 = vsel %vm1037, %v795, %v844
  %v1141 = vsel %vm1058, %v1112, %v886
  %v1143 = vsel %vm1058, %v1115, %v888
  %v1145 = vsel %vm1058, %v1118, %v890
  %v1147 = vsel %vm1058, %v1121, %v892
  %v1149 = vsel %vm1058, %v1124, %v894
  %v1151 = vsel %vm1058, %v1127, %v896
  %v1153 = vsel %vm1058, %v1130, %v898
  %v1155 = vsel %vm1058, %v1133, %v900
  %v1157 = vsel %vm1058, %v1136, %v902
  %v1159 = vsel %vm1058, %v1139, %v904
  %v1161 = vsel %vm1079, %v1141, %v989
  %v1164 = vsel %vm1079, %v1143, %v991
  %v1167 = vsel %vm1079, %v1145, %v993
  %v1170 = vsel %vm1079, %v1147, %v995
  %v1173 = vsel %vm1079, %v1149, %v997
  %v1176 = vsel %vm1079, %v1151, %v999
  %v1179 = vsel %vm1079, %v1153, %v1001
  %v1182 = vsel %vm1079, %v1155, %v1003
  %v1185 = vsel %vm1079, %v1157, %v1005
  %v1188 = vsel %vm1079, %v1159, %v1007
  %v1190 = vld [vmem:[%s1] sm:$0xf]
  %v1191 = vld [vmem:[%s1 + $0x4] sm:$0xf]
  %v1192 = vld [vmem:[%s1 + $0x8] sm:$0xf]
  %v1193 = vld [vmem:[%s1 + $0xc] sm:$0xf]
  %v1194 = vld [vmem:[%s1 + $0x10] sm:$0xf]
  %v1195 = vld [vmem:[%s1 + $0x14] sm:$0xf]
  %v1196 = vld [vmem:[%s1 + $0x18] sm:$0xf]
  %v1197 = vld [vmem:[%s1 + $0x1c] sm:$0xf]
  %v1198 = vld [vmem:[%s1 + $0x20] sm:$0xf]
  %v1199 = vld [vmem:[%s1 + $0x24] sm:$0xf]
  %v1200 = vld [vmem:[%s1 + $0x28] sm:$0xf]
  %v1201 = vld [vmem:[%s1 + $0x2c] sm:$0xf]
  %v1202 = vld [vmem:[%s1 + $0x30] sm:$0xf]
  %v1203 = vld [vmem:[%s1 + $0x34] sm:$0xf]
  %v1204 = vld [vmem:[%s1 + $0x38] sm:$0xf]
  %v1205 = vld [vmem:[%s1 + $0x3c] sm:$0xf]
  %v1206 = vld [vmem:[%s1 + $0x40] sm:$0xf]
  %v1207 = vld [vmem:[%s1 + $0x44] sm:$0xf]
  %v1208 = vld [vmem:[%s1 + $0x48] sm:$0xf]
  %v1209 = vld [vmem:[%s1 + $0x4c] sm:$0xf]
  %v1210 = vld [vmem:[%s1 + $0x50] sm:$0xf]
  %v1211 = vld [vmem:[%s1 + $0x54] sm:$0xf]
  %v1212 = vld [vmem:[%s1 + $0x58] sm:$0xf]
  %v1213 = vld [vmem:[%s1 + $0x5c] sm:$0xf]
  %v1214 = vld [vmem:[%s1 + $0x60] sm:$0xf]
  %v1215 = vld [vmem:[%s1 + $0x64] sm:$0xf]
  %v1216 = vld [vmem:[%s1 + $0x68] sm:$0xf]
  %v1217 = vld [vmem:[%s1 + $0x6c] sm:$0xf]
  %v1218 = vld [vmem:[%s1 + $0x70] sm:$0xf]
  %v1219 = vld [vmem:[%s1 + $0x74] sm:$0xf]
  %v1220 = vld [vmem:[%s1 + $0x78] sm:$0xf]
  %v1221 = vld [vmem:[%s1 + $0x7c] sm:$0xf]
  %v1222 = vld [vmem:[%s1 + $0x80] sm:$0xf]
  %v1223 = vld [vmem:[%s1 + $0x84] sm:$0xf]
  %v1224 = vld [vmem:[%s1 + $0x88] sm:$0xf]
  %v1225 = vld [vmem:[%s1 + $0x8c] sm:$0xf]
  %v1226 = vld [vmem:[%s2] sm:$0x1]
  %v1228 = vlaneseq
  %v1229 = vshrl.u32 %v1228, 7
  %v1230 = vsub.s32 0, %v1229
  %v1231 = vrot.slane %v1226, %v1230
  %v1269 = vunpack.c.l.b16 %v1190
  %v1270 = vunpack.c.l.b16 %v1191
  %v1271 = vunpack.c.l.b16 %v1192
  %v1272 = vunpack.c.l.b16 %v1193
  %v1273 = vunpack.c.l.b16 %v1194
  %v1274 = vunpack.c.l.b16 %v1195
  %v1275 = vunpack.c.l.b16 %v1196
  %v1276 = vunpack.c.l.b16 %v1197
  %v1277 = vunpack.c.l.b16 %v1198
  %v1278 = vunpack.c.l.b16 %v1199
  %v1279 = vunpack.c.l.b16 %v1200
  %v1280 = vunpack.c.l.b16 %v1201
  %v1281 = vunpack.c.l.b16 %v1202
  %v1282 = vunpack.c.l.b16 %v1203
  %v1283 = vunpack.c.l.b16 %v1204
  %v1284 = vunpack.c.l.b16 %v1205
  %v1285 = vunpack.c.l.b16 %v1206
  %v1286 = vunpack.c.l.b16 %v1207
  %v1287 = vunpack.c.l.b16 %v1208
  %v1288 = vunpack.c.l.b16 %v1209
  %v1289 = vunpack.c.l.b16 %v1210
  %v1290 = vunpack.c.l.b16 %v1211
  %v1291 = vunpack.c.l.b16 %v1212
  %v1292 = vunpack.c.l.b16 %v1213
  %v1293 = vunpack.c.l.b16 %v1214
  %v1294 = vunpack.c.l.b16 %v1215
  %v1295 = vunpack.c.l.b16 %v1216
  %v1296 = vunpack.c.l.b16 %v1217
  %v1297 = vunpack.c.l.b16 %v1218
  %v1298 = vunpack.c.l.b16 %v1219
  %v1299 = vunpack.c.l.b16 %v1220
  %v1300 = vunpack.c.l.b16 %v1221
  %v1301 = vunpack.c.l.b16 %v1222
  %v1302 = vunpack.c.l.b16 %v1223
  %v1303 = vunpack.c.l.b16 %v1224
  %v1304 = vunpack.c.l.b16 %v1225
  %v1305 = vpack.c.b16 %v1270, %v1269
  %v1306 = vpack.c.b16 %v1272, %v1271
  %v1307 = vpack.c.b16 %v1274, %v1273
  %v1308 = vpack.c.b16 %v1276, %v1275
  %v1309 = vpack.c.b16 %v1278, %v1277
  %v1310 = vpack.c.b16 %v1280, %v1279
  %v1311 = vpack.c.b16 %v1282, %v1281
  %v1312 = vpack.c.b16 %v1284, %v1283
  %v1313 = vpack.c.b16 %v1286, %v1285
  %v1314 = vpack.c.b16 %v1288, %v1287
  %v1315 = vpack.c.b16 %v1290, %v1289
  %v1316 = vpack.c.b16 %v1292, %v1291
  %v1317 = vpack.c.b16 %v1294, %v1293
  %v1318 = vpack.c.b16 %v1296, %v1295
  %v1319 = vpack.c.b16 %v1298, %v1297
  %v1320 = vpack.c.b16 %v1300, %v1299
  %v1321 = vpack.c.b16 %v1302, %v1301
  %v1322 = vpack.c.b16 %v1304, %v1303
  %v1342 = vsel %vm1037, %v1017, 0
  %v1345 = vsel %vm1037, %v1019, 0
  %v1348 = vsel %vm1037, %v1021, 0
  %v1351 = vsel %vm1037, %v1023, 0
  %v1354 = vsel %vm1037, %v1025, 0
  %v1357 = vsel %vm1037, %v1028, 0
  %v1360 = vsel %vm1037, %v1030, 0
  %v1363 = vsel %vm1037, %v1032, 0
  %v1366 = vsel %vm1037, %v1034, 0
  %v1369 = vsel %vm1037, %v1036, 0
  %1371 = vmatprep.subr.bf16.mxu0 0
  %1372 = vmatpush1.bf16.msra.mxu0 %v1312
  %1373 = vmatprep.subr.bf16.mxu0 0
  %1374 = vmatpush1.bf16.msra.mxu0 %v1311
  %1375 = vmatprep.subr.bf16.mxu0 0
  %1376 = vmatpush1.bf16.msra.mxu0 %v1310
  %1377 = vmatprep.subr.bf16.mxu0 0
  %1378 = vmatpush1.bf16.msra.mxu0 %v1309
  %1379 = vmatprep.subr.bf16.mxu0 0
  %1380 = vmatpush1.bf16.msra.mxu0 %v1308
  %1381 = vmatprep.subr.bf16.mxu0 0
  %1382 = vmatpush1.bf16.msra.mxu0 %v1307
  %1383 = vmatprep.subr.bf16.mxu0 0
  %1384 = vmatpush1.bf16.msra.mxu0 %v1306
  %1385 = vmatprep.subr.bf16.mxu0 0
  %1386 = vmatpush1.bf16.msra.mxu0 %v1305
  %1387 = vmatprep.subr.bf16.mxu0 0
  %1388 = vmatpush2.bf16.msra.mxu0 %v1320
  %1389 = vmatprep.subr.bf16.mxu0 0
  %1390 = vmatpush2.bf16.msra.mxu0 %v1319
  %1391 = vmatprep.subr.bf16.mxu0 0
  %1392 = vmatpush2.bf16.msra.mxu0 %v1318
  %1393 = vmatprep.subr.bf16.mxu0 0
  %1394 = vmatpush2.bf16.msra.mxu0 %v1317
  %1395 = vmatprep.subr.bf16.mxu0 0
  %1396 = vmatpush2.bf16.msra.mxu0 %v1316
  %1397 = vmatprep.subr.bf16.mxu0 0
  %1398 = vmatpush2.bf16.msra.mxu0 %v1315
  %1399 = vmatprep.subr.bf16.mxu0 0
  %1400 = vmatpush2.bf16.msra.mxu0 %v1314
  %1401 = vmatprep.subr.bf16.mxu0 0
  %1402 = vmatpush2.bf16.msra.mxu0 %v1313
  %1403 = vmatprep.mubr.bf16.mxu0 %v1161
  %1404 = vmatmul.mubr.bf16.gmra.mxu0 %v1081
  %v1405 = vpop.f32.mrf.mxu0
  %v1406 = vadd.f32 %v1231, %v1405
  %v1407 = vpop.f32.mrf.mxu0
  %v1408 = vpop.f32.mrf.mxu0
  %v1409 = vadd.f32 %v1231, %v1408
  %v1410 = vpop.f32.mrf.mxu0
  %1411 = vmatprep.mubr.bf16.mxu0 %v1164
  %1412 = vmatmul.mubr.bf16.gmra.mxu0 %v1084
  %v1413 = vpop.f32.mrf.mxu0
  %v1414 = vadd.f32 %v1231, %v1413
  %v1415 = vpop.f32.mrf.mxu0
  %v1416 = vpop.f32.mrf.mxu0
  %v1417 = vadd.f32 %v1231, %v1416
  %v1418 = vpop.f32.mrf.mxu0
  %1419 = vmatprep.mubr.bf16.mxu0 %v1167
  %1420 = vmatmul.mubr.bf16.gmra.mxu0 %v1087
  %v1421 = vpop.f32.mrf.mxu0
  %v1422 = vadd.f32 %v1231, %v1421
  %v1423 = vpop.f32.mrf.mxu0
  %v1424 = vpop.f32.mrf.mxu0
  %v1425 = vadd.f32 %v1231, %v1424
  %v1426 = vpop.f32.mrf.mxu0
  %1427 = vmatprep.mubr.bf16.mxu0 %v1170
  %1428 = vmatmul.mubr.bf16.gmra.mxu0 %v1090
  %v1429 = vpop.f32.mrf.mxu0
  %v1430 = vadd.f32 %v1231, %v1429
  %v1431 = vpop.f32.mrf.mxu0
  %v1432 = vpop.f32.mrf.mxu0
  %v1433 = vadd.f32 %v1231, %v1432
  %v1434 = vpop.f32.mrf.mxu0
  %1435 = vmatprep.mubr.bf16.mxu0 %v1173
  %1436 = vmatmul.mubr.bf16.gmra.mxu0 %v1093
  %v1437 = vpop.f32.mrf.mxu0
  %v1438 = vadd.f32 %v1231, %v1437
  %v1439 = vpop.f32.mrf.mxu0
  %v1440 = vpop.f32.mrf.mxu0
  %v1441 = vadd.f32 %v1231, %v1440
  %v1442 = vpop.f32.mrf.mxu0
  %1443 = vmatprep.mubr.bf16.mxu0 %v1176
  %1444 = vmatmul.mubr.bf16.gmra.mxu0 %v1096
  %v1445 = vpop.f32.mrf.mxu0
  %v1446 = vadd.f32 %v1231, %v1445
  %v1447 = vpop.f32.mrf.mxu0
  %v1448 = vpop.f32.mrf.mxu0
  %v1449 = vadd.f32 %v1231, %v1448
  %v1450 = vpop.f32.mrf.mxu0
  %1451 = vmatprep.mubr.bf16.mxu0 %v1179
  %1452 = vmatmul.mubr.bf16.gmra.mxu0 %v1099
  %v1453 = vpop.f32.mrf.mxu0
  %v1454 = vadd.f32 %v1231, %v1453
  %v1455 = vpop.f32.mrf.mxu0
  %v1456 = vpop.f32.mrf.mxu0
  %v1457 = vadd.f32 %v1231, %v1456
  %v1458 = vpop.f32.mrf.mxu0
  %1459 = vmatprep.mubr.bf16.mxu0 %v1182
  %1460 = vmatmul.mubr.bf16.gmra.mxu0 %v1102
  %v1461 = vpop.f32.mrf.mxu0
  %v1462 = vadd.f32 %v1231, %v1461
  %v1463 = vpop.f32.mrf.mxu0
  %v1464 = vpop.f32.mrf.mxu0
  %v1465 = vadd.f32 %v1231, %v1464
  %v1466 = vpop.f32.mrf.mxu0
  %1467 = vmatprep.mubr.bf16.mxu0 %v1185
  %1468 = vmatmul.mubr.bf16.gmra.mxu0 %v1105
  %v1469 = vpop.f32.mrf.mxu0
  %v1470 = vadd.f32 %v1231, %v1469
  %v1471 = vpop.f32.mrf.mxu0
  %v1472 = vpop.f32.mrf.mxu0
  %v1473 = vadd.f32 %v1231, %v1472
  %v1474 = vpop.f32.mrf.mxu0
  %1475 = vmatprep.mubr.bf16.mxu0 %v1188
  %1476 = vmatmul.mubr.bf16.gmra.mxu0 %v1108
  %v1477 = vpop.f32.mrf.mxu0
  %v1478 = vadd.f32 %v1231, %v1477
  %v1479 = vpop.f32.mrf.mxu0
  %v1480 = vpop.f32.mrf.mxu0
  %v1481 = vadd.f32 %v1231, %v1480
  %v1482 = vpop.f32.mrf.mxu0
  %1483 = vdwg.mxu0
  %1484 = vmatprep.subr.bf16.mxu0 0
  %1485 = vmatpush1.bf16.msra.mxu0 0
  %1486 = vmatprep.subr.bf16.mxu0 0
  %1487 = vmatpush1.bf16.msra.mxu0 0
  %1488 = vmatprep.subr.bf16.mxu0 0
  %1489 = vmatpush1.bf16.msra.mxu0 0
  %1490 = vmatprep.subr.bf16.mxu0 0
  %1491 = vmatpush1.bf16.msra.mxu0 0
  %1492 = vmatprep.subr.bf16.mxu0 0
  %1493 = vmatpush1.bf16.msra.mxu0 0
  %1494 = vmatprep.subr.bf16.mxu0 0
  %1495 = vmatpush1.bf16.msra.mxu0 0
  %1496 = vmatprep.subr.bf16.mxu0 0
  %1497 = vmatpush1.bf16.msra.mxu0 %v1322
  %1498 = vmatprep.subr.bf16.mxu0 0
  %1499 = vmatpush1.bf16.msra.mxu0 %v1321
  %1500 = vmatprep.subr.bf16.mxu0 0
  %1501 = vmatpush2.bf16.msra.mxu0 0
  %1502 = vmatprep.subr.bf16.mxu0 0
  %1503 = vmatpush2.bf16.msra.mxu0 0
  %1504 = vmatprep.subr.bf16.mxu0 0
  %1505 = vmatpush2.bf16.msra.mxu0 0
  %1506 = vmatprep.subr.bf16.mxu0 0
  %1507 = vmatpush2.bf16.msra.mxu0 0
  %1508 = vmatprep.subr.bf16.mxu0 0
  %1509 = vmatpush2.bf16.msra.mxu0 0
  %1510 = vmatprep.subr.bf16.mxu0 0
  %1511 = vmatpush2.bf16.msra.mxu0 0
  %1512 = vmatprep.subr.bf16.mxu0 0
  %1513 = vmatpush2.bf16.msra.mxu0 0
  %1514 = vmatprep.subr.bf16.mxu0 0
  %1515 = vmatpush2.bf16.msra.mxu0 0
  %1516 = vmatprep.mubr.bf16.mxu0 0
  %1517 = vmatmul.mubr.bf16.gmra.mxu0 %v1342
  %v1518 = vpop.f32.mrf.mxu0
  %v1519 = vadd.f32 %v1406, %v1518
  %v1520 = vpop.f32.mrf.mxu0
  %v1521 = vpop.f32.mrf.mxu0
  %v1522 = vadd.f32 %v1409, %v1521
  %v1523 = vpop.f32.mrf.mxu0
  %1524 = vmatprep.mubr.bf16.mxu0 0
  %1525 = vmatmul.mubr.bf16.gmra.mxu0 %v1345
  %v1526 = vpop.f32.mrf.mxu0
  %v1527 = vadd.f32 %v1414, %v1526
  %v1528 = vpop.f32.mrf.mxu0
  %v1529 = vpop.f32.mrf.mxu0
  %v1530 = vadd.f32 %v1417, %v1529
  %v1531 = vpop.f32.mrf.mxu0
  %1532 = vmatprep.mubr.bf16.mxu0 0
  %1533 = vmatmul.mubr.bf16.gmra.mxu0 %v1348
  %v1534 = vpop.f32.mrf.mxu0
  %v1535 = vadd.f32 %v1422, %v1534
  %v1536 = vpop.f32.mrf.mxu0
  %v1537 = vpop.f32.mrf.mxu0
  %v1538 = vadd.f32 %v1425, %v1537
  %v1539 = vpop.f32.mrf.mxu0
  %1540 = vmatprep.mubr.bf16.mxu0 0
  %1541 = vmatmul.mubr.bf16.gmra.mxu0 %v1351
  %v1542 = vpop.f32.mrf.mxu0
  %v1543 = vadd.f32 %v1430, %v1542
  %v1544 = vpop.f32.mrf.mxu0
  %v1545 = vpop.f32.mrf.mxu0
  %v1546 = vadd.f32 %v1433, %v1545
  %v1547 = vpop.f32.mrf.mxu0
  %1548 = vmatprep.mubr.bf16.mxu0 0
  %1549 = vmatmul.mubr.bf16.gmra.mxu0 %v1354
  %v1550 = vpop.f32.mrf.mxu0
  %v1551 = vadd.f32 %v1438, %v1550
  %v1552 = vpop.f32.mrf.mxu0
  %v1553 = vpop.f32.mrf.mxu0
  %v1554 = vadd.f32 %v1441, %v1553
  %v1555 = vpop.f32.mrf.mxu0
  %1556 = vmatprep.mubr.bf16.mxu0 0
  %1557 = vmatmul.mubr.bf16.gmra.mxu0 %v1357
  %v1558 = vpop.f32.mrf.mxu0
  %v1559 = vadd.f32 %v1446, %v1558
  %v1560 = vpop.f32.mrf.mxu0
  %v1561 = vpop.f32.mrf.mxu0
  %v1562 = vadd.f32 %v1449, %v1561
  %v1563 = vpop.f32.mrf.mxu0
  %1564 = vmatprep.mubr.bf16.mxu0 0
  %1565 = vmatmul.mubr.bf16.gmra.mxu0 %v1360
  %v1566 = vpop.f32.mrf.mxu0
  %v1567 = vadd.f32 %v1454, %v1566
  %v1568 = vpop.f32.mrf.mxu0
  %v1569 = vpop.f32.mrf.mxu0
  %v1570 = vadd.f32 %v1457, %v1569
  %v1571 = vpop.f32.mrf.mxu0
  %1572 = vmatprep.mubr.bf16.mxu0 0
  %1573 = vmatmul.mubr.bf16.gmra.mxu0 %v1363
  %v1574 = vpop.f32.mrf.mxu0
  %v1575 = vadd.f32 %v1462, %v1574
  %v1576 = vpop.f32.mrf.mxu0
  %v1577 = vpop.f32.mrf.mxu0
  %v1578 = vadd.f32 %v1465, %v1577
  %v1579 = vpop.f32.mrf.mxu0
  %1580 = vmatprep.mubr.bf16.mxu0 0
  %1581 = vmatmul.mubr.bf16.gmra.mxu0 %v1366
  %v1582 = vpop.f32.mrf.mxu0
  %v1583 = vadd.f32 %v1470, %v1582
  %v1584 = vpop.f32.mrf.mxu0
  %v1585 = vpop.f32.mrf.mxu0
  %v1586 = vadd.f32 %v1473, %v1585
  %v1587 = vpop.f32.mrf.mxu0
  %1588 = vmatprep.mubr.bf16.mxu0 0
  %1589 = vmatmul.mubr.bf16.gmra.mxu0 %v1369
  %v1590 = vpop.f32.mrf.mxu0
  %v1591 = vadd.f32 %v1478, %v1590
  %v1592 = vpop.f32.mrf.mxu0
  %v1593 = vpop.f32.mrf.mxu0
  %v1594 = vadd.f32 %v1481, %v1593
  %v1595 = vpop.f32.mrf.mxu0
  %1596 = vdwg.mxu0
  %v1597 = vmax.f32 %v1519, 0.0
  %v1598 = vmax.f32 %v1522, 0.0
  %v1599 = vmax.f32 %v1527, 0.0
  %v1600 = vmax.f32 %v1530, 0.0
  %v1601 = vmax.f32 %v1535, 0.0
  %v1602 = vmax.f32 %v1538, 0.0
  %v1603 = vmax.f32 %v1543, 0.0
  %v1604 = vmax.f32 %v1546, 0.0
  %v1605 = vmax.f32 %v1551, 0.0
  %v1606 = vmax.f32 %v1554, 0.0
  %v1607 = vmax.f32 %v1559, 0.0
  %v1608 = vmax.f32 %v1562, 0.0
  %v1609 = vmax.f32 %v1567, 0.0
  %v1610 = vmax.f32 %v1570, 0.0
  %v1611 = vmax.f32 %v1575, 0.0
  %v1612 = vmax.f32 %v1578, 0.0
  %v1613 = vmax.f32 %v1583, 0.0
  %v1614 = vmax.f32 %v1586, 0.0
  %v1615 = vmax.f32 %v1591, 0.0
  %v1616 = vmax.f32 %v1594, 0.0
  %v1637 = vcombine.high %v1597, %v1597
  %v1639 = vunpack.c.l.s4 1983009808
  %v1640 = vunpack.c.0.s8 %v1639
  %v1641 = vlaneseq
  %v1642 = vshrl.u32 %v1641, 7
  %v1643 = vsub.s32 %v1640, %v1642
  %v1644 = vrot.slane %v1597, %v1643
  %v1646 = vunpack.c.l.s4 1983009808
  %v1647 = vunpack.c.0.s8 %v1646
  %v1648 = vlaneseq
  %v1649 = vshrl.u32 %v1648, 7
  %v1650 = vsub.s32 %v1647, %v1649
  %v1651 = vrot.slane %v1637, %v1650
  %v1652 = vcombine.high %v1644, %v1644
  %v1653 = vcombine.high %v1651, %v1651
  %v1654 = vcombine.high %v1598, %v1598
  %v1656 = vunpack.c.l.s4 1983009808
  %v1657 = vunpack.c.0.s8 %v1656
  %v1658 = vlaneseq
  %v1659 = vshrl.u32 %v1658, 7
  %v1660 = vsub.s32 %v1657, %v1659
  %v1661 = vrot.slane %v1598, %v1660
  %v1663 = vunpack.c.l.s4 1983009808
  %v1664 = vunpack.c.0.s8 %v1663
  %v1665 = vlaneseq
  %v1666 = vshrl.u32 %v1665, 7
  %v1667 = vsub.s32 %v1664, %v1666
  %v1668 = vrot.slane %v1654, %v1667
  %v1669 = vcombine.high %v1661, %v1661
  %v1670 = vcombine.high %v1668, %v1668
  %v1671 = vcombine.high %v1599, %v1599
  %v1673 = vunpack.c.l.s4 1983009808
  %v1674 = vunpack.c.0.s8 %v1673
  %v1675 = vlaneseq
  %v1676 = vshrl.u32 %v1675, 7
  %v1677 = vsub.s32 %v1674, %v1676
  %v1678 = vrot.slane %v1599, %v1677
  %v1680 = vunpack.c.l.s4 1983009808
  %v1681 = vunpack.c.0.s8 %v1680
  %v1682 = vlaneseq
  %v1683 = vshrl.u32 %v1682, 7
  %v1684 = vsub.s32 %v1681, %v1683
  %v1685 = vrot.slane %v1671, %v1684
  %v1686 = vcombine.high %v1685, %v1685
  %v1687 = vcombine.high %v1600, %v1600
  %v1689 = vunpack.c.l.s4 1983009808
  %v1690 = vunpack.c.0.s8 %v1689
  %v1691 = vlaneseq
  %v1692 = vshrl.u32 %v1691, 7
  %v1693 = vsub.s32 %v1690, %v1692
  %v1694 = vrot.slane %v1600, %v1693
  %v1696 = vunpack.c.l.s4 1983009808
  %v1697 = vunpack.c.0.s8 %v1696
  %v1698 = vlaneseq
  %v1699 = vshrl.u32 %v1698, 7
  %v1700 = vsub.s32 %v1697, %v1699
  %v1701 = vrot.slane %v1687, %v1700
  %v1702 = vcombine.high %v1694, %v1694
  %v1703 = vcombine.high %v1701, %v1701
  %v1704 = vcombine.high %v1601, %v1601
  %v1706 = vunpack.c.l.s4 1983009808
  %v1707 = vunpack.c.0.s8 %v1706
  %v1708 = vlaneseq
  %v1709 = vshrl.u32 %v1708, 7
  %v1710 = vsub.s32 %v1707, %v1709
  %v1711 = vrot.slane %v1601, %v1710
  %v1713 = vunpack.c.l.s4 1983009808
  %v1714 = vunpack.c.0.s8 %v1713
  %v1715 = vlaneseq
  %v1716 = vshrl.u32 %v1715, 7
  %v1717 = vsub.s32 %v1714, %v1716
  %v1718 = vrot.slane %v1704, %v1717
  %v1719 = vcombine.high %v1711, %v1711
  %v1720 = vcombine.high %v1602, %v1602
  %v1722 = vunpack.c.l.s4 1983009808
  %v1723 = vunpack.c.0.s8 %v1722
  %v1724 = vlaneseq
  %v1725 = vshrl.u32 %v1724, 7
  %v1726 = vsub.s32 %v1723, %v1725
  %v1727 = vrot.slane %v1602, %v1726
  %v1729 = vunpack.c.l.s4 1983009808
  %v1730 = vunpack.c.0.s8 %v1729
  %v1731 = vlaneseq
  %v1732 = vshrl.u32 %v1731, 7
  %v1733 = vsub.s32 %v1730, %v1732
  %v1734 = vrot.slane %v1720, %v1733
  %v1735 = vcombine.high %v1727, %v1727
  %v1736 = vcombine.high %v1734, %v1734
  %v1737 = vcombine.high %v1603, %v1603
  %v1739 = vunpack.c.l.s4 1983009808
  %v1740 = vunpack.c.0.s8 %v1739
  %v1741 = vlaneseq
  %v1742 = vshrl.u32 %v1741, 7
  %v1743 = vsub.s32 %v1740, %v1742
  %v1744 = vrot.slane %v1603, %v1743
  %v1746 = vunpack.c.l.s4 1983009808
  %v1747 = vunpack.c.0.s8 %v1746
  %v1748 = vlaneseq
  %v1749 = vshrl.u32 %v1748, 7
  %v1750 = vsub.s32 %v1747, %v1749
  %v1751 = vrot.slane %v1737, %v1750
  %v1752 = vcombine.high %v1744, %v1744
  %v1753 = vcombine.high %v1751, %v1751
  %v1754 = vcombine.high %v1604, %v1604
  %v1756 = vunpack.c.l.s4 1983009808
  %v1757 = vunpack.c.0.s8 %v1756
  %v1758 = vlaneseq
  %v1759 = vshrl.u32 %v1758, 7
  %v1760 = vsub.s32 %v1757, %v1759
  %v1761 = vrot.slane %v1604, %v1760
  %v1763 = vunpack.c.l.s4 1983009808
  %v1764 = vunpack.c.0.s8 %v1763
  %v1765 = vlaneseq
  %v1766 = vshrl.u32 %v1765, 7
  %v1767 = vsub.s32 %v1764, %v1766
  %v1768 = vrot.slane %v1754, %v1767
  %v1769 = vcombine.high %v1768, %v1768
  %v1770 = vcombine.high %v1605, %v1605
  %v1772 = vunpack.c.l.s4 1983009808
  %v1773 = vunpack.c.0.s8 %v1772
  %v1774 = vlaneseq
  %v1775 = vshrl.u32 %v1774, 7
  %v1776 = vsub.s32 %v1773, %v1775
  %v1777 = vrot.slane %v1605, %v1776
  %v1779 = vunpack.c.l.s4 1983009808
  %v1780 = vunpack.c.0.s8 %v1779
  %v1781 = vlaneseq
  %v1782 = vshrl.u32 %v1781, 7
  %v1783 = vsub.s32 %v1780, %v1782
  %v1784 = vrot.slane %v1770, %v1783
  %v1785 = vcombine.high %v1777, %v1777
  %v1786 = vcombine.high %v1784, %v1784
  %v1787 = vcombine.high %v1606, %v1606
  %v1789 = vunpack.c.l.s4 1983009808
  %v1790 = vunpack.c.0.s8 %v1789
  %v1791 = vlaneseq
  %v1792 = vshrl.u32 %v1791, 7
  %v1793 = vsub.s32 %v1790, %v1792
  %v1794 = vrot.slane %v1606, %v1793
  %v1796 = vunpack.c.l.s4 1983009808
  %v1797 = vunpack.c.0.s8 %v1796
  %v1798 = vlaneseq
  %v1799 = vshrl.u32 %v1798, 7
  %v1800 = vsub.s32 %v1797, %v1799
  %v1801 = vrot.slane %v1787, %v1800
  %v1802 = vcombine.high %v1794, %v1794
  %v1803 = vcombine.high %v1607, %v1607
  %v1805 = vunpack.c.l.s4 1983009808
  %v1806 = vunpack.c.0.s8 %v1805
  %v1807 = vlaneseq
  %v1808 = vshrl.u32 %v1807, 7
  %v1809 = vsub.s32 %v1806, %v1808
  %v1810 = vrot.slane %v1607, %v1809
  %v1812 = vunpack.c.l.s4 1983009808
  %v1813 = vunpack.c.0.s8 %v1812
  %v1814 = vlaneseq
  %v1815 = vshrl.u32 %v1814, 7
  %v1816 = vsub.s32 %v1813, %v1815
  %v1817 = vrot.slane %v1803, %v1816
  %v1818 = vcombine.high %v1810, %v1810
  %v1819 = vcombine.high %v1817, %v1817
  %v1820 = vcombine.high %v1608, %v1608
  %v1822 = vunpack.c.l.s4 1983009808
  %v1823 = vunpack.c.0.s8 %v1822
  %v1824 = vlaneseq
  %v1825 = vshrl.u32 %v1824, 7
  %v1826 = vsub.s32 %v1823, %v1825
  %v1827 = vrot.slane %v1608, %v1826
  %v1829 = vunpack.c.l.s4 1983009808
  %v1830 = vunpack.c.0.s8 %v1829
  %v1831 = vlaneseq
  %v1832 = vshrl.u32 %v1831, 7
  %v1833 = vsub.s32 %v1830, %v1832
  %v1834 = vrot.slane %v1820, %v1833
  %v1835 = vcombine.high %v1827, %v1827
  %v1836 = vcombine.high %v1834, %v1834
  %v1837 = vcombine.high %v1609, %v1609
  %v1839 = vunpack.c.l.s4 1983009808
  %v1840 = vunpack.c.0.s8 %v1839
  %v1841 = vlaneseq
  %v1842 = vshrl.u32 %v1841, 7
  %v1843 = vsub.s32 %v1840, %v1842
  %v1844 = vrot.slane %v1609, %v1843
  %v1846 = vunpack.c.l.s4 1983009808
  %v1847 = vunpack.c.0.s8 %v1846
  %v1848 = vlaneseq
  %v1849 = vshrl.u32 %v1848, 7
  %v1850 = vsub.s32 %v1847, %v1849
  %v1851 = vrot.slane %v1837, %v1850
  %v1852 = vcombine.high %v1851, %v1851
  %v1853 = vcombine.high %v1610, %v1610
  %v1855 = vunpack.c.l.s4 1983009808
  %v1856 = vunpack.c.0.s8 %v1855
  %v1857 = vlaneseq
  %v1858 = vshrl.u32 %v1857, 7
  %v1859 = vsub.s32 %v1856, %v1858
  %v1860 = vrot.slane %v1610, %v1859
  %v1862 = vunpack.c.l.s4 1983009808
  %v1863 = vunpack.c.0.s8 %v1862
  %v1864 = vlaneseq
  %v1865 = vshrl.u32 %v1864, 7
  %v1866 = vsub.s32 %v1863, %v1865
  %v1867 = vrot.slane %v1853, %v1866
  %v1868 = vcombine.high %v1860, %v1860
  %v1869 = vcombine.high %v1867, %v1867
  %v1870 = vcombine.high %v1611, %v1611
  %v1872 = vunpack.c.l.s4 1983009808
  %v1873 = vunpack.c.0.s8 %v1872
  %v1874 = vlaneseq
  %v1875 = vshrl.u32 %v1874, 7
  %v1876 = vsub.s32 %v1873, %v1875
  %v1877 = vrot.slane %v1611, %v1876
  %v1879 = vunpack.c.l.s4 1983009808
  %v1880 = vunpack.c.0.s8 %v1879
  %v1881 = vlaneseq
  %v1882 = vshrl.u32 %v1881, 7
  %v1883 = vsub.s32 %v1880, %v1882
  %v1884 = vrot.slane %v1870, %v1883
  %v1885 = vcombine.high %v1877, %v1877
  %v1886 = vcombine.high %v1612, %v1612
  %v1888 = vunpack.c.l.s4 1983009808
  %v1889 = vunpack.c.0.s8 %v1888
  %v1890 = vlaneseq
  %v1891 = vshrl.u32 %v1890, 7
  %v1892 = vsub.s32 %v1889, %v1891
  %v1893 = vrot.slane %v1612, %v1892
  %v1895 = vunpack.c.l.s4 1983009808
  %v1896 = vunpack.c.0.s8 %v1895
  %v1897 = vlaneseq
  %v1898 = vshrl.u32 %v1897, 7
  %v1899 = vsub.s32 %v1896, %v1898
  %v1900 = vrot.slane %v1886, %v1899
  %v1901 = vcombine.high %v1893, %v1893
  %v1902 = vcombine.high %v1900, %v1900
  %v1903 = vcombine.high %v1613, %v1613
  %v1905 = vunpack.c.l.s4 1983009808
  %v1906 = vunpack.c.0.s8 %v1905
  %v1907 = vlaneseq
  %v1908 = vshrl.u32 %v1907, 7
  %v1909 = vsub.s32 %v1906, %v1908
  %v1910 = vrot.slane %v1613, %v1909
  %v1912 = vunpack.c.l.s4 1983009808
  %v1913 = vunpack.c.0.s8 %v1912
  %v1914 = vlaneseq
  %v1915 = vshrl.u32 %v1914, 7
  %v1916 = vsub.s32 %v1913, %v1915
  %v1917 = vrot.slane %v1903, %v1916
  %v1918 = vcombine.high %v1910, %v1910
  %v1919 = vcombine.high %v1917, %v1917
  %v1920 = vcombine.high %v1614, %v1614
  %v1922 = vunpack.c.l.s4 1983009808
  %v1923 = vunpack.c.0.s8 %v1922
  %v1924 = vlaneseq
  %v1925 = vshrl.u32 %v1924, 7
  %v1926 = vsub.s32 %v1923, %v1925
  %v1927 = vrot.slane %v1614, %v1926
  %v1929 = vunpack.c.l.s4 1983009808
  %v1930 = vunpack.c.0.s8 %v1929
  %v1931 = vlaneseq
  %v1932 = vshrl.u32 %v1931, 7
  %v1933 = vsub.s32 %v1930, %v1932
  %v1934 = vrot.slane %v1920, %v1933
  %v1935 = vcombine.high %v1934, %v1934
  %v1936 = vcombine.high %v1615, %v1615
  %v1938 = vunpack.c.l.s4 1983009808
  %v1939 = vunpack.c.0.s8 %v1938
  %v1940 = vlaneseq
  %v1941 = vshrl.u32 %v1940, 7
  %v1942 = vsub.s32 %v1939, %v1941
  %v1943 = vrot.slane %v1615, %v1942
  %v1945 = vunpack.c.l.s4 1983009808
  %v1946 = vunpack.c.0.s8 %v1945
  %v1947 = vlaneseq
  %v1948 = vshrl.u32 %v1947, 7
  %v1949 = vsub.s32 %v1946, %v1948
  %v1950 = vrot.slane %v1936, %v1949
  %v1951 = vcombine.high %v1943, %v1943
  %v1952 = vcombine.high %v1950, %v1950
  %v1953 = vcombine.high %v1616, %v1616
  %v1955 = vunpack.c.l.s4 1983009808
  %v1956 = vunpack.c.0.s8 %v1955
  %v1957 = vlaneseq
  %v1958 = vshrl.u32 %v1957, 7
  %v1959 = vsub.s32 %v1956, %v1958
  %v1960 = vrot.slane %v1616, %v1959
  %v1962 = vunpack.c.l.s4 1983009808
  %v1963 = vunpack.c.0.s8 %v1962
  %v1964 = vlaneseq
  %v1965 = vshrl.u32 %v1964, 7
  %v1966 = vsub.s32 %v1963, %v1965
  %v1967 = vrot.slane %v1953, %v1966
  %v1968 = vcombine.high %v1960, %v1960
  %vm2033 = vcmask 517120
  %v2034 = vsel %vm2033, %v1644, -inf
  %v2035 = vrot.slane %v2034, 4
  %v2036 = vmax.f32 %v2034, %v2035
  %v2037 = vrot.slane %v2036, 2
  %v2038 = vmax.f32 %v2036, %v2037
  %v2039 = vrot.slane %v2038, 1
  %v2040 = vmax.f32 %v2038, %v2039
  %v2041 = vsel %vm2033, %v1652, -inf
  %v2042 = vrot.slane %v2041, 4
  %v2043 = vmax.f32 %v2041, %v2042
  %v2044 = vrot.slane %v2043, 2
  %v2045 = vmax.f32 %v2043, %v2044
  %v2046 = vrot.slane %v2045, 1
  %v2047 = vmax.f32 %v2045, %v2046
  %v2048 = vsel %vm2033, %v1651, -inf
  %v2049 = vrot.slane %v2048, 4
  %v2050 = vmax.f32 %v2048, %v2049
  %v2051 = vrot.slane %v2050, 2
  %v2052 = vmax.f32 %v2050, %v2051
  %v2053 = vrot.slane %v2052, 1
  %v2054 = vmax.f32 %v2052, %v2053
  %v2055 = vsel %vm2033, %v1653, -inf
  %v2056 = vrot.slane %v2055, 4
  %v2057 = vmax.f32 %v2055, %v2056
  %v2058 = vrot.slane %v2057, 2
  %v2059 = vmax.f32 %v2057, %v2058
  %v2060 = vrot.slane %v2059, 1
  %v2061 = vmax.f32 %v2059, %v2060
  %v2062 = vsel %vm2033, %v1669, -inf
  %v2063 = vrot.slane %v2062, 4
  %v2064 = vmax.f32 %v2062, %v2063
  %v2065 = vrot.slane %v2064, 2
  %v2066 = vmax.f32 %v2064, %v2065
  %v2067 = vrot.slane %v2066, 1
  %v2068 = vmax.f32 %v2066, %v2067
  %v2069 = vsel %vm2033, %v1668, -inf
  %v2070 = vrot.slane %v2069, 4
  %v2071 = vmax.f32 %v2069, %v2070
  %v2072 = vrot.slane %v2071, 2
  %v2073 = vmax.f32 %v2071, %v2072
  %v2074 = vrot.slane %v2073, 1
  %v2075 = vmax.f32 %v2073, %v2074
  %v2076 = vsel %vm2033, %v1670, -inf
  %v2077 = vrot.slane %v2076, 4
  %v2078 = vmax.f32 %v2076, %v2077
  %v2079 = vrot.slane %v2078, 2
  %v2080 = vmax.f32 %v2078, %v2079
  %v2081 = vrot.slane %v2080, 1
  %v2082 = vmax.f32 %v2080, %v2081
  %v2083 = vsel %vm2033, %v1678, -inf
  %v2084 = vrot.slane %v2083, 4
  %v2085 = vmax.f32 %v2083, %v2084
  %v2086 = vrot.slane %v2085, 2
  %v2087 = vmax.f32 %v2085, %v2086
  %v2088 = vrot.slane %v2087, 1
  %v2089 = vmax.f32 %v2087, %v2088
  %v2090 = vsel %vm2033, %v1685, -inf
  %v2091 = vrot.slane %v2090, 4
  %v2092 = vmax.f32 %v2090, %v2091
  %v2093 = vrot.slane %v2092, 2
  %v2094 = vmax.f32 %v2092, %v2093
  %v2095 = vrot.slane %v2094, 1
  %v2096 = vmax.f32 %v2094, %v2095
  %v2097 = vsel %vm2033, %v1686, -inf
  %v2098 = vrot.slane %v2097, 4
  %v2099 = vmax.f32 %v2097, %v2098
  %v2100 = vrot.slane %v2099, 2
  %v2101 = vmax.f32 %v2099, %v2100
  %v2102 = vrot.slane %v2101, 1
  %v2103 = vmax.f32 %v2101, %v2102
  %v2104 = vsel %vm2033, %v1694, -inf
  %v2105 = vrot.slane %v2104, 4
  %v2106 = vmax.f32 %v2104, %v2105
  %v2107 = vrot.slane %v2106, 2
  %v2108 = vmax.f32 %v2106, %v2107
  %v2109 = vrot.slane %v2108, 1
  %v2110 = vmax.f32 %v2108, %v2109
  %v2111 = vsel %vm2033, %v1702, -inf
  %v2112 = vrot.slane %v2111, 4
  %v2113 = vmax.f32 %v2111, %v2112
  %v2114 = vrot.slane %v2113, 2
  %v2115 = vmax.f32 %v2113, %v2114
  %v2116 = vrot.slane %v2115, 1
  %v2117 = vmax.f32 %v2115, %v2116
  %v2118 = vsel %vm2033, %v1703, -inf
  %v2119 = vrot.slane %v2118, 4
  %v2120 = vmax.f32 %v2118, %v2119
  %v2121 = vrot.slane %v2120, 2
  %v2122 = vmax.f32 %v2120, %v2121
  %v2123 = vrot.slane %v2122, 1
  %v2124 = vmax.f32 %v2122, %v2123
  %v2125 = vsel %vm2033, %v1711, -inf
  %v2126 = vrot.slane %v2125, 4
  %v2127 = vmax.f32 %v2125, %v2126
  %v2128 = vrot.slane %v2127, 2
  %v2129 = vmax.f32 %v2127, %v2128
  %v2130 = vrot.slane %v2129, 1
  %v2131 = vmax.f32 %v2129, %v2130
  %v2132 = vsel %vm2033, %v1719, -inf
  %v2133 = vrot.slane %v2132, 4
  %v2134 = vmax.f32 %v2132, %v2133
  %v2135 = vrot.slane %v2134, 2
  %v2136 = vmax.f32 %v2134, %v2135
  %v2137 = vrot.slane %v2136, 1
  %v2138 = vmax.f32 %v2136, %v2137
  %v2139 = vsel %vm2033, %v1718, -inf
  %v2140 = vrot.slane %v2139, 4
  %v2141 = vmax.f32 %v2139, %v2140
  %v2142 = vrot.slane %v2141, 2
  %v2143 = vmax.f32 %v2141, %v2142
  %v2144 = vrot.slane %v2143, 1
  %v2145 = vmax.f32 %v2143, %v2144
  %v2146 = vsel %vm2033, %v1727, -inf
  %v2147 = vrot.slane %v2146, 4
  %v2148 = vmax.f32 %v2146, %v2147
  %v2149 = vrot.slane %v2148, 2
  %v2150 = vmax.f32 %v2148, %v2149
  %v2151 = vrot.slane %v2150, 1
  %v2152 = vmax.f32 %v2150, %v2151
  %v2153 = vsel %vm2033, %v1735, -inf
  %v2154 = vrot.slane %v2153, 4
  %v2155 = vmax.f32 %v2153, %v2154
  %v2156 = vrot.slane %v2155, 2
  %v2157 = vmax.f32 %v2155, %v2156
  %v2158 = vrot.slane %v2157, 1
  %v2159 = vmax.f32 %v2157, %v2158
  %v2160 = vsel %vm2033, %v1734, -inf
  %v2161 = vrot.slane %v2160, 4
  %v2162 = vmax.f32 %v2160, %v2161
  %v2163 = vrot.slane %v2162, 2
  %v2164 = vmax.f32 %v2162, %v2163
  %v2165 = vrot.slane %v2164, 1
  %v2166 = vmax.f32 %v2164, %v2165
  %v2167 = vsel %vm2033, %v1736, -inf
  %v2168 = vrot.slane %v2167, 4
  %v2169 = vmax.f32 %v2167, %v2168
  %v2170 = vrot.slane %v2169, 2
  %v2171 = vmax.f32 %v2169, %v2170
  %v2172 = vrot.slane %v2171, 1
  %v2173 = vmax.f32 %v2171, %v2172
  %v2174 = vsel %vm2033, %v1752, -inf
  %v2175 = vrot.slane %v2174, 4
  %v2176 = vmax.f32 %v2174, %v2175
  %v2177 = vrot.slane %v2176, 2
  %v2178 = vmax.f32 %v2176, %v2177
  %v2179 = vrot.slane %v2178, 1
  %v2180 = vmax.f32 %v2178, %v2179
  %v2181 = vsel %vm2033, %v1751, -inf
  %v2182 = vrot.slane %v2181, 4
  %v2183 = vmax.f32 %v2181, %v2182
  %v2184 = vrot.slane %v2183, 2
  %v2185 = vmax.f32 %v2183, %v2184
  %v2186 = vrot.slane %v2185, 1
  %v2187 = vmax.f32 %v2185, %v2186
  %v2188 = vsel %vm2033, %v1753, -inf
  %v2189 = vrot.slane %v2188, 4
  %v2190 = vmax.f32 %v2188, %v2189
  %v2191 = vrot.slane %v2190, 2
  %v2192 = vmax.f32 %v2190, %v2191
  %v2193 = vrot.slane %v2192, 1
  %v2194 = vmax.f32 %v2192, %v2193
  %v2195 = vsel %vm2033, %v1761, -inf
  %v2196 = vrot.slane %v2195, 4
  %v2197 = vmax.f32 %v2195, %v2196
  %v2198 = vrot.slane %v2197, 2
  %v2199 = vmax.f32 %v2197, %v2198
  %v2200 = vrot.slane %v2199, 1
  %v2201 = vmax.f32 %v2199, %v2200
  %v2202 = vsel %vm2033, %v1768, -inf
  %v2203 = vrot.slane %v2202, 4
  %v2204 = vmax.f32 %v2202, %v2203
  %v2205 = vrot.slane %v2204, 2
  %v2206 = vmax.f32 %v2204, %v2205
  %v2207 = vrot.slane %v2206, 1
  %v2208 = vmax.f32 %v2206, %v2207
  %v2209 = vsel %vm2033, %v1769, -inf
  %v2210 = vrot.slane %v2209, 4
  %v2211 = vmax.f32 %v2209, %v2210
  %v2212 = vrot.slane %v2211, 2
  %v2213 = vmax.f32 %v2211, %v2212
  %v2214 = vrot.slane %v2213, 1
  %v2215 = vmax.f32 %v2213, %v2214
  %v2216 = vsel %vm2033, %v1777, -inf
  %v2217 = vrot.slane %v2216, 4
  %v2218 = vmax.f32 %v2216, %v2217
  %v2219 = vrot.slane %v2218, 2
  %v2220 = vmax.f32 %v2218, %v2219
  %v2221 = vrot.slane %v2220, 1
  %v2222 = vmax.f32 %v2220, %v2221
  %v2223 = vsel %vm2033, %v1785, -inf
  %v2224 = vrot.slane %v2223, 4
  %v2225 = vmax.f32 %v2223, %v2224
  %v2226 = vrot.slane %v2225, 2
  %v2227 = vmax.f32 %v2225, %v2226
  %v2228 = vrot.slane %v2227, 1
  %v2229 = vmax.f32 %v2227, %v2228
  %v2230 = vsel %vm2033, %v1786, -inf
  %v2231 = vrot.slane %v2230, 4
  %v2232 = vmax.f32 %v2230, %v2231
  %v2233 = vrot.slane %v2232, 2
  %v2234 = vmax.f32 %v2232, %v2233
  %v2235 = vrot.slane %v2234, 1
  %v2236 = vmax.f32 %v2234, %v2235
  %v2237 = vsel %vm2033, %v1794, -inf
  %v2238 = vrot.slane %v2237, 4
  %v2239 = vmax.f32 %v2237, %v2238
  %v2240 = vrot.slane %v2239, 2
  %v2241 = vmax.f32 %v2239, %v2240
  %v2242 = vrot.slane %v2241, 1
  %v2243 = vmax.f32 %v2241, %v2242
  %v2244 = vsel %vm2033, %v1802, -inf
  %v2245 = vrot.slane %v2244, 4
  %v2246 = vmax.f32 %v2244, %v2245
  %v2247 = vrot.slane %v2246, 2
  %v2248 = vmax.f32 %v2246, %v2247
  %v2249 = vrot.slane %v2248, 1
  %v2250 = vmax.f32 %v2248, %v2249
  %v2251 = vsel %vm2033, %v1801, -inf
  %v2252 = vrot.slane %v2251, 4
  %v2253 = vmax.f32 %v2251, %v2252
  %v2254 = vrot.slane %v2253, 2
  %v2255 = vmax.f32 %v2253, %v2254
  %v2256 = vrot.slane %v2255, 1
  %v2257 = vmax.f32 %v2255, %v2256
  %v2258 = vsel %vm2033, %v1810, -inf
  %v2259 = vrot.slane %v2258, 4
  %v2260 = vmax.f32 %v2258, %v2259
  %v2261 = vrot.slane %v2260, 2
  %v2262 = vmax.f32 %v2260, %v2261
  %v2263 = vrot.slane %v2262, 1
  %v2264 = vmax.f32 %v2262, %v2263
  %v2265 = vsel %vm2033, %v1818, -inf
  %v2266 = vrot.slane %v2265, 4
  %v2267 = vmax.f32 %v2265, %v2266
  %v2268 = vrot.slane %v2267, 2
  %v2269 = vmax.f32 %v2267, %v2268
  %v2270 = vrot.slane %v2269, 1
  %v2271 = vmax.f32 %v2269, %v2270
  %v2272 = vsel %vm2033, %v1817, -inf
  %v2273 = vrot.slane %v2272, 4
  %v2274 = vmax.f32 %v2272, %v2273
  %v2275 = vrot.slane %v2274, 2
  %v2276 = vmax.f32 %v2274, %v2275
  %v2277 = vrot.slane %v2276, 1
  %v2278 = vmax.f32 %v2276, %v2277
  %v2279 = vsel %vm2033, %v1819, -inf
  %v2280 = vrot.slane %v2279, 4
  %v2281 = vmax.f32 %v2279, %v2280
  %v2282 = vrot.slane %v2281, 2
  %v2283 = vmax.f32 %v2281, %v2282
  %v2284 = vrot.slane %v2283, 1
  %v2285 = vmax.f32 %v2283, %v2284
  %v2286 = vsel %vm2033, %v1835, -inf
  %v2287 = vrot.slane %v2286, 4
  %v2288 = vmax.f32 %v2286, %v2287
  %v2289 = vrot.slane %v2288, 2
  %v2290 = vmax.f32 %v2288, %v2289
  %v2291 = vrot.slane %v2290, 1
  %v2292 = vmax.f32 %v2290, %v2291
  %v2293 = vsel %vm2033, %v1834, -inf
  %v2294 = vrot.slane %v2293, 4
  %v2295 = vmax.f32 %v2293, %v2294
  %v2296 = vrot.slane %v2295, 2
  %v2297 = vmax.f32 %v2295, %v2296
  %v2298 = vrot.slane %v2297, 1
  %v2299 = vmax.f32 %v2297, %v2298
  %v2300 = vsel %vm2033, %v1836, -inf
  %v2301 = vrot.slane %v2300, 4
  %v2302 = vmax.f32 %v2300, %v2301
  %v2303 = vrot.slane %v2302, 2
  %v2304 = vmax.f32 %v2302, %v2303
  %v2305 = vrot.slane %v2304, 1
  %v2306 = vmax.f32 %v2304, %v2305
  %v2307 = vsel %vm2033, %v1844, -inf
  %v2308 = vrot.slane %v2307, 4
  %v2309 = vmax.f32 %v2307, %v2308
  %v2310 = vrot.slane %v2309, 2
  %v2311 = vmax.f32 %v2309, %v2310
  %v2312 = vrot.slane %v2311, 1
  %v2313 = vmax.f32 %v2311, %v2312
  %v2314 = vsel %vm2033, %v1851, -inf
  %v2315 = vrot.slane %v2314, 4
  %v2316 = vmax.f32 %v2314, %v2315
  %v2317 = vrot.slane %v2316, 2
  %v2318 = vmax.f32 %v2316, %v2317
  %v2319 = vrot.slane %v2318, 1
  %v2320 = vmax.f32 %v2318, %v2319
  %v2321 = vsel %vm2033, %v1852, -inf
  %v2322 = vrot.slane %v2321, 4
  %v2323 = vmax.f32 %v2321, %v2322
  %v2324 = vrot.slane %v2323, 2
  %v2325 = vmax.f32 %v2323, %v2324
  %v2326 = vrot.slane %v2325, 1
  %v2327 = vmax.f32 %v2325, %v2326
  %v2328 = vsel %vm2033, %v1860, -inf
  %v2329 = vrot.slane %v2328, 4
  %v2330 = vmax.f32 %v2328, %v2329
  %v2331 = vrot.slane %v2330, 2
  %v2332 = vmax.f32 %v2330, %v2331
  %v2333 = vrot.slane %v2332, 1
  %v2334 = vmax.f32 %v2332, %v2333
  %v2335 = vsel %vm2033, %v1868, -inf
  %v2336 = vrot.slane %v2335, 4
  %v2337 = vmax.f32 %v2335, %v2336
  %v2338 = vrot.slane %v2337, 2
  %v2339 = vmax.f32 %v2337, %v2338
  %v2340 = vrot.slane %v2339, 1
  %v2341 = vmax.f32 %v2339, %v2340
  %v2342 = vsel %vm2033, %v1869, -inf
  %v2343 = vrot.slane %v2342, 4
  %v2344 = vmax.f32 %v2342, %v2343
  %v2345 = vrot.slane %v2344, 2
  %v2346 = vmax.f32 %v2344, %v2345
  %v2347 = vrot.slane %v2346, 1
  %v2348 = vmax.f32 %v2346, %v2347
  %v2349 = vsel %vm2033, %v1877, -inf
  %v2350 = vrot.slane %v2349, 4
  %v2351 = vmax.f32 %v2349, %v2350
  %v2352 = vrot.slane %v2351, 2
  %v2353 = vmax.f32 %v2351, %v2352
  %v2354 = vrot.slane %v2353, 1
  %v2355 = vmax.f32 %v2353, %v2354
  %v2356 = vsel %vm2033, %v1885, -inf
  %v2357 = vrot.slane %v2356, 4
  %v2358 = vmax.f32 %v2356, %v2357
  %v2359 = vrot.slane %v2358, 2
  %v2360 = vmax.f32 %v2358, %v2359
  %v2361 = vrot.slane %v2360, 1
  %v2362 = vmax.f32 %v2360, %v2361
  %v2363 = vsel %vm2033, %v1884, -inf
  %v2364 = vrot.slane %v2363, 4
  %v2365 = vmax.f32 %v2363, %v2364
  %v2366 = vrot.slane %v2365, 2
  %v2367 = vmax.f32 %v2365, %v2366
  %v2368 = vrot.slane %v2367, 1
  %v2369 = vmax.f32 %v2367, %v2368
  %v2370 = vsel %vm2033, %v1893, -inf
  %v2371 = vrot.slane %v2370, 4
  %v2372 = vmax.f32 %v2370, %v2371
  %v2373 = vrot.slane %v2372, 2
  %v2374 = vmax.f32 %v2372, %v2373
  %v2375 = vrot.slane %v2374, 1
  %v2376 = vmax.f32 %v2374, %v2375
  %v2377 = vsel %vm2033, %v1901, -inf
  %v2378 = vrot.slane %v2377, 4
  %v2379 = vmax.f32 %v2377, %v2378
  %v2380 = vrot.slane %v2379, 2
  %v2381 = vmax.f32 %v2379, %v2380
  %v2382 = vrot.slane %v2381, 1
  %v2383 = vmax.f32 %v2381, %v2382
  %v2384 = vsel %vm2033, %v1900, -inf
  %v2385 = vrot.slane %v2384, 4
  %v2386 = vmax.f32 %v2384, %v2385
  %v2387 = vrot.slane %v2386, 2
  %v2388 = vmax.f32 %v2386, %v2387
  %v2389 = vrot.slane %v2388, 1
  %v2390 = vmax.f32 %v2388, %v2389
  %v2391 = vsel %vm2033, %v1902, -inf
  %v2392 = vrot.slane %v2391, 4
  %v2393 = vmax.f32 %v2391, %v2392
  %v2394 = vrot.slane %v2393, 2
  %v2395 = vmax.f32 %v2393, %v2394
  %v2396 = vrot.slane %v2395, 1
  %v2397 = vmax.f32 %v2395, %v2396
  %v2398 = vsel %vm2033, %v1918, -inf
  %v2399 = vrot.slane %v2398, 4
  %v2400 = vmax.f32 %v2398, %v2399
  %v2401 = vrot.slane %v2400, 2
  %v2402 = vmax.f32 %v2400, %v2401
  %v2403 = vrot.slane %v2402, 1
  %v2404 = vmax.f32 %v2402, %v2403
  %v2405 = vsel %vm2033, %v1917, -inf
  %v2406 = vrot.slane %v2405, 4
  %v2407 = vmax.f32 %v2405, %v2406
  %v2408 = vrot.slane %v2407, 2
  %v2409 = vmax.f32 %v2407, %v2408
  %v2410 = vrot.slane %v2409, 1
  %v2411 = vmax.f32 %v2409, %v2410
  %v2412 = vsel %vm2033, %v1919, -inf
  %v2413 = vrot.slane %v2412, 4
  %v2414 = vmax.f32 %v2412, %v2413
  %v2415 = vrot.slane %v2414, 2
  %v2416 = vmax.f32 %v2414, %v2415
  %v2417 = vrot.slane %v2416, 1
  %v2418 = vmax.f32 %v2416, %v2417
  %v2419 = vsel %vm2033, %v1927, -inf
  %v2420 = vrot.slane %v2419, 4
  %v2421 = vmax.f32 %v2419, %v2420
  %v2422 = vrot.slane %v2421, 2
  %v2423 = vmax.f32 %v2421, %v2422
  %v2424 = vrot.slane %v2423, 1
  %v2425 = vmax.f32 %v2423, %v2424
  %v2426 = vsel %vm2033, %v1934, -inf
  %v2427 = vrot.slane %v2426, 4
  %v2428 = vmax.f32 %v2426, %v2427
  %v2429 = vrot.slane %v2428, 2
  %v2430 = vmax.f32 %v2428, %v2429
  %v2431 = vrot.slane %v2430, 1
  %v2432 = vmax.f32 %v2430, %v2431
  %v2433 = vsel %vm2033, %v1935, -inf
  %v2434 = vrot.slane %v2433, 4
  %v2435 = vmax.f32 %v2433, %v2434
  %v2436 = vrot.slane %v2435, 2
  %v2437 = vmax.f32 %v2435, %v2436
  %v2438 = vrot.slane %v2437, 1
  %v2439 = vmax.f32 %v2437, %v2438
  %v2440 = vsel %vm2033, %v1943, -inf
  %v2441 = vrot.slane %v2440, 4
  %v2442 = vmax.f32 %v2440, %v2441
  %v2443 = vrot.slane %v2442, 2
  %v2444 = vmax.f32 %v2442, %v2443
  %v2445 = vrot.slane %v2444, 1
  %v2446 = vmax.f32 %v2444, %v2445
  %v2447 = vsel %vm2033, %v1951, -inf
  %v2448 = vrot.slane %v2447, 4
  %v2449 = vmax.f32 %v2447, %v2448
  %v2450 = vrot.slane %v2449, 2
  %v2451 = vmax.f32 %v2449, %v2450
  %v2452 = vrot.slane %v2451, 1
  %v2453 = vmax.f32 %v2451, %v2452
  %v2454 = vsel %vm2033, %v1952, -inf
  %v2455 = vrot.slane %v2454, 4
  %v2456 = vmax.f32 %v2454, %v2455
  %v2457 = vrot.slane %v2456, 2
  %v2458 = vmax.f32 %v2456, %v2457
  %v2459 = vrot.slane %v2458, 1
  %v2460 = vmax.f32 %v2458, %v2459
  %v2461 = vsel %vm2033, %v1960, -inf
  %v2462 = vrot.slane %v2461, 4
  %v2463 = vmax.f32 %v2461, %v2462
  %v2464 = vrot.slane %v2463, 2
  %v2465 = vmax.f32 %v2463, %v2464
  %v2466 = vrot.slane %v2465, 1
  %v2467 = vmax.f32 %v2465, %v2466
  %v2468 = vsel %vm2033, %v1968, -inf
  %v2469 = vrot.slane %v2468, 4
  %v2470 = vmax.f32 %v2468, %v2469
  %v2471 = vrot.slane %v2470, 2
  %v2472 = vmax.f32 %v2470, %v2471
  %v2473 = vrot.slane %v2472, 1
  %v2474 = vmax.f32 %v2472, %v2473
  %v2475 = vsel %vm2033, %v1967, -inf
  %v2476 = vrot.slane %v2475, 4
  %v2477 = vmax.f32 %v2475, %v2476
  %v2478 = vrot.slane %v2477, 2
  %v2479 = vmax.f32 %v2477, %v2478
  %v2480 = vrot.slane %v2479, 1
  %v2481 = vmax.f32 %v2479, %v2480
  %v2482 = vmax.f32 %v2040, %v2068
  %v2483 = vmax.f32 %v2047, %v2075
  %v2484 = vmax.f32 %v2054, %v2082
  %v2485 = vmax.f32 %v2061, %v2089
  %v2486 = vmax.f32 %v2096, %v2124
  %v2487 = vmax.f32 %v2103, %v2131
  %v2488 = vmax.f32 %v2110, %v2138
  %v2489 = vmax.f32 %v2117, %v2145
  %v2490 = vmax.f32 %v2152, %v2180
  %v2491 = vmax.f32 %v2159, %v2187
  %v2492 = vmax.f32 %v2166, %v2194
  %v2493 = vmax.f32 %v2173, %v2201
  %v2494 = vmax.f32 %v2208, %v2236
  %v2495 = vmax.f32 %v2215, %v2243
  %v2496 = vmax.f32 %v2222, %v2250
  %v2497 = vmax.f32 %v2229, %v2257
  %v2498 = vmax.f32 %v2264, %v2292
  %v2499 = vmax.f32 %v2271, %v2299
  %v2500 = vmax.f32 %v2278, %v2306
  %v2501 = vmax.f32 %v2285, %v2313
  %v2502 = vmax.f32 %v2320, %v2348
  %v2503 = vmax.f32 %v2327, %v2355
  %v2504 = vmax.f32 %v2334, %v2362
  %v2505 = vmax.f32 %v2341, %v2369
  %v2506 = vmax.f32 %v2376, %v2404
  %v2507 = vmax.f32 %v2383, %v2411
  %v2508 = vmax.f32 %v2390, %v2418
  %v2509 = vmax.f32 %v2397, %v2425
  %v2510 = vmax.f32 %v2432, %v2460
  %v2511 = vmax.f32 %v2439, %v2467
  %v2512 = vmax.f32 %v2446, %v2474
  %v2513 = vmax.f32 %v2453, %v2481
  %vm2546 = vcmask 1041409
  %v2547 = vsel %vm2546, %v2483, %v2482
  %vm2548 = vcmask 1042434
  %v2549 = vsel %vm2548, %v2484, %v2547
  %vm2550 = vcmask 1043459
  %v2551 = vsel %vm2550, %v2485, %v2549
  %v2552 = vsel %vm2546, %v2487, %v2486
  %v2553 = vsel %vm2548, %v2488, %v2552
  %v2554 = vsel %vm2550, %v2489, %v2553
  %v2555 = vsel %vm2546, %v2491, %v2490
  %v2556 = vsel %vm2548, %v2492, %v2555
  %v2557 = vsel %vm2550, %v2493, %v2556
  %v2558 = vsel %vm2546, %v2495, %v2494
  %v2559 = vsel %vm2548, %v2496, %v2558
  %v2560 = vsel %vm2550, %v2497, %v2559
  %v2561 = vsel %vm2546, %v2499, %v2498
  %v2562 = vsel %vm2548, %v2500, %v2561
  %v2563 = vsel %vm2550, %v2501, %v2562
  %v2564 = vsel %vm2546, %v2503, %v2502
  %v2565 = vsel %vm2548, %v2504, %v2564
  %v2566 = vsel %vm2550, %v2505, %v2565
  %v2567 = vsel %vm2546, %v2507, %v2506
  %v2568 = vsel %vm2548, %v2508, %v2567
  %v2569 = vsel %vm2550, %v2509, %v2568
  %v2570 = vsel %vm2546, %v2511, %v2510
  %v2571 = vsel %vm2548, %v2512, %v2570
  %v2572 = vsel %vm2550, %v2513, %v2571
  %v2581 = vcombine.low %v2551, %v2557
  %v2583 = vunpack.c.l.s4 1983009808
  %v2584 = vunpack.c.0.s8 %v2583
  %v2585 = vlaneseq
  %v2586 = vshrl.u32 %v2585, 7
  %v2587 = vsub.s32 %v2584, %v2586
  %v2588 = vrot.slane %v2581, %v2587
  %v2589 = vcombine.low %v2554, %v2560
  %v2591 = vunpack.c.l.s4 1983009808
  %v2592 = vunpack.c.0.s8 %v2591
  %v2593 = vlaneseq
  %v2594 = vshrl.u32 %v2593, 7
  %v2595 = vsub.s32 %v2592, %v2594
  %v2596 = vrot.slane %v2589, %v2595
  %v2597 = vcombine.low %v2588, %v2596
  %v2598 = vcombine.high %v2588, %v2596
  %v2600 = vunpack.c.l.s4 1934713408
  %v2601 = vunpack.c.0.s8 %v2600
  %v2602 = vlaneseq
  %v2603 = vshrl.u32 %v2602, 7
  %v2604 = vsub.s32 %v2601, %v2603
  %v2605 = vrot.slane %v2597, %v2604
  %v2607 = vunpack.c.l.s4 1934713408
  %v2608 = vunpack.c.0.s8 %v2607
  %v2609 = vlaneseq
  %v2610 = vshrl.u32 %v2609, 7
  %v2611 = vsub.s32 %v2608, %v2610
  %v2612 = vrot.slane %v2598, %v2611
  %v2613 = vcombine.high %v2605, 0.0
  %v2614 = vcombine.high %v2612, 0.0
  %v2615 = vcombine.low %v2563, %v2569
  %v2617 = vunpack.c.l.s4 1983009808
  %v2618 = vunpack.c.0.s8 %v2617
  %v2619 = vlaneseq
  %v2620 = vshrl.u32 %v2619, 7
  %v2621 = vsub.s32 %v2618, %v2620
  %v2622 = vrot.slane %v2615, %v2621
  %v2623 = vcombine.low %v2566, %v2572
  %v2625 = vunpack.c.l.s4 1983009808
  %v2626 = vunpack.c.0.s8 %v2625
  %v2627 = vlaneseq
  %v2628 = vshrl.u32 %v2627, 7
  %v2629 = vsub.s32 %v2626, %v2628
  %v2630 = vrot.slane %v2623, %v2629
  %v2631 = vcombine.low %v2622, %v2630
  %v2632 = vcombine.high %v2622, %v2630
  %v2634 = vunpack.c.l.s4 1934713408
  %v2635 = vunpack.c.0.s8 %v2634
  %v2636 = vlaneseq
  %v2637 = vshrl.u32 %v2636, 7
  %v2638 = vsub.s32 %v2635, %v2637
  %v2639 = vrot.slane %v2631, %v2638
  %v2641 = vunpack.c.l.s4 1934713408
  %v2642 = vunpack.c.0.s8 %v2641
  %v2643 = vlaneseq
  %v2644 = vshrl.u32 %v2643, 7
  %v2645 = vsub.s32 %v2642, %v2644
  %v2646 = vrot.slane %v2632, %v2645
  %v2647 = vcombine.high %v2639, 0.0
  %v2648 = vcombine.high %v2646, 0.0
  %2651 = vrot.lane.b32.xlu0 %v2613, 64
  %v2652 = vpop.permute.xlu0 %2651
  %2653 = vrot.lane.b32.xlu0 %v2647, 64
  %v2654 = vpop.permute.xlu0 %2653
  %2659 = vrot.lane.b32.xlu0 %v2614, 64
  %v2660 = vpop.permute.xlu0 %2659
  %2661 = vrot.lane.b32.xlu0 %v2648, 64
  %v2662 = vpop.permute.xlu0 %2661
  %v2665 = vsel %vm1058, %v2605, %v2652
  %v2666 = vsel %vm1058, %v2639, %v2654
  %v2667 = vsel %vm1058, %v2612, %v2660
  %v2668 = vsel %vm1058, %v2646, %v2662
  %v2669 = vpack.c.bf16 %v2665, %v2665
  %v2670 = vpack.c.bf16 %v2667, %v2667
  %v2671 = vpack.c.bf16 %v2666, %v2666
  %v2672 = vpack.c.bf16 %v2668, %v2668
  %v2677 = vcombine.low %v2669, %v2670
  %v2679 = vunpack.c.l.s4 1983009808
  %v2680 = vunpack.c.0.s8 %v2679
  %v2681 = vlaneseq
  %v2682 = vshrl.u32 %v2681, 7
  %v2683 = vsub.s32 %v2680, %v2682
  %v2684 = vrot.slane %v2677, %v2683
  %v2685 = vcombine.low %v2671, %v2672
  %v2687 = vunpack.c.l.s4 1983009808
  %v2688 = vunpack.c.0.s8 %v2687
  %v2689 = vlaneseq
  %v2690 = vshrl.u32 %v2689, 7
  %v2691 = vsub.s32 %v2688, %v2690
  %v2692 = vrot.slane %v2685, %v2691
  %2695 = vst [vmem:[%s3] sm:$0xf] %v2684
  %2696 = vst [vmem:[%s3 + $0x4] sm:$0xf] %v2692
  // Predicated region
  $region14: #{custom_cnn_forward.4} parent=0 // pred_check
    _
  $region15: #{custom_cnn_forward.4} parent=0 // pred_check_branch
    %2698 = sbr.rel (0) target = $region17
  $region16: #{custom_cnn_forward.4} parent=0 // pred_region
    _
  $region17: #{custom_cnn_forward.4} parent=0 // pred_fallthru
    _
  // Predicated region
  $region18: #{custom_cnn_forward.4} parent=0 // pred_check
    _
  $region19: #{custom_cnn_forward.4} parent=0 // pred_check_branch
    %2700 = sbr.rel (0) target = $region21
  $region20: #{custom_cnn_forward.4} parent=0 // pred_region
    _
  $region21: #{custom_cnn_forward.4} parent=0 // pred_fallthru
    _

// kernel: custom_cnn_forward.3
$region0: #{custom_cnn_forward.3}
  #allocation0 [shape = 'u32[]', space=smem, size = 0x4, offset = 0x4, fixed_abs, tag = 'smem constant byte address 0x4 - core index']
  #allocation1 [shape = 'u32[144,128]{1,0:T(1,128)}', space=vmem, size = 0x12000, scoped, tag = 'internal scratch']
  #allocation2 [shape = 'bf16[2,342,4]{2,1,0:T(8,128)(2,1)}', space=vmem, size = 0x2b000, scoped, tag = 'scratch operand']
  %s0 = inlined_call_operand.vmem [shape: bf16[2,16,16,4], index: 0, kind: input, shape index: {}]
  %s1 = inlined_call_operand.vmem [shape: bf16[36,32], index: 1, kind: input, shape index: {}]
  %s2 = inlined_call_operand.vmem [shape: f32[1,32], index: 2, kind: input, shape index: {}]
  %s3 = inlined_call_operand.vmem [shape: bf16[2,8,256], index: 3, kind: output, shape index: {}]
  %s4 = sld [smem:[#allocation0]]
  $region22: #{custom_cnn_forward.3} parent=0
    _
  %s6 = ssub.s32 1, %s4
  %s7 = scalar_select 0, %s6, %s4
  // Predicated region
  $region2: #{custom_cnn_forward.3} parent=0 // pred_check
    _
  $region3: #{custom_cnn_forward.3} parent=0 // pred_check_branch
    %9 = sbr.rel (0) target = $region5
  $region4: #{custom_cnn_forward.3} parent=0 // pred_region
    _
  $region5: #{custom_cnn_forward.3} parent=0 // pred_fallthru
    _
  // Predicated region
  $region6: #{custom_cnn_forward.3} parent=0 // pred_check
    _
  $region7: #{custom_cnn_forward.3} parent=0 // pred_check_branch
    %11 = sbr.rel (0) target = $region9
  $region8: #{custom_cnn_forward.3} parent=0 // pred_region
    _
  $region9: #{custom_cnn_forward.3} parent=0 // pred_fallthru
    _
  // Predicated region
  $region10: #{custom_cnn_forward.3} parent=0 // pred_check
    _
  $region11: #{custom_cnn_forward.3} parent=0 // pred_check_branch
    %13 = sbr.rel (0) target = $region13
  $region12: #{custom_cnn_forward.3} parent=0 // pred_region
    _
  $region13: #{custom_cnn_forward.3} parent=0 // pred_fallthru
    _
  %vm15 = vcmask 27648
  %16 = vst.msk [vmem:[#allocation2] sm:$0xf] %vm15, 0
  %17 = vst.msk [vmem:[#allocation2 + $0x4] sm:$0xf] %vm15, 0
  %18 = vst.msk [vmem:[#allocation2 + $0x8] sm:$0xf] %vm15, 0
  %19 = vst.msk [vmem:[#allocation2 + $0xc] sm:$0xf] %vm15, 0
  %20 = vst.msk [vmem:[#allocation2 + $0x10] sm:$0xf] %vm15, 0
  %21 = vst.msk [vmem:[#allocation2 + $0x14] sm:$0xf] %vm15, 0
  %22 = vst.msk [vmem:[#allocation2 + $0x18] sm:$0xf] %vm15, 0
  %23 = vst.msk [vmem:[#allocation2 + $0x1c] sm:$0xf] %vm15, 0
  %24 = vst.msk [vmem:[#allocation2 + $0x20] sm:$0xf] %vm15, 0
  %25 = vst.msk [vmem:[#allocation2 + $0x24] sm:$0xf] %vm15, 0
  %26 = vst.msk [vmem:[#allocation2 + $0x28] sm:$0xf] %vm15, 0
  %27 = vst.msk [vmem:[#allocation2 + $0x2c] sm:$0xf] %vm15, 0
  %28 = vst.msk [vmem:[#allocation2 + $0x30] sm:$0xf] %vm15, 0
  %29 = vst.msk [vmem:[#allocation2 + $0x34] sm:$0xf] %vm15, 0
  %30 = vst.msk [vmem:[#allocation2 + $0x38] sm:$0xf] %vm15, 0
  %31 = vst.msk [vmem:[#allocation2 + $0x3c] sm:$0xf] %vm15, 0
  %32 = vst.msk [vmem:[#allocation2 + $0x40] sm:$0xf] %vm15, 0
  %33 = vst.msk [vmem:[#allocation2 + $0x44] sm:$0xf] %vm15, 0
  %34 = vst.msk [vmem:[#allocation2 + $0x48] sm:$0xf] %vm15, 0
  %35 = vst.msk [vmem:[#allocation2 + $0x4c] sm:$0xf] %vm15, 0
  %36 = vst.msk [vmem:[#allocation2 + $0x50] sm:$0xf] %vm15, 0
  %37 = vst.msk [vmem:[#allocation2 + $0x54] sm:$0xf] %vm15, 0
  %38 = vst.msk [vmem:[#allocation2 + $0x58] sm:$0xf] %vm15, 0
  %39 = vst.msk [vmem:[#allocation2 + $0x5c] sm:$0xf] %vm15, 0
  %40 = vst.msk [vmem:[#allocation2 + $0x60] sm:$0xf] %vm15, 0
  %41 = vst.msk [vmem:[#allocation2 + $0x64] sm:$0xf] %vm15, 0
  %42 = vst.msk [vmem:[#allocation2 + $0x68] sm:$0xf] %vm15, 0
  %43 = vst.msk [vmem:[#allocation2 + $0x6c] sm:$0xf] %vm15, 0
  %44 = vst.msk [vmem:[#allocation2 + $0x70] sm:$0xf] %vm15, 0
  %45 = vst.msk [vmem:[#allocation2 + $0x74] sm:$0xf] %vm15, 0
  %46 = vst.msk [vmem:[#allocation2 + $0x78] sm:$0xf] %vm15, 0
  %47 = vst.msk [vmem:[#allocation2 + $0x7c] sm:$0xf] %vm15, 0
  %48 = vst.msk [vmem:[#allocation2 + $0x80] sm:$0xf] %vm15, 0
  %49 = vst.msk [vmem:[#allocation2 + $0x84] sm:$0xf] %vm15, 0
  %50 = vst.msk [vmem:[#allocation2 + $0x88] sm:$0xf] %vm15, 0
  %51 = vst.msk [vmem:[#allocation2 + $0x8c] sm:$0xf] %vm15, 0
  %52 = vst.msk [vmem:[#allocation2 + $0x90] sm:$0xf] %vm15, 0
  %53 = vst.msk [vmem:[#allocation2 + $0x94] sm:$0xf] %vm15, 0
  %54 = vst.msk [vmem:[#allocation2 + $0x98] sm:$0xf] %vm15, 0
  %55 = vst.msk [vmem:[#allocation2 + $0x9c] sm:$0xf] %vm15, 0
  %56 = vst.msk [vmem:[#allocation2 + $0xa0] sm:$0xf] %vm15, 0
  %57 = vst.msk [vmem:[#allocation2 + $0xa4] sm:$0xf] %vm15, 0
  %vm58 = vcmask 26624
  %59 = vst.msk [vmem:[#allocation2 + $0xa8] sm:$0x7] %vm58, 0
  %60 = vst.msk [vmem:[#allocation2 + $0xac] sm:$0xf] %vm15, 0
  %61 = vst.msk [vmem:[#allocation2 + $0xb0] sm:$0xf] %vm15, 0
  %62 = vst.msk [vmem:[#allocation2 + $0xb4] sm:$0xf] %vm15, 0
  %63 = vst.msk [vmem:[#allocation2 + $0xb8] sm:$0xf] %vm15, 0
  %64 = vst.msk [vmem:[#allocation2 + $0xbc] sm:$0xf] %vm15, 0
  %65 = vst.msk [vmem:[#allocation2 + $0xc0] sm:$0xf] %vm15, 0
  %66 = vst.msk [vmem:[#allocation2 + $0xc4] sm:$0xf] %vm15, 0
  %67 = vst.msk [vmem:[#allocation2 + $0xc8] sm:$0xf] %vm15, 0
  %68 = vst.msk [vmem:[#allocation2 + $0xcc] sm:$0xf] %vm15, 0
  %69 = vst.msk [vmem:[#allocation2 + $0xd0] sm:$0xf] %vm15, 0
  %70 = vst.msk [vmem:[#allocation2 + $0xd4] sm:$0xf] %vm15, 0
  %71 = vst.msk [vmem:[#allocation2 + $0xd8] sm:$0xf] %vm15, 0
  %72 = vst.msk [vmem:[#allocation2 + $0xdc] sm:$0xf] %vm15, 0
  %73 = vst.msk [vmem:[#allocation2 + $0xe0] sm:$0xf] %vm15, 0
  %74 = vst.msk [vmem:[#allocation2 + $0xe4] sm:$0xf] %vm15, 0
  %75 = vst.msk [vmem:[#allocation2 + $0xe8] sm:$0xf] %vm15, 0
  %76 = vst.msk [vmem:[#allocation2 + $0xec] sm:$0xf] %vm15, 0
  %77 = vst.msk [vmem:[#allocation2 + $0xf0] sm:$0xf] %vm15, 0
  %78 = vst.msk [vmem:[#allocation2 + $0xf4] sm:$0xf] %vm15, 0
  %79 = vst.msk [vmem:[#allocation2 + $0xf8] sm:$0xf] %vm15, 0
  %80 = vst.msk [vmem:[#allocation2 + $0xfc] sm:$0xf] %vm15, 0
  %81 = vst.msk [vmem:[#allocation2 + $0x100] sm:$0xf] %vm15, 0
  %82 = vst.msk [vmem:[#allocation2 + $0x104] sm:$0xf] %vm15, 0
  %83 = vst.msk [vmem:[#allocation2 + $0x108] sm:$0xf] %vm15, 0
  %84 = vst.msk [vmem:[#allocation2 + $0x10c] sm:$0xf] %vm15, 0
  %85 = vst.msk [vmem:[#allocation2 + $0x110] sm:$0xf] %vm15, 0
  %86 = vst.msk [vmem:[#allocation2 + $0x114] sm:$0xf] %vm15, 0
  %87 = vst.msk [vmem:[#allocation2 + $0x118] sm:$0xf] %vm15, 0
  %88 = vst.msk [vmem:[#allocation2 + $0x11c] sm:$0xf] %vm15, 0
  %89 = vst.msk [vmem:[#allocation2 + $0x120] sm:$0xf] %vm15, 0
  %90 = vst.msk [vmem:[#allocation2 + $0x124] sm:$0xf] %vm15, 0
  %91 = vst.msk [vmem:[#allocation2 + $0x128] sm:$0xf] %vm15, 0
  %92 = vst.msk [vmem:[#allocation2 + $0x12c] sm:$0xf] %vm15, 0
  %93 = vst.msk [vmem:[#allocation2 + $0x130] sm:$0xf] %vm15, 0
  %94 = vst.msk [vmem:[#allocation2 + $0x134] sm:$0xf] %vm15, 0
  %95 = vst.msk [vmem:[#allocation2 + $0x138] sm:$0xf] %vm15, 0
  %96 = vst.msk [vmem:[#allocation2 + $0x13c] sm:$0xf] %vm15, 0
  %97 = vst.msk [vmem:[#allocation2 + $0x140] sm:$0xf] %vm15, 0
  %98 = vst.msk [vmem:[#allocation2 + $0x144] sm:$0xf] %vm15, 0
  %99 = vst.msk [vmem:[#allocation2 + $0x148] sm:$0xf] %vm15, 0
  %100 = vst.msk [vmem:[#allocation2 + $0x14c] sm:$0xf] %vm15, 0
  %101 = vst.msk [vmem:[#allocation2 + $0x150] sm:$0xf] %vm15, 0
  %102 = vst.msk [vmem:[#allocation2 + $0x154] sm:$0x7] %vm58, 0
  %v103 = vld [vmem:[%s0] sm:$0xf]
  %v104 = vld [vmem:[%s0 + $0x4] sm:$0xf]
  %v105 = vld [vmem:[%s0 + $0x80] sm:$0xf]
  %v106 = vld [vmem:[%s0 + $0x84] sm:$0xf]
  %vm107 = vsmask.f32 1280
  %vm108 = vsmask.f32 5392
  %vm109 = vmor %vm107, %vm108
  %v111 = vshrl.u32 %v103, 16
  %v113 = vrot.slane %v111, 6
  %v114 = vshll.u32 %v103, 16
  %v116 = vrot.slane %v114, 7
  %v117 = vor.u32 %v113, %v116
  %v118 = vrot.slane %v117, 4
  %v120 = vshrl.u32 %v104, 16
  %v122 = vrot.slane %v120, 6
  %v123 = vshll.u32 %v104, 16
  %v125 = vrot.slane %v123, 7
  %v126 = vor.u32 %v122, %v125
  %v127 = vsel %vm109, %v118, %v126
  %v128 = vrot.slane %v126, 4
  %v130 = vshrl.u32 %v105, 16
  %v132 = vrot.slane %v130, 6
  %v133 = vshll.u32 %v105, 16
  %v135 = vrot.slane %v133, 7
  %v136 = vor.u32 %v132, %v135
  %v137 = vrot.slane %v136, 4
  %v139 = vshrl.u32 %v106, 16
  %v141 = vrot.slane %v139, 6
  %v142 = vshll.u32 %v106, 16
  %v144 = vrot.slane %v142, 7
  %v145 = vor.u32 %v141, %v144
  %v146 = vsel %vm109, %v137, %v145
  %v147 = vrot.slane %v145, 4
  %vm154 = vcmask 27649
  %vm155 = vsmask.f32 7942
  %vm156 = vmand %vm154, %vm155
  %v157 = vld [vmem:[#allocation2 + $0x8] sm:$0xe]
  %v158 = vsel %vm156, %v117, %v157
  %159 = vst [vmem:[#allocation2 + $0x8] sm:$0xe] %v158
  %160 = vst.msk [vmem:[#allocation2 + $0xc] sm:$0xf] %vm15, %v127
  %vm161 = vcmask 25600
  %vm162 = vmand %vm161, %vm107
  %v163 = vld [vmem:[#allocation2 + $0x10] sm:$0x3]
  %v164 = vsel %vm162, %v128, %v163
  %165 = vst [vmem:[#allocation2 + $0x10] sm:$0x3] %v164
  %v166 = vld [vmem:[#allocation2 + $0xb4] sm:$0xe]
  %v167 = vsel %vm156, %v136, %v166
  %168 = vst [vmem:[#allocation2 + $0xb4] sm:$0xe] %v167
  %169 = vst.msk [vmem:[#allocation2 + $0xb8] sm:$0xf] %vm15, %v146
  %v170 = vld [vmem:[#allocation2 + $0xbc] sm:$0x3]
  %v171 = vsel %vm162, %v147, %v170
  %172 = vst [vmem:[#allocation2 + $0xbc] sm:$0x3] %v171
  %s173 = scalar_lea.vmem %s0, 8
  %v174 = vld [vmem:[%s173] sm:$0xf]
  %v175 = vld [vmem:[%s173 + $0x4] sm:$0xf]
  %v176 = vld [vmem:[%s173 + $0x80] sm:$0xf]
  %v177 = vld [vmem:[%s173 + $0x84] sm:$0xf]
  %vm178 = vsmask.f32 2304
  %vm179 = vsmask.f32 6416
  %vm180 = vmor %vm178, %vm179
  %v182 = vshrl.u32 %v174, 16
  %v184 = vrot.slane %v182, 5
  %v185 = vshll.u32 %v174, 16
  %v187 = vrot.slane %v185, 6
  %v188 = vor.u32 %v184, %v187
  %v189 = vrot.slane %v188, 4
  %v191 = vshrl.u32 %v175, 16
  %v193 = vrot.slane %v191, 5
  %v194 = vshll.u32 %v175, 16
  %v196 = vrot.slane %v194, 6
  %v197 = vor.u32 %v193, %v196
  %v198 = vsel %vm180, %v189, %v197
  %v199 = vrot.slane %v197, 4
  %v201 = vshrl.u32 %v176, 16
  %v203 = vrot.slane %v201, 5
  %v204 = vshll.u32 %v176, 16
  %v206 = vrot.slane %v204, 6
  %v207 = vor.u32 %v203, %v206
  %v208 = vrot.slane %v207, 4
  %v210 = vshrl.u32 %v177, 16
  %v212 = vrot.slane %v210, 5
  %v213 = vshll.u32 %v177, 16
  %v215 = vrot.slane %v213, 6
  %v216 = vor.u32 %v212, %v215
  %v217 = vsel %vm180, %v208, %v216
  %v218 = vrot.slane %v216, 4
  %vm225 = vcmask 27650
  %vm226 = vsmask.f32 7946
  %vm227 = vmand %vm225, %vm226
  %v228 = vld [vmem:[#allocation2 + $0x10] sm:$0xc]
  %v229 = vsel %vm227, %v188, %v228
  %230 = vst [vmem:[#allocation2 + $0x10] sm:$0xc] %v229
  %231 = vst.msk [vmem:[#allocation2 + $0x14] sm:$0xf] %vm15, %v198
  %vm232 = vcmask 26624
  %vm233 = vmand %vm232, %vm178
  %v234 = vld [vmem:[#allocation2 + $0x18] sm:$0x7]
  %v235 = vsel %vm233, %v199, %v234
  %236 = vst [vmem:[#allocation2 + $0x18] sm:$0x7] %v235
  %v237 = vld [vmem:[#allocation2 + $0xbc] sm:$0xc]
  %v238 = vsel %vm227, %v207, %v237
  %239 = vst [vmem:[#allocation2 + $0xbc] sm:$0xc] %v238
  %240 = vst.msk [vmem:[#allocation2 + $0xc0] sm:$0xf] %vm15, %v217
  %v241 = vld [vmem:[#allocation2 + $0xc4] sm:$0x7]
  %v242 = vsel %vm233, %v218, %v241
  %243 = vst [vmem:[#allocation2 + $0xc4] sm:$0x7] %v242
  %s244 = scalar_lea.vmem %s0, 16
  %v245 = vld [vmem:[%s244] sm:$0xf]
  %v246 = vld [vmem:[%s244 + $0x4] sm:$0xf]
  %v247 = vld [vmem:[%s244 + $0x80] sm:$0xf]
  %v248 = vld [vmem:[%s244 + $0x84] sm:$0xf]
  %vm249 = vsmask.f32 3328
  %vm250 = vsmask.f32 7440
  %vm251 = vmor %vm249, %vm250
  %v253 = vshll.u32 %v245, 16
  %v255 = vrot.slane %v253, 5
  %v256 = vshrl.u32 %v245, 16
  %v258 = vrot.slane %v256, 4
  %v259 = vor.u32 %v258, %v255
  %v260 = vrot.slane %v259, 4
  %v262 = vshll.u32 %v246, 16
  %v264 = vrot.slane %v262, 5
  %v265 = vsel %vm251, %v260, %v264
  %v266 = vshrl.u32 %v246, 16
  %v268 = vrot.slane %v266, 4
  %v269 = vor.u32 %v268, %v264
  %v270 = vrot.slane %v269, 4
  %v272 = vshll.u32 %v247, 16
  %v274 = vrot.slane %v272, 5
  %v275 = vshrl.u32 %v247, 16
  %v277 = vrot.slane %v275, 4
  %v278 = vor.u32 %v277, %v274
  %v279 = vrot.slane %v278, 4
  %v281 = vshll.u32 %v248, 16
  %v283 = vrot.slane %v281, 5
  %v284 = vsel %vm251, %v279, %v283
  %v285 = vshrl.u32 %v248, 16
  %v287 = vrot.slane %v285, 4
  %v288 = vor.u32 %v287, %v283
  %v289 = vrot.slane %v288, 4
  %vm296 = vcmask 27651
  %vm297 = vsmask.f32 7950
  %vm298 = vmand %vm296, %vm297
  %v299 = vld [vmem:[#allocation2 + $0x18] sm:$0x8]
  %v300 = vsel %vm298, %v255, %v299
  %301 = vst [vmem:[#allocation2 + $0x18] sm:$0x8] %v300
  %302 = vst.msk [vmem:[#allocation2 + $0x1c] sm:$0xf] %vm15, %v265
  %vm303 = vcmask 27648
  %vm304 = vmand %vm303, %vm249
  %v305 = vld [vmem:[#allocation2 + $0x20] sm:$0xf]
  %v306 = vsel %vm304, %v270, %v305
  %307 = vst [vmem:[#allocation2 + $0x20] sm:$0xf] %v306
  %v308 = vld [vmem:[#allocation2 + $0xc4] sm:$0x8]
  %v309 = vsel %vm298, %v274, %v308
  %310 = vst [vmem:[#allocation2 + $0xc4] sm:$0x8] %v309
  %311 = vst.msk [vmem:[#allocation2 + $0xc8] sm:$0xf] %vm15, %v284
  %v312 = vld [vmem:[#allocation2 + $0xcc] sm:$0xf]
  %v313 = vsel %vm304, %v289, %v312
  %314 = vst [vmem:[#allocation2 + $0xcc] sm:$0xf] %v313
  %s315 = scalar_lea.vmem %s0, 24
  %v316 = vld [vmem:[%s315] sm:$0xf]
  %v317 = vld [vmem:[%s315 + $0x4] sm:$0xf]
  %v318 = vld [vmem:[%s315 + $0x80] sm:$0xf]
  %v319 = vld [vmem:[%s315 + $0x84] sm:$0xf]
  %vm320 = vsmask.f32 256
  %vm321 = vsmask.f32 4368
  %vm322 = vmor %vm320, %vm321
  %v324 = vshrl.u32 %v316, 16
  %v326 = vrot.slane %v324, 7
  %v327 = vshll.u32 %v316, 16
  %v329 = vor.u32 %v326, %v327
  %v330 = vrot.slane %v326, 4
  %v332 = vshrl.u32 %v317, 16
  %v334 = vrot.slane %v332, 7
  %v335 = vshll.u32 %v317, 16
  %v337 = vor.u32 %v334, %v335
  %v338 = vsel %vm322, %v330, %v337
  %v339 = vrot.slane %v334, 4
  %v341 = vshrl.u32 %v318, 16
  %v343 = vrot.slane %v341, 7
  %v344 = vshll.u32 %v318, 16
  %v346 = vor.u32 %v343, %v344
  %v347 = vrot.slane %v343, 4
  %v349 = vshrl.u32 %v319, 16
  %v351 = vrot.slane %v349, 7
  %v352 = vshll.u32 %v319, 16
  %v354 = vor.u32 %v351, %v352
  %v355 = vsel %vm322, %v347, %v354
  %v356 = vrot.slane %v351, 4
  %vm363 = vsmask.f32 7938
  %vm364 = vmand %vm303, %vm363
  %v365 = vld [vmem:[#allocation2 + $0x24] sm:$0xf]
  %v366 = vsel %vm364, %v329, %v365
  %367 = vst [vmem:[#allocation2 + $0x24] sm:$0xf] %v366
  %368 = vst.msk [vmem:[#allocation2 + $0x28] sm:$0xf] %vm15, %v338
  %vm369 = vcmask 24576
  %vm370 = vmand %vm369, %vm320
  %v371 = vld [vmem:[#allocation2 + $0x2c] sm:$0x1]
  %v372 = vsel %vm370, %v339, %v371
  %373 = vst [vmem:[#allocation2 + $0x2c] sm:$0x1] %v372
  %v374 = vld [vmem:[#allocation2 + $0xd0] sm:$0xf]
  %v375 = vsel %vm364, %v346, %v374
  %376 = vst [vmem:[#allocation2 + $0xd0] sm:$0xf] %v375
  %377 = vst.msk [vmem:[#allocation2 + $0xd4] sm:$0xf] %vm15, %v355
  %v378 = vld [vmem:[#allocation2 + $0xd8] sm:$0x1]
  %v379 = vsel %vm370, %v356, %v378
  %380 = vst [vmem:[#allocation2 + $0xd8] sm:$0x1] %v379
  %s381 = scalar_lea.vmem %s0, 32
  %v382 = vld [vmem:[%s381] sm:$0xf]
  %v383 = vld [vmem:[%s381 + $0x4] sm:$0xf]
  %v384 = vld [vmem:[%s381 + $0x80] sm:$0xf]
  %v385 = vld [vmem:[%s381 + $0x84] sm:$0xf]
  %v387 = vshrl.u32 %v382, 16
  %v389 = vrot.slane %v387, 6
  %v390 = vshll.u32 %v382, 16
  %v392 = vrot.slane %v390, 7
  %v393 = vor.u32 %v389, %v392
  %v394 = vrot.slane %v393, 4
  %v396 = vshrl.u32 %v383, 16
  %v398 = vrot.slane %v396, 6
  %v399 = vshll.u32 %v383, 16
  %v401 = vrot.slane %v399, 7
  %v402 = vor.u32 %v398, %v401
  %v403 = vsel %vm109, %v394, %v402
  %v404 = vrot.slane %v402, 4
  %v406 = vshrl.u32 %v384, 16
  %v408 = vrot.slane %v406, 6
  %v409 = vshll.u32 %v384, 16
  %v411 = vrot.slane %v409, 7
  %v412 = vor.u32 %v408, %v411
  %v413 = vrot.slane %v412, 4
  %v415 = vshrl.u32 %v385, 16
  %v417 = vrot.slane %v415, 6
  %v418 = vshll.u32 %v385, 16
  %v420 = vrot.slane %v418, 7
  %v421 = vor.u32 %v417, %v420
  %v422 = vsel %vm109, %v413, %v421
  %v423 = vrot.slane %v421, 4
  %v430 = vld [vmem:[#allocation2 + $0x2c] sm:$0xe]
  %v431 = vsel %vm156, %v393, %v430
  %432 = vst [vmem:[#allocation2 + $0x2c] sm:$0xe] %v431
  %433 = vst.msk [vmem:[#allocation2 + $0x30] sm:$0xf] %vm15, %v403
  %v434 = vld [vmem:[#allocation2 + $0x34] sm:$0x3]
  %v435 = vsel %vm162, %v404, %v434
  %436 = vst [vmem:[#allocation2 + $0x34] sm:$0x3] %v435
  %v437 = vld [vmem:[#allocation2 + $0xd8] sm:$0xe]
  %v438 = vsel %vm156, %v412, %v437
  %439 = vst [vmem:[#allocation2 + $0xd8] sm:$0xe] %v438
  %440 = vst.msk [vmem:[#allocation2 + $0xdc] sm:$0xf] %vm15, %v422
  %v441 = vld [vmem:[#allocation2 + $0xe0] sm:$0x3]
  %v442 = vsel %vm162, %v423, %v441
  %443 = vst [vmem:[#allocation2 + $0xe0] sm:$0x3] %v442
  %s444 = scalar_lea.vmem %s0, 40
  %v445 = vld [vmem:[%s444] sm:$0xf]
  %v446 = vld [vmem:[%s444 + $0x4] sm:$0xf]
  %v447 = vld [vmem:[%s444 + $0x80] sm:$0xf]
  %v448 = vld [vmem:[%s444 + $0x84] sm:$0xf]
  %v450 = vshrl.u32 %v445, 16
  %v452 = vrot.slane %v450, 5
  %v453 = vshll.u32 %v445, 16
  %v455 = vrot.slane %v453, 6
  %v456 = vor.u32 %v452, %v455
  %v457 = vrot.slane %v456, 4
  %v459 = vshrl.u32 %v446, 16
  %v461 = vrot.slane %v459, 5
  %v462 = vshll.u32 %v446, 16
  %v464 = vrot.slane %v462, 6
  %v465 = vor.u32 %v461, %v464
  %v466 = vsel %vm180, %v457, %v465
  %v467 = vrot.slane %v465, 4
  %v469 = vshrl.u32 %v447, 16
  %v471 = vrot.slane %v469, 5
  %v472 = vshll.u32 %v447, 16
  %v474 = vrot.slane %v472, 6
  %v475 = vor.u32 %v471, %v474
  %v476 = vrot.slane %v475, 4
  %v478 = vshrl.u32 %v448, 16
  %v480 = vrot.slane %v478, 5
  %v481 = vshll.u32 %v448, 16
  %v483 = vrot.slane %v481, 6
  %v484 = vor.u32 %v480, %v483
  %v485 = vsel %vm180, %v476, %v484
  %v486 = vrot.slane %v484, 4
  %v493 = vld [vmem:[#allocation2 + $0x34] sm:$0xc]
  %v494 = vsel %vm227, %v456, %v493
  %495 = vst [vmem:[#allocation2 + $0x34] sm:$0xc] %v494
  %496 = vst.msk [vmem:[#allocation2 + $0x38] sm:$0xf] %vm15, %v466
  %v497 = vld [vmem:[#allocation2 + $0x3c] sm:$0x7]
  %v498 = vsel %vm233, %v467, %v497
  %499 = vst [vmem:[#allocation2 + $0x3c] sm:$0x7] %v498
  %v500 = vld [vmem:[#allocation2 + $0xe0] sm:$0xc]
  %v501 = vsel %vm227, %v475, %v500
  %502 = vst [vmem:[#allocation2 + $0xe0] sm:$0xc] %v501
  %503 = vst.msk [vmem:[#allocation2 + $0xe4] sm:$0xf] %vm15, %v485
  %v504 = vld [vmem:[#allocation2 + $0xe8] sm:$0x7]
  %v505 = vsel %vm233, %v486, %v504
  %506 = vst [vmem:[#allocation2 + $0xe8] sm:$0x7] %v505
  %s507 = scalar_lea.vmem %s0, 48
  %v508 = vld [vmem:[%s507] sm:$0xf]
  %v509 = vld [vmem:[%s507 + $0x4] sm:$0xf]
  %v510 = vld [vmem:[%s507 + $0x80] sm:$0xf]
  %v511 = vld [vmem:[%s507 + $0x84] sm:$0xf]
  %v513 = vshll.u32 %v508, 16
  %v515 = vrot.slane %v513, 5
  %v516 = vshrl.u32 %v508, 16
  %v518 = vrot.slane %v516, 4
  %v519 = vor.u32 %v518, %v515
  %v520 = vrot.slane %v519, 4
  %v522 = vshll.u32 %v509, 16
  %v524 = vrot.slane %v522, 5
  %v525 = vsel %vm251, %v520, %v524
  %v526 = vshrl.u32 %v509, 16
  %v528 = vrot.slane %v526, 4
  %v529 = vor.u32 %v528, %v524
  %v530 = vrot.slane %v529, 4
  %v532 = vshll.u32 %v510, 16
  %v534 = vrot.slane %v532, 5
  %v535 = vshrl.u32 %v510, 16
  %v537 = vrot.slane %v535, 4
  %v538 = vor.u32 %v537, %v534
  %v539 = vrot.slane %v538, 4
  %v541 = vshll.u32 %v511, 16
  %v543 = vrot.slane %v541, 5
  %v544 = vsel %vm251, %v539, %v543
  %v545 = vshrl.u32 %v511, 16
  %v547 = vrot.slane %v545, 4
  %v548 = vor.u32 %v547, %v543
  %v549 = vrot.slane %v548, 4
  %v556 = vld [vmem:[#allocation2 + $0x3c] sm:$0x8]
  %v557 = vsel %vm298, %v515, %v556
  %558 = vst [vmem:[#allocation2 + $0x3c] sm:$0x8] %v557
  %559 = vst.msk [vmem:[#allocation2 + $0x40] sm:$0xf] %vm15, %v525
  %v560 = vld [vmem:[#allocation2 + $0x44] sm:$0xf]
  %v561 = vsel %vm304, %v530, %v560
  %562 = vst [vmem:[#allocation2 + $0x44] sm:$0xf] %v561
  %v563 = vld [vmem:[#allocation2 + $0xe8] sm:$0x8]
  %v564 = vsel %vm298, %v534, %v563
  %565 = vst [vmem:[#allocation2 + $0xe8] sm:$0x8] %v564
  %566 = vst.msk [vmem:[#allocation2 + $0xec] sm:$0xf] %vm15, %v544
  %v567 = vld [vmem:[#allocation2 + $0xf0] sm:$0xf]
  %v568 = vsel %vm304, %v549, %v567
  %569 = vst [vmem:[#allocation2 + $0xf0] sm:$0xf] %v568
  %s570 = scalar_lea.vmem %s0, 56
  %v571 = vld [vmem:[%s570] sm:$0xf]
  %v572 = vld [vmem:[%s570 + $0x4] sm:$0xf]
  %v573 = vld [vmem:[%s570 + $0x80] sm:$0xf]
  %v574 = vld [vmem:[%s570 + $0x84] sm:$0xf]
  %v576 = vshrl.u32 %v571, 16
  %v578 = vrot.slane %v576, 7
  %v579 = vshll.u32 %v571, 16
  %v581 = vor.u32 %v578, %v579
  %v582 = vrot.slane %v578, 4
  %v584 = vshrl.u32 %v572, 16
  %v586 = vrot.slane %v584, 7
  %v587 = vshll.u32 %v572, 16
  %v589 = vor.u32 %v586, %v587
  %v590 = vsel %vm322, %v582, %v589
  %v591 = vrot.slane %v586, 4
  %v593 = vshrl.u32 %v573, 16
  %v595 = vrot.slane %v593, 7
  %v596 = vshll.u32 %v573, 16
  %v598 = vor.u32 %v595, %v596
  %v599 = vrot.slane %v595, 4
  %v601 = vshrl.u32 %v574, 16
  %v603 = vrot.slane %v601, 7
  %v604 = vshll.u32 %v574, 16
  %v606 = vor.u32 %v603, %v604
  %v607 = vsel %vm322, %v599, %v606
  %v608 = vrot.slane %v603, 4
  %v615 = vld [vmem:[#allocation2 + $0x48] sm:$0xf]
  %v616 = vsel %vm364, %v581, %v615
  %617 = vst [vmem:[#allocation2 + $0x48] sm:$0xf] %v616
  %618 = vst.msk [vmem:[#allocation2 + $0x4c] sm:$0xf] %vm15, %v590
  %v619 = vld [vmem:[#allocation2 + $0x50] sm:$0x1]
  %v620 = vsel %vm370, %v591, %v619
  %621 = vst [vmem:[#allocation2 + $0x50] sm:$0x1] %v620
  %v622 = vld [vmem:[#allocation2 + $0xf4] sm:$0xf]
  %v623 = vsel %vm364, %v598, %v622
  %624 = vst [vmem:[#allocation2 + $0xf4] sm:$0xf] %v623
  %625 = vst.msk [vmem:[#allocation2 + $0xf8] sm:$0xf] %vm15, %v607
  %v626 = vld [vmem:[#allocation2 + $0xfc] sm:$0x1]
  %v627 = vsel %vm370, %v608, %v626
  %628 = vst [vmem:[#allocation2 + $0xfc] sm:$0x1] %v627
  %s629 = scalar_lea.vmem %s0, 64
  %v630 = vld [vmem:[%s629] sm:$0xf]
  %v631 = vld [vmem:[%s629 + $0x4] sm:$0xf]
  %v632 = vld [vmem:[%s629 + $0x80] sm:$0xf]
  %v633 = vld [vmem:[%s629 + $0x84] sm:$0xf]
  %v635 = vshrl.u32 %v630, 16
  %v637 = vrot.slane %v635, 6
  %v638 = vshll.u32 %v630, 16
  %v640 = vrot.slane %v638, 7
  %v641 = vor.u32 %v637, %v640
  %v642 = vrot.slane %v641, 4
  %v644 = vshrl.u32 %v631, 16
  %v646 = vrot.slane %v644, 6
  %v647 = vshll.u32 %v631, 16
  %v649 = vrot.slane %v647, 7
  %v650 = vor.u32 %v646, %v649
  %v651 = vsel %vm109, %v642, %v650
  %v652 = vrot.slane %v650, 4
  %v654 = vshrl.u32 %v632, 16
  %v656 = vrot.slane %v654, 6
  %v657 = vshll.u32 %v632, 16
  %v659 = vrot.slane %v657, 7
  %v660 = vor.u32 %v656, %v659
  %v661 = vrot.slane %v660, 4
  %v663 = vshrl.u32 %v633, 16
  %v665 = vrot.slane %v663, 6
  %v666 = vshll.u32 %v633, 16
  %v668 = vrot.slane %v666, 7
  %v669 = vor.u32 %v665, %v668
  %v670 = vsel %vm109, %v661, %v669
  %v671 = vrot.slane %v669, 4
  %v678 = vld [vmem:[#allocation2 + $0x50] sm:$0xe]
  %v679 = vsel %vm156, %v641, %v678
  %680 = vst [vmem:[#allocation2 + $0x50] sm:$0xe] %v679
  %681 = vst.msk [vmem:[#allocation2 + $0x54] sm:$0xf] %vm15, %v651
  %v682 = vld [vmem:[#allocation2 + $0x58] sm:$0x3]
  %v683 = vsel %vm162, %v652, %v682
  %684 = vst [vmem:[#allocation2 + $0x58] sm:$0x3] %v683
  %v685 = vld [vmem:[#allocation2 + $0xfc] sm:$0xe]
  %v686 = vsel %vm156, %v660, %v685
  %687 = vst [vmem:[#allocation2 + $0xfc] sm:$0xe] %v686
  %688 = vst.msk [vmem:[#allocation2 + $0x100] sm:$0xf] %vm15, %v670
  %v689 = vld [vmem:[#allocation2 + $0x104] sm:$0x3]
  %v690 = vsel %vm162, %v671, %v689
  %691 = vst [vmem:[#allocation2 + $0x104] sm:$0x3] %v690
  %s692 = scalar_lea.vmem %s0, 72
  %v693 = vld [vmem:[%s692] sm:$0xf]
  %v694 = vld [vmem:[%s692 + $0x4] sm:$0xf]
  %v695 = vld [vmem:[%s692 + $0x80] sm:$0xf]
  %v696 = vld [vmem:[%s692 + $0x84] sm:$0xf]
  %v698 = vshrl.u32 %v693, 16
  %v700 = vrot.slane %v698, 5
  %v701 = vshll.u32 %v693, 16
  %v703 = vrot.slane %v701, 6
  %v704 = vor.u32 %v700, %v703
  %v705 = vrot.slane %v704, 4
  %v707 = vshrl.u32 %v694, 16
  %v709 = vrot.slane %v707, 5
  %v710 = vshll.u32 %v694, 16
  %v712 = vrot.slane %v710, 6
  %v713 = vor.u32 %v709, %v712
  %v714 = vsel %vm180, %v705, %v713
  %v715 = vrot.slane %v713, 4
  %v717 = vshrl.u32 %v695, 16
  %v719 = vrot.slane %v717, 5
  %v720 = vshll.u32 %v695, 16
  %v722 = vrot.slane %v720, 6
  %v723 = vor.u32 %v719, %v722
  %v724 = vrot.slane %v723, 4
  %v726 = vshrl.u32 %v696, 16
  %v728 = vrot.slane %v726, 5
  %v729 = vshll.u32 %v696, 16
  %v731 = vrot.slane %v729, 6
  %v732 = vor.u32 %v728, %v731
  %v733 = vsel %vm180, %v724, %v732
  %v734 = vrot.slane %v732, 4
  %v741 = vld [vmem:[#allocation2 + $0x58] sm:$0xc]
  %v742 = vsel %vm227, %v704, %v741
  %743 = vst [vmem:[#allocation2 + $0x58] sm:$0xc] %v742
  %744 = vst.msk [vmem:[#allocation2 + $0x5c] sm:$0xf] %vm15, %v714
  %v745 = vld [vmem:[#allocation2 + $0x60] sm:$0x7]
  %v746 = vsel %vm233, %v715, %v745
  %747 = vst [vmem:[#allocation2 + $0x60] sm:$0x7] %v746
  %v748 = vld [vmem:[#allocation2 + $0x104] sm:$0xc]
  %v749 = vsel %vm227, %v723, %v748
  %750 = vst [vmem:[#allocation2 + $0x104] sm:$0xc] %v749
  %751 = vst.msk [vmem:[#allocation2 + $0x108] sm:$0xf] %vm15, %v733
  %v752 = vld [vmem:[#allocation2 + $0x10c] sm:$0x7]
  %v753 = vsel %vm233, %v734, %v752
  %754 = vst [vmem:[#allocation2 + $0x10c] sm:$0x7] %v753
  %s755 = scalar_lea.vmem %s0, 80
  %v756 = vld [vmem:[%s755] sm:$0xf]
  %v757 = vld [vmem:[%s755 + $0x4] sm:$0xf]
  %v758 = vld [vmem:[%s755 + $0x80] sm:$0xf]
  %v759 = vld [vmem:[%s755 + $0x84] sm:$0xf]
  %v761 = vshll.u32 %v756, 16
  %v763 = vrot.slane %v761, 5
  %v764 = vshrl.u32 %v756, 16
  %v766 = vrot.slane %v764, 4
  %v767 = vor.u32 %v766, %v763
  %v768 = vrot.slane %v767, 4
  %v770 = vshll.u32 %v757, 16
  %v772 = vrot.slane %v770, 5
  %v773 = vsel %vm251, %v768, %v772
  %v774 = vshrl.u32 %v757, 16
  %v776 = vrot.slane %v774, 4
  %v777 = vor.u32 %v776, %v772
  %v778 = vrot.slane %v777, 4
  %v780 = vshll.u32 %v758, 16
  %v782 = vrot.slane %v780, 5
  %v783 = vshrl.u32 %v758, 16
  %v785 = vrot.slane %v783, 4
  %v786 = vor.u32 %v785, %v782
  %v787 = vrot.slane %v786, 4
  %v789 = vshll.u32 %v759, 16
  %v791 = vrot.slane %v789, 5
  %v792 = vsel %vm251, %v787, %v791
  %v793 = vshrl.u32 %v759, 16
  %v795 = vrot.slane %v793, 4
  %v796 = vor.u32 %v795, %v791
  %v797 = vrot.slane %v796, 4
  %v804 = vld [vmem:[#allocation2 + $0x60] sm:$0x8]
  %v805 = vsel %vm298, %v763, %v804
  %806 = vst [vmem:[#allocation2 + $0x60] sm:$0x8] %v805
  %807 = vst.msk [vmem:[#allocation2 + $0x64] sm:$0xf] %vm15, %v773
  %v808 = vld [vmem:[#allocation2 + $0x68] sm:$0xf]
  %v809 = vsel %vm304, %v778, %v808
  %810 = vst [vmem:[#allocation2 + $0x68] sm:$0xf] %v809
  %v811 = vld [vmem:[#allocation2 + $0x10c] sm:$0x8]
  %v812 = vsel %vm298, %v782, %v811
  %813 = vst [vmem:[#allocation2 + $0x10c] sm:$0x8] %v812
  %814 = vst.msk [vmem:[#allocation2 + $0x110] sm:$0xf] %vm15, %v792
  %v815 = vld [vmem:[#allocation2 + $0x114] sm:$0xf]
  %v816 = vsel %vm304, %v797, %v815
  %817 = vst [vmem:[#allocation2 + $0x114] sm:$0xf] %v816
  %s818 = scalar_lea.vmem %s0, 88
  %v819 = vld [vmem:[%s818] sm:$0xf]
  %v820 = vld [vmem:[%s818 + $0x4] sm:$0xf]
  %v821 = vld [vmem:[%s818 + $0x80] sm:$0xf]
  %v822 = vld [vmem:[%s818 + $0x84] sm:$0xf]
  %v824 = vshrl.u32 %v819, 16
  %v826 = vrot.slane %v824, 7
  %v827 = vshll.u32 %v819, 16
  %v829 = vor.u32 %v826, %v827
  %v830 = vrot.slane %v826, 4
  %v832 = vshrl.u32 %v820, 16
  %v834 = vrot.slane %v832, 7
  %v835 = vshll.u32 %v820, 16
  %v837 = vor.u32 %v834, %v835
  %v838 = vsel %vm322, %v830, %v837
  %v839 = vrot.slane %v834, 4
  %v841 = vshrl.u32 %v821, 16
  %v843 = vrot.slane %v841, 7
  %v844 = vshll.u32 %v821, 16
  %v846 = vor.u32 %v843, %v844
  %v847 = vrot.slane %v843, 4
  %v849 = vshrl.u32 %v822, 16
  %v851 = vrot.slane %v849, 7
  %v852 = vshll.u32 %v822, 16
  %v854 = vor.u32 %v851, %v852
  %v855 = vsel %vm322, %v847, %v854
  %v856 = vrot.slane %v851, 4
  %v863 = vld [vmem:[#allocation2 + $0x6c] sm:$0xf]
  %v864 = vsel %vm364, %v829, %v863
  %865 = vst [vmem:[#allocation2 + $0x6c] sm:$0xf] %v864
  %866 = vst.msk [vmem:[#allocation2 + $0x70] sm:$0xf] %vm15, %v838
  %v867 = vld [vmem:[#allocation2 + $0x74] sm:$0x1]
  %v868 = vsel %vm370, %v839, %v867
  %869 = vst [vmem:[#allocation2 + $0x74] sm:$0x1] %v868
  %v870 = vld [vmem:[#allocation2 + $0x118] sm:$0xf]
  %v871 = vsel %vm364, %v846, %v870
  %872 = vst [vmem:[#allocation2 + $0x118] sm:$0xf] %v871
  %873 = vst.msk [vmem:[#allocation2 + $0x11c] sm:$0xf] %vm15, %v855
  %v874 = vld [vmem:[#allocation2 + $0x120] sm:$0x1]
  %v875 = vsel %vm370, %v856, %v874
  %876 = vst [vmem:[#allocation2 + $0x120] sm:$0x1] %v875
  %s877 = scalar_lea.vmem %s0, 96
  %v878 = vld [vmem:[%s877] sm:$0xf]
  %v879 = vld [vmem:[%s877 + $0x4] sm:$0xf]
  %v880 = vld [vmem:[%s877 + $0x80] sm:$0xf]
  %v881 = vld [vmem:[%s877 + $0x84] sm:$0xf]
  %v883 = vshrl.u32 %v878, 16
  %v885 = vrot.slane %v883, 6
  %v886 = vshll.u32 %v878, 16
  %v888 = vrot.slane %v886, 7
  %v889 = vor.u32 %v885, %v888
  %v890 = vrot.slane %v889, 4
  %v892 = vshrl.u32 %v879, 16
  %v894 = vrot.slane %v892, 6
  %v895 = vshll.u32 %v879, 16
  %v897 = vrot.slane %v895, 7
  %v898 = vor.u32 %v894, %v897
  %v899 = vsel %vm109, %v890, %v898
  %v900 = vrot.slane %v898, 4
  %v902 = vshrl.u32 %v880, 16
  %v904 = vrot.slane %v902, 6
  %v905 = vshll.u32 %v880, 16
  %v907 = vrot.slane %v905, 7
  %v908 = vor.u32 %v904, %v907
  %v909 = vrot.slane %v908, 4
  %v911 = vshrl.u32 %v881, 16
  %v913 = vrot.slane %v911, 6
  %v914 = vshll.u32 %v881, 16
  %v916 = vrot.slane %v914, 7
  %v917 = vor.u32 %v913, %v916
  %v918 = vsel %vm109, %v909, %v917
  %v919 = vrot.slane %v917, 4
  %v926 = vld [vmem:[#allocation2 + $0x74] sm:$0xe]
  %v927 = vsel %vm156, %v889, %v926
  %928 = vst [vmem:[#allocation2 + $0x74] sm:$0xe] %v927
  %929 = vst.msk [vmem:[#allocation2 + $0x78] sm:$0xf] %vm15, %v899
  %v930 = vld [vmem:[#allocation2 + $0x7c] sm:$0x3]
  %v931 = vsel %vm162, %v900, %v930
  %932 = vst [vmem:[#allocation2 + $0x7c] sm:$0x3] %v931
  %v933 = vld [vmem:[#allocation2 + $0x120] sm:$0xe]
  %v934 = vsel %vm156, %v908, %v933
  %935 = vst [vmem:[#allocation2 + $0x120] sm:$0xe] %v934
  %936 = vst.msk [vmem:[#allocation2 + $0x124] sm:$0xf] %vm15, %v918
  %v937 = vld [vmem:[#allocation2 + $0x128] sm:$0x3]
  %v938 = vsel %vm162, %v919, %v937
  %939 = vst [vmem:[#allocation2 + $0x128] sm:$0x3] %v938
  %s940 = scalar_lea.vmem %s0, 104
  %v941 = vld [vmem:[%s940] sm:$0xf]
  %v942 = vld [vmem:[%s940 + $0x4] sm:$0xf]
  %v943 = vld [vmem:[%s940 + $0x80] sm:$0xf]
  %v944 = vld [vmem:[%s940 + $0x84] sm:$0xf]
  %v946 = vshrl.u32 %v941, 16
  %v948 = vrot.slane %v946, 5
  %v949 = vshll.u32 %v941, 16
  %v951 = vrot.slane %v949, 6
  %v952 = vor.u32 %v948, %v951
  %v953 = vrot.slane %v952, 4
  %v955 = vshrl.u32 %v942, 16
  %v957 = vrot.slane %v955, 5
  %v958 = vshll.u32 %v942, 16
  %v960 = vrot.slane %v958, 6
  %v961 = vor.u32 %v957, %v960
  %v962 = vsel %vm180, %v953, %v961
  %v963 = vrot.slane %v961, 4
  %v965 = vshrl.u32 %v943, 16
  %v967 = vrot.slane %v965, 5
  %v968 = vshll.u32 %v943, 16
  %v970 = vrot.slane %v968, 6
  %v971 = vor.u32 %v967, %v970
  %v972 = vrot.slane %v971, 4
  %v974 = vshrl.u32 %v944, 16
  %v976 = vrot.slane %v974, 5
  %v977 = vshll.u32 %v944, 16
  %v979 = vrot.slane %v977, 6
  %v980 = vor.u32 %v976, %v979
  %v981 = vsel %vm180, %v972, %v980
  %v982 = vrot.slane %v980, 4
  %v989 = vld [vmem:[#allocation2 + $0x7c] sm:$0xc]
  %v990 = vsel %vm227, %v952, %v989
  %991 = vst [vmem:[#allocation2 + $0x7c] sm:$0xc] %v990
  %992 = vst.msk [vmem:[#allocation2 + $0x80] sm:$0xf] %vm15, %v962
  %v993 = vld [vmem:[#allocation2 + $0x84] sm:$0x7]
  %v994 = vsel %vm233, %v963, %v993
  %995 = vst [vmem:[#allocation2 + $0x84] sm:$0x7] %v994
  %v996 = vld [vmem:[#allocation2 + $0x128] sm:$0xc]
  %v997 = vsel %vm227, %v971, %v996
  %998 = vst [vmem:[#allocation2 + $0x128] sm:$0xc] %v997
  %999 = vst.msk [vmem:[#allocation2 + $0x12c] sm:$0xf] %vm15, %v981
  %v1000 = vld [vmem:[#allocation2 + $0x130] sm:$0x7]
  %v1001 = vsel %vm233, %v982, %v1000
  %1002 = vst [vmem:[#allocation2 + $0x130] sm:$0x7] %v1001
  %s1003 = scalar_lea.vmem %s0, 112
  %v1004 = vld [vmem:[%s1003] sm:$0xf]
  %v1005 = vld [vmem:[%s1003 + $0x4] sm:$0xf]
  %v1006 = vld [vmem:[%s1003 + $0x80] sm:$0xf]
  %v1007 = vld [vmem:[%s1003 + $0x84] sm:$0xf]
  %v1009 = vshll.u32 %v1004, 16
  %v1011 = vrot.slane %v1009, 5
  %v1012 = vshrl.u32 %v1004, 16
  %v1014 = vrot.slane %v1012, 4
  %v1015 = vor.u32 %v1014, %v1011
  %v1016 = vrot.slane %v1015, 4
  %v1018 = vshll.u32 %v1005, 16
  %v1020 = vrot.slane %v1018, 5
  %v1021 = vsel %vm251, %v1016, %v1020
  %v1022 = vshrl.u32 %v1005, 16
  %v1024 = vrot.slane %v1022, 4
  %v1025 = vor.u32 %v1024, %v1020
  %v1026 = vrot.slane %v1025, 4
  %v1028 = vshll.u32 %v1006, 16
  %v1030 = vrot.slane %v1028, 5
  %v1031 = vshrl.u32 %v1006, 16
  %v1033 = vrot.slane %v1031, 4
  %v1034 = vor.u32 %v1033, %v1030
  %v1035 = vrot.slane %v1034, 4
  %v1037 = vshll.u32 %v1007, 16
  %v1039 = vrot.slane %v1037, 5
  %v1040 = vsel %vm251, %v1035, %v1039
  %v1041 = vshrl.u32 %v1007, 16
  %v1043 = vrot.slane %v1041, 4
  %v1044 = vor.u32 %v1043, %v1039
  %v1045 = vrot.slane %v1044, 4
  %v1052 = vld [vmem:[#allocation2 + $0x84] sm:$0x8]
  %v1053 = vsel %vm298, %v1011, %v1052
  %1054 = vst [vmem:[#allocation2 + $0x84] sm:$0x8] %v1053
  %1055 = vst.msk [vmem:[#allocation2 + $0x88] sm:$0xf] %vm15, %v1021
  %v1056 = vld [vmem:[#allocation2 + $0x8c] sm:$0xf]
  %v1057 = vsel %vm304, %v1026, %v1056
  %1058 = vst [vmem:[#allocation2 + $0x8c] sm:$0xf] %v1057
  %v1059 = vld [vmem:[#allocation2 + $0x130] sm:$0x8]
  %v1060 = vsel %vm298, %v1030, %v1059
  %1061 = vst [vmem:[#allocation2 + $0x130] sm:$0x8] %v1060
  %1062 = vst.msk [vmem:[#allocation2 + $0x134] sm:$0xf] %vm15, %v1040
  %v1063 = vld [vmem:[#allocation2 + $0x138] sm:$0xf]
  %v1064 = vsel %vm304, %v1045, %v1063
  %1065 = vst [vmem:[#allocation2 + $0x138] sm:$0xf] %v1064
  %s1066 = scalar_lea.vmem %s0, 120
  %v1067 = vld [vmem:[%s1066] sm:$0xf]
  %v1068 = vld [vmem:[%s1066 + $0x4] sm:$0xf]
  %v1069 = vld [vmem:[%s1066 + $0x80] sm:$0xf]
  %v1070 = vld [vmem:[%s1066 + $0x84] sm:$0xf]
  %v1072 = vshrl.u32 %v1067, 16
  %v1074 = vrot.slane %v1072, 7
  %v1075 = vshll.u32 %v1067, 16
  %v1077 = vor.u32 %v1074, %v1075
  %v1078 = vrot.slane %v1074, 4
  %v1080 = vshrl.u32 %v1068, 16
  %v1082 = vrot.slane %v1080, 7
  %v1083 = vshll.u32 %v1068, 16
  %v1085 = vor.u32 %v1082, %v1083
  %v1086 = vsel %vm322, %v1078, %v1085
  %v1087 = vrot.slane %v1082, 4
  %v1089 = vshrl.u32 %v1069, 16
  %v1091 = vrot.slane %v1089, 7
  %v1092 = vshll.u32 %v1069, 16
  %v1094 = vor.u32 %v1091, %v1092
  %v1095 = vrot.slane %v1091, 4
  %v1097 = vshrl.u32 %v1070, 16
  %v1099 = vrot.slane %v1097, 7
  %v1100 = vshll.u32 %v1070, 16
  %v1102 = vor.u32 %v1099, %v1100
  %v1103 = vsel %vm322, %v1095, %v1102
  %v1104 = vrot.slane %v1099, 4
  %v1111 = vld [vmem:[#allocation2 + $0x90] sm:$0xf]
  %v1112 = vsel %vm364, %v1077, %v1111
  %1113 = vst [vmem:[#allocation2 + $0x90] sm:$0xf] %v1112
  %1114 = vst.msk [vmem:[#allocation2 + $0x94] sm:$0xf] %vm15, %v1086
  %v1115 = vld [vmem:[#allocation2 + $0x98] sm:$0x1]
  %v1116 = vsel %vm370, %v1087, %v1115
  %1117 = vst [vmem:[#allocation2 + $0x98] sm:$0x1] %v1116
  %v1118 = vld [vmem:[#allocation2 + $0x13c] sm:$0xf]
  %v1119 = vsel %vm364, %v1094, %v1118
  %1120 = vst [vmem:[#allocation2 + $0x13c] sm:$0xf] %v1119
  %1121 = vst.msk [vmem:[#allocation2 + $0x140] sm:$0xf] %vm15, %v1103
  %v1122 = vld [vmem:[#allocation2 + $0x144] sm:$0x1]
  %v1123 = vsel %vm370, %v1104, %v1122
  %1124 = vst [vmem:[#allocation2 + $0x144] sm:$0x1] %v1123
  %v1125 = vld [vmem:[#allocation2] sm:$0xf]
  %v1126 = vld [vmem:[#allocation2 + $0x4] sm:$0xf]
  %v1127 = vld [vmem:[#allocation2 + $0x8] sm:$0xf]
  %v1128 = vld [vmem:[#allocation2 + $0xc] sm:$0xf]
  %v1129 = vld [vmem:[#allocation2 + $0x10] sm:$0xf]
  %v1130 = vld [vmem:[#allocation2 + $0x14] sm:$0xf]
  %v1131 = vld [vmem:[#allocation2 + $0x18] sm:$0xf]
  %v1132 = vld [vmem:[#allocation2 + $0x1c] sm:$0xf]
  %v1133 = vld [vmem:[#allocation2 + $0x20] sm:$0xf]
  %v1134 = vld [vmem:[#allocation2 + $0x24] sm:$0xf]
  %v1135 = vld [vmem:[#allocation2 + $0x28] sm:$0xf]
  %v1136 = vld [vmem:[#allocation2 + $0x2c] sm:$0xf]
  %v1137 = vld [vmem:[#allocation2 + $0x30] sm:$0xf]
  %v1138 = vld [vmem:[#allocation2 + $0x34] sm:$0xf]
  %v1139 = vld [vmem:[#allocation2 + $0x38] sm:$0xf]
  %v1140 = vld [vmem:[#allocation2 + $0x3c] sm:$0xf]
  %v1141 = vld [vmem:[#allocation2 + $0x40] sm:$0xf]
  %v1142 = vld [vmem:[#allocation2 + $0x44] sm:$0xf]
  %v1143 = vld [vmem:[#allocation2 + $0x48] sm:$0xf]
  %v1144 = vld [vmem:[#allocation2 + $0x4c] sm:$0xf]
  %v1145 = vld [vmem:[#allocation2 + $0x50] sm:$0xf]
  %v1146 = vld [vmem:[#allocation2 + $0x54] sm:$0xf]
  %v1147 = vld [vmem:[#allocation2 + $0x58] sm:$0xf]
  %v1148 = vld [vmem:[#allocation2 + $0x5c] sm:$0xf]
  %v1149 = vld [vmem:[#allocation2 + $0x60] sm:$0xf]
  %v1150 = vld [vmem:[#allocation2 + $0x64] sm:$0xf]
  %v1151 = vld [vmem:[#allocation2 + $0x68] sm:$0xf]
  %v1152 = vld [vmem:[#allocation2 + $0x6c] sm:$0xf]
  %v1153 = vld [vmem:[#allocation2 + $0x70] sm:$0xf]
  %v1154 = vld [vmem:[#allocation2 + $0x74] sm:$0xf]
  %v1155 = vld [vmem:[#allocation2 + $0x78] sm:$0xf]
  %v1156 = vld [vmem:[#allocation2 + $0x7c] sm:$0xf]
  %v1157 = vld [vmem:[#allocation2 + $0x80] sm:$0xf]
  %v1158 = vld [vmem:[#allocation2 + $0x84] sm:$0xf]
  %v1159 = vld [vmem:[#allocation2 + $0x88] sm:$0xf]
  %v1160 = vld [vmem:[#allocation2 + $0x8c] sm:$0xf]
  %v1161 = vld [vmem:[#allocation2 + $0xac] sm:$0xf]
  %v1162 = vld [vmem:[#allocation2 + $0xb0] sm:$0xf]
  %v1163 = vld [vmem:[#allocation2 + $0xb4] sm:$0xf]
  %v1164 = vld [vmem:[#allocation2 + $0xb8] sm:$0xf]
  %v1165 = vld [vmem:[#allocation2 + $0xbc] sm:$0xf]
  %v1166 = vld [vmem:[#allocation2 + $0xc0] sm:$0xf]
  %v1167 = vld [vmem:[#allocation2 + $0xc4] sm:$0xf]
  %v1168 = vld [vmem:[#allocation2 + $0xc8] sm:$0xf]
  %v1169 = vld [vmem:[#allocation2 + $0xcc] sm:$0xf]
  %v1170 = vld [vmem:[#allocation2 + $0xd0] sm:$0xf]
  %v1171 = vld [vmem:[#allocation2 + $0xd4] sm:$0xf]
  %v1172 = vld [vmem:[#allocation2 + $0xd8] sm:$0xf]
  %v1173 = vld [vmem:[#allocation2 + $0xdc] sm:$0xf]
  %v1174 = vld [vmem:[#allocation2 + $0xe0] sm:$0xf]
  %v1175 = vld [vmem:[#allocation2 + $0xe4] sm:$0xf]
  %v1176 = vld [vmem:[#allocation2 + $0xe8] sm:$0xf]
  %v1177 = vld [vmem:[#allocation2 + $0xec] sm:$0xf]
  %v1178 = vld [vmem:[#allocation2 + $0xf0] sm:$0xf]
  %v1179 = vld [vmem:[#allocation2 + $0xf4] sm:$0xf]
  %v1180 = vld [vmem:[#allocation2 + $0xf8] sm:$0xf]
  %v1181 = vld [vmem:[#allocation2 + $0xfc] sm:$0xf]
  %v1182 = vld [vmem:[#allocation2 + $0x100] sm:$0xf]
  %v1183 = vld [vmem:[#allocation2 + $0x104] sm:$0xf]
  %v1184 = vld [vmem:[#allocation2 + $0x108] sm:$0xf]
  %v1185 = vld [vmem:[#allocation2 + $0x10c] sm:$0xf]
  %v1186 = vld [vmem:[#allocation2 + $0x110] sm:$0xf]
  %v1187 = vld [vmem:[#allocation2 + $0x114] sm:$0xf]
  %v1188 = vld [vmem:[#allocation2 + $0x118] sm:$0xf]
  %v1189 = vld [vmem:[#allocation2 + $0x11c] sm:$0xf]
  %v1190 = vld [vmem:[#allocation2 + $0x120] sm:$0xf]
  %v1191 = vld [vmem:[#allocation2 + $0x124] sm:$0xf]
  %v1192 = vld [vmem:[#allocation2 + $0x128] sm:$0xf]
  %v1193 = vld [vmem:[#allocation2 + $0x12c] sm:$0xf]
  %v1194 = vld [vmem:[#allocation2 + $0x130] sm:$0xf]
  %v1195 = vld [vmem:[#allocation2 + $0x134] sm:$0xf]
  %v1196 = vld [vmem:[#allocation2 + $0x138] sm:$0xf]
  %v1197 = vld [vmem:[#allocation2 + $0x90] sm:$0x1]
  %v1198 = vld [vmem:[#allocation2 + $0x13c] sm:$0x1]
  %v1199 = vld [vmem:[#allocation2] sm:$0xe]
  %v1200 = vld [vmem:[#allocation2 + $0xac] sm:$0xe]
  %v1201 = vld [vmem:[#allocation2 + $0x8] sm:$0xe]
  %v1202 = vld [vmem:[#allocation2 + $0x90] sm:$0xf]
  %v1203 = vld [vmem:[#allocation2 + $0x94] sm:$0xf]
  %v1204 = vld [vmem:[#allocation2 + $0x98] sm:$0x1]
  %v1205 = vld [vmem:[#allocation2 + $0xb4] sm:$0xe]
  %v1206 = vld [vmem:[#allocation2 + $0x13c] sm:$0xf]
  %v1207 = vld [vmem:[#allocation2 + $0x140] sm:$0xf]
  %v1208 = vld [vmem:[#allocation2 + $0x144] sm:$0x1]
  %v1209 = vld [vmem:[#allocation2 + $0x98] sm:$0x3]
  %v1210 = vld [vmem:[#allocation2 + $0x144] sm:$0x3]
  %v1211 = vld [vmem:[#allocation2 + $0x8] sm:$0xc]
  %v1212 = vld [vmem:[#allocation2 + $0xb4] sm:$0xc]
  %v1213 = vld [vmem:[#allocation2 + $0x10] sm:$0xc]
  %v1214 = vld [vmem:[#allocation2 + $0x98] sm:$0xf]
  %v1215 = vld [vmem:[#allocation2 + $0x9c] sm:$0xf]
  %v1216 = vld [vmem:[#allocation2 + $0xa0] sm:$0x3]
  %v1217 = vld [vmem:[#allocation2 + $0xbc] sm:$0xc]
  %v1218 = vld [vmem:[#allocation2 + $0x144] sm:$0xf]
  %v1219 = vld [vmem:[#allocation2 + $0x148] sm:$0xf]
  %v1220 = vld [vmem:[#allocation2 + $0x14c] sm:$0x3]
  %v1221 = vld [vmem:[#allocation2 + $0xa0] sm:$0x7]
  %v1222 = vld [vmem:[#allocation2 + $0x14c] sm:$0x7]
  %v1223 = vld [vmem:[#allocation2 + $0x10] sm:$0x8]
  %v1224 = vld [vmem:[#allocation2 + $0xbc] sm:$0x8]
  %v1297 = vunpack.c.l.b16 %v1125
  %v1298 = vunpack.c.l.b16 %v1126
  %v1299 = vunpack.c.l.b16 %v1127
  %v1300 = vunpack.c.l.b16 %v1128
  %v1301 = vunpack.c.l.b16 %v1129
  %v1302 = vunpack.c.l.b16 %v1130
  %v1303 = vunpack.c.l.b16 %v1131
  %v1304 = vunpack.c.l.b16 %v1132
  %v1305 = vunpack.c.l.b16 %v1133
  %v1306 = vunpack.c.l.b16 %v1134
  %v1307 = vunpack.c.l.b16 %v1135
  %v1308 = vunpack.c.l.b16 %v1136
  %v1309 = vunpack.c.l.b16 %v1137
  %v1310 = vunpack.c.l.b16 %v1138
  %v1311 = vunpack.c.l.b16 %v1139
  %v1312 = vunpack.c.l.b16 %v1140
  %v1313 = vunpack.c.l.b16 %v1141
  %v1314 = vunpack.c.l.b16 %v1142
  %v1315 = vunpack.c.l.b16 %v1143
  %v1316 = vunpack.c.l.b16 %v1144
  %v1317 = vunpack.c.l.b16 %v1145
  %v1318 = vunpack.c.l.b16 %v1146
  %v1319 = vunpack.c.l.b16 %v1147
  %v1320 = vunpack.c.l.b16 %v1148
  %v1321 = vunpack.c.l.b16 %v1149
  %v1322 = vunpack.c.l.b16 %v1150
  %v1323 = vunpack.c.l.b16 %v1151
  %v1324 = vunpack.c.l.b16 %v1152
  %v1325 = vunpack.c.l.b16 %v1153
  %v1326 = vunpack.c.l.b16 %v1154
  %v1327 = vunpack.c.l.b16 %v1155
  %v1328 = vunpack.c.l.b16 %v1156
  %v1329 = vunpack.c.l.b16 %v1157
  %v1330 = vunpack.c.l.b16 %v1158
  %v1331 = vunpack.c.l.b16 %v1159
  %v1332 = vunpack.c.l.b16 %v1160
  %v1333 = vunpack.c.l.b16 %v1161
  %v1334 = vunpack.c.l.b16 %v1162
  %v1335 = vunpack.c.l.b16 %v1163
  %v1336 = vunpack.c.l.b16 %v1164
  %v1337 = vunpack.c.l.b16 %v1165
  %v1338 = vunpack.c.l.b16 %v1166
  %v1339 = vunpack.c.l.b16 %v1167
  %v1340 = vunpack.c.l.b16 %v1168
  %v1341 = vunpack.c.l.b16 %v1169
  %v1342 = vunpack.c.l.b16 %v1170
  %v1343 = vunpack.c.l.b16 %v1171
  %v1344 = vunpack.c.l.b16 %v1172
  %v1345 = vunpack.c.l.b16 %v1173
  %v1346 = vunpack.c.l.b16 %v1174
  %v1347 = vunpack.c.l.b16 %v1175
  %v1348 = vunpack.c.l.b16 %v1176
  %v1349 = vunpack.c.l.b16 %v1177
  %v1350 = vunpack.c.l.b16 %v1178
  %v1351 = vunpack.c.l.b16 %v1179
  %v1352 = vunpack.c.l.b16 %v1180
  %v1353 = vunpack.c.l.b16 %v1181
  %v1354 = vunpack.c.l.b16 %v1182
  %v1355 = vunpack.c.l.b16 %v1183
  %v1356 = vunpack.c.l.b16 %v1184
  %v1357 = vunpack.c.l.b16 %v1185
  %v1358 = vunpack.c.l.b16 %v1186
  %v1359 = vunpack.c.l.b16 %v1187
  %v1360 = vunpack.c.l.b16 %v1188
  %v1361 = vunpack.c.l.b16 %v1189
  %v1362 = vunpack.c.l.b16 %v1190
  %v1363 = vunpack.c.l.b16 %v1191
  %v1364 = vunpack.c.l.b16 %v1192
  %v1365 = vunpack.c.l.b16 %v1193
  %v1366 = vunpack.c.l.b16 %v1194
  %v1367 = vunpack.c.l.b16 %v1195
  %v1368 = vunpack.c.l.b16 %v1196
  %v1369 = vpack.c.b16 %v1298, %v1297
  %v1370 = vpack.c.b16 %v1300, %v1299
  %v1371 = vpack.c.b16 %v1302, %v1301
  %v1372 = vpack.c.b16 %v1304, %v1303
  %v1373 = vpack.c.b16 %v1306, %v1305
  %v1374 = vpack.c.b16 %v1308, %v1307
  %v1375 = vpack.c.b16 %v1310, %v1309
  %v1376 = vpack.c.b16 %v1312, %v1311
  %v1377 = vpack.c.b16 %v1314, %v1313
  %v1378 = vpack.c.b16 %v1316, %v1315
  %v1379 = vpack.c.b16 %v1318, %v1317
  %v1380 = vpack.c.b16 %v1320, %v1319
  %v1381 = vpack.c.b16 %v1322, %v1321
  %v1382 = vpack.c.b16 %v1324, %v1323
  %v1383 = vpack.c.b16 %v1326, %v1325
  %v1384 = vpack.c.b16 %v1328, %v1327
  %v1385 = vpack.c.b16 %v1330, %v1329
  %v1386 = vpack.c.b16 %v1332, %v1331
  %v1387 = vpack.c.b16 %v1334, %v1333
  %v1388 = vpack.c.b16 %v1336, %v1335
  %v1389 = vpack.c.b16 %v1338, %v1337
  %v1390 = vpack.c.b16 %v1340, %v1339
  %v1391 = vpack.c.b16 %v1342, %v1341
  %v1392 = vpack.c.b16 %v1344, %v1343
  %v1393 = vpack.c.b16 %v1346, %v1345
  %v1394 = vpack.c.b16 %v1348, %v1347
  %v1395 = vpack.c.b16 %v1350, %v1349
  %v1396 = vpack.c.b16 %v1352, %v1351
  %v1397 = vpack.c.b16 %v1354, %v1353
  %v1398 = vpack.c.b16 %v1356, %v1355
  %v1399 = vpack.c.b16 %v1358, %v1357
  %v1400 = vpack.c.b16 %v1360, %v1359
  %v1401 = vpack.c.b16 %v1362, %v1361
  %v1402 = vpack.c.b16 %v1364, %v1363
  %v1403 = vpack.c.b16 %v1366, %v1365
  %v1404 = vpack.c.b16 %v1368, %v1367
  %v1407 = vunpack.c.l.b16 %v1197
  %v1408 = vunpack.c.l.b16 %v1198
  %v1409 = vpack.c.b16 %v1407, %v1407
  %v1410 = vpack.c.b16 %v1408, %v1408
  %vm1411 = vsmask.f32 7424
  %v1413 = vshrl.u32 %v1369, 16
  %v1415 = vshll.u32 %v1369, 16
  %v1417 = vrot.slane %v1415, 1
  %v1418 = vor.u32 %v1413, %v1417
  %v1420 = vshll.u32 %v1370, 16
  %v1422 = vrot.slane %v1420, 1
  %v1423 = vsel %vm1411, %v1418, %v1422
  %v1424 = vshrl.u32 %v1370, 16
  %v1426 = vor.u32 %v1424, %v1422
  %v1428 = vshll.u32 %v1371, 16
  %v1430 = vrot.slane %v1428, 1
  %v1431 = vsel %vm1411, %v1426, %v1430
  %v1432 = vshrl.u32 %v1371, 16
  %v1434 = vor.u32 %v1432, %v1430
  %v1436 = vshll.u32 %v1372, 16
  %v1438 = vrot.slane %v1436, 1
  %v1439 = vsel %vm1411, %v1434, %v1438
  %v1440 = vshrl.u32 %v1372, 16
  %v1442 = vor.u32 %v1440, %v1438
  %v1444 = vshll.u32 %v1373, 16
  %v1446 = vrot.slane %v1444, 1
  %v1447 = vsel %vm1411, %v1442, %v1446
  %v1448 = vshrl.u32 %v1373, 16
  %v1450 = vor.u32 %v1448, %v1446
  %v1452 = vshll.u32 %v1374, 16
  %v1454 = vrot.slane %v1452, 1
  %v1455 = vsel %vm1411, %v1450, %v1454
  %v1456 = vshrl.u32 %v1374, 16
  %v1458 = vor.u32 %v1456, %v1454
  %v1460 = vshll.u32 %v1375, 16
  %v1462 = vrot.slane %v1460, 1
  %v1463 = vsel %vm1411, %v1458, %v1462
  %v1464 = vshrl.u32 %v1375, 16
  %v1466 = vor.u32 %v1464, %v1462
  %v1468 = vshll.u32 %v1376, 16
  %v1470 = vrot.slane %v1468, 1
  %v1471 = vsel %vm1411, %v1466, %v1470
  %v1472 = vshrl.u32 %v1376, 16
  %v1474 = vor.u32 %v1472, %v1470
  %v1476 = vshll.u32 %v1377, 16
  %v1478 = vrot.slane %v1476, 1
  %v1479 = vsel %vm1411, %v1474, %v1478
  %v1480 = vshrl.u32 %v1377, 16
  %v1482 = vor.u32 %v1480, %v1478
  %v1484 = vshll.u32 %v1378, 16
  %v1486 = vrot.slane %v1484, 1
  %v1487 = vsel %vm1411, %v1482, %v1486
  %v1488 = vshrl.u32 %v1378, 16
  %v1490 = vor.u32 %v1488, %v1486
  %v1492 = vshll.u32 %v1379, 16
  %v1494 = vrot.slane %v1492, 1
  %v1495 = vsel %vm1411, %v1490, %v1494
  %v1496 = vshrl.u32 %v1379, 16
  %v1498 = vor.u32 %v1496, %v1494
  %v1500 = vshll.u32 %v1380, 16
  %v1502 = vrot.slane %v1500, 1
  %v1503 = vsel %vm1411, %v1498, %v1502
  %v1504 = vshrl.u32 %v1380, 16
  %v1506 = vor.u32 %v1504, %v1502
  %v1508 = vshll.u32 %v1381, 16
  %v1510 = vrot.slane %v1508, 1
  %v1511 = vsel %vm1411, %v1506, %v1510
  %v1512 = vshrl.u32 %v1381, 16
  %v1514 = vor.u32 %v1512, %v1510
  %v1516 = vshll.u32 %v1382, 16
  %v1518 = vrot.slane %v1516, 1
  %v1519 = vsel %vm1411, %v1514, %v1518
  %v1520 = vshrl.u32 %v1382, 16
  %v1522 = vor.u32 %v1520, %v1518
  %v1524 = vshll.u32 %v1383, 16
  %v1526 = vrot.slane %v1524, 1
  %v1527 = vsel %vm1411, %v1522, %v1526
  %v1528 = vshrl.u32 %v1383, 16
  %v1530 = vor.u32 %v1528, %v1526
  %v1532 = vshll.u32 %v1384, 16
  %v1534 = vrot.slane %v1532, 1
  %v1535 = vsel %vm1411, %v1530, %v1534
  %v1536 = vshrl.u32 %v1384, 16
  %v1538 = vor.u32 %v1536, %v1534
  %v1540 = vshll.u32 %v1385, 16
  %v1542 = vrot.slane %v1540, 1
  %v1543 = vsel %vm1411, %v1538, %v1542
  %v1544 = vshrl.u32 %v1385, 16
  %v1546 = vor.u32 %v1544, %v1542
  %v1548 = vshll.u32 %v1386, 16
  %v1550 = vrot.slane %v1548, 1
  %v1551 = vsel %vm1411, %v1546, %v1550
  %v1552 = vshrl.u32 %v1386, 16
  %v1554 = vor.u32 %v1552, %v1550
  %v1556 = vshll.u32 %v1409, 16
  %v1558 = vrot.slane %v1556, 1
  %v1559 = vsel %vm1411, %v1554, %v1558
  %v1561 = vshrl.u32 %v1387, 16
  %v1563 = vshll.u32 %v1387, 16
  %v1565 = vrot.slane %v1563, 1
  %v1566 = vor.u32 %v1561, %v1565
  %v1568 = vshll.u32 %v1388, 16
  %v1570 = vrot.slane %v1568, 1
  %v1571 = vsel %vm1411, %v1566, %v1570
  %v1572 = vshrl.u32 %v1388, 16
  %v1574 = vor.u32 %v1572, %v1570
  %v1576 = vshll.u32 %v1389, 16
  %v1578 = vrot.slane %v1576, 1
  %v1579 = vsel %vm1411, %v1574, %v1578
  %v1580 = vshrl.u32 %v1389, 16
  %v1582 = vor.u32 %v1580, %v1578
  %v1584 = vshll.u32 %v1390, 16
  %v1586 = vrot.slane %v1584, 1
  %v1587 = vsel %vm1411, %v1582, %v1586
  %v1588 = vshrl.u32 %v1390, 16
  %v1590 = vor.u32 %v1588, %v1586
  %v1592 = vshll.u32 %v1391, 16
  %v1594 = vrot.slane %v1592, 1
  %v1595 = vsel %vm1411, %v1590, %v1594
  %v1596 = vshrl.u32 %v1391, 16
  %v1598 = vor.u32 %v1596, %v1594
  %v1600 = vshll.u32 %v1392, 16
  %v1602 = vrot.slane %v1600, 1
  %v1603 = vsel %vm1411, %v1598, %v1602
  %v1604 = vshrl.u32 %v1392, 16
  %v1606 = vor.u32 %v1604, %v1602
  %v1608 = vshll.u32 %v1393, 16
  %v1610 = vrot.slane %v1608, 1
  %v1611 = vsel %vm1411, %v1606, %v1610
  %v1612 = vshrl.u32 %v1393, 16
  %v1614 = vor.u32 %v1612, %v1610
  %v1616 = vshll.u32 %v1394, 16
  %v1618 = vrot.slane %v1616, 1
  %v1619 = vsel %vm1411, %v1614, %v1618
  %v1620 = vshrl.u32 %v1394, 16
  %v1622 = vor.u32 %v1620, %v1618
  %v1624 = vshll.u32 %v1395, 16
  %v1626 = vrot.slane %v1624, 1
  %v1627 = vsel %vm1411, %v1622, %v1626
  %v1628 = vshrl.u32 %v1395, 16
  %v1630 = vor.u32 %v1628, %v1626
  %v1632 = vshll.u32 %v1396, 16
  %v1634 = vrot.slane %v1632, 1
  %v1635 = vsel %vm1411, %v1630, %v1634
  %v1636 = vshrl.u32 %v1396, 16
  %v1638 = vor.u32 %v1636, %v1634
  %v1640 = vshll.u32 %v1397, 16
  %v1642 = vrot.slane %v1640, 1
  %v1643 = vsel %vm1411, %v1638, %v1642
  %v1644 = vshrl.u32 %v1397, 16
  %v1646 = vor.u32 %v1644, %v1642
  %v1648 = vshll.u32 %v1398, 16
  %v1650 = vrot.slane %v1648, 1
  %v1651 = vsel %vm1411, %v1646, %v1650
  %v1652 = vshrl.u32 %v1398, 16
  %v1654 = vor.u32 %v1652, %v1650
  %v1656 = vshll.u32 %v1399, 16
  %v1658 = vrot.slane %v1656, 1
  %v1659 = vsel %vm1411, %v1654, %v1658
  %v1660 = vshrl.u32 %v1399, 16
  %v1662 = vor.u32 %v1660, %v1658
  %v1664 = vshll.u32 %v1400, 16
  %v1666 = vrot.slane %v1664, 1
  %v1667 = vsel %vm1411, %v1662, %v1666
  %v1668 = vshrl.u32 %v1400, 16
  %v1670 = vor.u32 %v1668, %v1666
  %v1672 = vshll.u32 %v1401, 16
  %v1674 = vrot.slane %v1672, 1
  %v1675 = vsel %vm1411, %v1670, %v1674
  %v1676 = vshrl.u32 %v1401, 16
  %v1678 = vor.u32 %v1676, %v1674
  %v1680 = vshll.u32 %v1402, 16
  %v1682 = vrot.slane %v1680, 1
  %v1683 = vsel %vm1411, %v1678, %v1682
  %v1684 = vshrl.u32 %v1402, 16
  %v1686 = vor.u32 %v1684, %v1682
  %v1688 = vshll.u32 %v1403, 16
  %v1690 = vrot.slane %v1688, 1
  %v1691 = vsel %vm1411, %v1686, %v1690
  %v1692 = vshrl.u32 %v1403, 16
  %v1694 = vor.u32 %v1692, %v1690
  %v1696 = vshll.u32 %v1404, 16
  %v1698 = vrot.slane %v1696, 1
  %v1699 = vsel %vm1411, %v1694, %v1698
  %v1700 = vshrl.u32 %v1404, 16
  %v1702 = vor.u32 %v1700, %v1698
  %v1704 = vshll.u32 %v1410, 16
  %v1706 = vrot.slane %v1704, 1
  %v1707 = vsel %vm1411, %v1702, %v1706
  %1708 = vrot.lane.b32.xlu0 %v1423, 4
  %v1709 = vpop.permute.xlu0 %1708
  %1710 = vrot.lane.b32.xlu0 %v1431, 4
  %v1711 = vpop.permute.xlu0 %1710
  %1712 = vrot.lane.b32.xlu0 %v1439, 4
  %v1713 = vpop.permute.xlu0 %1712
  %1714 = vrot.lane.b32.xlu0 %v1447, 4
  %v1715 = vpop.permute.xlu0 %1714
  %1716 = vrot.lane.b32.xlu0 %v1455, 4
  %v1717 = vpop.permute.xlu0 %1716
  %1718 = vrot.lane.b32.xlu0 %v1463, 4
  %v1719 = vpop.permute.xlu0 %1718
  %1720 = vrot.lane.b32.xlu0 %v1471, 4
  %v1721 = vpop.permute.xlu0 %1720
  %1722 = vrot.lane.b32.xlu0 %v1479, 4
  %v1723 = vpop.permute.xlu0 %1722
  %1724 = vrot.lane.b32.xlu0 %v1487, 4
  %v1725 = vpop.permute.xlu0 %1724
  %1726 = vrot.lane.b32.xlu0 %v1495, 4
  %v1727 = vpop.permute.xlu0 %1726
  %1728 = vrot.lane.b32.xlu0 %v1503, 4
  %v1729 = vpop.permute.xlu0 %1728
  %1730 = vrot.lane.b32.xlu0 %v1511, 4
  %v1731 = vpop.permute.xlu0 %1730
  %1732 = vrot.lane.b32.xlu0 %v1519, 4
  %v1733 = vpop.permute.xlu0 %1732
  %1734 = vrot.lane.b32.xlu0 %v1527, 4
  %v1735 = vpop.permute.xlu0 %1734
  %1736 = vrot.lane.b32.xlu0 %v1535, 4
  %v1737 = vpop.permute.xlu0 %1736
  %1738 = vrot.lane.b32.xlu0 %v1543, 4
  %v1739 = vpop.permute.xlu0 %1738
  %1740 = vrot.lane.b32.xlu0 %v1551, 4
  %v1741 = vpop.permute.xlu0 %1740
  %1742 = vrot.lane.b32.xlu0 %v1559, 4
  %v1743 = vpop.permute.xlu0 %1742
  %1744 = vrot.lane.b32.xlu0 %v1571, 4
  %v1745 = vpop.permute.xlu0 %1744
  %1746 = vrot.lane.b32.xlu0 %v1579, 4
  %v1747 = vpop.permute.xlu0 %1746
  %1748 = vrot.lane.b32.xlu0 %v1587, 4
  %v1749 = vpop.permute.xlu0 %1748
  %1750 = vrot.lane.b32.xlu0 %v1595, 4
  %v1751 = vpop.permute.xlu0 %1750
  %1752 = vrot.lane.b32.xlu0 %v1603, 4
  %v1753 = vpop.permute.xlu0 %1752
  %1754 = vrot.lane.b32.xlu0 %v1611, 4
  %v1755 = vpop.permute.xlu0 %1754
  %1756 = vrot.lane.b32.xlu0 %v1619, 4
  %v1757 = vpop.permute.xlu0 %1756
  %1758 = vrot.lane.b32.xlu0 %v1627, 4
  %v1759 = vpop.permute.xlu0 %1758
  %1760 = vrot.lane.b32.xlu0 %v1635, 4
  %v1761 = vpop.permute.xlu0 %1760
  %1762 = vrot.lane.b32.xlu0 %v1643, 4
  %v1763 = vpop.permute.xlu0 %1762
  %1764 = vrot.lane.b32.xlu0 %v1651, 4
  %v1765 = vpop.permute.xlu0 %1764
  %1766 = vrot.lane.b32.xlu0 %v1659, 4
  %v1767 = vpop.permute.xlu0 %1766
  %1768 = vrot.lane.b32.xlu0 %v1667, 4
  %v1769 = vpop.permute.xlu0 %1768
  %1770 = vrot.lane.b32.xlu0 %v1675, 4
  %v1771 = vpop.permute.xlu0 %1770
  %1772 = vrot.lane.b32.xlu0 %v1683, 4
  %v1773 = vpop.permute.xlu0 %1772
  %1774 = vrot.lane.b32.xlu0 %v1691, 4
  %v1775 = vpop.permute.xlu0 %1774
  %1776 = vrot.lane.b32.xlu0 %v1699, 4
  %v1777 = vpop.permute.xlu0 %1776
  %1778 = vrot.lane.b32.xlu0 %v1707, 4
  %v1779 = vpop.permute.xlu0 %1778
  %v1782 = vunpack.c.l.b16 %v1199
  %v1783 = vunpack.c.l.b16 %v1200
  %v1784 = vpack.c.b16 %v1298, %v1782
  %v1785 = vpack.c.b16 %v1334, %v1783
  %vm1786 = vcmask 1046528
  %v1787 = vrot.slane %v1784, 1
  %v1788 = vrot.slane %v1370, 1
  %v1789 = vsel %vm1786, %v1787, %v1788
  %v1790 = vrot.slane %v1371, 1
  %v1791 = vsel %vm1786, %v1788, %v1790
  %v1792 = vrot.slane %v1372, 1
  %v1793 = vsel %vm1786, %v1790, %v1792
  %v1794 = vrot.slane %v1373, 1
  %v1795 = vsel %vm1786, %v1792, %v1794
  %v1796 = vrot.slane %v1374, 1
  %v1797 = vsel %vm1786, %v1794, %v1796
  %v1798 = vrot.slane %v1375, 1
  %v1799 = vsel %vm1786, %v1796, %v1798
  %v1800 = vrot.slane %v1376, 1
  %v1801 = vsel %vm1786, %v1798, %v1800
  %v1802 = vrot.slane %v1377, 1
  %v1803 = vsel %vm1786, %v1800, %v1802
  %v1804 = vrot.slane %v1378, 1
  %v1805 = vsel %vm1786, %v1802, %v1804
  %v1806 = vrot.slane %v1379, 1
  %v1807 = vsel %vm1786, %v1804, %v1806
  %v1808 = vrot.slane %v1380, 1
  %v1809 = vsel %vm1786, %v1806, %v1808
  %v1810 = vrot.slane %v1381, 1
  %v1811 = vsel %vm1786, %v1808, %v1810
  %v1812 = vrot.slane %v1382, 1
  %v1813 = vsel %vm1786, %v1810, %v1812
  %v1814 = vrot.slane %v1383, 1
  %v1815 = vsel %vm1786, %v1812, %v1814
  %v1816 = vrot.slane %v1384, 1
  %v1817 = vsel %vm1786, %v1814, %v1816
  %v1818 = vrot.slane %v1385, 1
  %v1819 = vsel %vm1786, %v1816, %v1818
  %v1820 = vrot.slane %v1386, 1
  %v1821 = vsel %vm1786, %v1818, %v1820
  %v1822 = vrot.slane %v1409, 1
  %v1823 = vsel %vm1786, %v1820, %v1822
  %v1824 = vrot.slane %v1785, 1
  %v1825 = vrot.slane %v1388, 1
  %v1826 = vsel %vm1786, %v1824, %v1825
  %v1827 = vrot.slane %v1389, 1
  %v1828 = vsel %vm1786, %v1825, %v1827
  %v1829 = vrot.slane %v1390, 1
  %v1830 = vsel %vm1786, %v1827, %v1829
  %v1831 = vrot.slane %v1391, 1
  %v1832 = vsel %vm1786, %v1829, %v1831
  %v1833 = vrot.slane %v1392, 1
  %v1834 = vsel %vm1786, %v1831, %v1833
  %v1835 = vrot.slane %v1393, 1
  %v1836 = vsel %vm1786, %v1833, %v1835
  %v1837 = vrot.slane %v1394, 1
  %v1838 = vsel %vm1786, %v1835, %v1837
  %v1839 = vrot.slane %v1395, 1
  %v1840 = vsel %vm1786, %v1837, %v1839
  %v1841 = vrot.slane %v1396, 1
  %v1842 = vsel %vm1786, %v1839, %v1841
  %v1843 = vrot.slane %v1397, 1
  %v1844 = vsel %vm1786, %v1841, %v1843
  %v1845 = vrot.slane %v1398, 1
  %v1846 = vsel %vm1786, %v1843, %v1845
  %v1847 = vrot.slane %v1399, 1
  %v1848 = vsel %vm1786, %v1845, %v1847
  %v1849 = vrot.slane %v1400, 1
  %v1850 = vsel %vm1786, %v1847, %v1849
  %v1851 = vrot.slane %v1401, 1
  %v1852 = vsel %vm1786, %v1849, %v1851
  %v1853 = vrot.slane %v1402, 1
  %v1854 = vsel %vm1786, %v1851, %v1853
  %v1855 = vrot.slane %v1403, 1
  %v1856 = vsel %vm1786, %v1853, %v1855
  %v1857 = vrot.slane %v1404, 1
  %v1858 = vsel %vm1786, %v1855, %v1857
  %v1859 = vrot.slane %v1410, 1
  %v1860 = vsel %vm1786, %v1857, %v1859
  %1861 = vrot.lane.b32.xlu0 %v1789, 8
  %v1862 = vpop.permute.xlu0 %1861
  %1863 = vrot.lane.b32.xlu0 %v1791, 8
  %v1864 = vpop.permute.xlu0 %1863
  %1865 = vrot.lane.b32.xlu0 %v1793, 8
  %v1866 = vpop.permute.xlu0 %1865
  %1867 = vrot.lane.b32.xlu0 %v1795, 8
  %v1868 = vpop.permute.xlu0 %1867
  %1869 = vrot.lane.b32.xlu0 %v1797, 8
  %v1870 = vpop.permute.xlu0 %1869
  %1871 = vrot.lane.b32.xlu0 %v1799, 8
  %v1872 = vpop.permute.xlu0 %1871
  %1873 = vrot.lane.b32.xlu0 %v1801, 8
  %v1874 = vpop.permute.xlu0 %1873
  %1875 = vrot.lane.b32.xlu0 %v1803, 8
  %v1876 = vpop.permute.xlu0 %1875
  %1877 = vrot.lane.b32.xlu0 %v1805, 8
  %v1878 = vpop.permute.xlu0 %1877
  %1879 = vrot.lane.b32.xlu0 %v1807, 8
  %v1880 = vpop.permute.xlu0 %1879
  %1881 = vrot.lane.b32.xlu0 %v1809, 8
  %v1882 = vpop.permute.xlu0 %1881
  %1883 = vrot.lane.b32.xlu0 %v1811, 8
  %v1884 = vpop.permute.xlu0 %1883
  %1885 = vrot.lane.b32.xlu0 %v1813, 8
  %v1886 = vpop.permute.xlu0 %1885
  %1887 = vrot.lane.b32.xlu0 %v1815, 8
  %v1888 = vpop.permute.xlu0 %1887
  %1889 = vrot.lane.b32.xlu0 %v1817, 8
  %v1890 = vpop.permute.xlu0 %1889
  %1891 = vrot.lane.b32.xlu0 %v1819, 8
  %v1892 = vpop.permute.xlu0 %1891
  %1893 = vrot.lane.b32.xlu0 %v1821, 8
  %v1894 = vpop.permute.xlu0 %1893
  %1895 = vrot.lane.b32.xlu0 %v1823, 8
  %v1896 = vpop.permute.xlu0 %1895
  %1897 = vrot.lane.b32.xlu0 %v1826, 8
  %v1898 = vpop.permute.xlu0 %1897
  %1899 = vrot.lane.b32.xlu0 %v1828, 8
  %v1900 = vpop.permute.xlu0 %1899
  %1901 = vrot.lane.b32.xlu0 %v1830, 8
  %v1902 = vpop.permute.xlu0 %1901
  %1903 = vrot.lane.b32.xlu0 %v1832, 8
  %v1904 = vpop.permute.xlu0 %1903
  %1905 = vrot.lane.b32.xlu0 %v1834, 8
  %v1906 = vpop.permute.xlu0 %1905
  %1907 = vrot.lane.b32.xlu0 %v1836, 8
  %v1908 = vpop.permute.xlu0 %1907
  %1909 = vrot.lane.b32.xlu0 %v1838, 8
  %v1910 = vpop.permute.xlu0 %1909
  %1911 = vrot.lane.b32.xlu0 %v1840, 8
  %v1912 = vpop.permute.xlu0 %1911
  %1913 = vrot.lane.b32.xlu0 %v1842, 8
  %v1914 = vpop.permute.xlu0 %1913
  %1915 = vrot.lane.b32.xlu0 %v1844, 8
  %v1916 = vpop.permute.xlu0 %1915
  %1917 = vrot.lane.b32.xlu0 %v1846, 8
  %v1918 = vpop.permute.xlu0 %1917
  %1919 = vrot.lane.b32.xlu0 %v1848, 8
  %v1920 = vpop.permute.xlu0 %1919
  %1921 = vrot.lane.b32.xlu0 %v1850, 8
  %v1922 = vpop.permute.xlu0 %1921
  %1923 = vrot.lane.b32.xlu0 %v1852, 8
  %v1924 = vpop.permute.xlu0 %1923
  %1925 = vrot.lane.b32.xlu0 %v1854, 8
  %v1926 = vpop.permute.xlu0 %1925
  %1927 = vrot.lane.b32.xlu0 %v1856, 8
  %v1928 = vpop.permute.xlu0 %1927
  %1929 = vrot.lane.b32.xlu0 %v1858, 8
  %v1930 = vpop.permute.xlu0 %1929
  %1931 = vrot.lane.b32.xlu0 %v1860, 8
  %v1932 = vpop.permute.xlu0 %1931
  %v1941 = vunpack.c.l.b16 %v1201
  %v1942 = vunpack.c.l.b16 %v1202
  %v1943 = vunpack.c.l.b16 %v1203
  %v1944 = vunpack.c.l.b16 %v1204
  %v1945 = vunpack.c.l.b16 %v1205
  %v1946 = vunpack.c.l.b16 %v1206
  %v1947 = vunpack.c.l.b16 %v1207
  %v1948 = vunpack.c.l.b16 %v1208
  %v1949 = vpack.c.b16 %v1300, %v1941
  %v1950 = vpack.c.b16 %v1943, %v1942
  %v1951 = vpack.c.b16 %v1944, %v1944
  %v1952 = vpack.c.b16 %v1336, %v1945
  %v1953 = vpack.c.b16 %v1947, %v1946
  %v1954 = vpack.c.b16 %v1948, %v1948
  %v1955 = vrot.slane %v1949, 1
  %v1956 = vsel %vm1786, %v1955, %v1790
  %v1957 = vrot.slane %v1950, 1
  %v1958 = vsel %vm1786, %v1820, %v1957
  %v1959 = vrot.slane %v1951, 1
  %v1960 = vsel %vm1786, %v1957, %v1959
  %v1961 = vrot.slane %v1952, 1
  %v1962 = vsel %vm1786, %v1961, %v1827
  %v1963 = vrot.slane %v1953, 1
  %v1964 = vsel %vm1786, %v1857, %v1963
  %v1965 = vrot.slane %v1954, 1
  %v1966 = vsel %vm1786, %v1963, %v1965
  %1967 = vrot.lane.b32.xlu0 %v1956, 12
  %v1968 = vpop.permute.xlu0 %1967
  %1969 = vrot.lane.b32.xlu0 %v1793, 12
  %v1970 = vpop.permute.xlu0 %1969
  %1971 = vrot.lane.b32.xlu0 %v1795, 12
  %v1972 = vpop.permute.xlu0 %1971
  %1973 = vrot.lane.b32.xlu0 %v1797, 12
  %v1974 = vpop.permute.xlu0 %1973
  %1975 = vrot.lane.b32.xlu0 %v1799, 12
  %v1976 = vpop.permute.xlu0 %1975
  %1977 = vrot.lane.b32.xlu0 %v1801, 12
  %v1978 = vpop.permute.xlu0 %1977
  %1979 = vrot.lane.b32.xlu0 %v1803, 12
  %v1980 = vpop.permute.xlu0 %1979
  %1981 = vrot.lane.b32.xlu0 %v1805, 12
  %v1982 = vpop.permute.xlu0 %1981
  %1983 = vrot.lane.b32.xlu0 %v1807, 12
  %v1984 = vpop.permute.xlu0 %1983
  %1985 = vrot.lane.b32.xlu0 %v1809, 12
  %v1986 = vpop.permute.xlu0 %1985
  %1987 = vrot.lane.b32.xlu0 %v1811, 12
  %v1988 = vpop.permute.xlu0 %1987
  %1989 = vrot.lane.b32.xlu0 %v1813, 12
  %v1990 = vpop.permute.xlu0 %1989
  %1991 = vrot.lane.b32.xlu0 %v1815, 12
  %v1992 = vpop.permute.xlu0 %1991
  %1993 = vrot.lane.b32.xlu0 %v1817, 12
  %v1994 = vpop.permute.xlu0 %1993
  %1995 = vrot.lane.b32.xlu0 %v1819, 12
  %v1996 = vpop.permute.xlu0 %1995
  %1997 = vrot.lane.b32.xlu0 %v1821, 12
  %v1998 = vpop.permute.xlu0 %1997
  %1999 = vrot.lane.b32.xlu0 %v1958, 12
  %v2000 = vpop.permute.xlu0 %1999
  %2001 = vrot.lane.b32.xlu0 %v1960, 12
  %v2002 = vpop.permute.xlu0 %2001
  %2003 = vrot.lane.b32.xlu0 %v1962, 12
  %v2004 = vpop.permute.xlu0 %2003
  %2005 = vrot.lane.b32.xlu0 %v1830, 12
  %v2006 = vpop.permute.xlu0 %2005
  %2007 = vrot.lane.b32.xlu0 %v1832, 12
  %v2008 = vpop.permute.xlu0 %2007
  %2009 = vrot.lane.b32.xlu0 %v1834, 12
  %v2010 = vpop.permute.xlu0 %2009
  %2011 = vrot.lane.b32.xlu0 %v1836, 12
  %v2012 = vpop.permute.xlu0 %2011
  %2013 = vrot.lane.b32.xlu0 %v1838, 12
  %v2014 = vpop.permute.xlu0 %2013
  %2015 = vrot.lane.b32.xlu0 %v1840, 12
  %v2016 = vpop.permute.xlu0 %2015
  %2017 = vrot.lane.b32.xlu0 %v1842, 12
  %v2018 = vpop.permute.xlu0 %2017
  %2019 = vrot.lane.b32.xlu0 %v1844, 12
  %v2020 = vpop.permute.xlu0 %2019
  %2021 = vrot.lane.b32.xlu0 %v1846, 12
  %v2022 = vpop.permute.xlu0 %2021
  %2023 = vrot.lane.b32.xlu0 %v1848, 12
  %v2024 = vpop.permute.xlu0 %2023
  %2025 = vrot.lane.b32.xlu0 %v1850, 12
  %v2026 = vpop.permute.xlu0 %2025
  %2027 = vrot.lane.b32.xlu0 %v1852, 12
  %v2028 = vpop.permute.xlu0 %2027
  %2029 = vrot.lane.b32.xlu0 %v1854, 12
  %v2030 = vpop.permute.xlu0 %2029
  %2031 = vrot.lane.b32.xlu0 %v1856, 12
  %v2032 = vpop.permute.xlu0 %2031
  %2033 = vrot.lane.b32.xlu0 %v1858, 12
  %v2034 = vpop.permute.xlu0 %2033
  %2035 = vrot.lane.b32.xlu0 %v1964, 12
  %v2036 = vpop.permute.xlu0 %2035
  %2037 = vrot.lane.b32.xlu0 %v1966, 12
  %v2038 = vpop.permute.xlu0 %2037
  %v2041 = vunpack.c.l.b16 %v1209
  %v2042 = vunpack.c.l.b16 %v1210
  %v2043 = vpack.c.b16 %v2041, %v2041
  %v2044 = vpack.c.b16 %v2042, %v2042
  %vm2045 = vsmask.f32 6400
  %v2047 = vshrl.u32 %v1949, 16
  %v2049 = vrot.slane %v2047, 1
  %v2050 = vshll.u32 %v1949, 16
  %v2052 = vrot.slane %v2050, 2
  %v2053 = vor.u32 %v2049, %v2052
  %v2054 = vrot.slane %v1432, 1
  %v2055 = vrot.slane %v1428, 2
  %v2056 = vor.u32 %v2054, %v2055
  %v2057 = vsel %vm2045, %v2053, %v2056
  %v2058 = vrot.slane %v1440, 1
  %v2059 = vrot.slane %v1436, 2
  %v2060 = vor.u32 %v2058, %v2059
  %v2061 = vsel %vm2045, %v2056, %v2060
  %v2062 = vrot.slane %v1448, 1
  %v2063 = vrot.slane %v1444, 2
  %v2064 = vor.u32 %v2062, %v2063
  %v2065 = vsel %vm2045, %v2060, %v2064
  %v2066 = vrot.slane %v1456, 1
  %v2067 = vrot.slane %v1452, 2
  %v2068 = vor.u32 %v2066, %v2067
  %v2069 = vsel %vm2045, %v2064, %v2068
  %v2070 = vrot.slane %v1464, 1
  %v2071 = vrot.slane %v1460, 2
  %v2072 = vor.u32 %v2070, %v2071
  %v2073 = vsel %vm2045, %v2068, %v2072
  %v2074 = vrot.slane %v1472, 1
  %v2075 = vrot.slane %v1468, 2
  %v2076 = vor.u32 %v2074, %v2075
  %v2077 = vsel %vm2045, %v2072, %v2076
  %v2078 = vrot.slane %v1480, 1
  %v2079 = vrot.slane %v1476, 2
  %v2080 = vor.u32 %v2078, %v2079
  %v2081 = vsel %vm2045, %v2076, %v2080
  %v2082 = vrot.slane %v1488, 1
  %v2083 = vrot.slane %v1484, 2
  %v2084 = vor.u32 %v2082, %v2083
  %v2085 = vsel %vm2045, %v2080, %v2084
  %v2086 = vrot.slane %v1496, 1
  %v2087 = vrot.slane %v1492, 2
  %v2088 = vor.u32 %v2086, %v2087
  %v2089 = vsel %vm2045, %v2084, %v2088
  %v2090 = vrot.slane %v1504, 1
  %v2091 = vrot.slane %v1500, 2
  %v2092 = vor.u32 %v2090, %v2091
  %v2093 = vsel %vm2045, %v2088, %v2092
  %v2094 = vrot.slane %v1512, 1
  %v2095 = vrot.slane %v1508, 2
  %v2096 = vor.u32 %v2094, %v2095
  %v2097 = vsel %vm2045, %v2092, %v2096
  %v2098 = vrot.slane %v1520, 1
  %v2099 = vrot.slane %v1516, 2
  %v2100 = vor.u32 %v2098, %v2099
  %v2101 = vsel %vm2045, %v2096, %v2100
  %v2102 = vrot.slane %v1528, 1
  %v2103 = vrot.slane %v1524, 2
  %v2104 = vor.u32 %v2102, %v2103
  %v2105 = vsel %vm2045, %v2100, %v2104
  %v2106 = vrot.slane %v1536, 1
  %v2107 = vrot.slane %v1532, 2
  %v2108 = vor.u32 %v2106, %v2107
  %v2109 = vsel %vm2045, %v2104, %v2108
  %v2110 = vrot.slane %v1544, 1
  %v2111 = vrot.slane %v1540, 2
  %v2112 = vor.u32 %v2110, %v2111
  %v2113 = vsel %vm2045, %v2108, %v2112
  %v2114 = vrot.slane %v1552, 1
  %v2115 = vrot.slane %v1548, 2
  %v2116 = vor.u32 %v2114, %v2115
  %v2117 = vsel %vm2045, %v2112, %v2116
  %v2119 = vshrl.u32 %v1950, 16
  %v2121 = vrot.slane %v2119, 1
  %v2122 = vshll.u32 %v1950, 16
  %v2124 = vrot.slane %v2122, 2
  %v2125 = vor.u32 %v2121, %v2124
  %v2126 = vsel %vm2045, %v2116, %v2125
  %v2128 = vshrl.u32 %v2043, 16
  %v2130 = vrot.slane %v2128, 1
  %v2131 = vshll.u32 %v2043, 16
  %v2133 = vrot.slane %v2131, 2
  %v2134 = vor.u32 %v2130, %v2133
  %v2135 = vsel %vm2045, %v2125, %v2134
  %v2137 = vshrl.u32 %v1952, 16
  %v2139 = vrot.slane %v2137, 1
  %v2140 = vshll.u32 %v1952, 16
  %v2142 = vrot.slane %v2140, 2
  %v2143 = vor.u32 %v2139, %v2142
  %v2144 = vrot.slane %v1580, 1
  %v2145 = vrot.slane %v1576, 2
  %v2146 = vor.u32 %v2144, %v2145
  %v2147 = vsel %vm2045, %v2143, %v2146
  %v2148 = vrot.slane %v1588, 1
  %v2149 = vrot.slane %v1584, 2
  %v2150 = vor.u32 %v2148, %v2149
  %v2151 = vsel %vm2045, %v2146, %v2150
  %v2152 = vrot.slane %v1596, 1
  %v2153 = vrot.slane %v1592, 2
  %v2154 = vor.u32 %v2152, %v2153
  %v2155 = vsel %vm2045, %v2150, %v2154
  %v2156 = vrot.slane %v1604, 1
  %v2157 = vrot.slane %v1600, 2
  %v2158 = vor.u32 %v2156, %v2157
  %v2159 = vsel %vm2045, %v2154, %v2158
  %v2160 = vrot.slane %v1612, 1
  %v2161 = vrot.slane %v1608, 2
  %v2162 = vor.u32 %v2160, %v2161
  %v2163 = vsel %vm2045, %v2158, %v2162
  %v2164 = vrot.slane %v1620, 1
  %v2165 = vrot.slane %v1616, 2
  %v2166 = vor.u32 %v2164, %v2165
  %v2167 = vsel %vm2045, %v2162, %v2166
  %v2168 = vrot.slane %v1628, 1
  %v2169 = vrot.slane %v1624, 2
  %v2170 = vor.u32 %v2168, %v2169
  %v2171 = vsel %vm2045, %v2166, %v2170
  %v2172 = vrot.slane %v1636, 1
  %v2173 = vrot.slane %v1632, 2
  %v2174 = vor.u32 %v2172, %v2173
  %v2175 = vsel %vm2045, %v2170, %v2174
  %v2176 = vrot.slane %v1644, 1
  %v2177 = vrot.slane %v1640, 2
  %v2178 = vor.u32 %v2176, %v2177
  %v2179 = vsel %vm2045, %v2174, %v2178
  %v2180 = vrot.slane %v1652, 1
  %v2181 = vrot.slane %v1648, 2
  %v2182 = vor.u32 %v2180, %v2181
  %v2183 = vsel %vm2045, %v2178, %v2182
  %v2184 = vrot.slane %v1660, 1
  %v2185 = vrot.slane %v1656, 2
  %v2186 = vor.u32 %v2184, %v2185
  %v2187 = vsel %vm2045, %v2182, %v2186
  %v2188 = vrot.slane %v1668, 1
  %v2189 = vrot.slane %v1664, 2
  %v2190 = vor.u32 %v2188, %v2189
  %v2191 = vsel %vm2045, %v2186, %v2190
  %v2192 = vrot.slane %v1676, 1
  %v2193 = vrot.slane %v1672, 2
  %v2194 = vor.u32 %v2192, %v2193
  %v2195 = vsel %vm2045, %v2190, %v2194
  %v2196 = vrot.slane %v1684, 1
  %v2197 = vrot.slane %v1680, 2
  %v2198 = vor.u32 %v2196, %v2197
  %v2199 = vsel %vm2045, %v2194, %v2198
  %v2200 = vrot.slane %v1692, 1
  %v2201 = vrot.slane %v1688, 2
  %v2202 = vor.u32 %v2200, %v2201
  %v2203 = vsel %vm2045, %v2198, %v2202
  %v2204 = vrot.slane %v1700, 1
  %v2205 = vrot.slane %v1696, 2
  %v2206 = vor.u32 %v2204, %v2205
  %v2207 = vsel %vm2045, %v2202, %v2206
  %v2209 = vshrl.u32 %v1953, 16
  %v2211 = vrot.slane %v2209, 1
  %v2212 = vshll.u32 %v1953, 16
  %v2214 = vrot.slane %v2212, 2
  %v2215 = vor.u32 %v2211, %v2214
  %v2216 = vsel %vm2045, %v2206, %v2215
  %v2218 = vshrl.u32 %v2044, 16
  %v2220 = vrot.slane %v2218, 1
  %v2221 = vshll.u32 %v2044, 16
  %v2223 = vrot.slane %v2221, 2
  %v2224 = vor.u32 %v2220, %v2223
  %v2225 = vsel %vm2045, %v2215, %v2224
  %2226 = vrot.lane.b32.xlu0 %v2057, 16
  %v2227 = vpop.permute.xlu0 %2226
  %2228 = vrot.lane.b32.xlu0 %v2061, 16
  %v2229 = vpop.permute.xlu0 %2228
  %2230 = vrot.lane.b32.xlu0 %v2065, 16
  %v2231 = vpop.permute.xlu0 %2230
  %2232 = vrot.lane.b32.xlu0 %v2069, 16
  %v2233 = vpop.permute.xlu0 %2232
  %2234 = vrot.lane.b32.xlu0 %v2073, 16
  %v2235 = vpop.permute.xlu0 %2234
  %2236 = vrot.lane.b32.xlu0 %v2077, 16
  %v2237 = vpop.permute.xlu0 %2236
  %2238 = vrot.lane.b32.xlu0 %v2081, 16
  %v2239 = vpop.permute.xlu0 %2238
  %2240 = vrot.lane.b32.xlu0 %v2085, 16
  %v2241 = vpop.permute.xlu0 %2240
  %2242 = vrot.lane.b32.xlu0 %v2089, 16
  %v2243 = vpop.permute.xlu0 %2242
  %2244 = vrot.lane.b32.xlu0 %v2093, 16
  %v2245 = vpop.permute.xlu0 %2244
  %2246 = vrot.lane.b32.xlu0 %v2097, 16
  %v2247 = vpop.permute.xlu0 %2246
  %2248 = vrot.lane.b32.xlu0 %v2101, 16
  %v2249 = vpop.permute.xlu0 %2248
  %2250 = vrot.lane.b32.xlu0 %v2105, 16
  %v2251 = vpop.permute.xlu0 %2250
  %2252 = vrot.lane.b32.xlu0 %v2109, 16
  %v2253 = vpop.permute.xlu0 %2252
  %2254 = vrot.lane.b32.xlu0 %v2113, 16
  %v2255 = vpop.permute.xlu0 %2254
  %2256 = vrot.lane.b32.xlu0 %v2117, 16
  %v2257 = vpop.permute.xlu0 %2256
  %2258 = vrot.lane.b32.xlu0 %v2126, 16
  %v2259 = vpop.permute.xlu0 %2258
  %2260 = vrot.lane.b32.xlu0 %v2135, 16
  %v2261 = vpop.permute.xlu0 %2260
  %2262 = vrot.lane.b32.xlu0 %v2147, 16
  %v2263 = vpop.permute.xlu0 %2262
  %2264 = vrot.lane.b32.xlu0 %v2151, 16
  %v2265 = vpop.permute.xlu0 %2264
  %2266 = vrot.lane.b32.xlu0 %v2155, 16
  %v2267 = vpop.permute.xlu0 %2266
  %2268 = vrot.lane.b32.xlu0 %v2159, 16
  %v2269 = vpop.permute.xlu0 %2268
  %2270 = vrot.lane.b32.xlu0 %v2163, 16
  %v2271 = vpop.permute.xlu0 %2270
  %2272 = vrot.lane.b32.xlu0 %v2167, 16
  %v2273 = vpop.permute.xlu0 %2272
  %2274 = vrot.lane.b32.xlu0 %v2171, 16
  %v2275 = vpop.permute.xlu0 %2274
  %2276 = vrot.lane.b32.xlu0 %v2175, 16
  %v2277 = vpop.permute.xlu0 %2276
  %2278 = vrot.lane.b32.xlu0 %v2179, 16
  %v2279 = vpop.permute.xlu0 %2278
  %2280 = vrot.lane.b32.xlu0 %v2183, 16
  %v2281 = vpop.permute.xlu0 %2280
  %2282 = vrot.lane.b32.xlu0 %v2187, 16
  %v2283 = vpop.permute.xlu0 %2282
  %2284 = vrot.lane.b32.xlu0 %v2191, 16
  %v2285 = vpop.permute.xlu0 %2284
  %2286 = vrot.lane.b32.xlu0 %v2195, 16
  %v2287 = vpop.permute.xlu0 %2286
  %2288 = vrot.lane.b32.xlu0 %v2199, 16
  %v2289 = vpop.permute.xlu0 %2288
  %2290 = vrot.lane.b32.xlu0 %v2203, 16
  %v2291 = vpop.permute.xlu0 %2290
  %2292 = vrot.lane.b32.xlu0 %v2207, 16
  %v2293 = vpop.permute.xlu0 %2292
  %2294 = vrot.lane.b32.xlu0 %v2216, 16
  %v2295 = vpop.permute.xlu0 %2294
  %2296 = vrot.lane.b32.xlu0 %v2225, 16
  %v2297 = vpop.permute.xlu0 %2296
  %v2300 = vunpack.c.l.b16 %v1211
  %v2301 = vunpack.c.l.b16 %v1212
  %v2302 = vpack.c.b16 %v1300, %v2300
  %v2303 = vpack.c.b16 %v1336, %v2301
  %vm2304 = vcmask 1045504
  %v2305 = vrot.slane %v2302, 2
  %v2306 = vrot.slane %v1371, 2
  %v2307 = vsel %vm2304, %v2305, %v2306
  %v2308 = vrot.slane %v1372, 2
  %v2309 = vsel %vm2304, %v2306, %v2308
  %v2310 = vrot.slane %v1373, 2
  %v2311 = vsel %vm2304, %v2308, %v2310
  %v2312 = vrot.slane %v1374, 2
  %v2313 = vsel %vm2304, %v2310, %v2312
  %v2314 = vrot.slane %v1375, 2
  %v2315 = vsel %vm2304, %v2312, %v2314
  %v2316 = vrot.slane %v1376, 2
  %v2317 = vsel %vm2304, %v2314, %v2316
  %v2318 = vrot.slane %v1377, 2
  %v2319 = vsel %vm2304, %v2316, %v2318
  %v2320 = vrot.slane %v1378, 2
  %v2321 = vsel %vm2304, %v2318, %v2320
  %v2322 = vrot.slane %v1379, 2
  %v2323 = vsel %vm2304, %v2320, %v2322
  %v2324 = vrot.slane %v1380, 2
  %v2325 = vsel %vm2304, %v2322, %v2324
  %v2326 = vrot.slane %v1381, 2
  %v2327 = vsel %vm2304, %v2324, %v2326
  %v2328 = vrot.slane %v1382, 2
  %v2329 = vsel %vm2304, %v2326, %v2328
  %v2330 = vrot.slane %v1383, 2
  %v2331 = vsel %vm2304, %v2328, %v2330
  %v2332 = vrot.slane %v1384, 2
  %v2333 = vsel %vm2304, %v2330, %v2332
  %v2334 = vrot.slane %v1385, 2
  %v2335 = vsel %vm2304, %v2332, %v2334
  %v2336 = vrot.slane %v1386, 2
  %v2337 = vsel %vm2304, %v2334, %v2336
  %v2338 = vrot.slane %v1950, 2
  %v2339 = vsel %vm2304, %v2336, %v2338
  %v2340 = vrot.slane %v2043, 2
  %v2341 = vsel %vm2304, %v2338, %v2340
  %v2342 = vrot.slane %v2303, 2
  %v2343 = vrot.slane %v1389, 2
  %v2344 = vsel %vm2304, %v2342, %v2343
  %v2345 = vrot.slane %v1390, 2
  %v2346 = vsel %vm2304, %v2343, %v2345
  %v2347 = vrot.slane %v1391, 2
  %v2348 = vsel %vm2304, %v2345, %v2347
  %v2349 = vrot.slane %v1392, 2
  %v2350 = vsel %vm2304, %v2347, %v2349
  %v2351 = vrot.slane %v1393, 2
  %v2352 = vsel %vm2304, %v2349, %v2351
  %v2353 = vrot.slane %v1394, 2
  %v2354 = vsel %vm2304, %v2351, %v2353
  %v2355 = vrot.slane %v1395, 2
  %v2356 = vsel %vm2304, %v2353, %v2355
  %v2357 = vrot.slane %v1396, 2
  %v2358 = vsel %vm2304, %v2355, %v2357
  %v2359 = vrot.slane %v1397, 2
  %v2360 = vsel %vm2304, %v2357, %v2359
  %v2361 = vrot.slane %v1398, 2
  %v2362 = vsel %vm2304, %v2359, %v2361
  %v2363 = vrot.slane %v1399, 2
  %v2364 = vsel %vm2304, %v2361, %v2363
  %v2365 = vrot.slane %v1400, 2
  %v2366 = vsel %vm2304, %v2363, %v2365
  %v2367 = vrot.slane %v1401, 2
  %v2368 = vsel %vm2304, %v2365, %v2367
  %v2369 = vrot.slane %v1402, 2
  %v2370 = vsel %vm2304, %v2367, %v2369
  %v2371 = vrot.slane %v1403, 2
  %v2372 = vsel %vm2304, %v2369, %v2371
  %v2373 = vrot.slane %v1404, 2
  %v2374 = vsel %vm2304, %v2371, %v2373
  %v2375 = vrot.slane %v1953, 2
  %v2376 = vsel %vm2304, %v2373, %v2375
  %v2377 = vrot.slane %v2044, 2
  %v2378 = vsel %vm2304, %v2375, %v2377
  %2379 = vrot.lane.b32.xlu0 %v2307, 20
  %v2380 = vpop.permute.xlu0 %2379
  %2381 = vrot.lane.b32.xlu0 %v2309, 20
  %v2382 = vpop.permute.xlu0 %2381
  %2383 = vrot.lane.b32.xlu0 %v2311, 20
  %v2384 = vpop.permute.xlu0 %2383
  %2385 = vrot.lane.b32.xlu0 %v2313, 20
  %v2386 = vpop.permute.xlu0 %2385
  %2387 = vrot.lane.b32.xlu0 %v2315, 20
  %v2388 = vpop.permute.xlu0 %2387
  %2389 = vrot.lane.b32.xlu0 %v2317, 20
  %v2390 = vpop.permute.xlu0 %2389
  %2391 = vrot.lane.b32.xlu0 %v2319, 20
  %v2392 = vpop.permute.xlu0 %2391
  %2393 = vrot.lane.b32.xlu0 %v2321, 20
  %v2394 = vpop.permute.xlu0 %2393
  %2395 = vrot.lane.b32.xlu0 %v2323, 20
  %v2396 = vpop.permute.xlu0 %2395
  %2397 = vrot.lane.b32.xlu0 %v2325, 20
  %v2398 = vpop.permute.xlu0 %2397
  %2399 = vrot.lane.b32.xlu0 %v2327, 20
  %v2400 = vpop.permute.xlu0 %2399
  %2401 = vrot.lane.b32.xlu0 %v2329, 20
  %v2402 = vpop.permute.xlu0 %2401
  %2403 = vrot.lane.b32.xlu0 %v2331, 20
  %v2404 = vpop.permute.xlu0 %2403
  %2405 = vrot.lane.b32.xlu0 %v2333, 20
  %v2406 = vpop.permute.xlu0 %2405
  %2407 = vrot.lane.b32.xlu0 %v2335, 20
  %v2408 = vpop.permute.xlu0 %2407
  %2409 = vrot.lane.b32.xlu0 %v2337, 20
  %v2410 = vpop.permute.xlu0 %2409
  %2411 = vrot.lane.b32.xlu0 %v2339, 20
  %v2412 = vpop.permute.xlu0 %2411
  %2413 = vrot.lane.b32.xlu0 %v2341, 20
  %v2414 = vpop.permute.xlu0 %2413
  %2415 = vrot.lane.b32.xlu0 %v2344, 20
  %v2416 = vpop.permute.xlu0 %2415
  %2417 = vrot.lane.b32.xlu0 %v2346, 20
  %v2418 = vpop.permute.xlu0 %2417
  %2419 = vrot.lane.b32.xlu0 %v2348, 20
  %v2420 = vpop.permute.xlu0 %2419
  %2421 = vrot.lane.b32.xlu0 %v2350, 20
  %v2422 = vpop.permute.xlu0 %2421
  %2423 = vrot.lane.b32.xlu0 %v2352, 20
  %v2424 = vpop.permute.xlu0 %2423
  %2425 = vrot.lane.b32.xlu0 %v2354, 20
  %v2426 = vpop.permute.xlu0 %2425
  %2427 = vrot.lane.b32.xlu0 %v2356, 20
  %v2428 = vpop.permute.xlu0 %2427
  %2429 = vrot.lane.b32.xlu0 %v2358, 20
  %v2430 = vpop.permute.xlu0 %2429
  %2431 = vrot.lane.b32.xlu0 %v2360, 20
  %v2432 = vpop.permute.xlu0 %2431
  %2433 = vrot.lane.b32.xlu0 %v2362, 20
  %v2434 = vpop.permute.xlu0 %2433
  %2435 = vrot.lane.b32.xlu0 %v2364, 20
  %v2436 = vpop.permute.xlu0 %2435
  %2437 = vrot.lane.b32.xlu0 %v2366, 20
  %v2438 = vpop.permute.xlu0 %2437
  %2439 = vrot.lane.b32.xlu0 %v2368, 20
  %v2440 = vpop.permute.xlu0 %2439
  %2441 = vrot.lane.b32.xlu0 %v2370, 20
  %v2442 = vpop.permute.xlu0 %2441
  %2443 = vrot.lane.b32.xlu0 %v2372, 20
  %v2444 = vpop.permute.xlu0 %2443
  %2445 = vrot.lane.b32.xlu0 %v2374, 20
  %v2446 = vpop.permute.xlu0 %2445
  %2447 = vrot.lane.b32.xlu0 %v2376, 20
  %v2448 = vpop.permute.xlu0 %2447
  %2449 = vrot.lane.b32.xlu0 %v2378, 20
  %v2450 = vpop.permute.xlu0 %2449
  %v2459 = vunpack.c.l.b16 %v1213
  %v2460 = vunpack.c.l.b16 %v1214
  %v2461 = vunpack.c.l.b16 %v1215
  %v2462 = vunpack.c.l.b16 %v1216
  %v2463 = vunpack.c.l.b16 %v1217
  %v2464 = vunpack.c.l.b16 %v1218
  %v2465 = vunpack.c.l.b16 %v1219
  %v2466 = vunpack.c.l.b16 %v1220
  %v2467 = vpack.c.b16 %v1302, %v2459
  %v2468 = vpack.c.b16 %v2461, %v2460
  %v2469 = vpack.c.b16 %v2462, %v2462
  %v2470 = vpack.c.b16 %v1338, %v2463
  %v2471 = vpack.c.b16 %v2465, %v2464
  %v2472 = vpack.c.b16 %v2466, %v2466
  %v2473 = vrot.slane %v2467, 2
  %v2474 = vsel %vm2304, %v2473, %v2308
  %v2475 = vrot.slane %v2468, 2
  %v2476 = vsel %vm2304, %v2338, %v2475
  %v2477 = vrot.slane %v2469, 2
  %v2478 = vsel %vm2304, %v2475, %v2477
  %v2479 = vrot.slane %v2470, 2
  %v2480 = vsel %vm2304, %v2479, %v2345
  %v2481 = vrot.slane %v2471, 2
  %v2482 = vsel %vm2304, %v2375, %v2481
  %v2483 = vrot.slane %v2472, 2
  %v2484 = vsel %vm2304, %v2481, %v2483
  %2485 = vrot.lane.b32.xlu0 %v2474, 24
  %v2486 = vpop.permute.xlu0 %2485
  %2487 = vrot.lane.b32.xlu0 %v2311, 24
  %v2488 = vpop.permute.xlu0 %2487
  %2489 = vrot.lane.b32.xlu0 %v2313, 24
  %v2490 = vpop.permute.xlu0 %2489
  %2491 = vrot.lane.b32.xlu0 %v2315, 24
  %v2492 = vpop.permute.xlu0 %2491
  %2493 = vrot.lane.b32.xlu0 %v2317, 24
  %v2494 = vpop.permute.xlu0 %2493
  %2495 = vrot.lane.b32.xlu0 %v2319, 24
  %v2496 = vpop.permute.xlu0 %2495
  %2497 = vrot.lane.b32.xlu0 %v2321, 24
  %v2498 = vpop.permute.xlu0 %2497
  %2499 = vrot.lane.b32.xlu0 %v2323, 24
  %v2500 = vpop.permute.xlu0 %2499
  %2501 = vrot.lane.b32.xlu0 %v2325, 24
  %v2502 = vpop.permute.xlu0 %2501
  %2503 = vrot.lane.b32.xlu0 %v2327, 24
  %v2504 = vpop.permute.xlu0 %2503
  %2505 = vrot.lane.b32.xlu0 %v2329, 24
  %v2506 = vpop.permute.xlu0 %2505
  %2507 = vrot.lane.b32.xlu0 %v2331, 24
  %v2508 = vpop.permute.xlu0 %2507
  %2509 = vrot.lane.b32.xlu0 %v2333, 24
  %v2510 = vpop.permute.xlu0 %2509
  %2511 = vrot.lane.b32.xlu0 %v2335, 24
  %v2512 = vpop.permute.xlu0 %2511
  %2513 = vrot.lane.b32.xlu0 %v2337, 24
  %v2514 = vpop.permute.xlu0 %2513
  %2515 = vrot.lane.b32.xlu0 %v2339, 24
  %v2516 = vpop.permute.xlu0 %2515
  %2517 = vrot.lane.b32.xlu0 %v2476, 24
  %v2518 = vpop.permute.xlu0 %2517
  %2519 = vrot.lane.b32.xlu0 %v2478, 24
  %v2520 = vpop.permute.xlu0 %2519
  %2521 = vrot.lane.b32.xlu0 %v2480, 24
  %v2522 = vpop.permute.xlu0 %2521
  %2523 = vrot.lane.b32.xlu0 %v2348, 24
  %v2524 = vpop.permute.xlu0 %2523
  %2525 = vrot.lane.b32.xlu0 %v2350, 24
  %v2526 = vpop.permute.xlu0 %2525
  %2527 = vrot.lane.b32.xlu0 %v2352, 24
  %v2528 = vpop.permute.xlu0 %2527
  %2529 = vrot.lane.b32.xlu0 %v2354, 24
  %v2530 = vpop.permute.xlu0 %2529
  %2531 = vrot.lane.b32.xlu0 %v2356, 24
  %v2532 = vpop.permute.xlu0 %2531
  %2533 = vrot.lane.b32.xlu0 %v2358, 24
  %v2534 = vpop.permute.xlu0 %2533
  %2535 = vrot.lane.b32.xlu0 %v2360, 24
  %v2536 = vpop.permute.xlu0 %2535
  %2537 = vrot.lane.b32.xlu0 %v2362, 24
  %v2538 = vpop.permute.xlu0 %2537
  %2539 = vrot.lane.b32.xlu0 %v2364, 24
  %v2540 = vpop.permute.xlu0 %2539
  %2541 = vrot.lane.b32.xlu0 %v2366, 24
  %v2542 = vpop.permute.xlu0 %2541
  %2543 = vrot.lane.b32.xlu0 %v2368, 24
  %v2544 = vpop.permute.xlu0 %2543
  %2545 = vrot.lane.b32.xlu0 %v2370, 24
  %v2546 = vpop.permute.xlu0 %2545
  %2547 = vrot.lane.b32.xlu0 %v2372, 24
  %v2548 = vpop.permute.xlu0 %2547
  %2549 = vrot.lane.b32.xlu0 %v2374, 24
  %v2550 = vpop.permute.xlu0 %2549
  %2551 = vrot.lane.b32.xlu0 %v2376, 24
  %v2552 = vpop.permute.xlu0 %2551
  %2553 = vrot.lane.b32.xlu0 %v2482, 24
  %v2554 = vpop.permute.xlu0 %2553
  %2555 = vrot.lane.b32.xlu0 %v2484, 24
  %v2556 = vpop.permute.xlu0 %2555
  %v2559 = vunpack.c.l.b16 %v1221
  %v2560 = vunpack.c.l.b16 %v1222
  %v2561 = vpack.c.b16 %v2559, %v2559
  %v2562 = vpack.c.b16 %v2560, %v2560
  %vm2563 = vsmask.f32 5376
  %v2565 = vshrl.u32 %v2467, 16
  %v2567 = vrot.slane %v2565, 2
  %v2568 = vshll.u32 %v2467, 16
  %v2570 = vrot.slane %v2568, 3
  %v2571 = vor.u32 %v2567, %v2570
  %v2572 = vrot.slane %v1440, 2
  %v2573 = vrot.slane %v1436, 3
  %v2574 = vor.u32 %v2572, %v2573
  %v2575 = vsel %vm2563, %v2571, %v2574
  %v2576 = vrot.slane %v1448, 2
  %v2577 = vrot.slane %v1444, 3
  %v2578 = vor.u32 %v2576, %v2577
  %v2579 = vsel %vm2563, %v2574, %v2578
  %v2580 = vrot.slane %v1456, 2
  %v2581 = vrot.slane %v1452, 3
  %v2582 = vor.u32 %v2580, %v2581
  %v2583 = vsel %vm2563, %v2578, %v2582
  %v2584 = vrot.slane %v1464, 2
  %v2585 = vrot.slane %v1460, 3
  %v2586 = vor.u32 %v2584, %v2585
  %v2587 = vsel %vm2563, %v2582, %v2586
  %v2588 = vrot.slane %v1472, 2
  %v2589 = vrot.slane %v1468, 3
  %v2590 = vor.u32 %v2588, %v2589
  %v2591 = vsel %vm2563, %v2586, %v2590
  %v2592 = vrot.slane %v1480, 2
  %v2593 = vrot.slane %v1476, 3
  %v2594 = vor.u32 %v2592, %v2593
  %v2595 = vsel %vm2563, %v2590, %v2594
  %v2596 = vrot.slane %v1488, 2
  %v2597 = vrot.slane %v1484, 3
  %v2598 = vor.u32 %v2596, %v2597
  %v2599 = vsel %vm2563, %v2594, %v2598
  %v2600 = vrot.slane %v1496, 2
  %v2601 = vrot.slane %v1492, 3
  %v2602 = vor.u32 %v2600, %v2601
  %v2603 = vsel %vm2563, %v2598, %v2602
  %v2604 = vrot.slane %v1504, 2
  %v2605 = vrot.slane %v1500, 3
  %v2606 = vor.u32 %v2604, %v2605
  %v2607 = vsel %vm2563, %v2602, %v2606
  %v2608 = vrot.slane %v1512, 2
  %v2609 = vrot.slane %v1508, 3
  %v2610 = vor.u32 %v2608, %v2609
  %v2611 = vsel %vm2563, %v2606, %v2610
  %v2612 = vrot.slane %v1520, 2
  %v2613 = vrot.slane %v1516, 3
  %v2614 = vor.u32 %v2612, %v2613
  %v2615 = vsel %vm2563, %v2610, %v2614
  %v2616 = vrot.slane %v1528, 2
  %v2617 = vrot.slane %v1524, 3
  %v2618 = vor.u32 %v2616, %v2617
  %v2619 = vsel %vm2563, %v2614, %v2618
  %v2620 = vrot.slane %v1536, 2
  %v2621 = vrot.slane %v1532, 3
  %v2622 = vor.u32 %v2620, %v2621
  %v2623 = vsel %vm2563, %v2618, %v2622
  %v2624 = vrot.slane %v1544, 2
  %v2625 = vrot.slane %v1540, 3
  %v2626 = vor.u32 %v2624, %v2625
  %v2627 = vsel %vm2563, %v2622, %v2626
  %v2628 = vrot.slane %v1552, 2
  %v2629 = vrot.slane %v1548, 3
  %v2630 = vor.u32 %v2628, %v2629
  %v2631 = vsel %vm2563, %v2626, %v2630
  %v2632 = vrot.slane %v2119, 2
  %v2633 = vrot.slane %v2122, 3
  %v2634 = vor.u32 %v2632, %v2633
  %v2635 = vsel %vm2563, %v2630, %v2634
  %v2637 = vshrl.u32 %v2468, 16
  %v2639 = vrot.slane %v2637, 2
  %v2640 = vshll.u32 %v2468, 16
  %v2642 = vrot.slane %v2640, 3
  %v2643 = vor.u32 %v2639, %v2642
  %v2644 = vsel %vm2563, %v2634, %v2643
  %v2646 = vshrl.u32 %v2561, 16
  %v2648 = vrot.slane %v2646, 2
  %v2649 = vshll.u32 %v2561, 16
  %v2651 = vrot.slane %v2649, 3
  %v2652 = vor.u32 %v2648, %v2651
  %v2653 = vsel %vm2563, %v2643, %v2652
  %v2655 = vshrl.u32 %v2470, 16
  %v2657 = vrot.slane %v2655, 2
  %v2658 = vshll.u32 %v2470, 16
  %v2660 = vrot.slane %v2658, 3
  %v2661 = vor.u32 %v2657, %v2660
  %v2662 = vrot.slane %v1588, 2
  %v2663 = vrot.slane %v1584, 3
  %v2664 = vor.u32 %v2662, %v2663
  %v2665 = vsel %vm2563, %v2661, %v2664
  %v2666 = vrot.slane %v1596, 2
  %v2667 = vrot.slane %v1592, 3
  %v2668 = vor.u32 %v2666, %v2667
  %v2669 = vsel %vm2563, %v2664, %v2668
  %v2670 = vrot.slane %v1604, 2
  %v2671 = vrot.slane %v1600, 3
  %v2672 = vor.u32 %v2670, %v2671
  %v2673 = vsel %vm2563, %v2668, %v2672
  %v2674 = vrot.slane %v1612, 2
  %v2675 = vrot.slane %v1608, 3
  %v2676 = vor.u32 %v2674, %v2675
  %v2677 = vsel %vm2563, %v2672, %v2676
  %v2678 = vrot.slane %v1620, 2
  %v2679 = vrot.slane %v1616, 3
  %v2680 = vor.u32 %v2678, %v2679
  %v2681 = vsel %vm2563, %v2676, %v2680
  %v2682 = vrot.slane %v1628, 2
  %v2683 = vrot.slane %v1624, 3
  %v2684 = vor.u32 %v2682, %v2683
  %v2685 = vsel %vm2563, %v2680, %v2684
  %v2686 = vrot.slane %v1636, 2
  %v2687 = vrot.slane %v1632, 3
  %v2688 = vor.u32 %v2686, %v2687
  %v2689 = vsel %vm2563, %v2684, %v2688
  %v2690 = vrot.slane %v1644, 2
  %v2691 = vrot.slane %v1640, 3
  %v2692 = vor.u32 %v2690, %v2691
  %v2693 = vsel %vm2563, %v2688, %v2692
  %v2694 = vrot.slane %v1652, 2
  %v2695 = vrot.slane %v1648, 3
  %v2696 = vor.u32 %v2694, %v2695
  %v2697 = vsel %vm2563, %v2692, %v2696
  %v2698 = vrot.slane %v1660, 2
  %v2699 = vrot.slane %v1656, 3
  %v2700 = vor.u32 %v2698, %v2699
  %v2701 = vsel %vm2563, %v2696, %v2700
  %v2702 = vrot.slane %v1668, 2
  %v2703 = vrot.slane %v1664, 3
  %v2704 = vor.u32 %v2702, %v2703
  %v2705 = vsel %vm2563, %v2700, %v2704
  %v2706 = vrot.slane %v1676, 2
  %v2707 = vrot.slane %v1672, 3
  %v2708 = vor.u32 %v2706, %v2707
  %v2709 = vsel %vm2563, %v2704, %v2708
  %v2710 = vrot.slane %v1684, 2
  %v2711 = vrot.slane %v1680, 3
  %v2712 = vor.u32 %v2710, %v2711
  %v2713 = vsel %vm2563, %v2708, %v2712
  %v2714 = vrot.slane %v1692, 2
  %v2715 = vrot.slane %v1688, 3
  %v2716 = vor.u32 %v2714, %v2715
  %v2717 = vsel %vm2563, %v2712, %v2716
  %v2718 = vrot.slane %v1700, 2
  %v2719 = vrot.slane %v1696, 3
  %v2720 = vor.u32 %v2718, %v2719
  %v2721 = vsel %vm2563, %v2716, %v2720
  %v2722 = vrot.slane %v2209, 2
  %v2723 = vrot.slane %v2212, 3
  %v2724 = vor.u32 %v2722, %v2723
  %v2725 = vsel %vm2563, %v2720, %v2724
  %v2727 = vshrl.u32 %v2471, 16
  %v2729 = vrot.slane %v2727, 2
  %v2730 = vshll.u32 %v2471, 16
  %v2732 = vrot.slane %v2730, 3
  %v2733 = vor.u32 %v2729, %v2732
  %v2734 = vsel %vm2563, %v2724, %v2733
  %v2736 = vshrl.u32 %v2562, 16
  %v2738 = vrot.slane %v2736, 2
  %v2739 = vshll.u32 %v2562, 16
  %v2741 = vrot.slane %v2739, 3
  %v2742 = vor.u32 %v2738, %v2741
  %v2743 = vsel %vm2563, %v2733, %v2742
  %2744 = vrot.lane.b32.xlu0 %v2575, 28
  %v2745 = vpop.permute.xlu0 %2744
  %2746 = vrot.lane.b32.xlu0 %v2579, 28
  %v2747 = vpop.permute.xlu0 %2746
  %2748 = vrot.lane.b32.xlu0 %v2583, 28
  %v2749 = vpop.permute.xlu0 %2748
  %2750 = vrot.lane.b32.xlu0 %v2587, 28
  %v2751 = vpop.permute.xlu0 %2750
  %2752 = vrot.lane.b32.xlu0 %v2591, 28
  %v2753 = vpop.permute.xlu0 %2752
  %2754 = vrot.lane.b32.xlu0 %v2595, 28
  %v2755 = vpop.permute.xlu0 %2754
  %2756 = vrot.lane.b32.xlu0 %v2599, 28
  %v2757 = vpop.permute.xlu0 %2756
  %2758 = vrot.lane.b32.xlu0 %v2603, 28
  %v2759 = vpop.permute.xlu0 %2758
  %2760 = vrot.lane.b32.xlu0 %v2607, 28
  %v2761 = vpop.permute.xlu0 %2760
  %2762 = vrot.lane.b32.xlu0 %v2611, 28
  %v2763 = vpop.permute.xlu0 %2762
  %2764 = vrot.lane.b32.xlu0 %v2615, 28
  %v2765 = vpop.permute.xlu0 %2764
  %2766 = vrot.lane.b32.xlu0 %v2619, 28
  %v2767 = vpop.permute.xlu0 %2766
  %2768 = vrot.lane.b32.xlu0 %v2623, 28
  %v2769 = vpop.permute.xlu0 %2768
  %2770 = vrot.lane.b32.xlu0 %v2627, 28
  %v2771 = vpop.permute.xlu0 %2770
  %2772 = vrot.lane.b32.xlu0 %v2631, 28
  %v2773 = vpop.permute.xlu0 %2772
  %2774 = vrot.lane.b32.xlu0 %v2635, 28
  %v2775 = vpop.permute.xlu0 %2774
  %2776 = vrot.lane.b32.xlu0 %v2644, 28
  %v2777 = vpop.permute.xlu0 %2776
  %2778 = vrot.lane.b32.xlu0 %v2653, 28
  %v2779 = vpop.permute.xlu0 %2778
  %2780 = vrot.lane.b32.xlu0 %v2665, 28
  %v2781 = vpop.permute.xlu0 %2780
  %2782 = vrot.lane.b32.xlu0 %v2669, 28
  %v2783 = vpop.permute.xlu0 %2782
  %2784 = vrot.lane.b32.xlu0 %v2673, 28
  %v2785 = vpop.permute.xlu0 %2784
  %2786 = vrot.lane.b32.xlu0 %v2677, 28
  %v2787 = vpop.permute.xlu0 %2786
  %2788 = vrot.lane.b32.xlu0 %v2681, 28
  %v2789 = vpop.permute.xlu0 %2788
  %2790 = vrot.lane.b32.xlu0 %v2685, 28
  %v2791 = vpop.permute.xlu0 %2790
  %2792 = vrot.lane.b32.xlu0 %v2689, 28
  %v2793 = vpop.permute.xlu0 %2792
  %2794 = vrot.lane.b32.xlu0 %v2693, 28
  %v2795 = vpop.permute.xlu0 %2794
  %2796 = vrot.lane.b32.xlu0 %v2697, 28
  %v2797 = vpop.permute.xlu0 %2796
  %2798 = vrot.lane.b32.xlu0 %v2701, 28
  %v2799 = vpop.permute.xlu0 %2798
  %2800 = vrot.lane.b32.xlu0 %v2705, 28
  %v2801 = vpop.permute.xlu0 %2800
  %2802 = vrot.lane.b32.xlu0 %v2709, 28
  %v2803 = vpop.permute.xlu0 %2802
  %2804 = vrot.lane.b32.xlu0 %v2713, 28
  %v2805 = vpop.permute.xlu0 %2804
  %2806 = vrot.lane.b32.xlu0 %v2717, 28
  %v2807 = vpop.permute.xlu0 %2806
  %2808 = vrot.lane.b32.xlu0 %v2721, 28
  %v2809 = vpop.permute.xlu0 %2808
  %2810 = vrot.lane.b32.xlu0 %v2725, 28
  %v2811 = vpop.permute.xlu0 %2810
  %2812 = vrot.lane.b32.xlu0 %v2734, 28
  %v2813 = vpop.permute.xlu0 %2812
  %2814 = vrot.lane.b32.xlu0 %v2743, 28
  %v2815 = vpop.permute.xlu0 %2814
  %v2818 = vunpack.c.l.b16 %v1223
  %v2819 = vunpack.c.l.b16 %v1224
  %v2820 = vpack.c.b16 %v1302, %v2818
  %v2821 = vpack.c.b16 %v1338, %v2819
  %vm2822 = vcmask 1044480
  %v2823 = vrot.slane %v2820, 3
  %v2824 = vrot.slane %v1372, 3
  %v2825 = vsel %vm2822, %v2823, %v2824
  %v2826 = vrot.slane %v1373, 3
  %v2827 = vsel %vm2822, %v2824, %v2826
  %v2828 = vrot.slane %v1374, 3
  %v2829 = vsel %vm2822, %v2826, %v2828
  %v2830 = vrot.slane %v1375, 3
  %v2831 = vsel %vm2822, %v2828, %v2830
  %v2832 = vrot.slane %v1376, 3
  %v2833 = vsel %vm2822, %v2830, %v2832
  %v2834 = vrot.slane %v1377, 3
  %v2835 = vsel %vm2822, %v2832, %v2834
  %v2836 = vrot.slane %v1378, 3
  %v2837 = vsel %vm2822, %v2834, %v2836
  %v2838 = vrot.slane %v1379, 3
  %v2839 = vsel %vm2822, %v2836, %v2838
  %v2840 = vrot.slane %v1380, 3
  %v2841 = vsel %vm2822, %v2838, %v2840
  %v2842 = vrot.slane %v1381, 3
  %v2843 = vsel %vm2822, %v2840, %v2842
  %v2844 = vrot.slane %v1382, 3
  %v2845 = vsel %vm2822, %v2842, %v2844
  %v2846 = vrot.slane %v1383, 3
  %v2847 = vsel %vm2822, %v2844, %v2846
  %v2848 = vrot.slane %v1384, 3
  %v2849 = vsel %vm2822, %v2846, %v2848
  %v2850 = vrot.slane %v1385, 3
  %v2851 = vsel %vm2822, %v2848, %v2850
  %v2852 = vrot.slane %v1386, 3
  %v2853 = vsel %vm2822, %v2850, %v2852
  %v2854 = vrot.slane %v1950, 3
  %v2855 = vsel %vm2822, %v2852, %v2854
  %v2856 = vrot.slane %v2468, 3
  %v2857 = vsel %vm2822, %v2854, %v2856
  %v2858 = vrot.slane %v2561, 3
  %v2859 = vsel %vm2822, %v2856, %v2858
  %v2860 = vrot.slane %v2821, 3
  %v2861 = vrot.slane %v1390, 3
  %v2862 = vsel %vm2822, %v2860, %v2861
  %v2863 = vrot.slane %v1391, 3
  %v2864 = vsel %vm2822, %v2861, %v2863
  %v2865 = vrot.slane %v1392, 3
  %v2866 = vsel %vm2822, %v2863, %v2865
  %v2867 = vrot.slane %v1393, 3
  %v2868 = vsel %vm2822, %v2865, %v2867
  %v2869 = vrot.slane %v1394, 3
  %v2870 = vsel %vm2822, %v2867, %v2869
  %v2871 = vrot.slane %v1395, 3
  %v2872 = vsel %vm2822, %v2869, %v2871
  %v2873 = vrot.slane %v1396, 3
  %v2874 = vsel %vm2822, %v2871, %v2873
  %v2875 = vrot.slane %v1397, 3
  %v2876 = vsel %vm2822, %v2873, %v2875
  %v2877 = vrot.slane %v1398, 3
  %v2878 = vsel %vm2822, %v2875, %v2877
  %v2879 = vrot.slane %v1399, 3
  %v2880 = vsel %vm2822, %v2877, %v2879
  %v2881 = vrot.slane %v1400, 3
  %v2882 = vsel %vm2822, %v2879, %v2881
  %v2883 = vrot.slane %v1401, 3
  %v2884 = vsel %vm2822, %v2881, %v2883
  %v2885 = vrot.slane %v1402, 3
  %v2886 = vsel %vm2822, %v2883, %v2885
  %v2887 = vrot.slane %v1403, 3
  %v2888 = vsel %vm2822, %v2885, %v2887
  %v2889 = vrot.slane %v1404, 3
  %v2890 = vsel %vm2822, %v2887, %v2889
  %v2891 = vrot.slane %v1953, 3
  %v2892 = vsel %vm2822, %v2889, %v2891
  %v2893 = vrot.slane %v2471, 3
  %v2894 = vsel %vm2822, %v2891, %v2893
  %v2895 = vrot.slane %v2562, 3
  %v2896 = vsel %vm2822, %v2893, %v2895
  %2897 = vrot.lane.b32.xlu0 %v2825, 32
  %v2898 = vpop.permute.xlu0 %2897
  %2899 = vrot.lane.b32.xlu0 %v2827, 32
  %v2900 = vpop.permute.xlu0 %2899
  %2901 = vrot.lane.b32.xlu0 %v2829, 32
  %v2902 = vpop.permute.xlu0 %2901
  %2903 = vrot.lane.b32.xlu0 %v2831, 32
  %v2904 = vpop.permute.xlu0 %2903
  %2905 = vrot.lane.b32.xlu0 %v2833, 32
  %v2906 = vpop.permute.xlu0 %2905
  %2907 = vrot.lane.b32.xlu0 %v2835, 32
  %v2908 = vpop.permute.xlu0 %2907
  %2909 = vrot.lane.b32.xlu0 %v2837, 32
  %v2910 = vpop.permute.xlu0 %2909
  %2911 = vrot.lane.b32.xlu0 %v2839, 32
  %v2912 = vpop.permute.xlu0 %2911
  %2913 = vrot.lane.b32.xlu0 %v2841, 32
  %v2914 = vpop.permute.xlu0 %2913
  %2915 = vrot.lane.b32.xlu0 %v2843, 32
  %v2916 = vpop.permute.xlu0 %2915
  %2917 = vrot.lane.b32.xlu0 %v2845, 32
  %v2918 = vpop.permute.xlu0 %2917
  %2919 = vrot.lane.b32.xlu0 %v2847, 32
  %v2920 = vpop.permute.xlu0 %2919
  %2921 = vrot.lane.b32.xlu0 %v2849, 32
  %v2922 = vpop.permute.xlu0 %2921
  %2923 = vrot.lane.b32.xlu0 %v2851, 32
  %v2924 = vpop.permute.xlu0 %2923
  %2925 = vrot.lane.b32.xlu0 %v2853, 32
  %v2926 = vpop.permute.xlu0 %2925
  %2927 = vrot.lane.b32.xlu0 %v2855, 32
  %v2928 = vpop.permute.xlu0 %2927
  %2929 = vrot.lane.b32.xlu0 %v2857, 32
  %v2930 = vpop.permute.xlu0 %2929
  %2931 = vrot.lane.b32.xlu0 %v2859, 32
  %v2932 = vpop.permute.xlu0 %2931
  %2933 = vrot.lane.b32.xlu0 %v2862, 32
  %v2934 = vpop.permute.xlu0 %2933
  %2935 = vrot.lane.b32.xlu0 %v2864, 32
  %v2936 = vpop.permute.xlu0 %2935
  %2937 = vrot.lane.b32.xlu0 %v2866, 32
  %v2938 = vpop.permute.xlu0 %2937
  %2939 = vrot.lane.b32.xlu0 %v2868, 32
  %v2940 = vpop.permute.xlu0 %2939
  %2941 = vrot.lane.b32.xlu0 %v2870, 32
  %v2942 = vpop.permute.xlu0 %2941
  %2943 = vrot.lane.b32.xlu0 %v2872, 32
  %v2944 = vpop.permute.xlu0 %2943
  %2945 = vrot.lane.b32.xlu0 %v2874, 32
  %v2946 = vpop.permute.xlu0 %2945
  %2947 = vrot.lane.b32.xlu0 %v2876, 32
  %v2948 = vpop.permute.xlu0 %2947
  %2949 = vrot.lane.b32.xlu0 %v2878, 32
  %v2950 = vpop.permute.xlu0 %2949
  %2951 = vrot.lane.b32.xlu0 %v2880, 32
  %v2952 = vpop.permute.xlu0 %2951
  %2953 = vrot.lane.b32.xlu0 %v2882, 32
  %v2954 = vpop.permute.xlu0 %2953
  %2955 = vrot.lane.b32.xlu0 %v2884, 32
  %v2956 = vpop.permute.xlu0 %2955
  %2957 = vrot.lane.b32.xlu0 %v2886, 32
  %v2958 = vpop.permute.xlu0 %2957
  %2959 = vrot.lane.b32.xlu0 %v2888, 32
  %v2960 = vpop.permute.xlu0 %2959
  %2961 = vrot.lane.b32.xlu0 %v2890, 32
  %v2962 = vpop.permute.xlu0 %2961
  %2963 = vrot.lane.b32.xlu0 %v2892, 32
  %v2964 = vpop.permute.xlu0 %2963
  %2965 = vrot.lane.b32.xlu0 %v2894, 32
  %v2966 = vpop.permute.xlu0 %2965
  %2967 = vrot.lane.b32.xlu0 %v2896, 32
  %v2968 = vpop.permute.xlu0 %2967
  %vm2969 = vcmask 31744
  %v2971 = vsel %vm2969, %v1369, %v1709
  %v2973 = vsel %vm2969, %v1370, %v1711
  %v2975 = vsel %vm2969, %v1371, %v1713
  %v2977 = vsel %vm2969, %v1372, %v1715
  %v2979 = vsel %vm2969, %v1373, %v1717
  %v2981 = vsel %vm2969, %v1374, %v1719
  %v2983 = vsel %vm2969, %v1375, %v1721
  %v2985 = vsel %vm2969, %v1376, %v1723
  %v2987 = vsel %vm2969, %v1377, %v1725
  %v2989 = vsel %vm2969, %v1378, %v1727
  %v2991 = vsel %vm2969, %v1379, %v1729
  %v2993 = vsel %vm2969, %v1380, %v1731
  %v2995 = vsel %vm2969, %v1381, %v1733
  %v2997 = vsel %vm2969, %v1382, %v1735
  %v2999 = vsel %vm2969, %v1383, %v1737
  %v3001 = vsel %vm2969, %v1384, %v1739
  %v3003 = vsel %vm2969, %v1385, %v1741
  %v3005 = vsel %vm2969, %v1386, %v1743
  %v3007 = vsel %vm2969, %v1387, %v1745
  %v3009 = vsel %vm2969, %v1388, %v1747
  %v3011 = vsel %vm2969, %v1389, %v1749
  %v3013 = vsel %vm2969, %v1390, %v1751
  %v3015 = vsel %vm2969, %v1391, %v1753
  %v3017 = vsel %vm2969, %v1392, %v1755
  %v3019 = vsel %vm2969, %v1393, %v1757
  %v3021 = vsel %vm2969, %v1394, %v1759
  %v3023 = vsel %vm2969, %v1395, %v1761
  %v3025 = vsel %vm2969, %v1396, %v1763
  %v3027 = vsel %vm2969, %v1397, %v1765
  %v3029 = vsel %vm2969, %v1398, %v1767
  %v3031 = vsel %vm2969, %v1399, %v1769
  %v3033 = vsel %vm2969, %v1400, %v1771
  %v3035 = vsel %vm2969, %v1401, %v1773
  %v3037 = vsel %vm2969, %v1402, %v1775
  %v3039 = vsel %vm2969, %v1403, %v1777
  %v3041 = vsel %vm2969, %v1404, %v1779
  %vm3042 = vcmask 64512
  %v3044 = vsel %vm3042, %v2971, %v1862
  %v3046 = vsel %vm3042, %v2973, %v1864
  %v3048 = vsel %vm3042, %v2975, %v1866
  %v3050 = vsel %vm3042, %v2977, %v1868
  %v3052 = vsel %vm3042, %v2979, %v1870
  %v3054 = vsel %vm3042, %v2981, %v1872
  %v3056 = vsel %vm3042, %v2983, %v1874
  %v3058 = vsel %vm3042, %v2985, %v1876
  %v3060 = vsel %vm3042, %v2987, %v1878
  %v3062 = vsel %vm3042, %v2989, %v1880
  %v3064 = vsel %vm3042, %v2991, %v1882
  %v3066 = vsel %vm3042, %v2993, %v1884
  %v3068 = vsel %vm3042, %v2995, %v1886
  %v3070 = vsel %vm3042, %v2997, %v1888
  %v3072 = vsel %vm3042, %v2999, %v1890
  %v3074 = vsel %vm3042, %v3001, %v1892
  %v3076 = vsel %vm3042, %v3003, %v1894
  %v3078 = vsel %vm3042, %v3005, %v1896
  %v3080 = vsel %vm3042, %v3007, %v1898
  %v3082 = vsel %vm3042, %v3009, %v1900
  %v3084 = vsel %vm3042, %v3011, %v1902
  %v3086 = vsel %vm3042, %v3013, %v1904
  %v3088 = vsel %vm3042, %v3015, %v1906
  %v3090 = vsel %vm3042, %v3017, %v1908
  %v3092 = vsel %vm3042, %v3019, %v1910
  %v3094 = vsel %vm3042, %v3021, %v1912
  %v3096 = vsel %vm3042, %v3023, %v1914
  %v3098 = vsel %vm3042, %v3025, %v1916
  %v3100 = vsel %vm3042, %v3027, %v1918
  %v3102 = vsel %vm3042, %v3029, %v1920
  %v3104 = vsel %vm3042, %v3031, %v1922
  %v3106 = vsel %vm3042, %v3033, %v1924
  %v3108 = vsel %vm3042, %v3035, %v1926
  %v3110 = vsel %vm3042, %v3037, %v1928
  %v3112 = vsel %vm3042, %v3039, %v1930
  %v3114 = vsel %vm3042, %v3041, %v1932
  %vm3115 = vcmask 97280
  %v3117 = vsel %vm3115, %v3044, %v1968
  %v3119 = vsel %vm3115, %v3046, %v1970
  %v3121 = vsel %vm3115, %v3048, %v1972
  %v3123 = vsel %vm3115, %v3050, %v1974
  %v3125 = vsel %vm3115, %v3052, %v1976
  %v3127 = vsel %vm3115, %v3054, %v1978
  %v3129 = vsel %vm3115, %v3056, %v1980
  %v3131 = vsel %vm3115, %v3058, %v1982
  %v3133 = vsel %vm3115, %v3060, %v1984
  %v3135 = vsel %vm3115, %v3062, %v1986
  %v3137 = vsel %vm3115, %v3064, %v1988
  %v3139 = vsel %vm3115, %v3066, %v1990
  %v3141 = vsel %vm3115, %v3068, %v1992
  %v3143 = vsel %vm3115, %v3070, %v1994
  %v3145 = vsel %vm3115, %v3072, %v1996
  %v3147 = vsel %vm3115, %v3074, %v1998
  %v3149 = vsel %vm3115, %v3076, %v2000
  %v3151 = vsel %vm3115, %v3078, %v2002
  %v3153 = vsel %vm3115, %v3080, %v2004
  %v3155 = vsel %vm3115, %v3082, %v2006
  %v3157 = vsel %vm3115, %v3084, %v2008
  %v3159 = vsel %vm3115, %v3086, %v2010
  %v3161 = vsel %vm3115, %v3088, %v2012
  %v3163 = vsel %vm3115, %v3090, %v2014
  %v3165 = vsel %vm3115, %v3092, %v2016
  %v3167 = vsel %vm3115, %v3094, %v2018
  %v3169 = vsel %vm3115, %v3096, %v2020
  %v3171 = vsel %vm3115, %v3098, %v2022
  %v3173 = vsel %vm3115, %v3100, %v2024
  %v3175 = vsel %vm3115, %v3102, %v2026
  %v3177 = vsel %vm3115, %v3104, %v2028
  %v3179 = vsel %vm3115, %v3106, %v2030
  %v3181 = vsel %vm3115, %v3108, %v2032
  %v3183 = vsel %vm3115, %v3110, %v2034
  %v3185 = vsel %vm3115, %v3112, %v2036
  %v3187 = vsel %vm3115, %v3114, %v2038
  %vm3188 = vcmask 130048
  %v3190 = vsel %vm3188, %v3117, %v2227
  %v3192 = vsel %vm3188, %v3119, %v2229
  %v3194 = vsel %vm3188, %v3121, %v2231
  %v3196 = vsel %vm3188, %v3123, %v2233
  %v3198 = vsel %vm3188, %v3125, %v2235
  %v3200 = vsel %vm3188, %v3127, %v2237
  %v3202 = vsel %vm3188, %v3129, %v2239
  %v3204 = vsel %vm3188, %v3131, %v2241
  %v3206 = vsel %vm3188, %v3133, %v2243
  %v3208 = vsel %vm3188, %v3135, %v2245
  %v3210 = vsel %vm3188, %v3137, %v2247
  %v3212 = vsel %vm3188, %v3139, %v2249
  %v3214 = vsel %vm3188, %v3141, %v2251
  %v3216 = vsel %vm3188, %v3143, %v2253
  %v3218 = vsel %vm3188, %v3145, %v2255
  %v3220 = vsel %vm3188, %v3147, %v2257
  %v3222 = vsel %vm3188, %v3149, %v2259
  %v3224 = vsel %vm3188, %v3151, %v2261
  %v3226 = vsel %vm3188, %v3153, %v2263
  %v3228 = vsel %vm3188, %v3155, %v2265
  %v3230 = vsel %vm3188, %v3157, %v2267
  %v3232 = vsel %vm3188, %v3159, %v2269
  %v3234 = vsel %vm3188, %v3161, %v2271
  %v3236 = vsel %vm3188, %v3163, %v2273
  %v3238 = vsel %vm3188, %v3165, %v2275
  %v3240 = vsel %vm3188, %v3167, %v2277
  %v3242 = vsel %vm3188, %v3169, %v2279
  %v3244 = vsel %vm3188, %v3171, %v2281
  %v3246 = vsel %vm3188, %v3173, %v2283
  %v3248 = vsel %vm3188, %v3175, %v2285
  %v3250 = vsel %vm3188, %v3177, %v2287
  %v3252 = vsel %vm3188, %v3179, %v2289
  %v3254 = vsel %vm3188, %v3181, %v2291
  %v3256 = vsel %vm3188, %v3183, %v2293
  %v3258 = vsel %vm3188, %v3185, %v2295
  %v3260 = vsel %vm3188, %v3187, %v2297
  %vm3261 = vcmask 162816
  %v3263 = vsel %vm3261, %v3190, %v2380
  %v3265 = vsel %vm3261, %v3192, %v2382
  %v3267 = vsel %vm3261, %v3194, %v2384
  %v3269 = vsel %vm3261, %v3196, %v2386
  %v3271 = vsel %vm3261, %v3198, %v2388
  %v3273 = vsel %vm3261, %v3200, %v2390
  %v3275 = vsel %vm3261, %v3202, %v2392
  %v3277 = vsel %vm3261, %v3204, %v2394
  %v3279 = vsel %vm3261, %v3206, %v2396
  %v3281 = vsel %vm3261, %v3208, %v2398
  %v3283 = vsel %vm3261, %v3210, %v2400
  %v3285 = vsel %vm3261, %v3212, %v2402
  %v3287 = vsel %vm3261, %v3214, %v2404
  %v3289 = vsel %vm3261, %v3216, %v2406
  %v3291 = vsel %vm3261, %v3218, %v2408
  %v3293 = vsel %vm3261, %v3220, %v2410
  %v3295 = vsel %vm3261, %v3222, %v2412
  %v3297 = vsel %vm3261, %v3224, %v2414
  %v3299 = vsel %vm3261, %v3226, %v2416
  %v3301 = vsel %vm3261, %v3228, %v2418
  %v3303 = vsel %vm3261, %v3230, %v2420
  %v3305 = vsel %vm3261, %v3232, %v2422
  %v3307 = vsel %vm3261, %v3234, %v2424
  %v3309 = vsel %vm3261, %v3236, %v2426
  %v3311 = vsel %vm3261, %v3238, %v2428
  %v3313 = vsel %vm3261, %v3240, %v2430
  %v3315 = vsel %vm3261, %v3242, %v2432
  %v3317 = vsel %vm3261, %v3244, %v2434
  %v3319 = vsel %vm3261, %v3246, %v2436
  %v3321 = vsel %vm3261, %v3248, %v2438
  %v3323 = vsel %vm3261, %v3250, %v2440
  %v3325 = vsel %vm3261, %v3252, %v2442
  %v3327 = vsel %vm3261, %v3254, %v2444
  %v3329 = vsel %vm3261, %v3256, %v2446
  %v3331 = vsel %vm3261, %v3258, %v2448
  %v3333 = vsel %vm3261, %v3260, %v2450
  %vm3334 = vcmask 195584
  %v3336 = vsel %vm3334, %v3263, %v2486
  %v3338 = vsel %vm3334, %v3265, %v2488
  %v3340 = vsel %vm3334, %v3267, %v2490
  %v3342 = vsel %vm3334, %v3269, %v2492
  %v3344 = vsel %vm3334, %v3271, %v2494
  %v3346 = vsel %vm3334, %v3273, %v2496
  %v3348 = vsel %vm3334, %v3275, %v2498
  %v3350 = vsel %vm3334, %v3277, %v2500
  %v3352 = vsel %vm3334, %v3279, %v2502
  %v3354 = vsel %vm3334, %v3281, %v2504
  %v3356 = vsel %vm3334, %v3283, %v2506
  %v3358 = vsel %vm3334, %v3285, %v2508
  %v3360 = vsel %vm3334, %v3287, %v2510
  %v3362 = vsel %vm3334, %v3289, %v2512
  %v3364 = vsel %vm3334, %v3291, %v2514
  %v3366 = vsel %vm3334, %v3293, %v2516
  %v3368 = vsel %vm3334, %v3295, %v2518
  %v3370 = vsel %vm3334, %v3297, %v2520
  %v3372 = vsel %vm3334, %v3299, %v2522
  %v3374 = vsel %vm3334, %v3301, %v2524
  %v3376 = vsel %vm3334, %v3303, %v2526
  %v3378 = vsel %vm3334, %v3305, %v2528
  %v3380 = vsel %vm3334, %v3307, %v2530
  %v3382 = vsel %vm3334, %v3309, %v2532
  %v3384 = vsel %vm3334, %v3311, %v2534
  %v3386 = vsel %vm3334, %v3313, %v2536
  %v3388 = vsel %vm3334, %v3315, %v2538
  %v3390 = vsel %vm3334, %v3317, %v2540
  %v3392 = vsel %vm3334, %v3319, %v2542
  %v3394 = vsel %vm3334, %v3321, %v2544
  %v3396 = vsel %vm3334, %v3323, %v2546
  %v3398 = vsel %vm3334, %v3325, %v2548
  %v3400 = vsel %vm3334, %v3327, %v2550
  %v3402 = vsel %vm3334, %v3329, %v2552
  %v3404 = vsel %vm3334, %v3331, %v2554
  %v3406 = vsel %vm3334, %v3333, %v2556
  %vm3407 = vcmask 228352
  %v3409 = vsel %vm3407, %v3336, %v2745
  %v3411 = vsel %vm3407, %v3338, %v2747
  %v3413 = vsel %vm3407, %v3340, %v2749
  %v3415 = vsel %vm3407, %v3342, %v2751
  %v3417 = vsel %vm3407, %v3344, %v2753
  %v3419 = vsel %vm3407, %v3346, %v2755
  %v3421 = vsel %vm3407, %v3348, %v2757
  %v3423 = vsel %vm3407, %v3350, %v2759
  %v3425 = vsel %vm3407, %v3352, %v2761
  %v3427 = vsel %vm3407, %v3354, %v2763
  %v3429 = vsel %vm3407, %v3356, %v2765
  %v3431 = vsel %vm3407, %v3358, %v2767
  %v3433 = vsel %vm3407, %v3360, %v2769
  %v3435 = vsel %vm3407, %v3362, %v2771
  %v3437 = vsel %vm3407, %v3364, %v2773
  %v3439 = vsel %vm3407, %v3366, %v2775
  %v3441 = vsel %vm3407, %v3368, %v2777
  %v3443 = vsel %vm3407, %v3370, %v2779
  %v3445 = vsel %vm3407, %v3372, %v2781
  %v3447 = vsel %vm3407, %v3374, %v2783
  %v3449 = vsel %vm3407, %v3376, %v2785
  %v3451 = vsel %vm3407, %v3378, %v2787
  %v3453 = vsel %vm3407, %v3380, %v2789
  %v3455 = vsel %vm3407, %v3382, %v2791
  %v3457 = vsel %vm3407, %v3384, %v2793
  %v3459 = vsel %vm3407, %v3386, %v2795
  %v3461 = vsel %vm3407, %v3388, %v2797
  %v3463 = vsel %vm3407, %v3390, %v2799
  %v3465 = vsel %vm3407, %v3392, %v2801
  %v3467 = vsel %vm3407, %v3394, %v2803
  %v3469 = vsel %vm3407, %v3396, %v2805
  %v3471 = vsel %vm3407, %v3398, %v2807
  %v3473 = vsel %vm3407, %v3400, %v2809
  %v3475 = vsel %vm3407, %v3402, %v2811
  %v3477 = vsel %vm3407, %v3404, %v2813
  %v3479 = vsel %vm3407, %v3406, %v2815
  %vm3480 = vcmask 261120
  %v3482 = vsel %vm3480, %v3409, %v2898
  %v3484 = vsel %vm3480, %v3411, %v2900
  %v3486 = vsel %vm3480, %v3413, %v2902
  %v3488 = vsel %vm3480, %v3415, %v2904
  %v3490 = vsel %vm3480, %v3417, %v2906
  %v3492 = vsel %vm3480, %v3419, %v2908
  %v3494 = vsel %vm3480, %v3421, %v2910
  %v3496 = vsel %vm3480, %v3423, %v2912
  %v3498 = vsel %vm3480, %v3425, %v2914
  %v3500 = vsel %vm3480, %v3427, %v2916
  %v3502 = vsel %vm3480, %v3429, %v2918
  %v3504 = vsel %vm3480, %v3431, %v2920
  %v3506 = vsel %vm3480, %v3433, %v2922
  %v3508 = vsel %vm3480, %v3435, %v2924
  %v3510 = vsel %vm3480, %v3437, %v2926
  %v3512 = vsel %vm3480, %v3439, %v2928
  %v3514 = vsel %vm3480, %v3441, %v2930
  %v3516 = vsel %vm3480, %v3443, %v2932
  %v3518 = vsel %vm3480, %v3445, %v2934
  %v3520 = vsel %vm3480, %v3447, %v2936
  %v3522 = vsel %vm3480, %v3449, %v2938
  %v3524 = vsel %vm3480, %v3451, %v2940
  %v3526 = vsel %vm3480, %v3453, %v2942
  %v3528 = vsel %vm3480, %v3455, %v2944
  %v3530 = vsel %vm3480, %v3457, %v2946
  %v3532 = vsel %vm3480, %v3459, %v2948
  %v3534 = vsel %vm3480, %v3461, %v2950
  %v3536 = vsel %vm3480, %v3463, %v2952
  %v3538 = vsel %vm3480, %v3465, %v2954
  %v3540 = vsel %vm3480, %v3467, %v2956
  %v3542 = vsel %vm3480, %v3469, %v2958
  %v3544 = vsel %vm3480, %v3471, %v2960
  %v3546 = vsel %vm3480, %v3473, %v2962
  %v3548 = vsel %vm3480, %v3475, %v2964
  %v3550 = vsel %vm3480, %v3477, %v2966
  %v3552 = vsel %vm3480, %v3479, %v2968
  %v3553 = vld [vmem:[%s1] sm:$0xf]
  %v3554 = vld [vmem:[%s1 + $0x4] sm:$0xf]
  %v3555 = vld [vmem:[%s1 + $0x8] sm:$0xf]
  %v3556 = vld [vmem:[%s1 + $0xc] sm:$0xf]
  %v3557 = vld [vmem:[%s1 + $0x10] sm:$0x3]
  %v3558 = vld [vmem:[%s2] sm:$0x1]
  %v3560 = vlaneseq
  %v3561 = vshrl.u32 %v3560, 7
  %v3562 = vsub.s32 0, %v3561
  %v3563 = vrot.slane %v3558, %v3562
  %v3570 = vunpack.c.l.b16 %v3553
  %v3571 = vunpack.c.l.b16 %v3554
  %v3572 = vunpack.c.l.b16 %v3555
  %v3573 = vunpack.c.l.b16 %v3556
  %v3574 = vunpack.c.l.b16 %v3557
  %v3575 = vpack.c.b16 %v3571, %v3570
  %v3576 = vpack.c.b16 %v3573, %v3572
  %v3577 = vpack.c.b16 %v3574, %v3574
  %vm3580 = vcmask 293888
  %v3581 = vsel %vm3580, %v3482, 0
  %v3583 = vsel %vm3580, %v3484, 0
  %v3585 = vsel %vm3580, %v3486, 0
  %v3587 = vsel %vm3580, %v3488, 0
  %v3589 = vsel %vm3580, %v3490, 0
  %v3591 = vsel %vm3580, %v3492, 0
  %v3593 = vsel %vm3580, %v3494, 0
  %v3595 = vsel %vm3580, %v3496, 0
  %v3597 = vsel %vm3580, %v3498, 0
  %v3599 = vsel %vm3580, %v3500, 0
  %v3601 = vsel %vm3580, %v3502, 0
  %v3603 = vsel %vm3580, %v3504, 0
  %v3605 = vsel %vm3580, %v3506, 0
  %v3607 = vsel %vm3580, %v3508, 0
  %v3609 = vsel %vm3580, %v3510, 0
  %v3611 = vsel %vm3580, %v3512, 0
  %v3613 = vsel %vm3580, %v3514, 0
  %v3615 = vsel %vm3580, %v3516, 0
  %v3617 = vsel %vm3580, %v3518, 0
  %v3619 = vsel %vm3580, %v3520, 0
  %v3621 = vsel %vm3580, %v3522, 0
  %v3623 = vsel %vm3580, %v3524, 0
  %v3625 = vsel %vm3580, %v3526, 0
  %v3627 = vsel %vm3580, %v3528, 0
  %v3629 = vsel %vm3580, %v3530, 0
  %v3631 = vsel %vm3580, %v3532, 0
  %v3633 = vsel %vm3580, %v3534, 0
  %v3635 = vsel %vm3580, %v3536, 0
  %v3637 = vsel %vm3580, %v3538, 0
  %v3639 = vsel %vm3580, %v3540, 0
  %v3641 = vsel %vm3580, %v3542, 0
  %v3643 = vsel %vm3580, %v3544, 0
  %v3645 = vsel %vm3580, %v3546, 0
  %v3647 = vsel %vm3580, %v3548, 0
  %v3649 = vsel %vm3580, %v3550, 0
  %v3651 = vsel %vm3580, %v3552, 0
  %vm3653 = vcmask 1041408
  %v3655 = vsel %vm3653, %v3577, 0
  %3657 = vmatprep.subr.bf16.mxu0 0
  %3658 = vmatpush1.bf16.msra.mxu0 0
  %3659 = vmatprep.subr.bf16.mxu0 0
  %3660 = vmatpush1.bf16.msra.mxu0 0
  %3661 = vmatprep.subr.bf16.mxu0 0
  %3662 = vmatpush1.bf16.msra.mxu0 0
  %3663 = vmatprep.subr.bf16.mxu0 0
  %3664 = vmatpush1.bf16.msra.mxu0 0
  %3665 = vmatprep.subr.bf16.mxu0 0
  %3666 = vmatpush1.bf16.msra.mxu0 0
  %3667 = vmatprep.subr.bf16.mxu0 0
  %3668 = vmatpush1.bf16.msra.mxu0 %v3655
  %3669 = vmatprep.subr.bf16.mxu0 0
  %3670 = vmatpush1.bf16.msra.mxu0 %v3576
  %3671 = vmatprep.subr.bf16.mxu0 0
  %3672 = vmatpush1.bf16.msra.mxu0 %v3575
  %3673 = vmatprep.subr.bf16.mxu0 0
  %3674 = vmatpush2.bf16.msra.mxu0 0
  %3675 = vmatprep.subr.bf16.mxu0 0
  %3676 = vmatpush2.bf16.msra.mxu0 0
  %3677 = vmatprep.subr.bf16.mxu0 0
  %3678 = vmatpush2.bf16.msra.mxu0 0
  %3679 = vmatprep.subr.bf16.mxu0 0
  %3680 = vmatpush2.bf16.msra.mxu0 0
  %3681 = vmatprep.subr.bf16.mxu0 0
  %3682 = vmatpush2.bf16.msra.mxu0 0
  %3683 = vmatprep.subr.bf16.mxu0 0
  %3684 = vmatpush2.bf16.msra.mxu0 0
  %3685 = vmatprep.subr.bf16.mxu0 0
  %3686 = vmatpush2.bf16.msra.mxu0 0
  %3687 = vmatprep.subr.bf16.mxu0 0
  %3688 = vmatpush2.bf16.msra.mxu0 0
  %3689 = vmatprep.mubr.bf16.mxu0 0
  %3690 = vmatmul.mubr.bf16.gmra.mxu0 %v3581
  %v3691 = vpop.f32.mrf.mxu0
  %v3692 = vadd.f32 %v3563, %v3691
  %v3693 = vpop.f32.mrf.mxu0
  %v3694 = vpop.f32.mrf.mxu0
  %v3695 = vadd.f32 %v3563, %v3694
  %v3696 = vpop.f32.mrf.mxu0
  %3697 = vmatprep.mubr.bf16.mxu0 0
  %3698 = vmatmul.mubr.bf16.gmra.mxu0 %v3583
  %v3699 = vpop.f32.mrf.mxu0
  %v3700 = vadd.f32 %v3563, %v3699
  %v3701 = vpop.f32.mrf.mxu0
  %v3702 = vpop.f32.mrf.mxu0
  %v3703 = vadd.f32 %v3563, %v3702
  %v3704 = vpop.f32.mrf.mxu0
  %3705 = vmatprep.mubr.bf16.mxu0 0
  %3706 = vmatmul.mubr.bf16.gmra.mxu0 %v3585
  %v3707 = vpop.f32.mrf.mxu0
  %v3708 = vadd.f32 %v3563, %v3707
  %v3709 = vpop.f32.mrf.mxu0
  %v3710 = vpop.f32.mrf.mxu0
  %v3711 = vadd.f32 %v3563, %v3710
  %v3712 = vpop.f32.mrf.mxu0
  %3713 = vmatprep.mubr.bf16.mxu0 0
  %3714 = vmatmul.mubr.bf16.gmra.mxu0 %v3587
  %v3715 = vpop.f32.mrf.mxu0
  %v3716 = vadd.f32 %v3563, %v3715
  %v3717 = vpop.f32.mrf.mxu0
  %v3718 = vpop.f32.mrf.mxu0
  %v3719 = vadd.f32 %v3563, %v3718
  %v3720 = vpop.f32.mrf.mxu0
  %3721 = vmatprep.mubr.bf16.mxu0 0
  %3722 = vmatmul.mubr.bf16.gmra.mxu0 %v3589
  %v3723 = vpop.f32.mrf.mxu0
  %v3724 = vadd.f32 %v3563, %v3723
  %v3725 = vpop.f32.mrf.mxu0
  %v3726 = vpop.f32.mrf.mxu0
  %v3727 = vadd.f32 %v3563, %v3726
  %v3728 = vpop.f32.mrf.mxu0
  %3729 = vmatprep.mubr.bf16.mxu0 0
  %3730 = vmatmul.mubr.bf16.gmra.mxu0 %v3591
  %v3731 = vpop.f32.mrf.mxu0
  %v3732 = vadd.f32 %v3563, %v3731
  %v3733 = vpop.f32.mrf.mxu0
  %v3734 = vpop.f32.mrf.mxu0
  %v3735 = vadd.f32 %v3563, %v3734
  %v3736 = vpop.f32.mrf.mxu0
  %3737 = vmatprep.mubr.bf16.mxu0 0
  %3738 = vmatmul.mubr.bf16.gmra.mxu0 %v3593
  %v3739 = vpop.f32.mrf.mxu0
  %v3740 = vadd.f32 %v3563, %v3739
  %v3741 = vpop.f32.mrf.mxu0
  %v3742 = vpop.f32.mrf.mxu0
  %v3743 = vadd.f32 %v3563, %v3742
  %v3744 = vpop.f32.mrf.mxu0
  %3745 = vmatprep.mubr.bf16.mxu0 0
  %3746 = vmatmul.mubr.bf16.gmra.mxu0 %v3595
  %v3747 = vpop.f32.mrf.mxu0
  %v3748 = vadd.f32 %v3563, %v3747
  %v3749 = vpop.f32.mrf.mxu0
  %v3750 = vpop.f32.mrf.mxu0
  %v3751 = vadd.f32 %v3563, %v3750
  %v3752 = vpop.f32.mrf.mxu0
  %3753 = vmatprep.mubr.bf16.mxu0 0
  %3754 = vmatmul.mubr.bf16.gmra.mxu0 %v3597
  %v3755 = vpop.f32.mrf.mxu0
  %v3756 = vadd.f32 %v3563, %v3755
  %v3757 = vpop.f32.mrf.mxu0
  %v3758 = vpop.f32.mrf.mxu0
  %v3759 = vadd.f32 %v3563, %v3758
  %v3760 = vpop.f32.mrf.mxu0
  %3761 = vmatprep.mubr.bf16.mxu0 0
  %3762 = vmatmul.mubr.bf16.gmra.mxu0 %v3599
  %v3763 = vpop.f32.mrf.mxu0
  %v3764 = vadd.f32 %v3563, %v3763
  %v3765 = vpop.f32.mrf.mxu0
  %v3766 = vpop.f32.mrf.mxu0
  %v3767 = vadd.f32 %v3563, %v3766
  %v3768 = vpop.f32.mrf.mxu0
  %3769 = vmatprep.mubr.bf16.mxu0 0
  %3770 = vmatmul.mubr.bf16.gmra.mxu0 %v3601
  %v3771 = vpop.f32.mrf.mxu0
  %v3772 = vadd.f32 %v3563, %v3771
  %v3773 = vpop.f32.mrf.mxu0
  %v3774 = vpop.f32.mrf.mxu0
  %v3775 = vadd.f32 %v3563, %v3774
  %v3776 = vpop.f32.mrf.mxu0
  %3777 = vmatprep.mubr.bf16.mxu0 0
  %3778 = vmatmul.mubr.bf16.gmra.mxu0 %v3603
  %v3779 = vpop.f32.mrf.mxu0
  %v3780 = vadd.f32 %v3563, %v3779
  %v3781 = vpop.f32.mrf.mxu0
  %v3782 = vpop.f32.mrf.mxu0
  %v3783 = vadd.f32 %v3563, %v3782
  %v3784 = vpop.f32.mrf.mxu0
  %3785 = vmatprep.mubr.bf16.mxu0 0
  %3786 = vmatmul.mubr.bf16.gmra.mxu0 %v3605
  %v3787 = vpop.f32.mrf.mxu0
  %v3788 = vadd.f32 %v3563, %v3787
  %v3789 = vpop.f32.mrf.mxu0
  %v3790 = vpop.f32.mrf.mxu0
  %v3791 = vadd.f32 %v3563, %v3790
  %v3792 = vpop.f32.mrf.mxu0
  %3793 = vmatprep.mubr.bf16.mxu0 0
  %3794 = vmatmul.mubr.bf16.gmra.mxu0 %v3607
  %v3795 = vpop.f32.mrf.mxu0
  %v3796 = vadd.f32 %v3563, %v3795
  %v3797 = vpop.f32.mrf.mxu0
  %v3798 = vpop.f32.mrf.mxu0
  %v3799 = vadd.f32 %v3563, %v3798
  %v3800 = vpop.f32.mrf.mxu0
  %3801 = vmatprep.mubr.bf16.mxu0 0
  %3802 = vmatmul.mubr.bf16.gmra.mxu0 %v3609
  %v3803 = vpop.f32.mrf.mxu0
  %v3804 = vadd.f32 %v3563, %v3803
  %v3805 = vpop.f32.mrf.mxu0
  %v3806 = vpop.f32.mrf.mxu0
  %v3807 = vadd.f32 %v3563, %v3806
  %v3808 = vpop.f32.mrf.mxu0
  %3809 = vmatprep.mubr.bf16.mxu0 0
  %3810 = vmatmul.mubr.bf16.gmra.mxu0 %v3611
  %v3811 = vpop.f32.mrf.mxu0
  %v3812 = vadd.f32 %v3563, %v3811
  %v3813 = vpop.f32.mrf.mxu0
  %v3814 = vpop.f32.mrf.mxu0
  %v3815 = vadd.f32 %v3563, %v3814
  %v3816 = vpop.f32.mrf.mxu0
  %3817 = vmatprep.mubr.bf16.mxu0 0
  %3818 = vmatmul.mubr.bf16.gmra.mxu0 %v3613
  %v3819 = vpop.f32.mrf.mxu0
  %v3820 = vadd.f32 %v3563, %v3819
  %v3821 = vpop.f32.mrf.mxu0
  %v3822 = vpop.f32.mrf.mxu0
  %v3823 = vadd.f32 %v3563, %v3822
  %v3824 = vpop.f32.mrf.mxu0
  %3825 = vmatprep.mubr.bf16.mxu0 0
  %3826 = vmatmul.mubr.bf16.gmra.mxu0 %v3615
  %v3827 = vpop.f32.mrf.mxu0
  %v3828 = vadd.f32 %v3563, %v3827
  %v3829 = vpop.f32.mrf.mxu0
  %v3830 = vpop.f32.mrf.mxu0
  %v3831 = vadd.f32 %v3563, %v3830
  %v3832 = vpop.f32.mrf.mxu0
  %3833 = vmatprep.mubr.bf16.mxu0 0
  %3834 = vmatmul.mubr.bf16.gmra.mxu0 %v3617
  %v3835 = vpop.f32.mrf.mxu0
  %v3836 = vadd.f32 %v3563, %v3835
  %v3837 = vpop.f32.mrf.mxu0
  %v3838 = vpop.f32.mrf.mxu0
  %v3839 = vadd.f32 %v3563, %v3838
  %v3840 = vpop.f32.mrf.mxu0
  %3841 = vmatprep.mubr.bf16.mxu0 0
  %3842 = vmatmul.mubr.bf16.gmra.mxu0 %v3619
  %v3843 = vpop.f32.mrf.mxu0
  %v3844 = vadd.f32 %v3563, %v3843
  %v3845 = vpop.f32.mrf.mxu0
  %v3846 = vpop.f32.mrf.mxu0
  %v3847 = vadd.f32 %v3563, %v3846
  %v3848 = vpop.f32.mrf.mxu0
  %3849 = vmatprep.mubr.bf16.mxu0 0
  %3850 = vmatmul.mubr.bf16.gmra.mxu0 %v3621
  %v3851 = vpop.f32.mrf.mxu0
  %v3852 = vadd.f32 %v3563, %v3851
  %v3853 = vpop.f32.mrf.mxu0
  %v3854 = vpop.f32.mrf.mxu0
  %v3855 = vadd.f32 %v3563, %v3854
  %v3856 = vpop.f32.mrf.mxu0
  %3857 = vmatprep.mubr.bf16.mxu0 0
  %3858 = vmatmul.mubr.bf16.gmra.mxu0 %v3623
  %v3859 = vpop.f32.mrf.mxu0
  %v3860 = vadd.f32 %v3563, %v3859
  %v3861 = vpop.f32.mrf.mxu0
  %v3862 = vpop.f32.mrf.mxu0
  %v3863 = vadd.f32 %v3563, %v3862
  %v3864 = vpop.f32.mrf.mxu0
  %3865 = vmatprep.mubr.bf16.mxu0 0
  %3866 = vmatmul.mubr.bf16.gmra.mxu0 %v3625
  %v3867 = vpop.f32.mrf.mxu0
  %v3868 = vadd.f32 %v3563, %v3867
  %v3869 = vpop.f32.mrf.mxu0
  %v3870 = vpop.f32.mrf.mxu0
  %v3871 = vadd.f32 %v3563, %v3870
  %v3872 = vpop.f32.mrf.mxu0
  %3873 = vmatprep.mubr.bf16.mxu0 0
  %3874 = vmatmul.mubr.bf16.gmra.mxu0 %v3627
  %v3875 = vpop.f32.mrf.mxu0
  %v3876 = vadd.f32 %v3563, %v3875
  %v3877 = vpop.f32.mrf.mxu0
  %v3878 = vpop.f32.mrf.mxu0
  %v3879 = vadd.f32 %v3563, %v3878
  %v3880 = vpop.f32.mrf.mxu0
  %3881 = vmatprep.mubr.bf16.mxu0 0
  %3882 = vmatmul.mubr.bf16.gmra.mxu0 %v3629
  %v3883 = vpop.f32.mrf.mxu0
  %v3884 = vadd.f32 %v3563, %v3883
  %v3885 = vpop.f32.mrf.mxu0
  %v3886 = vpop.f32.mrf.mxu0
  %v3887 = vadd.f32 %v3563, %v3886
  %v3888 = vpop.f32.mrf.mxu0
  %3889 = vmatprep.mubr.bf16.mxu0 0
  %3890 = vmatmul.mubr.bf16.gmra.mxu0 %v3631
  %v3891 = vpop.f32.mrf.mxu0
  %v3892 = vadd.f32 %v3563, %v3891
  %v3893 = vpop.f32.mrf.mxu0
  %v3894 = vpop.f32.mrf.mxu0
  %v3895 = vadd.f32 %v3563, %v3894
  %v3896 = vpop.f32.mrf.mxu0
  %3897 = vmatprep.mubr.bf16.mxu0 0
  %3898 = vmatmul.mubr.bf16.gmra.mxu0 %v3633
  %v3899 = vpop.f32.mrf.mxu0
  %v3900 = vadd.f32 %v3563, %v3899
  %v3901 = vpop.f32.mrf.mxu0
  %v3902 = vpop.f32.mrf.mxu0
  %v3903 = vadd.f32 %v3563, %v3902
  %v3904 = vpop.f32.mrf.mxu0
  %3905 = vmatprep.mubr.bf16.mxu0 0
  %3906 = vmatmul.mubr.bf16.gmra.mxu0 %v3635
  %v3907 = vpop.f32.mrf.mxu0
  %v3908 = vadd.f32 %v3563, %v3907
  %v3909 = vpop.f32.mrf.mxu0
  %v3910 = vpop.f32.mrf.mxu0
  %v3911 = vadd.f32 %v3563, %v3910
  %v3912 = vpop.f32.mrf.mxu0
  %3913 = vmatprep.mubr.bf16.mxu0 0
  %3914 = vmatmul.mubr.bf16.gmra.mxu0 %v3637
  %v3915 = vpop.f32.mrf.mxu0
  %v3916 = vadd.f32 %v3563, %v3915
  %v3917 = vpop.f32.mrf.mxu0
  %v3918 = vpop.f32.mrf.mxu0
  %v3919 = vadd.f32 %v3563, %v3918
  %v3920 = vpop.f32.mrf.mxu0
  %3921 = vmatprep.mubr.bf16.mxu0 0
  %3922 = vmatmul.mubr.bf16.gmra.mxu0 %v3639
  %v3923 = vpop.f32.mrf.mxu0
  %v3924 = vadd.f32 %v3563, %v3923
  %v3925 = vpop.f32.mrf.mxu0
  %v3926 = vpop.f32.mrf.mxu0
  %v3927 = vadd.f32 %v3563, %v3926
  %v3928 = vpop.f32.mrf.mxu0
  %3929 = vmatprep.mubr.bf16.mxu0 0
  %3930 = vmatmul.mubr.bf16.gmra.mxu0 %v3641
  %v3931 = vpop.f32.mrf.mxu0
  %v3932 = vadd.f32 %v3563, %v3931
  %v3933 = vpop.f32.mrf.mxu0
  %v3934 = vpop.f32.mrf.mxu0
  %v3935 = vadd.f32 %v3563, %v3934
  %v3936 = vpop.f32.mrf.mxu0
  %3937 = vmatprep.mubr.bf16.mxu0 0
  %3938 = vmatmul.mubr.bf16.gmra.mxu0 %v3643
  %v3939 = vpop.f32.mrf.mxu0
  %v3940 = vadd.f32 %v3563, %v3939
  %v3941 = vpop.f32.mrf.mxu0
  %v3942 = vpop.f32.mrf.mxu0
  %v3943 = vadd.f32 %v3563, %v3942
  %v3944 = vpop.f32.mrf.mxu0
  %3945 = vmatprep.mubr.bf16.mxu0 0
  %3946 = vmatmul.mubr.bf16.gmra.mxu0 %v3645
  %v3947 = vpop.f32.mrf.mxu0
  %v3948 = vadd.f32 %v3563, %v3947
  %v3949 = vpop.f32.mrf.mxu0
  %v3950 = vpop.f32.mrf.mxu0
  %v3951 = vadd.f32 %v3563, %v3950
  %v3952 = vpop.f32.mrf.mxu0
  %3953 = vmatprep.mubr.bf16.mxu0 0
  %3954 = vmatmul.mubr.bf16.gmra.mxu0 %v3647
  %v3955 = vpop.f32.mrf.mxu0
  %v3956 = vadd.f32 %v3563, %v3955
  %v3957 = vpop.f32.mrf.mxu0
  %v3958 = vpop.f32.mrf.mxu0
  %v3959 = vadd.f32 %v3563, %v3958
  %v3960 = vpop.f32.mrf.mxu0
  %3961 = vmatprep.mubr.bf16.mxu0 0
  %3962 = vmatmul.mubr.bf16.gmra.mxu0 %v3649
  %v3963 = vpop.f32.mrf.mxu0
  %v3964 = vadd.f32 %v3563, %v3963
  %v3965 = vpop.f32.mrf.mxu0
  %v3966 = vpop.f32.mrf.mxu0
  %v3967 = vadd.f32 %v3563, %v3966
  %v3968 = vpop.f32.mrf.mxu0
  %3969 = vmatprep.mubr.bf16.mxu0 0
  %3970 = vmatmul.mubr.bf16.gmra.mxu0 %v3651
  %v3971 = vpop.f32.mrf.mxu0
  %v3972 = vadd.f32 %v3563, %v3971
  %v3973 = vpop.f32.mrf.mxu0
  %v3974 = vpop.f32.mrf.mxu0
  %v3975 = vadd.f32 %v3563, %v3974
  %v3976 = vpop.f32.mrf.mxu0
  %3977 = vdwg.mxu0
  %v3978 = vmax.f32 %v3692, 0.0
  %v3979 = vmax.f32 %v3695, 0.0
  %v3980 = vmax.f32 %v3700, 0.0
  %v3981 = vmax.f32 %v3703, 0.0
  %v3982 = vmax.f32 %v3708, 0.0
  %v3983 = vmax.f32 %v3711, 0.0
  %v3984 = vmax.f32 %v3716, 0.0
  %v3985 = vmax.f32 %v3719, 0.0
  %v3986 = vmax.f32 %v3724, 0.0
  %v3987 = vmax.f32 %v3727, 0.0
  %v3988 = vmax.f32 %v3732, 0.0
  %v3989 = vmax.f32 %v3735, 0.0
  %v3990 = vmax.f32 %v3740, 0.0
  %v3991 = vmax.f32 %v3743, 0.0
  %v3992 = vmax.f32 %v3748, 0.0
  %v3993 = vmax.f32 %v3751, 0.0
  %v3994 = vmax.f32 %v3756, 0.0
  %v3995 = vmax.f32 %v3759, 0.0
  %v3996 = vmax.f32 %v3764, 0.0
  %v3997 = vmax.f32 %v3767, 0.0
  %v3998 = vmax.f32 %v3772, 0.0
  %v3999 = vmax.f32 %v3775, 0.0
  %v4000 = vmax.f32 %v3780, 0.0
  %v4001 = vmax.f32 %v3783, 0.0
  %v4002 = vmax.f32 %v3788, 0.0
  %v4003 = vmax.f32 %v3791, 0.0
  %v4004 = vmax.f32 %v3796, 0.0
  %v4005 = vmax.f32 %v3799, 0.0
  %v4006 = vmax.f32 %v3804, 0.0
  %v4007 = vmax.f32 %v3807, 0.0
  %v4008 = vmax.f32 %v3812, 0.0
  %v4009 = vmax.f32 %v3815, 0.0
  %v4010 = vmax.f32 %v3820, 0.0
  %v4011 = vmax.f32 %v3823, 0.0
  %v4012 = vmax.f32 %v3828, 0.0
  %v4013 = vmax.f32 %v3831, 0.0
  %v4014 = vmax.f32 %v3836, 0.0
  %v4015 = vmax.f32 %v3839, 0.0
  %v4016 = vmax.f32 %v3844, 0.0
  %v4017 = vmax.f32 %v3847, 0.0
  %v4018 = vmax.f32 %v3852, 0.0
  %v4019 = vmax.f32 %v3855, 0.0
  %v4020 = vmax.f32 %v3860, 0.0
  %v4021 = vmax.f32 %v3863, 0.0
  %v4022 = vmax.f32 %v3868, 0.0
  %v4023 = vmax.f32 %v3871, 0.0
  %v4024 = vmax.f32 %v3876, 0.0
  %v4025 = vmax.f32 %v3879, 0.0
  %v4026 = vmax.f32 %v3884, 0.0
  %v4027 = vmax.f32 %v3887, 0.0
  %v4028 = vmax.f32 %v3892, 0.0
  %v4029 = vmax.f32 %v3895, 0.0
  %v4030 = vmax.f32 %v3900, 0.0
  %v4031 = vmax.f32 %v3903, 0.0
  %v4032 = vmax.f32 %v3908, 0.0
  %v4033 = vmax.f32 %v3911, 0.0
  %v4034 = vmax.f32 %v3916, 0.0
  %v4035 = vmax.f32 %v3919, 0.0
  %v4036 = vmax.f32 %v3924, 0.0
  %v4037 = vmax.f32 %v3927, 0.0
  %v4038 = vmax.f32 %v3932, 0.0
  %v4039 = vmax.f32 %v3935, 0.0
  %v4040 = vmax.f32 %v3940, 0.0
  %v4041 = vmax.f32 %v3943, 0.0
  %v4042 = vmax.f32 %v3948, 0.0
  %v4043 = vmax.f32 %v3951, 0.0
  %v4044 = vmax.f32 %v3956, 0.0
  %v4045 = vmax.f32 %v3959, 0.0
  %v4046 = vmax.f32 %v3964, 0.0
  %v4047 = vmax.f32 %v3967, 0.0
  %v4048 = vmax.f32 %v3972, 0.0
  %v4049 = vmax.f32 %v3975, 0.0
  %v4122 = vcombine.high %v3978, %v3978
  %v4124 = vunpack.c.l.s4 1983009808
  %v4125 = vunpack.c.0.s8 %v4124
  %v4126 = vlaneseq
  %v4127 = vshrl.u32 %v4126, 7
  %v4128 = vsub.s32 %v4125, %v4127
  %v4129 = vrot.slane %v3978, %v4128
  %v4131 = vunpack.c.l.s4 1983009808
  %v4132 = vunpack.c.0.s8 %v4131
  %v4133 = vlaneseq
  %v4134 = vshrl.u32 %v4133, 7
  %v4135 = vsub.s32 %v4132, %v4134
  %v4136 = vrot.slane %v4122, %v4135
  %v4137 = vcombine.high %v4129, %v4129
  %v4138 = vcombine.high %v4136, %v4136
  %v4139 = vcombine.high %v3979, %v3979
  %v4141 = vunpack.c.l.s4 1983009808
  %v4142 = vunpack.c.0.s8 %v4141
  %v4143 = vlaneseq
  %v4144 = vshrl.u32 %v4143, 7
  %v4145 = vsub.s32 %v4142, %v4144
  %v4146 = vrot.slane %v3979, %v4145
  %v4148 = vunpack.c.l.s4 1983009808
  %v4149 = vunpack.c.0.s8 %v4148
  %v4150 = vlaneseq
  %v4151 = vshrl.u32 %v4150, 7
  %v4152 = vsub.s32 %v4149, %v4151
  %v4153 = vrot.slane %v4139, %v4152
  %v4154 = vcombine.high %v4146, %v4146
  %v4155 = vcombine.high %v4153, %v4153
  %v4156 = vcombine.high %v3980, %v3980
  %v4158 = vunpack.c.l.s4 1983009808
  %v4159 = vunpack.c.0.s8 %v4158
  %v4160 = vlaneseq
  %v4161 = vshrl.u32 %v4160, 7
  %v4162 = vsub.s32 %v4159, %v4161
  %v4163 = vrot.slane %v3980, %v4162
  %v4165 = vunpack.c.l.s4 1983009808
  %v4166 = vunpack.c.0.s8 %v4165
  %v4167 = vlaneseq
  %v4168 = vshrl.u32 %v4167, 7
  %v4169 = vsub.s32 %v4166, %v4168
  %v4170 = vrot.slane %v4156, %v4169
  %v4171 = vcombine.high %v4163, %v4163
  %v4172 = vcombine.high %v4170, %v4170
  %v4173 = vcombine.high %v3981, %v3981
  %v4175 = vunpack.c.l.s4 1983009808
  %v4176 = vunpack.c.0.s8 %v4175
  %v4177 = vlaneseq
  %v4178 = vshrl.u32 %v4177, 7
  %v4179 = vsub.s32 %v4176, %v4178
  %v4180 = vrot.slane %v3981, %v4179
  %v4182 = vunpack.c.l.s4 1983009808
  %v4183 = vunpack.c.0.s8 %v4182
  %v4184 = vlaneseq
  %v4185 = vshrl.u32 %v4184, 7
  %v4186 = vsub.s32 %v4183, %v4185
  %v4187 = vrot.slane %v4173, %v4186
  %v4188 = vcombine.high %v4180, %v4180
  %v4189 = vcombine.high %v4187, %v4187
  %v4190 = vcombine.high %v3982, %v3982
  %v4192 = vunpack.c.l.s4 1983009808
  %v4193 = vunpack.c.0.s8 %v4192
  %v4194 = vlaneseq
  %v4195 = vshrl.u32 %v4194, 7
  %v4196 = vsub.s32 %v4193, %v4195
  %v4197 = vrot.slane %v3982, %v4196
  %v4199 = vunpack.c.l.s4 1983009808
  %v4200 = vunpack.c.0.s8 %v4199
  %v4201 = vlaneseq
  %v4202 = vshrl.u32 %v4201, 7
  %v4203 = vsub.s32 %v4200, %v4202
  %v4204 = vrot.slane %v4190, %v4203
  %v4205 = vcombine.high %v4204, %v4204
  %v4206 = vcombine.high %v3983, %v3983
  %v4208 = vunpack.c.l.s4 1983009808
  %v4209 = vunpack.c.0.s8 %v4208
  %v4210 = vlaneseq
  %v4211 = vshrl.u32 %v4210, 7
  %v4212 = vsub.s32 %v4209, %v4211
  %v4213 = vrot.slane %v3983, %v4212
  %v4215 = vunpack.c.l.s4 1983009808
  %v4216 = vunpack.c.0.s8 %v4215
  %v4217 = vlaneseq
  %v4218 = vshrl.u32 %v4217, 7
  %v4219 = vsub.s32 %v4216, %v4218
  %v4220 = vrot.slane %v4206, %v4219
  %v4221 = vcombine.high %v4213, %v4213
  %v4222 = vcombine.high %v4220, %v4220
  %v4223 = vcombine.high %v3984, %v3984
  %v4225 = vunpack.c.l.s4 1983009808
  %v4226 = vunpack.c.0.s8 %v4225
  %v4227 = vlaneseq
  %v4228 = vshrl.u32 %v4227, 7
  %v4229 = vsub.s32 %v4226, %v4228
  %v4230 = vrot.slane %v3984, %v4229
  %v4232 = vunpack.c.l.s4 1983009808
  %v4233 = vunpack.c.0.s8 %v4232
  %v4234 = vlaneseq
  %v4235 = vshrl.u32 %v4234, 7
  %v4236 = vsub.s32 %v4233, %v4235
  %v4237 = vrot.slane %v4223, %v4236
  %v4238 = vcombine.high %v4230, %v4230
  %v4239 = vcombine.high %v4237, %v4237
  %v4240 = vcombine.high %v3985, %v3985
  %v4242 = vunpack.c.l.s4 1983009808
  %v4243 = vunpack.c.0.s8 %v4242
  %v4244 = vlaneseq
  %v4245 = vshrl.u32 %v4244, 7
  %v4246 = vsub.s32 %v4243, %v4245
  %v4247 = vrot.slane %v3985, %v4246
  %v4249 = vunpack.c.l.s4 1983009808
  %v4250 = vunpack.c.0.s8 %v4249
  %v4251 = vlaneseq
  %v4252 = vshrl.u32 %v4251, 7
  %v4253 = vsub.s32 %v4250, %v4252
  %v4254 = vrot.slane %v4240, %v4253
  %v4255 = vcombine.high %v4247, %v4247
  %v4256 = vcombine.high %v4254, %v4254
  %v4257 = vcombine.high %v3986, %v3986
  %v4259 = vunpack.c.l.s4 1983009808
  %v4260 = vunpack.c.0.s8 %v4259
  %v4261 = vlaneseq
  %v4262 = vshrl.u32 %v4261, 7
  %v4263 = vsub.s32 %v4260, %v4262
  %v4264 = vrot.slane %v3986, %v4263
  %v4266 = vunpack.c.l.s4 1983009808
  %v4267 = vunpack.c.0.s8 %v4266
  %v4268 = vlaneseq
  %v4269 = vshrl.u32 %v4268, 7
  %v4270 = vsub.s32 %v4267, %v4269
  %v4271 = vrot.slane %v4257, %v4270
  %v4272 = vcombine.high %v4264, %v4264
  %v4273 = vcombine.high %v3987, %v3987
  %v4275 = vunpack.c.l.s4 1983009808
  %v4276 = vunpack.c.0.s8 %v4275
  %v4277 = vlaneseq
  %v4278 = vshrl.u32 %v4277, 7
  %v4279 = vsub.s32 %v4276, %v4278
  %v4280 = vrot.slane %v3987, %v4279
  %v4282 = vunpack.c.l.s4 1983009808
  %v4283 = vunpack.c.0.s8 %v4282
  %v4284 = vlaneseq
  %v4285 = vshrl.u32 %v4284, 7
  %v4286 = vsub.s32 %v4283, %v4285
  %v4287 = vrot.slane %v4273, %v4286
  %v4288 = vcombine.high %v4280, %v4280
  %v4289 = vcombine.high %v4287, %v4287
  %v4290 = vcombine.high %v3988, %v3988
  %v4292 = vunpack.c.l.s4 1983009808
  %v4293 = vunpack.c.0.s8 %v4292
  %v4294 = vlaneseq
  %v4295 = vshrl.u32 %v4294, 7
  %v4296 = vsub.s32 %v4293, %v4295
  %v4297 = vrot.slane %v3988, %v4296
  %v4299 = vunpack.c.l.s4 1983009808
  %v4300 = vunpack.c.0.s8 %v4299
  %v4301 = vlaneseq
  %v4302 = vshrl.u32 %v4301, 7
  %v4303 = vsub.s32 %v4300, %v4302
  %v4304 = vrot.slane %v4290, %v4303
  %v4305 = vcombine.high %v4297, %v4297
  %v4306 = vcombine.high %v4304, %v4304
  %v4307 = vcombine.high %v3989, %v3989
  %v4309 = vunpack.c.l.s4 1983009808
  %v4310 = vunpack.c.0.s8 %v4309
  %v4311 = vlaneseq
  %v4312 = vshrl.u32 %v4311, 7
  %v4313 = vsub.s32 %v4310, %v4312
  %v4314 = vrot.slane %v3989, %v4313
  %v4316 = vunpack.c.l.s4 1983009808
  %v4317 = vunpack.c.0.s8 %v4316
  %v4318 = vlaneseq
  %v4319 = vshrl.u32 %v4318, 7
  %v4320 = vsub.s32 %v4317, %v4319
  %v4321 = vrot.slane %v4307, %v4320
  %v4322 = vcombine.high %v4314, %v4314
  %v4323 = vcombine.high %v4321, %v4321
  %v4324 = vcombine.high %v3990, %v3990
  %v4326 = vunpack.c.l.s4 1983009808
  %v4327 = vunpack.c.0.s8 %v4326
  %v4328 = vlaneseq
  %v4329 = vshrl.u32 %v4328, 7
  %v4330 = vsub.s32 %v4327, %v4329
  %v4331 = vrot.slane %v3990, %v4330
  %v4333 = vunpack.c.l.s4 1983009808
  %v4334 = vunpack.c.0.s8 %v4333
  %v4335 = vlaneseq
  %v4336 = vshrl.u32 %v4335, 7
  %v4337 = vsub.s32 %v4334, %v4336
  %v4338 = vrot.slane %v4324, %v4337
  %v4339 = vcombine.high %v4331, %v4331
  %v4340 = vcombine.high %v4338, %v4338
  %v4341 = vcombine.high %v3991, %v3991
  %v4343 = vunpack.c.l.s4 1983009808
  %v4344 = vunpack.c.0.s8 %v4343
  %v4345 = vlaneseq
  %v4346 = vshrl.u32 %v4345, 7
  %v4347 = vsub.s32 %v4344, %v4346
  %v4348 = vrot.slane %v3991, %v4347
  %v4350 = vunpack.c.l.s4 1983009808
  %v4351 = vunpack.c.0.s8 %v4350
  %v4352 = vlaneseq
  %v4353 = vshrl.u32 %v4352, 7
  %v4354 = vsub.s32 %v4351, %v4353
  %v4355 = vrot.slane %v4341, %v4354
  %v4356 = vcombine.high %v4355, %v4355
  %v4357 = vcombine.high %v3992, %v3992
  %v4359 = vunpack.c.l.s4 1983009808
  %v4360 = vunpack.c.0.s8 %v4359
  %v4361 = vlaneseq
  %v4362 = vshrl.u32 %v4361, 7
  %v4363 = vsub.s32 %v4360, %v4362
  %v4364 = vrot.slane %v3992, %v4363
  %v4366 = vunpack.c.l.s4 1983009808
  %v4367 = vunpack.c.0.s8 %v4366
  %v4368 = vlaneseq
  %v4369 = vshrl.u32 %v4368, 7
  %v4370 = vsub.s32 %v4367, %v4369
  %v4371 = vrot.slane %v4357, %v4370
  %v4372 = vcombine.high %v4364, %v4364
  %v4373 = vcombine.high %v4371, %v4371
  %v4374 = vcombine.high %v3993, %v3993
  %v4376 = vunpack.c.l.s4 1983009808
  %v4377 = vunpack.c.0.s8 %v4376
  %v4378 = vlaneseq
  %v4379 = vshrl.u32 %v4378, 7
  %v4380 = vsub.s32 %v4377, %v4379
  %v4381 = vrot.slane %v3993, %v4380
  %v4383 = vunpack.c.l.s4 1983009808
  %v4384 = vunpack.c.0.s8 %v4383
  %v4385 = vlaneseq
  %v4386 = vshrl.u32 %v4385, 7
  %v4387 = vsub.s32 %v4384, %v4386
  %v4388 = vrot.slane %v4374, %v4387
  %v4389 = vcombine.high %v4381, %v4381
  %v4390 = vcombine.high %v4388, %v4388
  %v4391 = vcombine.high %v3994, %v3994
  %v4393 = vunpack.c.l.s4 1983009808
  %v4394 = vunpack.c.0.s8 %v4393
  %v4395 = vlaneseq
  %v4396 = vshrl.u32 %v4395, 7
  %v4397 = vsub.s32 %v4394, %v4396
  %v4398 = vrot.slane %v3994, %v4397
  %v4400 = vunpack.c.l.s4 1983009808
  %v4401 = vunpack.c.0.s8 %v4400
  %v4402 = vlaneseq
  %v4403 = vshrl.u32 %v4402, 7
  %v4404 = vsub.s32 %v4401, %v4403
  %v4405 = vrot.slane %v4391, %v4404
  %v4406 = vcombine.high %v4398, %v4398
  %v4407 = vcombine.high %v4405, %v4405
  %v4408 = vcombine.high %v3995, %v3995
  %v4410 = vunpack.c.l.s4 1983009808
  %v4411 = vunpack.c.0.s8 %v4410
  %v4412 = vlaneseq
  %v4413 = vshrl.u32 %v4412, 7
  %v4414 = vsub.s32 %v4411, %v4413
  %v4415 = vrot.slane %v3995, %v4414
  %v4417 = vunpack.c.l.s4 1983009808
  %v4418 = vunpack.c.0.s8 %v4417
  %v4419 = vlaneseq
  %v4420 = vshrl.u32 %v4419, 7
  %v4421 = vsub.s32 %v4418, %v4420
  %v4422 = vrot.slane %v4408, %v4421
  %v4423 = vcombine.high %v4415, %v4415
  %v4424 = vcombine.high %v3996, %v3996
  %v4426 = vunpack.c.l.s4 1983009808
  %v4427 = vunpack.c.0.s8 %v4426
  %v4428 = vlaneseq
  %v4429 = vshrl.u32 %v4428, 7
  %v4430 = vsub.s32 %v4427, %v4429
  %v4431 = vrot.slane %v3996, %v4430
  %v4433 = vunpack.c.l.s4 1983009808
  %v4434 = vunpack.c.0.s8 %v4433
  %v4435 = vlaneseq
  %v4436 = vshrl.u32 %v4435, 7
  %v4437 = vsub.s32 %v4434, %v4436
  %v4438 = vrot.slane %v4424, %v4437
  %v4439 = vcombine.high %v4431, %v4431
  %v4440 = vcombine.high %v4438, %v4438
  %v4441 = vcombine.high %v3997, %v3997
  %v4443 = vunpack.c.l.s4 1983009808
  %v4444 = vunpack.c.0.s8 %v4443
  %v4445 = vlaneseq
  %v4446 = vshrl.u32 %v4445, 7
  %v4447 = vsub.s32 %v4444, %v4446
  %v4448 = vrot.slane %v3997, %v4447
  %v4450 = vunpack.c.l.s4 1983009808
  %v4451 = vunpack.c.0.s8 %v4450
  %v4452 = vlaneseq
  %v4453 = vshrl.u32 %v4452, 7
  %v4454 = vsub.s32 %v4451, %v4453
  %v4455 = vrot.slane %v4441, %v4454
  %v4456 = vcombine.high %v4448, %v4448
  %v4457 = vcombine.high %v4455, %v4455
  %v4458 = vcombine.high %v3998, %v3998
  %v4460 = vunpack.c.l.s4 1983009808
  %v4461 = vunpack.c.0.s8 %v4460
  %v4462 = vlaneseq
  %v4463 = vshrl.u32 %v4462, 7
  %v4464 = vsub.s32 %v4461, %v4463
  %v4465 = vrot.slane %v3998, %v4464
  %v4467 = vunpack.c.l.s4 1983009808
  %v4468 = vunpack.c.0.s8 %v4467
  %v4469 = vlaneseq
  %v4470 = vshrl.u32 %v4469, 7
  %v4471 = vsub.s32 %v4468, %v4470
  %v4472 = vrot.slane %v4458, %v4471
  %v4473 = vcombine.high %v4465, %v4465
  %v4474 = vcombine.high %v4472, %v4472
  %v4475 = vcombine.high %v3999, %v3999
  %v4477 = vunpack.c.l.s4 1983009808
  %v4478 = vunpack.c.0.s8 %v4477
  %v4479 = vlaneseq
  %v4480 = vshrl.u32 %v4479, 7
  %v4481 = vsub.s32 %v4478, %v4480
  %v4482 = vrot.slane %v3999, %v4481
  %v4484 = vunpack.c.l.s4 1983009808
  %v4485 = vunpack.c.0.s8 %v4484
  %v4486 = vlaneseq
  %v4487 = vshrl.u32 %v4486, 7
  %v4488 = vsub.s32 %v4485, %v4487
  %v4489 = vrot.slane %v4475, %v4488
  %v4490 = vcombine.high %v4482, %v4482
  %v4491 = vcombine.high %v4489, %v4489
  %v4492 = vcombine.high %v4000, %v4000
  %v4494 = vunpack.c.l.s4 1983009808
  %v4495 = vunpack.c.0.s8 %v4494
  %v4496 = vlaneseq
  %v4497 = vshrl.u32 %v4496, 7
  %v4498 = vsub.s32 %v4495, %v4497
  %v4499 = vrot.slane %v4000, %v4498
  %v4501 = vunpack.c.l.s4 1983009808
  %v4502 = vunpack.c.0.s8 %v4501
  %v4503 = vlaneseq
  %v4504 = vshrl.u32 %v4503, 7
  %v4505 = vsub.s32 %v4502, %v4504
  %v4506 = vrot.slane %v4492, %v4505
  %v4507 = vcombine.high %v4506, %v4506
  %v4508 = vcombine.high %v4001, %v4001
  %v4510 = vunpack.c.l.s4 1983009808
  %v4511 = vunpack.c.0.s8 %v4510
  %v4512 = vlaneseq
  %v4513 = vshrl.u32 %v4512, 7
  %v4514 = vsub.s32 %v4511, %v4513
  %v4515 = vrot.slane %v4001, %v4514
  %v4517 = vunpack.c.l.s4 1983009808
  %v4518 = vunpack.c.0.s8 %v4517
  %v4519 = vlaneseq
  %v4520 = vshrl.u32 %v4519, 7
  %v4521 = vsub.s32 %v4518, %v4520
  %v4522 = vrot.slane %v4508, %v4521
  %v4523 = vcombine.high %v4515, %v4515
  %v4524 = vcombine.high %v4522, %v4522
  %v4525 = vcombine.high %v4002, %v4002
  %v4527 = vunpack.c.l.s4 1983009808
  %v4528 = vunpack.c.0.s8 %v4527
  %v4529 = vlaneseq
  %v4530 = vshrl.u32 %v4529, 7
  %v4531 = vsub.s32 %v4528, %v4530
  %v4532 = vrot.slane %v4002, %v4531
  %v4534 = vunpack.c.l.s4 1983009808
  %v4535 = vunpack.c.0.s8 %v4534
  %v4536 = vlaneseq
  %v4537 = vshrl.u32 %v4536, 7
  %v4538 = vsub.s32 %v4535, %v4537
  %v4539 = vrot.slane %v4525, %v4538
  %v4540 = vcombine.high %v4532, %v4532
  %v4541 = vcombine.high %v4539, %v4539
  %v4542 = vcombine.high %v4003, %v4003
  %v4544 = vunpack.c.l.s4 1983009808
  %v4545 = vunpack.c.0.s8 %v4544
  %v4546 = vlaneseq
  %v4547 = vshrl.u32 %v4546, 7
  %v4548 = vsub.s32 %v4545, %v4547
  %v4549 = vrot.slane %v4003, %v4548
  %v4551 = vunpack.c.l.s4 1983009808
  %v4552 = vunpack.c.0.s8 %v4551
  %v4553 = vlaneseq
  %v4554 = vshrl.u32 %v4553, 7
  %v4555 = vsub.s32 %v4552, %v4554
  %v4556 = vrot.slane %v4542, %v4555
  %v4557 = vcombine.high %v4549, %v4549
  %v4558 = vcombine.high %v4556, %v4556
  %v4559 = vcombine.high %v4004, %v4004
  %v4561 = vunpack.c.l.s4 1983009808
  %v4562 = vunpack.c.0.s8 %v4561
  %v4563 = vlaneseq
  %v4564 = vshrl.u32 %v4563, 7
  %v4565 = vsub.s32 %v4562, %v4564
  %v4566 = vrot.slane %v4004, %v4565
  %v4568 = vunpack.c.l.s4 1983009808
  %v4569 = vunpack.c.0.s8 %v4568
  %v4570 = vlaneseq
  %v4571 = vshrl.u32 %v4570, 7
  %v4572 = vsub.s32 %v4569, %v4571
  %v4573 = vrot.slane %v4559, %v4572
  %v4574 = vcombine.high %v4566, %v4566
  %v4575 = vcombine.high %v4005, %v4005
  %v4577 = vunpack.c.l.s4 1983009808
  %v4578 = vunpack.c.0.s8 %v4577
  %v4579 = vlaneseq
  %v4580 = vshrl.u32 %v4579, 7
  %v4581 = vsub.s32 %v4578, %v4580
  %v4582 = vrot.slane %v4005, %v4581
  %v4584 = vunpack.c.l.s4 1983009808
  %v4585 = vunpack.c.0.s8 %v4584
  %v4586 = vlaneseq
  %v4587 = vshrl.u32 %v4586, 7
  %v4588 = vsub.s32 %v4585, %v4587
  %v4589 = vrot.slane %v4575, %v4588
  %v4590 = vcombine.high %v4582, %v4582
  %v4591 = vcombine.high %v4589, %v4589
  %v4592 = vcombine.high %v4006, %v4006
  %v4594 = vunpack.c.l.s4 1983009808
  %v4595 = vunpack.c.0.s8 %v4594
  %v4596 = vlaneseq
  %v4597 = vshrl.u32 %v4596, 7
  %v4598 = vsub.s32 %v4595, %v4597
  %v4599 = vrot.slane %v4006, %v4598
  %v4601 = vunpack.c.l.s4 1983009808
  %v4602 = vunpack.c.0.s8 %v4601
  %v4603 = vlaneseq
  %v4604 = vshrl.u32 %v4603, 7
  %v4605 = vsub.s32 %v4602, %v4604
  %v4606 = vrot.slane %v4592, %v4605
  %v4607 = vcombine.high %v4599, %v4599
  %v4608 = vcombine.high %v4606, %v4606
  %v4609 = vcombine.high %v4007, %v4007
  %v4611 = vunpack.c.l.s4 1983009808
  %v4612 = vunpack.c.0.s8 %v4611
  %v4613 = vlaneseq
  %v4614 = vshrl.u32 %v4613, 7
  %v4615 = vsub.s32 %v4612, %v4614
  %v4616 = vrot.slane %v4007, %v4615
  %v4618 = vunpack.c.l.s4 1983009808
  %v4619 = vunpack.c.0.s8 %v4618
  %v4620 = vlaneseq
  %v4621 = vshrl.u32 %v4620, 7
  %v4622 = vsub.s32 %v4619, %v4621
  %v4623 = vrot.slane %v4609, %v4622
  %v4624 = vcombine.high %v4616, %v4616
  %v4625 = vcombine.high %v4623, %v4623
  %v4626 = vcombine.high %v4008, %v4008
  %v4628 = vunpack.c.l.s4 1983009808
  %v4629 = vunpack.c.0.s8 %v4628
  %v4630 = vlaneseq
  %v4631 = vshrl.u32 %v4630, 7
  %v4632 = vsub.s32 %v4629, %v4631
  %v4633 = vrot.slane %v4008, %v4632
  %v4635 = vunpack.c.l.s4 1983009808
  %v4636 = vunpack.c.0.s8 %v4635
  %v4637 = vlaneseq
  %v4638 = vshrl.u32 %v4637, 7
  %v4639 = vsub.s32 %v4636, %v4638
  %v4640 = vrot.slane %v4626, %v4639
  %v4641 = vcombine.high %v4633, %v4633
  %v4642 = vcombine.high %v4640, %v4640
  %v4643 = vcombine.high %v4009, %v4009
  %v4645 = vunpack.c.l.s4 1983009808
  %v4646 = vunpack.c.0.s8 %v4645
  %v4647 = vlaneseq
  %v4648 = vshrl.u32 %v4647, 7
  %v4649 = vsub.s32 %v4646, %v4648
  %v4650 = vrot.slane %v4009, %v4649
  %v4652 = vunpack.c.l.s4 1983009808
  %v4653 = vunpack.c.0.s8 %v4652
  %v4654 = vlaneseq
  %v4655 = vshrl.u32 %v4654, 7
  %v4656 = vsub.s32 %v4653, %v4655
  %v4657 = vrot.slane %v4643, %v4656
  %v4658 = vcombine.high %v4657, %v4657
  %v4659 = vcombine.high %v4010, %v4010
  %v4661 = vunpack.c.l.s4 1983009808
  %v4662 = vunpack.c.0.s8 %v4661
  %v4663 = vlaneseq
  %v4664 = vshrl.u32 %v4663, 7
  %v4665 = vsub.s32 %v4662, %v4664
  %v4666 = vrot.slane %v4010, %v4665
  %v4668 = vunpack.c.l.s4 1983009808
  %v4669 = vunpack.c.0.s8 %v4668
  %v4670 = vlaneseq
  %v4671 = vshrl.u32 %v4670, 7
  %v4672 = vsub.s32 %v4669, %v4671
  %v4673 = vrot.slane %v4659, %v4672
  %v4674 = vcombine.high %v4666, %v4666
  %v4675 = vcombine.high %v4673, %v4673
  %v4676 = vcombine.high %v4011, %v4011
  %v4678 = vunpack.c.l.s4 1983009808
  %v4679 = vunpack.c.0.s8 %v4678
  %v4680 = vlaneseq
  %v4681 = vshrl.u32 %v4680, 7
  %v4682 = vsub.s32 %v4679, %v4681
  %v4683 = vrot.slane %v4011, %v4682
  %v4685 = vunpack.c.l.s4 1983009808
  %v4686 = vunpack.c.0.s8 %v4685
  %v4687 = vlaneseq
  %v4688 = vshrl.u32 %v4687, 7
  %v4689 = vsub.s32 %v4686, %v4688
  %v4690 = vrot.slane %v4676, %v4689
  %v4691 = vcombine.high %v4683, %v4683
  %v4692 = vcombine.high %v4690, %v4690
  %v4693 = vcombine.high %v4012, %v4012
  %v4695 = vunpack.c.l.s4 1983009808
  %v4696 = vunpack.c.0.s8 %v4695
  %v4697 = vlaneseq
  %v4698 = vshrl.u32 %v4697, 7
  %v4699 = vsub.s32 %v4696, %v4698
  %v4700 = vrot.slane %v4012, %v4699
  %v4702 = vunpack.c.l.s4 1983009808
  %v4703 = vunpack.c.0.s8 %v4702
  %v4704 = vlaneseq
  %v4705 = vshrl.u32 %v4704, 7
  %v4706 = vsub.s32 %v4703, %v4705
  %v4707 = vrot.slane %v4693, %v4706
  %v4708 = vcombine.high %v4700, %v4700
  %v4709 = vcombine.high %v4707, %v4707
  %v4710 = vcombine.high %v4013, %v4013
  %v4712 = vunpack.c.l.s4 1983009808
  %v4713 = vunpack.c.0.s8 %v4712
  %v4714 = vlaneseq
  %v4715 = vshrl.u32 %v4714, 7
  %v4716 = vsub.s32 %v4713, %v4715
  %v4717 = vrot.slane %v4013, %v4716
  %v4719 = vunpack.c.l.s4 1983009808
  %v4720 = vunpack.c.0.s8 %v4719
  %v4721 = vlaneseq
  %v4722 = vshrl.u32 %v4721, 7
  %v4723 = vsub.s32 %v4720, %v4722
  %v4724 = vrot.slane %v4710, %v4723
  %v4725 = vcombine.high %v4717, %v4717
  %v4726 = vcombine.high %v4014, %v4014
  %v4728 = vunpack.c.l.s4 1983009808
  %v4729 = vunpack.c.0.s8 %v4728
  %v4730 = vlaneseq
  %v4731 = vshrl.u32 %v4730, 7
  %v4732 = vsub.s32 %v4729, %v4731
  %v4733 = vrot.slane %v4014, %v4732
  %v4735 = vunpack.c.l.s4 1983009808
  %v4736 = vunpack.c.0.s8 %v4735
  %v4737 = vlaneseq
  %v4738 = vshrl.u32 %v4737, 7
  %v4739 = vsub.s32 %v4736, %v4738
  %v4740 = vrot.slane %v4726, %v4739
  %v4741 = vcombine.high %v4733, %v4733
  %v4742 = vcombine.high %v4740, %v4740
  %v4743 = vcombine.high %v4015, %v4015
  %v4745 = vunpack.c.l.s4 1983009808
  %v4746 = vunpack.c.0.s8 %v4745
  %v4747 = vlaneseq
  %v4748 = vshrl.u32 %v4747, 7
  %v4749 = vsub.s32 %v4746, %v4748
  %v4750 = vrot.slane %v4015, %v4749
  %v4752 = vunpack.c.l.s4 1983009808
  %v4753 = vunpack.c.0.s8 %v4752
  %v4754 = vlaneseq
  %v4755 = vshrl.u32 %v4754, 7
  %v4756 = vsub.s32 %v4753, %v4755
  %v4757 = vrot.slane %v4743, %v4756
  %v4758 = vcombine.high %v4750, %v4750
  %v4759 = vcombine.high %v4757, %v4757
  %v4760 = vcombine.high %v4016, %v4016
  %v4762 = vunpack.c.l.s4 1983009808
  %v4763 = vunpack.c.0.s8 %v4762
  %v4764 = vlaneseq
  %v4765 = vshrl.u32 %v4764, 7
  %v4766 = vsub.s32 %v4763, %v4765
  %v4767 = vrot.slane %v4016, %v4766
  %v4769 = vunpack.c.l.s4 1983009808
  %v4770 = vunpack.c.0.s8 %v4769
  %v4771 = vlaneseq
  %v4772 = vshrl.u32 %v4771, 7
  %v4773 = vsub.s32 %v4770, %v4772
  %v4774 = vrot.slane %v4760, %v4773
  %v4775 = vcombine.high %v4767, %v4767
  %v4776 = vcombine.high %v4774, %v4774
  %v4777 = vcombine.high %v4017, %v4017
  %v4779 = vunpack.c.l.s4 1983009808
  %v4780 = vunpack.c.0.s8 %v4779
  %v4781 = vlaneseq
  %v4782 = vshrl.u32 %v4781, 7
  %v4783 = vsub.s32 %v4780, %v4782
  %v4784 = vrot.slane %v4017, %v4783
  %v4786 = vunpack.c.l.s4 1983009808
  %v4787 = vunpack.c.0.s8 %v4786
  %v4788 = vlaneseq
  %v4789 = vshrl.u32 %v4788, 7
  %v4790 = vsub.s32 %v4787, %v4789
  %v4791 = vrot.slane %v4777, %v4790
  %v4792 = vcombine.high %v4784, %v4784
  %v4793 = vcombine.high %v4791, %v4791
  %v4794 = vcombine.high %v4018, %v4018
  %v4796 = vunpack.c.l.s4 1983009808
  %v4797 = vunpack.c.0.s8 %v4796
  %v4798 = vlaneseq
  %v4799 = vshrl.u32 %v4798, 7
  %v4800 = vsub.s32 %v4797, %v4799
  %v4801 = vrot.slane %v4018, %v4800
  %v4803 = vunpack.c.l.s4 1983009808
  %v4804 = vunpack.c.0.s8 %v4803
  %v4805 = vlaneseq
  %v4806 = vshrl.u32 %v4805, 7
  %v4807 = vsub.s32 %v4804, %v4806
  %v4808 = vrot.slane %v4794, %v4807
  %v4809 = vcombine.high %v4808, %v4808
  %v4810 = vcombine.high %v4019, %v4019
  %v4812 = vunpack.c.l.s4 1983009808
  %v4813 = vunpack.c.0.s8 %v4812
  %v4814 = vlaneseq
  %v4815 = vshrl.u32 %v4814, 7
  %v4816 = vsub.s32 %v4813, %v4815
  %v4817 = vrot.slane %v4019, %v4816
  %v4819 = vunpack.c.l.s4 1983009808
  %v4820 = vunpack.c.0.s8 %v4819
  %v4821 = vlaneseq
  %v4822 = vshrl.u32 %v4821, 7
  %v4823 = vsub.s32 %v4820, %v4822
  %v4824 = vrot.slane %v4810, %v4823
  %v4825 = vcombine.high %v4817, %v4817
  %v4826 = vcombine.high %v4824, %v4824
  %v4827 = vcombine.high %v4020, %v4020
  %v4829 = vunpack.c.l.s4 1983009808
  %v4830 = vunpack.c.0.s8 %v4829
  %v4831 = vlaneseq
  %v4832 = vshrl.u32 %v4831, 7
  %v4833 = vsub.s32 %v4830, %v4832
  %v4834 = vrot.slane %v4020, %v4833
  %v4836 = vunpack.c.l.s4 1983009808
  %v4837 = vunpack.c.0.s8 %v4836
  %v4838 = vlaneseq
  %v4839 = vshrl.u32 %v4838, 7
  %v4840 = vsub.s32 %v4837, %v4839
  %v4841 = vrot.slane %v4827, %v4840
  %v4842 = vcombine.high %v4834, %v4834
  %v4843 = vcombine.high %v4841, %v4841
  %v4844 = vcombine.high %v4021, %v4021
  %v4846 = vunpack.c.l.s4 1983009808
  %v4847 = vunpack.c.0.s8 %v4846
  %v4848 = vlaneseq
  %v4849 = vshrl.u32 %v4848, 7
  %v4850 = vsub.s32 %v4847, %v4849
  %v4851 = vrot.slane %v4021, %v4850
  %v4853 = vunpack.c.l.s4 1983009808
  %v4854 = vunpack.c.0.s8 %v4853
  %v4855 = vlaneseq
  %v4856 = vshrl.u32 %v4855, 7
  %v4857 = vsub.s32 %v4854, %v4856
  %v4858 = vrot.slane %v4844, %v4857
  %v4859 = vcombine.high %v4851, %v4851
  %v4860 = vcombine.high %v4858, %v4858
  %v4861 = vcombine.high %v4022, %v4022
  %v4863 = vunpack.c.l.s4 1983009808
  %v4864 = vunpack.c.0.s8 %v4863
  %v4865 = vlaneseq
  %v4866 = vshrl.u32 %v4865, 7
  %v4867 = vsub.s32 %v4864, %v4866
  %v4868 = vrot.slane %v4022, %v4867
  %v4870 = vunpack.c.l.s4 1983009808
  %v4871 = vunpack.c.0.s8 %v4870
  %v4872 = vlaneseq
  %v4873 = vshrl.u32 %v4872, 7
  %v4874 = vsub.s32 %v4871, %v4873
  %v4875 = vrot.slane %v4861, %v4874
  %v4876 = vcombine.high %v4868, %v4868
  %v4877 = vcombine.high %v4023, %v4023
  %v4879 = vunpack.c.l.s4 1983009808
  %v4880 = vunpack.c.0.s8 %v4879
  %v4881 = vlaneseq
  %v4882 = vshrl.u32 %v4881, 7
  %v4883 = vsub.s32 %v4880, %v4882
  %v4884 = vrot.slane %v4023, %v4883
  %v4886 = vunpack.c.l.s4 1983009808
  %v4887 = vunpack.c.0.s8 %v4886
  %v4888 = vlaneseq
  %v4889 = vshrl.u32 %v4888, 7
  %v4890 = vsub.s32 %v4887, %v4889
  %v4891 = vrot.slane %v4877, %v4890
  %v4892 = vcombine.high %v4884, %v4884
  %v4893 = vcombine.high %v4891, %v4891
  %v4894 = vcombine.high %v4024, %v4024
  %v4896 = vunpack.c.l.s4 1983009808
  %v4897 = vunpack.c.0.s8 %v4896
  %v4898 = vlaneseq
  %v4899 = vshrl.u32 %v4898, 7
  %v4900 = vsub.s32 %v4897, %v4899
  %v4901 = vrot.slane %v4024, %v4900
  %v4903 = vunpack.c.l.s4 1983009808
  %v4904 = vunpack.c.0.s8 %v4903
  %v4905 = vlaneseq
  %v4906 = vshrl.u32 %v4905, 7
  %v4907 = vsub.s32 %v4904, %v4906
  %v4908 = vrot.slane %v4894, %v4907
  %v4909 = vcombine.high %v4901, %v4901
  %v4910 = vcombine.high %v4908, %v4908
  %v4911 = vcombine.high %v4025, %v4025
  %v4913 = vunpack.c.l.s4 1983009808
  %v4914 = vunpack.c.0.s8 %v4913
  %v4915 = vlaneseq
  %v4916 = vshrl.u32 %v4915, 7
  %v4917 = vsub.s32 %v4914, %v4916
  %v4918 = vrot.slane %v4025, %v4917
  %v4920 = vunpack.c.l.s4 1983009808
  %v4921 = vunpack.c.0.s8 %v4920
  %v4922 = vlaneseq
  %v4923 = vshrl.u32 %v4922, 7
  %v4924 = vsub.s32 %v4921, %v4923
  %v4925 = vrot.slane %v4911, %v4924
  %v4926 = vcombine.high %v4918, %v4918
  %v4927 = vcombine.high %v4925, %v4925
  %v4928 = vcombine.high %v4026, %v4026
  %v4930 = vunpack.c.l.s4 1983009808
  %v4931 = vunpack.c.0.s8 %v4930
  %v4932 = vlaneseq
  %v4933 = vshrl.u32 %v4932, 7
  %v4934 = vsub.s32 %v4931, %v4933
  %v4935 = vrot.slane %v4026, %v4934
  %v4937 = vunpack.c.l.s4 1983009808
  %v4938 = vunpack.c.0.s8 %v4937
  %v4939 = vlaneseq
  %v4940 = vshrl.u32 %v4939, 7
  %v4941 = vsub.s32 %v4938, %v4940
  %v4942 = vrot.slane %v4928, %v4941
  %v4943 = vcombine.high %v4935, %v4935
  %v4944 = vcombine.high %v4942, %v4942
  %v4945 = vcombine.high %v4027, %v4027
  %v4947 = vunpack.c.l.s4 1983009808
  %v4948 = vunpack.c.0.s8 %v4947
  %v4949 = vlaneseq
  %v4950 = vshrl.u32 %v4949, 7
  %v4951 = vsub.s32 %v4948, %v4950
  %v4952 = vrot.slane %v4027, %v4951
  %v4954 = vunpack.c.l.s4 1983009808
  %v4955 = vunpack.c.0.s8 %v4954
  %v4956 = vlaneseq
  %v4957 = vshrl.u32 %v4956, 7
  %v4958 = vsub.s32 %v4955, %v4957
  %v4959 = vrot.slane %v4945, %v4958
  %v4960 = vcombine.high %v4959, %v4959
  %v4961 = vcombine.high %v4028, %v4028
  %v4963 = vunpack.c.l.s4 1983009808
  %v4964 = vunpack.c.0.s8 %v4963
  %v4965 = vlaneseq
  %v4966 = vshrl.u32 %v4965, 7
  %v4967 = vsub.s32 %v4964, %v4966
  %v4968 = vrot.slane %v4028, %v4967
  %v4970 = vunpack.c.l.s4 1983009808
  %v4971 = vunpack.c.0.s8 %v4970
  %v4972 = vlaneseq
  %v4973 = vshrl.u32 %v4972, 7
  %v4974 = vsub.s32 %v4971, %v4973
  %v4975 = vrot.slane %v4961, %v4974
  %v4976 = vcombine.high %v4968, %v4968
  %v4977 = vcombine.high %v4975, %v4975
  %v4978 = vcombine.high %v4029, %v4029
  %v4980 = vunpack.c.l.s4 1983009808
  %v4981 = vunpack.c.0.s8 %v4980
  %v4982 = vlaneseq
  %v4983 = vshrl.u32 %v4982, 7
  %v4984 = vsub.s32 %v4981, %v4983
  %v4985 = vrot.slane %v4029, %v4984
  %v4987 = vunpack.c.l.s4 1983009808
  %v4988 = vunpack.c.0.s8 %v4987
  %v4989 = vlaneseq
  %v4990 = vshrl.u32 %v4989, 7
  %v4991 = vsub.s32 %v4988, %v4990
  %v4992 = vrot.slane %v4978, %v4991
  %v4993 = vcombine.high %v4985, %v4985
  %v4994 = vcombine.high %v4992, %v4992
  %v4995 = vcombine.high %v4030, %v4030
  %v4997 = vunpack.c.l.s4 1983009808
  %v4998 = vunpack.c.0.s8 %v4997
  %v4999 = vlaneseq
  %v5000 = vshrl.u32 %v4999, 7
  %v5001 = vsub.s32 %v4998, %v5000
  %v5002 = vrot.slane %v4030, %v5001
  %v5004 = vunpack.c.l.s4 1983009808
  %v5005 = vunpack.c.0.s8 %v5004
  %v5006 = vlaneseq
  %v5007 = vshrl.u32 %v5006, 7
  %v5008 = vsub.s32 %v5005, %v5007
  %v5009 = vrot.slane %v4995, %v5008
  %v5010 = vcombine.high %v5002, %v5002
  %v5011 = vcombine.high %v5009, %v5009
  %v5012 = vcombine.high %v4031, %v4031
  %v5014 = vunpack.c.l.s4 1983009808
  %v5015 = vunpack.c.0.s8 %v5014
  %v5016 = vlaneseq
  %v5017 = vshrl.u32 %v5016, 7
  %v5018 = vsub.s32 %v5015, %v5017
  %v5019 = vrot.slane %v4031, %v5018
  %v5021 = vunpack.c.l.s4 1983009808
  %v5022 = vunpack.c.0.s8 %v5021
  %v5023 = vlaneseq
  %v5024 = vshrl.u32 %v5023, 7
  %v5025 = vsub.s32 %v5022, %v5024
  %v5026 = vrot.slane %v5012, %v5025
  %v5027 = vcombine.high %v5019, %v5019
  %v5028 = vcombine.high %v4032, %v4032
  %v5030 = vunpack.c.l.s4 1983009808
  %v5031 = vunpack.c.0.s8 %v5030
  %v5032 = vlaneseq
  %v5033 = vshrl.u32 %v5032, 7
  %v5034 = vsub.s32 %v5031, %v5033
  %v5035 = vrot.slane %v4032, %v5034
  %v5037 = vunpack.c.l.s4 1983009808
  %v5038 = vunpack.c.0.s8 %v5037
  %v5039 = vlaneseq
  %v5040 = vshrl.u32 %v5039, 7
  %v5041 = vsub.s32 %v5038, %v5040
  %v5042 = vrot.slane %v5028, %v5041
  %v5043 = vcombine.high %v5035, %v5035
  %v5044 = vcombine.high %v5042, %v5042
  %v5045 = vcombine.high %v4033, %v4033
  %v5047 = vunpack.c.l.s4 1983009808
  %v5048 = vunpack.c.0.s8 %v5047
  %v5049 = vlaneseq
  %v5050 = vshrl.u32 %v5049, 7
  %v5051 = vsub.s32 %v5048, %v5050
  %v5052 = vrot.slane %v4033, %v5051
  %v5054 = vunpack.c.l.s4 1983009808
  %v5055 = vunpack.c.0.s8 %v5054
  %v5056 = vlaneseq
  %v5057 = vshrl.u32 %v5056, 7
  %v5058 = vsub.s32 %v5055, %v5057
  %v5059 = vrot.slane %v5045, %v5058
  %v5060 = vcombine.high %v5052, %v5052
  %v5061 = vcombine.high %v5059, %v5059
  %v5062 = vcombine.high %v4034, %v4034
  %v5064 = vunpack.c.l.s4 1983009808
  %v5065 = vunpack.c.0.s8 %v5064
  %v5066 = vlaneseq
  %v5067 = vshrl.u32 %v5066, 7
  %v5068 = vsub.s32 %v5065, %v5067
  %v5069 = vrot.slane %v4034, %v5068
  %v5071 = vunpack.c.l.s4 1983009808
  %v5072 = vunpack.c.0.s8 %v5071
  %v5073 = vlaneseq
  %v5074 = vshrl.u32 %v5073, 7
  %v5075 = vsub.s32 %v5072, %v5074
  %v5076 = vrot.slane %v5062, %v5075
  %v5077 = vcombine.high %v5069, %v5069
  %v5078 = vcombine.high %v5076, %v5076
  %v5079 = vcombine.high %v4035, %v4035
  %v5081 = vunpack.c.l.s4 1983009808
  %v5082 = vunpack.c.0.s8 %v5081
  %v5083 = vlaneseq
  %v5084 = vshrl.u32 %v5083, 7
  %v5085 = vsub.s32 %v5082, %v5084
  %v5086 = vrot.slane %v4035, %v5085
  %v5088 = vunpack.c.l.s4 1983009808
  %v5089 = vunpack.c.0.s8 %v5088
  %v5090 = vlaneseq
  %v5091 = vshrl.u32 %v5090, 7
  %v5092 = vsub.s32 %v5089, %v5091
  %v5093 = vrot.slane %v5079, %v5092
  %v5094 = vcombine.high %v5086, %v5086
  %v5095 = vcombine.high %v5093, %v5093
  %v5096 = vcombine.high %v4036, %v4036
  %v5098 = vunpack.c.l.s4 1983009808
  %v5099 = vunpack.c.0.s8 %v5098
  %v5100 = vlaneseq
  %v5101 = vshrl.u32 %v5100, 7
  %v5102 = vsub.s32 %v5099, %v5101
  %v5103 = vrot.slane %v4036, %v5102
  %v5105 = vunpack.c.l.s4 1983009808
  %v5106 = vunpack.c.0.s8 %v5105
  %v5107 = vlaneseq
  %v5108 = vshrl.u32 %v5107, 7
  %v5109 = vsub.s32 %v5106, %v5108
  %v5110 = vrot.slane %v5096, %v5109
  %v5111 = vcombine.high %v5110, %v5110
  %v5112 = vcombine.high %v4037, %v4037
  %v5114 = vunpack.c.l.s4 1983009808
  %v5115 = vunpack.c.0.s8 %v5114
  %v5116 = vlaneseq
  %v5117 = vshrl.u32 %v5116, 7
  %v5118 = vsub.s32 %v5115, %v5117
  %v5119 = vrot.slane %v4037, %v5118
  %v5121 = vunpack.c.l.s4 1983009808
  %v5122 = vunpack.c.0.s8 %v5121
  %v5123 = vlaneseq
  %v5124 = vshrl.u32 %v5123, 7
  %v5125 = vsub.s32 %v5122, %v5124
  %v5126 = vrot.slane %v5112, %v5125
  %v5127 = vcombine.high %v5119, %v5119
  %v5128 = vcombine.high %v5126, %v5126
  %v5129 = vcombine.high %v4038, %v4038
  %v5131 = vunpack.c.l.s4 1983009808
  %v5132 = vunpack.c.0.s8 %v5131
  %v5133 = vlaneseq
  %v5134 = vshrl.u32 %v5133, 7
  %v5135 = vsub.s32 %v5132, %v5134
  %v5136 = vrot.slane %v4038, %v5135
  %v5138 = vunpack.c.l.s4 1983009808
  %v5139 = vunpack.c.0.s8 %v5138
  %v5140 = vlaneseq
  %v5141 = vshrl.u32 %v5140, 7
  %v5142 = vsub.s32 %v5139, %v5141
  %v5143 = vrot.slane %v5129, %v5142
  %v5144 = vcombine.high %v5136, %v5136
  %v5145 = vcombine.high %v5143, %v5143
  %v5146 = vcombine.high %v4039, %v4039
  %v5148 = vunpack.c.l.s4 1983009808
  %v5149 = vunpack.c.0.s8 %v5148
  %v5150 = vlaneseq
  %v5151 = vshrl.u32 %v5150, 7
  %v5152 = vsub.s32 %v5149, %v5151
  %v5153 = vrot.slane %v4039, %v5152
  %v5155 = vunpack.c.l.s4 1983009808
  %v5156 = vunpack.c.0.s8 %v5155
  %v5157 = vlaneseq
  %v5158 = vshrl.u32 %v5157, 7
  %v5159 = vsub.s32 %v5156, %v5158
  %v5160 = vrot.slane %v5146, %v5159
  %v5161 = vcombine.high %v5153, %v5153
  %v5162 = vcombine.high %v5160, %v5160
  %v5163 = vcombine.high %v4040, %v4040
  %v5165 = vunpack.c.l.s4 1983009808
  %v5166 = vunpack.c.0.s8 %v5165
  %v5167 = vlaneseq
  %v5168 = vshrl.u32 %v5167, 7
  %v5169 = vsub.s32 %v5166, %v5168
  %v5170 = vrot.slane %v4040, %v5169
  %v5172 = vunpack.c.l.s4 1983009808
  %v5173 = vunpack.c.0.s8 %v5172
  %v5174 = vlaneseq
  %v5175 = vshrl.u32 %v5174, 7
  %v5176 = vsub.s32 %v5173, %v5175
  %v5177 = vrot.slane %v5163, %v5176
  %v5178 = vcombine.high %v5170, %v5170
  %v5179 = vcombine.high %v4041, %v4041
  %v5181 = vunpack.c.l.s4 1983009808
  %v5182 = vunpack.c.0.s8 %v5181
  %v5183 = vlaneseq
  %v5184 = vshrl.u32 %v5183, 7
  %v5185 = vsub.s32 %v5182, %v5184
  %v5186 = vrot.slane %v4041, %v5185
  %v5188 = vunpack.c.l.s4 1983009808
  %v5189 = vunpack.c.0.s8 %v5188
  %v5190 = vlaneseq
  %v5191 = vshrl.u32 %v5190, 7
  %v5192 = vsub.s32 %v5189, %v5191
  %v5193 = vrot.slane %v5179, %v5192
  %v5194 = vcombine.high %v5186, %v5186
  %v5195 = vcombine.high %v5193, %v5193
  %v5196 = vcombine.high %v4042, %v4042
  %v5198 = vunpack.c.l.s4 1983009808
  %v5199 = vunpack.c.0.s8 %v5198
  %v5200 = vlaneseq
  %v5201 = vshrl.u32 %v5200, 7
  %v5202 = vsub.s32 %v5199, %v5201
  %v5203 = vrot.slane %v4042, %v5202
  %v5205 = vunpack.c.l.s4 1983009808
  %v5206 = vunpack.c.0.s8 %v5205
  %v5207 = vlaneseq
  %v5208 = vshrl.u32 %v5207, 7
  %v5209 = vsub.s32 %v5206, %v5208
  %v5210 = vrot.slane %v5196, %v5209
  %v5211 = vcombine.high %v5203, %v5203
  %v5212 = vcombine.high %v5210, %v5210
  %v5213 = vcombine.high %v4043, %v4043
  %v5215 = vunpack.c.l.s4 1983009808
  %v5216 = vunpack.c.0.s8 %v5215
  %v5217 = vlaneseq
  %v5218 = vshrl.u32 %v5217, 7
  %v5219 = vsub.s32 %v5216, %v5218
  %v5220 = vrot.slane %v4043, %v5219
  %v5222 = vunpack.c.l.s4 1983009808
  %v5223 = vunpack.c.0.s8 %v5222
  %v5224 = vlaneseq
  %v5225 = vshrl.u32 %v5224, 7
  %v5226 = vsub.s32 %v5223, %v5225
  %v5227 = vrot.slane %v5213, %v5226
  %v5228 = vcombine.high %v5220, %v5220
  %v5229 = vcombine.high %v5227, %v5227
  %v5230 = vcombine.high %v4044, %v4044
  %v5232 = vunpack.c.l.s4 1983009808
  %v5233 = vunpack.c.0.s8 %v5232
  %v5234 = vlaneseq
  %v5235 = vshrl.u32 %v5234, 7
  %v5236 = vsub.s32 %v5233, %v5235
  %v5237 = vrot.slane %v4044, %v5236
  %v5239 = vunpack.c.l.s4 1983009808
  %v5240 = vunpack.c.0.s8 %v5239
  %v5241 = vlaneseq
  %v5242 = vshrl.u32 %v5241, 7
  %v5243 = vsub.s32 %v5240, %v5242
  %v5244 = vrot.slane %v5230, %v5243
  %v5245 = vcombine.high %v5237, %v5237
  %v5246 = vcombine.high %v5244, %v5244
  %v5247 = vcombine.high %v4045, %v4045
  %v5249 = vunpack.c.l.s4 1983009808
  %v5250 = vunpack.c.0.s8 %v5249
  %v5251 = vlaneseq
  %v5252 = vshrl.u32 %v5251, 7
  %v5253 = vsub.s32 %v5250, %v5252
  %v5254 = vrot.slane %v4045, %v5253
  %v5256 = vunpack.c.l.s4 1983009808
  %v5257 = vunpack.c.0.s8 %v5256
  %v5258 = vlaneseq
  %v5259 = vshrl.u32 %v5258, 7
  %v5260 = vsub.s32 %v5257, %v5259
  %v5261 = vrot.slane %v5247, %v5260
  %v5262 = vcombine.high %v5261, %v5261
  %v5263 = vcombine.high %v4046, %v4046
  %v5265 = vunpack.c.l.s4 1983009808
  %v5266 = vunpack.c.0.s8 %v5265
  %v5267 = vlaneseq
  %v5268 = vshrl.u32 %v5267, 7
  %v5269 = vsub.s32 %v5266, %v5268
  %v5270 = vrot.slane %v4046, %v5269
  %v5272 = vunpack.c.l.s4 1983009808
  %v5273 = vunpack.c.0.s8 %v5272
  %v5274 = vlaneseq
  %v5275 = vshrl.u32 %v5274, 7
  %v5276 = vsub.s32 %v5273, %v5275
  %v5277 = vrot.slane %v5263, %v5276
  %v5278 = vcombine.high %v5270, %v5270
  %v5279 = vcombine.high %v5277, %v5277
  %v5280 = vcombine.high %v4047, %v4047
  %v5282 = vunpack.c.l.s4 1983009808
  %v5283 = vunpack.c.0.s8 %v5282
  %v5284 = vlaneseq
  %v5285 = vshrl.u32 %v5284, 7
  %v5286 = vsub.s32 %v5283, %v5285
  %v5287 = vrot.slane %v4047, %v5286
  %v5289 = vunpack.c.l.s4 1983009808
  %v5290 = vunpack.c.0.s8 %v5289
  %v5291 = vlaneseq
  %v5292 = vshrl.u32 %v5291, 7
  %v5293 = vsub.s32 %v5290, %v5292
  %v5294 = vrot.slane %v5280, %v5293
  %v5295 = vcombine.high %v5287, %v5287
  %v5296 = vcombine.high %v5294, %v5294
  %v5297 = vcombine.high %v4048, %v4048
  %v5299 = vunpack.c.l.s4 1983009808
  %v5300 = vunpack.c.0.s8 %v5299
  %v5301 = vlaneseq
  %v5302 = vshrl.u32 %v5301, 7
  %v5303 = vsub.s32 %v5300, %v5302
  %v5304 = vrot.slane %v4048, %v5303
  %v5306 = vunpack.c.l.s4 1983009808
  %v5307 = vunpack.c.0.s8 %v5306
  %v5308 = vlaneseq
  %v5309 = vshrl.u32 %v5308, 7
  %v5310 = vsub.s32 %v5307, %v5309
  %v5311 = vrot.slane %v5297, %v5310
  %v5312 = vcombine.high %v5304, %v5304
  %v5313 = vcombine.high %v5311, %v5311
  %v5314 = vcombine.high %v4049, %v4049
  %v5316 = vunpack.c.l.s4 1983009808
  %v5317 = vunpack.c.0.s8 %v5316
  %v5318 = vlaneseq
  %v5319 = vshrl.u32 %v5318, 7
  %v5320 = vsub.s32 %v5317, %v5319
  %v5321 = vrot.slane %v4049, %v5320
  %v5323 = vunpack.c.l.s4 1983009808
  %v5324 = vunpack.c.0.s8 %v5323
  %v5325 = vlaneseq
  %v5326 = vshrl.u32 %v5325, 7
  %v5327 = vsub.s32 %v5324, %v5326
  %v5328 = vrot.slane %v5314, %v5327
  %v5329 = vcombine.high %v5321, %v5321
  %vm5586 = vcmask 254976
  %v5587 = vsel %vm5586, %v4129, -inf
  %v5588 = vrot.slane %v5587, 4
  %v5589 = vmax.f32 %v5587, %v5588
  %v5590 = vrot.slane %v5589, 2
  %v5591 = vmax.f32 %v5589, %v5590
  %v5592 = vrot.slane %v5591, 1
  %v5593 = vmax.f32 %v5591, %v5592
  %v5594 = vsel %vm5586, %v4137, -inf
  %v5595 = vrot.slane %v5594, 4
  %v5596 = vmax.f32 %v5594, %v5595
  %v5597 = vrot.slane %v5596, 2
  %v5598 = vmax.f32 %v5596, %v5597
  %v5599 = vrot.slane %v5598, 1
  %v5600 = vmax.f32 %v5598, %v5599
  %v5601 = vsel %vm5586, %v4136, -inf
  %v5602 = vrot.slane %v5601, 4
  %v5603 = vmax.f32 %v5601, %v5602
  %v5604 = vrot.slane %v5603, 2
  %v5605 = vmax.f32 %v5603, %v5604
  %v5606 = vrot.slane %v5605, 1
  %v5607 = vmax.f32 %v5605, %v5606
  %v5608 = vsel %vm5586, %v4138, -inf
  %v5609 = vrot.slane %v5608, 4
  %v5610 = vmax.f32 %v5608, %v5609
  %v5611 = vrot.slane %v5610, 2
  %v5612 = vmax.f32 %v5610, %v5611
  %v5613 = vrot.slane %v5612, 1
  %v5614 = vmax.f32 %v5612, %v5613
  %v5615 = vsel %vm5586, %v4146, -inf
  %v5616 = vrot.slane %v5615, 4
  %v5617 = vmax.f32 %v5615, %v5616
  %v5618 = vrot.slane %v5617, 2
  %v5619 = vmax.f32 %v5617, %v5618
  %v5620 = vrot.slane %v5619, 1
  %v5621 = vmax.f32 %v5619, %v5620
  %v5622 = vsel %vm5586, %v4154, -inf
  %v5623 = vrot.slane %v5622, 4
  %v5624 = vmax.f32 %v5622, %v5623
  %v5625 = vrot.slane %v5624, 2
  %v5626 = vmax.f32 %v5624, %v5625
  %v5627 = vrot.slane %v5626, 1
  %v5628 = vmax.f32 %v5626, %v5627
  %v5629 = vsel %vm5586, %v4153, -inf
  %v5630 = vrot.slane %v5629, 4
  %v5631 = vmax.f32 %v5629, %v5630
  %v5632 = vrot.slane %v5631, 2
  %v5633 = vmax.f32 %v5631, %v5632
  %v5634 = vrot.slane %v5633, 1
  %v5635 = vmax.f32 %v5633, %v5634
  %v5636 = vsel %vm5586, %v4155, -inf
  %v5637 = vrot.slane %v5636, 4
  %v5638 = vmax.f32 %v5636, %v5637
  %v5639 = vrot.slane %v5638, 2
  %v5640 = vmax.f32 %v5638, %v5639
  %v5641 = vrot.slane %v5640, 1
  %v5642 = vmax.f32 %v5640, %v5641
  %v5643 = vsel %vm5586, %v4171, -inf
  %v5644 = vrot.slane %v5643, 4
  %v5645 = vmax.f32 %v5643, %v5644
  %v5646 = vrot.slane %v5645, 2
  %v5647 = vmax.f32 %v5645, %v5646
  %v5648 = vrot.slane %v5647, 1
  %v5649 = vmax.f32 %v5647, %v5648
  %v5650 = vsel %vm5586, %v4170, -inf
  %v5651 = vrot.slane %v5650, 4
  %v5652 = vmax.f32 %v5650, %v5651
  %v5653 = vrot.slane %v5652, 2
  %v5654 = vmax.f32 %v5652, %v5653
  %v5655 = vrot.slane %v5654, 1
  %v5656 = vmax.f32 %v5654, %v5655
  %v5657 = vsel %vm5586, %v4172, -inf
  %v5658 = vrot.slane %v5657, 4
  %v5659 = vmax.f32 %v5657, %v5658
  %v5660 = vrot.slane %v5659, 2
  %v5661 = vmax.f32 %v5659, %v5660
  %v5662 = vrot.slane %v5661, 1
  %v5663 = vmax.f32 %v5661, %v5662
  %v5664 = vsel %vm5586, %v4180, -inf
  %v5665 = vrot.slane %v5664, 4
  %v5666 = vmax.f32 %v5664, %v5665
  %v5667 = vrot.slane %v5666, 2
  %v5668 = vmax.f32 %v5666, %v5667
  %v5669 = vrot.slane %v5668, 1
  %v5670 = vmax.f32 %v5668, %v5669
  %v5671 = vsel %vm5586, %v4188, -inf
  %v5672 = vrot.slane %v5671, 4
  %v5673 = vmax.f32 %v5671, %v5672
  %v5674 = vrot.slane %v5673, 2
  %v5675 = vmax.f32 %v5673, %v5674
  %v5676 = vrot.slane %v5675, 1
  %v5677 = vmax.f32 %v5675, %v5676
  %v5678 = vsel %vm5586, %v4187, -inf
  %v5679 = vrot.slane %v5678, 4
  %v5680 = vmax.f32 %v5678, %v5679
  %v5681 = vrot.slane %v5680, 2
  %v5682 = vmax.f32 %v5680, %v5681
  %v5683 = vrot.slane %v5682, 1
  %v5684 = vmax.f32 %v5682, %v5683
  %v5685 = vsel %vm5586, %v4189, -inf
  %v5686 = vrot.slane %v5685, 4
  %v5687 = vmax.f32 %v5685, %v5686
  %v5688 = vrot.slane %v5687, 2
  %v5689 = vmax.f32 %v5687, %v5688
  %v5690 = vrot.slane %v5689, 1
  %v5691 = vmax.f32 %v5689, %v5690
  %v5692 = vsel %vm5586, %v4197, -inf
  %v5693 = vrot.slane %v5692, 4
  %v5694 = vmax.f32 %v5692, %v5693
  %v5695 = vrot.slane %v5694, 2
  %v5696 = vmax.f32 %v5694, %v5695
  %v5697 = vrot.slane %v5696, 1
  %v5698 = vmax.f32 %v5696, %v5697
  %v5699 = vsel %vm5586, %v4204, -inf
  %v5700 = vrot.slane %v5699, 4
  %v5701 = vmax.f32 %v5699, %v5700
  %v5702 = vrot.slane %v5701, 2
  %v5703 = vmax.f32 %v5701, %v5702
  %v5704 = vrot.slane %v5703, 1
  %v5705 = vmax.f32 %v5703, %v5704
  %v5706 = vsel %vm5586, %v4205, -inf
  %v5707 = vrot.slane %v5706, 4
  %v5708 = vmax.f32 %v5706, %v5707
  %v5709 = vrot.slane %v5708, 2
  %v5710 = vmax.f32 %v5708, %v5709
  %v5711 = vrot.slane %v5710, 1
  %v5712 = vmax.f32 %v5710, %v5711
  %v5713 = vsel %vm5586, %v4213, -inf
  %v5714 = vrot.slane %v5713, 4
  %v5715 = vmax.f32 %v5713, %v5714
  %v5716 = vrot.slane %v5715, 2
  %v5717 = vmax.f32 %v5715, %v5716
  %v5718 = vrot.slane %v5717, 1
  %v5719 = vmax.f32 %v5717, %v5718
  %v5720 = vsel %vm5586, %v4221, -inf
  %v5721 = vrot.slane %v5720, 4
  %v5722 = vmax.f32 %v5720, %v5721
  %v5723 = vrot.slane %v5722, 2
  %v5724 = vmax.f32 %v5722, %v5723
  %v5725 = vrot.slane %v5724, 1
  %v5726 = vmax.f32 %v5724, %v5725
  %v5727 = vsel %vm5586, %v4220, -inf
  %v5728 = vrot.slane %v5727, 4
  %v5729 = vmax.f32 %v5727, %v5728
  %v5730 = vrot.slane %v5729, 2
  %v5731 = vmax.f32 %v5729, %v5730
  %v5732 = vrot.slane %v5731, 1
  %v5733 = vmax.f32 %v5731, %v5732
  %v5734 = vsel %vm5586, %v4222, -inf
  %v5735 = vrot.slane %v5734, 4
  %v5736 = vmax.f32 %v5734, %v5735
  %v5737 = vrot.slane %v5736, 2
  %v5738 = vmax.f32 %v5736, %v5737
  %v5739 = vrot.slane %v5738, 1
  %v5740 = vmax.f32 %v5738, %v5739
  %v5741 = vsel %vm5586, %v4230, -inf
  %v5742 = vrot.slane %v5741, 4
  %v5743 = vmax.f32 %v5741, %v5742
  %v5744 = vrot.slane %v5743, 2
  %v5745 = vmax.f32 %v5743, %v5744
  %v5746 = vrot.slane %v5745, 1
  %v5747 = vmax.f32 %v5745, %v5746
  %v5748 = vsel %vm5586, %v4238, -inf
  %v5749 = vrot.slane %v5748, 4
  %v5750 = vmax.f32 %v5748, %v5749
  %v5751 = vrot.slane %v5750, 2
  %v5752 = vmax.f32 %v5750, %v5751
  %v5753 = vrot.slane %v5752, 1
  %v5754 = vmax.f32 %v5752, %v5753
  %v5755 = vsel %vm5586, %v4239, -inf
  %v5756 = vrot.slane %v5755, 4
  %v5757 = vmax.f32 %v5755, %v5756
  %v5758 = vrot.slane %v5757, 2
  %v5759 = vmax.f32 %v5757, %v5758
  %v5760 = vrot.slane %v5759, 1
  %v5761 = vmax.f32 %v5759, %v5760
  %v5762 = vsel %vm5586, %v4247, -inf
  %v5763 = vrot.slane %v5762, 4
  %v5764 = vmax.f32 %v5762, %v5763
  %v5765 = vrot.slane %v5764, 2
  %v5766 = vmax.f32 %v5764, %v5765
  %v5767 = vrot.slane %v5766, 1
  %v5768 = vmax.f32 %v5766, %v5767
  %v5769 = vsel %vm5586, %v4255, -inf
  %v5770 = vrot.slane %v5769, 4
  %v5771 = vmax.f32 %v5769, %v5770
  %v5772 = vrot.slane %v5771, 2
  %v5773 = vmax.f32 %v5771, %v5772
  %v5774 = vrot.slane %v5773, 1
  %v5775 = vmax.f32 %v5773, %v5774
  %v5776 = vsel %vm5586, %v4254, -inf
  %v5777 = vrot.slane %v5776, 4
  %v5778 = vmax.f32 %v5776, %v5777
  %v5779 = vrot.slane %v5778, 2
  %v5780 = vmax.f32 %v5778, %v5779
  %v5781 = vrot.slane %v5780, 1
  %v5782 = vmax.f32 %v5780, %v5781
  %v5783 = vsel %vm5586, %v4256, -inf
  %v5784 = vrot.slane %v5783, 4
  %v5785 = vmax.f32 %v5783, %v5784
  %v5786 = vrot.slane %v5785, 2
  %v5787 = vmax.f32 %v5785, %v5786
  %v5788 = vrot.slane %v5787, 1
  %v5789 = vmax.f32 %v5787, %v5788
  %v5790 = vsel %vm5586, %v4264, -inf
  %v5791 = vrot.slane %v5790, 4
  %v5792 = vmax.f32 %v5790, %v5791
  %v5793 = vrot.slane %v5792, 2
  %v5794 = vmax.f32 %v5792, %v5793
  %v5795 = vrot.slane %v5794, 1
  %v5796 = vmax.f32 %v5794, %v5795
  %v5797 = vsel %vm5586, %v4272, -inf
  %v5798 = vrot.slane %v5797, 4
  %v5799 = vmax.f32 %v5797, %v5798
  %v5800 = vrot.slane %v5799, 2
  %v5801 = vmax.f32 %v5799, %v5800
  %v5802 = vrot.slane %v5801, 1
  %v5803 = vmax.f32 %v5801, %v5802
  %v5804 = vsel %vm5586, %v4271, -inf
  %v5805 = vrot.slane %v5804, 4
  %v5806 = vmax.f32 %v5804, %v5805
  %v5807 = vrot.slane %v5806, 2
  %v5808 = vmax.f32 %v5806, %v5807
  %v5809 = vrot.slane %v5808, 1
  %v5810 = vmax.f32 %v5808, %v5809
  %v5811 = vsel %vm5586, %v4280, -inf
  %v5812 = vrot.slane %v5811, 4
  %v5813 = vmax.f32 %v5811, %v5812
  %v5814 = vrot.slane %v5813, 2
  %v5815 = vmax.f32 %v5813, %v5814
  %v5816 = vrot.slane %v5815, 1
  %v5817 = vmax.f32 %v5815, %v5816
  %v5818 = vsel %vm5586, %v4288, -inf
  %v5819 = vrot.slane %v5818, 4
  %v5820 = vmax.f32 %v5818, %v5819
  %v5821 = vrot.slane %v5820, 2
  %v5822 = vmax.f32 %v5820, %v5821
  %v5823 = vrot.slane %v5822, 1
  %v5824 = vmax.f32 %v5822, %v5823
  %v5825 = vsel %vm5586, %v4287, -inf
  %v5826 = vrot.slane %v5825, 4
  %v5827 = vmax.f32 %v5825, %v5826
  %v5828 = vrot.slane %v5827, 2
  %v5829 = vmax.f32 %v5827, %v5828
  %v5830 = vrot.slane %v5829, 1
  %v5831 = vmax.f32 %v5829, %v5830
  %v5832 = vsel %vm5586, %v4289, -inf
  %v5833 = vrot.slane %v5832, 4
  %v5834 = vmax.f32 %v5832, %v5833
  %v5835 = vrot.slane %v5834, 2
  %v5836 = vmax.f32 %v5834, %v5835
  %v5837 = vrot.slane %v5836, 1
  %v5838 = vmax.f32 %v5836, %v5837
  %v5839 = vsel %vm5586, %v4297, -inf
  %v5840 = vrot.slane %v5839, 4
  %v5841 = vmax.f32 %v5839, %v5840
  %v5842 = vrot.slane %v5841, 2
  %v5843 = vmax.f32 %v5841, %v5842
  %v5844 = vrot.slane %v5843, 1
  %v5845 = vmax.f32 %v5843, %v5844
  %v5846 = vsel %vm5586, %v4305, -inf
  %v5847 = vrot.slane %v5846, 4
  %v5848 = vmax.f32 %v5846, %v5847
  %v5849 = vrot.slane %v5848, 2
  %v5850 = vmax.f32 %v5848, %v5849
  %v5851 = vrot.slane %v5850, 1
  %v5852 = vmax.f32 %v5850, %v5851
  %v5853 = vsel %vm5586, %v4304, -inf
  %v5854 = vrot.slane %v5853, 4
  %v5855 = vmax.f32 %v5853, %v5854
  %v5856 = vrot.slane %v5855, 2
  %v5857 = vmax.f32 %v5855, %v5856
  %v5858 = vrot.slane %v5857, 1
  %v5859 = vmax.f32 %v5857, %v5858
  %v5860 = vsel %vm5586, %v4306, -inf
  %v5861 = vrot.slane %v5860, 4
  %v5862 = vmax.f32 %v5860, %v5861
  %v5863 = vrot.slane %v5862, 2
  %v5864 = vmax.f32 %v5862, %v5863
  %v5865 = vrot.slane %v5864, 1
  %v5866 = vmax.f32 %v5864, %v5865
  %v5867 = vsel %vm5586, %v4322, -inf
  %v5868 = vrot.slane %v5867, 4
  %v5869 = vmax.f32 %v5867, %v5868
  %v5870 = vrot.slane %v5869, 2
  %v5871 = vmax.f32 %v5869, %v5870
  %v5872 = vrot.slane %v5871, 1
  %v5873 = vmax.f32 %v5871, %v5872
  %v5874 = vsel %vm5586, %v4321, -inf
  %v5875 = vrot.slane %v5874, 4
  %v5876 = vmax.f32 %v5874, %v5875
  %v5877 = vrot.slane %v5876, 2
  %v5878 = vmax.f32 %v5876, %v5877
  %v5879 = vrot.slane %v5878, 1
  %v5880 = vmax.f32 %v5878, %v5879
  %v5881 = vsel %vm5586, %v4323, -inf
  %v5882 = vrot.slane %v5881, 4
  %v5883 = vmax.f32 %v5881, %v5882
  %v5884 = vrot.slane %v5883, 2
  %v5885 = vmax.f32 %v5883, %v5884
  %v5886 = vrot.slane %v5885, 1
  %v5887 = vmax.f32 %v5885, %v5886
  %v5888 = vsel %vm5586, %v4331, -inf
  %v5889 = vrot.slane %v5888, 4
  %v5890 = vmax.f32 %v5888, %v5889
  %v5891 = vrot.slane %v5890, 2
  %v5892 = vmax.f32 %v5890, %v5891
  %v5893 = vrot.slane %v5892, 1
  %v5894 = vmax.f32 %v5892, %v5893
  %v5895 = vsel %vm5586, %v4339, -inf
  %v5896 = vrot.slane %v5895, 4
  %v5897 = vmax.f32 %v5895, %v5896
  %v5898 = vrot.slane %v5897, 2
  %v5899 = vmax.f32 %v5897, %v5898
  %v5900 = vrot.slane %v5899, 1
  %v5901 = vmax.f32 %v5899, %v5900
  %v5902 = vsel %vm5586, %v4338, -inf
  %v5903 = vrot.slane %v5902, 4
  %v5904 = vmax.f32 %v5902, %v5903
  %v5905 = vrot.slane %v5904, 2
  %v5906 = vmax.f32 %v5904, %v5905
  %v5907 = vrot.slane %v5906, 1
  %v5908 = vmax.f32 %v5906, %v5907
  %v5909 = vsel %vm5586, %v4340, -inf
  %v5910 = vrot.slane %v5909, 4
  %v5911 = vmax.f32 %v5909, %v5910
  %v5912 = vrot.slane %v5911, 2
  %v5913 = vmax.f32 %v5911, %v5912
  %v5914 = vrot.slane %v5913, 1
  %v5915 = vmax.f32 %v5913, %v5914
  %v5916 = vsel %vm5586, %v4348, -inf
  %v5917 = vrot.slane %v5916, 4
  %v5918 = vmax.f32 %v5916, %v5917
  %v5919 = vrot.slane %v5918, 2
  %v5920 = vmax.f32 %v5918, %v5919
  %v5921 = vrot.slane %v5920, 1
  %v5922 = vmax.f32 %v5920, %v5921
  %v5923 = vsel %vm5586, %v4355, -inf
  %v5924 = vrot.slane %v5923, 4
  %v5925 = vmax.f32 %v5923, %v5924
  %v5926 = vrot.slane %v5925, 2
  %v5927 = vmax.f32 %v5925, %v5926
  %v5928 = vrot.slane %v5927, 1
  %v5929 = vmax.f32 %v5927, %v5928
  %v5930 = vsel %vm5586, %v4356, -inf
  %v5931 = vrot.slane %v5930, 4
  %v5932 = vmax.f32 %v5930, %v5931
  %v5933 = vrot.slane %v5932, 2
  %v5934 = vmax.f32 %v5932, %v5933
  %v5935 = vrot.slane %v5934, 1
  %v5936 = vmax.f32 %v5934, %v5935
  %v5937 = vsel %vm5586, %v4364, -inf
  %v5938 = vrot.slane %v5937, 4
  %v5939 = vmax.f32 %v5937, %v5938
  %v5940 = vrot.slane %v5939, 2
  %v5941 = vmax.f32 %v5939, %v5940
  %v5942 = vrot.slane %v5941, 1
  %v5943 = vmax.f32 %v5941, %v5942
  %v5944 = vsel %vm5586, %v4372, -inf
  %v5945 = vrot.slane %v5944, 4
  %v5946 = vmax.f32 %v5944, %v5945
  %v5947 = vrot.slane %v5946, 2
  %v5948 = vmax.f32 %v5946, %v5947
  %v5949 = vrot.slane %v5948, 1
  %v5950 = vmax.f32 %v5948, %v5949
  %v5951 = vsel %vm5586, %v4371, -inf
  %v5952 = vrot.slane %v5951, 4
  %v5953 = vmax.f32 %v5951, %v5952
  %v5954 = vrot.slane %v5953, 2
  %v5955 = vmax.f32 %v5953, %v5954
  %v5956 = vrot.slane %v5955, 1
  %v5957 = vmax.f32 %v5955, %v5956
  %v5958 = vsel %vm5586, %v4373, -inf
  %v5959 = vrot.slane %v5958, 4
  %v5960 = vmax.f32 %v5958, %v5959
  %v5961 = vrot.slane %v5960, 2
  %v5962 = vmax.f32 %v5960, %v5961
  %v5963 = vrot.slane %v5962, 1
  %v5964 = vmax.f32 %v5962, %v5963
  %v5965 = vsel %vm5586, %v4381, -inf
  %v5966 = vrot.slane %v5965, 4
  %v5967 = vmax.f32 %v5965, %v5966
  %v5968 = vrot.slane %v5967, 2
  %v5969 = vmax.f32 %v5967, %v5968
  %v5970 = vrot.slane %v5969, 1
  %v5971 = vmax.f32 %v5969, %v5970
  %v5972 = vsel %vm5586, %v4389, -inf
  %v5973 = vrot.slane %v5972, 4
  %v5974 = vmax.f32 %v5972, %v5973
  %v5975 = vrot.slane %v5974, 2
  %v5976 = vmax.f32 %v5974, %v5975
  %v5977 = vrot.slane %v5976, 1
  %v5978 = vmax.f32 %v5976, %v5977
  %v5979 = vsel %vm5586, %v4390, -inf
  %v5980 = vrot.slane %v5979, 4
  %v5981 = vmax.f32 %v5979, %v5980
  %v5982 = vrot.slane %v5981, 2
  %v5983 = vmax.f32 %v5981, %v5982
  %v5984 = vrot.slane %v5983, 1
  %v5985 = vmax.f32 %v5983, %v5984
  %v5986 = vsel %vm5586, %v4398, -inf
  %v5987 = vrot.slane %v5986, 4
  %v5988 = vmax.f32 %v5986, %v5987
  %v5989 = vrot.slane %v5988, 2
  %v5990 = vmax.f32 %v5988, %v5989
  %v5991 = vrot.slane %v5990, 1
  %v5992 = vmax.f32 %v5990, %v5991
  %v5993 = vsel %vm5586, %v4406, -inf
  %v5994 = vrot.slane %v5993, 4
  %v5995 = vmax.f32 %v5993, %v5994
  %v5996 = vrot.slane %v5995, 2
  %v5997 = vmax.f32 %v5995, %v5996
  %v5998 = vrot.slane %v5997, 1
  %v5999 = vmax.f32 %v5997, %v5998
  %v6000 = vsel %vm5586, %v4405, -inf
  %v6001 = vrot.slane %v6000, 4
  %v6002 = vmax.f32 %v6000, %v6001
  %v6003 = vrot.slane %v6002, 2
  %v6004 = vmax.f32 %v6002, %v6003
  %v6005 = vrot.slane %v6004, 1
  %v6006 = vmax.f32 %v6004, %v6005
  %v6007 = vsel %vm5586, %v4407, -inf
  %v6008 = vrot.slane %v6007, 4
  %v6009 = vmax.f32 %v6007, %v6008
  %v6010 = vrot.slane %v6009, 2
  %v6011 = vmax.f32 %v6009, %v6010
  %v6012 = vrot.slane %v6011, 1
  %v6013 = vmax.f32 %v6011, %v6012
  %v6014 = vsel %vm5586, %v4415, -inf
  %v6015 = vrot.slane %v6014, 4
  %v6016 = vmax.f32 %v6014, %v6015
  %v6017 = vrot.slane %v6016, 2
  %v6018 = vmax.f32 %v6016, %v6017
  %v6019 = vrot.slane %v6018, 1
  %v6020 = vmax.f32 %v6018, %v6019
  %v6021 = vsel %vm5586, %v4423, -inf
  %v6022 = vrot.slane %v6021, 4
  %v6023 = vmax.f32 %v6021, %v6022
  %v6024 = vrot.slane %v6023, 2
  %v6025 = vmax.f32 %v6023, %v6024
  %v6026 = vrot.slane %v6025, 1
  %v6027 = vmax.f32 %v6025, %v6026
  %v6028 = vsel %vm5586, %v4422, -inf
  %v6029 = vrot.slane %v6028, 4
  %v6030 = vmax.f32 %v6028, %v6029
  %v6031 = vrot.slane %v6030, 2
  %v6032 = vmax.f32 %v6030, %v6031
  %v6033 = vrot.slane %v6032, 1
  %v6034 = vmax.f32 %v6032, %v6033
  %v6035 = vsel %vm5586, %v4431, -inf
  %v6036 = vrot.slane %v6035, 4
  %v6037 = vmax.f32 %v6035, %v6036
  %v6038 = vrot.slane %v6037, 2
  %v6039 = vmax.f32 %v6037, %v6038
  %v6040 = vrot.slane %v6039, 1
  %v6041 = vmax.f32 %v6039, %v6040
  %v6042 = vsel %vm5586, %v4439, -inf
  %v6043 = vrot.slane %v6042, 4
  %v6044 = vmax.f32 %v6042, %v6043
  %v6045 = vrot.slane %v6044, 2
  %v6046 = vmax.f32 %v6044, %v6045
  %v6047 = vrot.slane %v6046, 1
  %v6048 = vmax.f32 %v6046, %v6047
  %v6049 = vsel %vm5586, %v4438, -inf
  %v6050 = vrot.slane %v6049, 4
  %v6051 = vmax.f32 %v6049, %v6050
  %v6052 = vrot.slane %v6051, 2
  %v6053 = vmax.f32 %v6051, %v6052
  %v6054 = vrot.slane %v6053, 1
  %v6055 = vmax.f32 %v6053, %v6054
  %v6056 = vsel %vm5586, %v4440, -inf
  %v6057 = vrot.slane %v6056, 4
  %v6058 = vmax.f32 %v6056, %v6057
  %v6059 = vrot.slane %v6058, 2
  %v6060 = vmax.f32 %v6058, %v6059
  %v6061 = vrot.slane %v6060, 1
  %v6062 = vmax.f32 %v6060, %v6061
  %v6063 = vsel %vm5586, %v4448, -inf
  %v6064 = vrot.slane %v6063, 4
  %v6065 = vmax.f32 %v6063, %v6064
  %v6066 = vrot.slane %v6065, 2
  %v6067 = vmax.f32 %v6065, %v6066
  %v6068 = vrot.slane %v6067, 1
  %v6069 = vmax.f32 %v6067, %v6068
  %v6070 = vsel %vm5586, %v4456, -inf
  %v6071 = vrot.slane %v6070, 4
  %v6072 = vmax.f32 %v6070, %v6071
  %v6073 = vrot.slane %v6072, 2
  %v6074 = vmax.f32 %v6072, %v6073
  %v6075 = vrot.slane %v6074, 1
  %v6076 = vmax.f32 %v6074, %v6075
  %v6077 = vsel %vm5586, %v4455, -inf
  %v6078 = vrot.slane %v6077, 4
  %v6079 = vmax.f32 %v6077, %v6078
  %v6080 = vrot.slane %v6079, 2
  %v6081 = vmax.f32 %v6079, %v6080
  %v6082 = vrot.slane %v6081, 1
  %v6083 = vmax.f32 %v6081, %v6082
  %v6084 = vsel %vm5586, %v4457, -inf
  %v6085 = vrot.slane %v6084, 4
  %v6086 = vmax.f32 %v6084, %v6085
  %v6087 = vrot.slane %v6086, 2
  %v6088 = vmax.f32 %v6086, %v6087
  %v6089 = vrot.slane %v6088, 1
  %v6090 = vmax.f32 %v6088, %v6089
  %v6091 = vsel %vm5586, %v4473, -inf
  %v6092 = vrot.slane %v6091, 4
  %v6093 = vmax.f32 %v6091, %v6092
  %v6094 = vrot.slane %v6093, 2
  %v6095 = vmax.f32 %v6093, %v6094
  %v6096 = vrot.slane %v6095, 1
  %v6097 = vmax.f32 %v6095, %v6096
  %v6098 = vsel %vm5586, %v4472, -inf
  %v6099 = vrot.slane %v6098, 4
  %v6100 = vmax.f32 %v6098, %v6099
  %v6101 = vrot.slane %v6100, 2
  %v6102 = vmax.f32 %v6100, %v6101
  %v6103 = vrot.slane %v6102, 1
  %v6104 = vmax.f32 %v6102, %v6103
  %v6105 = vsel %vm5586, %v4474, -inf
  %v6106 = vrot.slane %v6105, 4
  %v6107 = vmax.f32 %v6105, %v6106
  %v6108 = vrot.slane %v6107, 2
  %v6109 = vmax.f32 %v6107, %v6108
  %v6110 = vrot.slane %v6109, 1
  %v6111 = vmax.f32 %v6109, %v6110
  %v6112 = vsel %vm5586, %v4482, -inf
  %v6113 = vrot.slane %v6112, 4
  %v6114 = vmax.f32 %v6112, %v6113
  %v6115 = vrot.slane %v6114, 2
  %v6116 = vmax.f32 %v6114, %v6115
  %v6117 = vrot.slane %v6116, 1
  %v6118 = vmax.f32 %v6116, %v6117
  %v6119 = vsel %vm5586, %v4490, -inf
  %v6120 = vrot.slane %v6119, 4
  %v6121 = vmax.f32 %v6119, %v6120
  %v6122 = vrot.slane %v6121, 2
  %v6123 = vmax.f32 %v6121, %v6122
  %v6124 = vrot.slane %v6123, 1
  %v6125 = vmax.f32 %v6123, %v6124
  %v6126 = vsel %vm5586, %v4489, -inf
  %v6127 = vrot.slane %v6126, 4
  %v6128 = vmax.f32 %v6126, %v6127
  %v6129 = vrot.slane %v6128, 2
  %v6130 = vmax.f32 %v6128, %v6129
  %v6131 = vrot.slane %v6130, 1
  %v6132 = vmax.f32 %v6130, %v6131
  %v6133 = vsel %vm5586, %v4491, -inf
  %v6134 = vrot.slane %v6133, 4
  %v6135 = vmax.f32 %v6133, %v6134
  %v6136 = vrot.slane %v6135, 2
  %v6137 = vmax.f32 %v6135, %v6136
  %v6138 = vrot.slane %v6137, 1
  %v6139 = vmax.f32 %v6137, %v6138
  %v6140 = vsel %vm5586, %v4499, -inf
  %v6141 = vrot.slane %v6140, 4
  %v6142 = vmax.f32 %v6140, %v6141
  %v6143 = vrot.slane %v6142, 2
  %v6144 = vmax.f32 %v6142, %v6143
  %v6145 = vrot.slane %v6144, 1
  %v6146 = vmax.f32 %v6144, %v6145
  %v6147 = vsel %vm5586, %v4506, -inf
  %v6148 = vrot.slane %v6147, 4
  %v6149 = vmax.f32 %v6147, %v6148
  %v6150 = vrot.slane %v6149, 2
  %v6151 = vmax.f32 %v6149, %v6150
  %v6152 = vrot.slane %v6151, 1
  %v6153 = vmax.f32 %v6151, %v6152
  %v6154 = vsel %vm5586, %v4507, -inf
  %v6155 = vrot.slane %v6154, 4
  %v6156 = vmax.f32 %v6154, %v6155
  %v6157 = vrot.slane %v6156, 2
  %v6158 = vmax.f32 %v6156, %v6157
  %v6159 = vrot.slane %v6158, 1
  %v6160 = vmax.f32 %v6158, %v6159
  %v6161 = vsel %vm5586, %v4515, -inf
  %v6162 = vrot.slane %v6161, 4
  %v6163 = vmax.f32 %v6161, %v6162
  %v6164 = vrot.slane %v6163, 2
  %v6165 = vmax.f32 %v6163, %v6164
  %v6166 = vrot.slane %v6165, 1
  %v6167 = vmax.f32 %v6165, %v6166
  %v6168 = vsel %vm5586, %v4523, -inf
  %v6169 = vrot.slane %v6168, 4
  %v6170 = vmax.f32 %v6168, %v6169
  %v6171 = vrot.slane %v6170, 2
  %v6172 = vmax.f32 %v6170, %v6171
  %v6173 = vrot.slane %v6172, 1
  %v6174 = vmax.f32 %v6172, %v6173
  %v6175 = vsel %vm5586, %v4522, -inf
  %v6176 = vrot.slane %v6175, 4
  %v6177 = vmax.f32 %v6175, %v6176
  %v6178 = vrot.slane %v6177, 2
  %v6179 = vmax.f32 %v6177, %v6178
  %v6180 = vrot.slane %v6179, 1
  %v6181 = vmax.f32 %v6179, %v6180
  %v6182 = vsel %vm5586, %v4524, -inf
  %v6183 = vrot.slane %v6182, 4
  %v6184 = vmax.f32 %v6182, %v6183
  %v6185 = vrot.slane %v6184, 2
  %v6186 = vmax.f32 %v6184, %v6185
  %v6187 = vrot.slane %v6186, 1
  %v6188 = vmax.f32 %v6186, %v6187
  %v6189 = vsel %vm5586, %v4532, -inf
  %v6190 = vrot.slane %v6189, 4
  %v6191 = vmax.f32 %v6189, %v6190
  %v6192 = vrot.slane %v6191, 2
  %v6193 = vmax.f32 %v6191, %v6192
  %v6194 = vrot.slane %v6193, 1
  %v6195 = vmax.f32 %v6193, %v6194
  %v6196 = vsel %vm5586, %v4540, -inf
  %v6197 = vrot.slane %v6196, 4
  %v6198 = vmax.f32 %v6196, %v6197
  %v6199 = vrot.slane %v6198, 2
  %v6200 = vmax.f32 %v6198, %v6199
  %v6201 = vrot.slane %v6200, 1
  %v6202 = vmax.f32 %v6200, %v6201
  %v6203 = vsel %vm5586, %v4541, -inf
  %v6204 = vrot.slane %v6203, 4
  %v6205 = vmax.f32 %v6203, %v6204
  %v6206 = vrot.slane %v6205, 2
  %v6207 = vmax.f32 %v6205, %v6206
  %v6208 = vrot.slane %v6207, 1
  %v6209 = vmax.f32 %v6207, %v6208
  %v6210 = vsel %vm5586, %v4549, -inf
  %v6211 = vrot.slane %v6210, 4
  %v6212 = vmax.f32 %v6210, %v6211
  %v6213 = vrot.slane %v6212, 2
  %v6214 = vmax.f32 %v6212, %v6213
  %v6215 = vrot.slane %v6214, 1
  %v6216 = vmax.f32 %v6214, %v6215
  %v6217 = vsel %vm5586, %v4557, -inf
  %v6218 = vrot.slane %v6217, 4
  %v6219 = vmax.f32 %v6217, %v6218
  %v6220 = vrot.slane %v6219, 2
  %v6221 = vmax.f32 %v6219, %v6220
  %v6222 = vrot.slane %v6221, 1
  %v6223 = vmax.f32 %v6221, %v6222
  %v6224 = vsel %vm5586, %v4556, -inf
  %v6225 = vrot.slane %v6224, 4
  %v6226 = vmax.f32 %v6224, %v6225
  %v6227 = vrot.slane %v6226, 2
  %v6228 = vmax.f32 %v6226, %v6227
  %v6229 = vrot.slane %v6228, 1
  %v6230 = vmax.f32 %v6228, %v6229
  %v6231 = vsel %vm5586, %v4558, -inf
  %v6232 = vrot.slane %v6231, 4
  %v6233 = vmax.f32 %v6231, %v6232
  %v6234 = vrot.slane %v6233, 2
  %v6235 = vmax.f32 %v6233, %v6234
  %v6236 = vrot.slane %v6235, 1
  %v6237 = vmax.f32 %v6235, %v6236
  %v6238 = vsel %vm5586, %v4566, -inf
  %v6239 = vrot.slane %v6238, 4
  %v6240 = vmax.f32 %v6238, %v6239
  %v6241 = vrot.slane %v6240, 2
  %v6242 = vmax.f32 %v6240, %v6241
  %v6243 = vrot.slane %v6242, 1
  %v6244 = vmax.f32 %v6242, %v6243
  %v6245 = vsel %vm5586, %v4574, -inf
  %v6246 = vrot.slane %v6245, 4
  %v6247 = vmax.f32 %v6245, %v6246
  %v6248 = vrot.slane %v6247, 2
  %v6249 = vmax.f32 %v6247, %v6248
  %v6250 = vrot.slane %v6249, 1
  %v6251 = vmax.f32 %v6249, %v6250
  %v6252 = vsel %vm5586, %v4573, -inf
  %v6253 = vrot.slane %v6252, 4
  %v6254 = vmax.f32 %v6252, %v6253
  %v6255 = vrot.slane %v6254, 2
  %v6256 = vmax.f32 %v6254, %v6255
  %v6257 = vrot.slane %v6256, 1
  %v6258 = vmax.f32 %v6256, %v6257
  %v6259 = vsel %vm5586, %v4582, -inf
  %v6260 = vrot.slane %v6259, 4
  %v6261 = vmax.f32 %v6259, %v6260
  %v6262 = vrot.slane %v6261, 2
  %v6263 = vmax.f32 %v6261, %v6262
  %v6264 = vrot.slane %v6263, 1
  %v6265 = vmax.f32 %v6263, %v6264
  %v6266 = vsel %vm5586, %v4590, -inf
  %v6267 = vrot.slane %v6266, 4
  %v6268 = vmax.f32 %v6266, %v6267
  %v6269 = vrot.slane %v6268, 2
  %v6270 = vmax.f32 %v6268, %v6269
  %v6271 = vrot.slane %v6270, 1
  %v6272 = vmax.f32 %v6270, %v6271
  %v6273 = vsel %vm5586, %v4589, -inf
  %v6274 = vrot.slane %v6273, 4
  %v6275 = vmax.f32 %v6273, %v6274
  %v6276 = vrot.slane %v6275, 2
  %v6277 = vmax.f32 %v6275, %v6276
  %v6278 = vrot.slane %v6277, 1
  %v6279 = vmax.f32 %v6277, %v6278
  %v6280 = vsel %vm5586, %v4591, -inf
  %v6281 = vrot.slane %v6280, 4
  %v6282 = vmax.f32 %v6280, %v6281
  %v6283 = vrot.slane %v6282, 2
  %v6284 = vmax.f32 %v6282, %v6283
  %v6285 = vrot.slane %v6284, 1
  %v6286 = vmax.f32 %v6284, %v6285
  %v6287 = vsel %vm5586, %v4599, -inf
  %v6288 = vrot.slane %v6287, 4
  %v6289 = vmax.f32 %v6287, %v6288
  %v6290 = vrot.slane %v6289, 2
  %v6291 = vmax.f32 %v6289, %v6290
  %v6292 = vrot.slane %v6291, 1
  %v6293 = vmax.f32 %v6291, %v6292
  %v6294 = vsel %vm5586, %v4607, -inf
  %v6295 = vrot.slane %v6294, 4
  %v6296 = vmax.f32 %v6294, %v6295
  %v6297 = vrot.slane %v6296, 2
  %v6298 = vmax.f32 %v6296, %v6297
  %v6299 = vrot.slane %v6298, 1
  %v6300 = vmax.f32 %v6298, %v6299
  %v6301 = vsel %vm5586, %v4606, -inf
  %v6302 = vrot.slane %v6301, 4
  %v6303 = vmax.f32 %v6301, %v6302
  %v6304 = vrot.slane %v6303, 2
  %v6305 = vmax.f32 %v6303, %v6304
  %v6306 = vrot.slane %v6305, 1
  %v6307 = vmax.f32 %v6305, %v6306
  %v6308 = vsel %vm5586, %v4608, -inf
  %v6309 = vrot.slane %v6308, 4
  %v6310 = vmax.f32 %v6308, %v6309
  %v6311 = vrot.slane %v6310, 2
  %v6312 = vmax.f32 %v6310, %v6311
  %v6313 = vrot.slane %v6312, 1
  %v6314 = vmax.f32 %v6312, %v6313
  %v6315 = vsel %vm5586, %v4624, -inf
  %v6316 = vrot.slane %v6315, 4
  %v6317 = vmax.f32 %v6315, %v6316
  %v6318 = vrot.slane %v6317, 2
  %v6319 = vmax.f32 %v6317, %v6318
  %v6320 = vrot.slane %v6319, 1
  %v6321 = vmax.f32 %v6319, %v6320
  %v6322 = vsel %vm5586, %v4623, -inf
  %v6323 = vrot.slane %v6322, 4
  %v6324 = vmax.f32 %v6322, %v6323
  %v6325 = vrot.slane %v6324, 2
  %v6326 = vmax.f32 %v6324, %v6325
  %v6327 = vrot.slane %v6326, 1
  %v6328 = vmax.f32 %v6326, %v6327
  %v6329 = vsel %vm5586, %v4625, -inf
  %v6330 = vrot.slane %v6329, 4
  %v6331 = vmax.f32 %v6329, %v6330
  %v6332 = vrot.slane %v6331, 2
  %v6333 = vmax.f32 %v6331, %v6332
  %v6334 = vrot.slane %v6333, 1
  %v6335 = vmax.f32 %v6333, %v6334
  %v6336 = vsel %vm5586, %v4633, -inf
  %v6337 = vrot.slane %v6336, 4
  %v6338 = vmax.f32 %v6336, %v6337
  %v6339 = vrot.slane %v6338, 2
  %v6340 = vmax.f32 %v6338, %v6339
  %v6341 = vrot.slane %v6340, 1
  %v6342 = vmax.f32 %v6340, %v6341
  %v6343 = vsel %vm5586, %v4641, -inf
  %v6344 = vrot.slane %v6343, 4
  %v6345 = vmax.f32 %v6343, %v6344
  %v6346 = vrot.slane %v6345, 2
  %v6347 = vmax.f32 %v6345, %v6346
  %v6348 = vrot.slane %v6347, 1
  %v6349 = vmax.f32 %v6347, %v6348
  %v6350 = vsel %vm5586, %v4640, -inf
  %v6351 = vrot.slane %v6350, 4
  %v6352 = vmax.f32 %v6350, %v6351
  %v6353 = vrot.slane %v6352, 2
  %v6354 = vmax.f32 %v6352, %v6353
  %v6355 = vrot.slane %v6354, 1
  %v6356 = vmax.f32 %v6354, %v6355
  %v6357 = vsel %vm5586, %v4642, -inf
  %v6358 = vrot.slane %v6357, 4
  %v6359 = vmax.f32 %v6357, %v6358
  %v6360 = vrot.slane %v6359, 2
  %v6361 = vmax.f32 %v6359, %v6360
  %v6362 = vrot.slane %v6361, 1
  %v6363 = vmax.f32 %v6361, %v6362
  %v6364 = vsel %vm5586, %v4650, -inf
  %v6365 = vrot.slane %v6364, 4
  %v6366 = vmax.f32 %v6364, %v6365
  %v6367 = vrot.slane %v6366, 2
  %v6368 = vmax.f32 %v6366, %v6367
  %v6369 = vrot.slane %v6368, 1
  %v6370 = vmax.f32 %v6368, %v6369
  %v6371 = vsel %vm5586, %v4657, -inf
  %v6372 = vrot.slane %v6371, 4
  %v6373 = vmax.f32 %v6371, %v6372
  %v6374 = vrot.slane %v6373, 2
  %v6375 = vmax.f32 %v6373, %v6374
  %v6376 = vrot.slane %v6375, 1
  %v6377 = vmax.f32 %v6375, %v6376
  %v6378 = vsel %vm5586, %v4658, -inf
  %v6379 = vrot.slane %v6378, 4
  %v6380 = vmax.f32 %v6378, %v6379
  %v6381 = vrot.slane %v6380, 2
  %v6382 = vmax.f32 %v6380, %v6381
  %v6383 = vrot.slane %v6382, 1
  %v6384 = vmax.f32 %v6382, %v6383
  %v6385 = vsel %vm5586, %v4666, -inf
  %v6386 = vrot.slane %v6385, 4
  %v6387 = vmax.f32 %v6385, %v6386
  %v6388 = vrot.slane %v6387, 2
  %v6389 = vmax.f32 %v6387, %v6388
  %v6390 = vrot.slane %v6389, 1
  %v6391 = vmax.f32 %v6389, %v6390
  %v6392 = vsel %vm5586, %v4674, -inf
  %v6393 = vrot.slane %v6392, 4
  %v6394 = vmax.f32 %v6392, %v6393
  %v6395 = vrot.slane %v6394, 2
  %v6396 = vmax.f32 %v6394, %v6395
  %v6397 = vrot.slane %v6396, 1
  %v6398 = vmax.f32 %v6396, %v6397
  %v6399 = vsel %vm5586, %v4673, -inf
  %v6400 = vrot.slane %v6399, 4
  %v6401 = vmax.f32 %v6399, %v6400
  %v6402 = vrot.slane %v6401, 2
  %v6403 = vmax.f32 %v6401, %v6402
  %v6404 = vrot.slane %v6403, 1
  %v6405 = vmax.f32 %v6403, %v6404
  %v6406 = vsel %vm5586, %v4675, -inf
  %v6407 = vrot.slane %v6406, 4
  %v6408 = vmax.f32 %v6406, %v6407
  %v6409 = vrot.slane %v6408, 2
  %v6410 = vmax.f32 %v6408, %v6409
  %v6411 = vrot.slane %v6410, 1
  %v6412 = vmax.f32 %v6410, %v6411
  %v6413 = vsel %vm5586, %v4683, -inf
  %v6414 = vrot.slane %v6413, 4
  %v6415 = vmax.f32 %v6413, %v6414
  %v6416 = vrot.slane %v6415, 2
  %v6417 = vmax.f32 %v6415, %v6416
  %v6418 = vrot.slane %v6417, 1
  %v6419 = vmax.f32 %v6417, %v6418
  %v6420 = vsel %vm5586, %v4691, -inf
  %v6421 = vrot.slane %v6420, 4
  %v6422 = vmax.f32 %v6420, %v6421
  %v6423 = vrot.slane %v6422, 2
  %v6424 = vmax.f32 %v6422, %v6423
  %v6425 = vrot.slane %v6424, 1
  %v6426 = vmax.f32 %v6424, %v6425
  %v6427 = vsel %vm5586, %v4692, -inf
  %v6428 = vrot.slane %v6427, 4
  %v6429 = vmax.f32 %v6427, %v6428
  %v6430 = vrot.slane %v6429, 2
  %v6431 = vmax.f32 %v6429, %v6430
  %v6432 = vrot.slane %v6431, 1
  %v6433 = vmax.f32 %v6431, %v6432
  %v6434 = vsel %vm5586, %v4700, -inf
  %v6435 = vrot.slane %v6434, 4
  %v6436 = vmax.f32 %v6434, %v6435
  %v6437 = vrot.slane %v6436, 2
  %v6438 = vmax.f32 %v6436, %v6437
  %v6439 = vrot.slane %v6438, 1
  %v6440 = vmax.f32 %v6438, %v6439
  %v6441 = vsel %vm5586, %v4708, -inf
  %v6442 = vrot.slane %v6441, 4
  %v6443 = vmax.f32 %v6441, %v6442
  %v6444 = vrot.slane %v6443, 2
  %v6445 = vmax.f32 %v6443, %v6444
  %v6446 = vrot.slane %v6445, 1
  %v6447 = vmax.f32 %v6445, %v6446
  %v6448 = vsel %vm5586, %v4707, -inf
  %v6449 = vrot.slane %v6448, 4
  %v6450 = vmax.f32 %v6448, %v6449
  %v6451 = vrot.slane %v6450, 2
  %v6452 = vmax.f32 %v6450, %v6451
  %v6453 = vrot.slane %v6452, 1
  %v6454 = vmax.f32 %v6452, %v6453
  %v6455 = vsel %vm5586, %v4709, -inf
  %v6456 = vrot.slane %v6455, 4
  %v6457 = vmax.f32 %v6455, %v6456
  %v6458 = vrot.slane %v6457, 2
  %v6459 = vmax.f32 %v6457, %v6458
  %v6460 = vrot.slane %v6459, 1
  %v6461 = vmax.f32 %v6459, %v6460
  %v6462 = vsel %vm5586, %v4717, -inf
  %v6463 = vrot.slane %v6462, 4
  %v6464 = vmax.f32 %v6462, %v6463
  %v6465 = vrot.slane %v6464, 2
  %v6466 = vmax.f32 %v6464, %v6465
  %v6467 = vrot.slane %v6466, 1
  %v6468 = vmax.f32 %v6466, %v6467
  %v6469 = vsel %vm5586, %v4725, -inf
  %v6470 = vrot.slane %v6469, 4
  %v6471 = vmax.f32 %v6469, %v6470
  %v6472 = vrot.slane %v6471, 2
  %v6473 = vmax.f32 %v6471, %v6472
  %v6474 = vrot.slane %v6473, 1
  %v6475 = vmax.f32 %v6473, %v6474
  %v6476 = vsel %vm5586, %v4724, -inf
  %v6477 = vrot.slane %v6476, 4
  %v6478 = vmax.f32 %v6476, %v6477
  %v6479 = vrot.slane %v6478, 2
  %v6480 = vmax.f32 %v6478, %v6479
  %v6481 = vrot.slane %v6480, 1
  %v6482 = vmax.f32 %v6480, %v6481
  %v6483 = vsel %vm5586, %v4733, -inf
  %v6484 = vrot.slane %v6483, 4
  %v6485 = vmax.f32 %v6483, %v6484
  %v6486 = vrot.slane %v6485, 2
  %v6487 = vmax.f32 %v6485, %v6486
  %v6488 = vrot.slane %v6487, 1
  %v6489 = vmax.f32 %v6487, %v6488
  %v6490 = vsel %vm5586, %v4741, -inf
  %v6491 = vrot.slane %v6490, 4
  %v6492 = vmax.f32 %v6490, %v6491
  %v6493 = vrot.slane %v6492, 2
  %v6494 = vmax.f32 %v6492, %v6493
  %v6495 = vrot.slane %v6494, 1
  %v6496 = vmax.f32 %v6494, %v6495
  %v6497 = vsel %vm5586, %v4740, -inf
  %v6498 = vrot.slane %v6497, 4
  %v6499 = vmax.f32 %v6497, %v6498
  %v6500 = vrot.slane %v6499, 2
  %v6501 = vmax.f32 %v6499, %v6500
  %v6502 = vrot.slane %v6501, 1
  %v6503 = vmax.f32 %v6501, %v6502
  %v6504 = vsel %vm5586, %v4742, -inf
  %v6505 = vrot.slane %v6504, 4
  %v6506 = vmax.f32 %v6504, %v6505
  %v6507 = vrot.slane %v6506, 2
  %v6508 = vmax.f32 %v6506, %v6507
  %v6509 = vrot.slane %v6508, 1
  %v6510 = vmax.f32 %v6508, %v6509
  %v6511 = vsel %vm5586, %v4750, -inf
  %v6512 = vrot.slane %v6511, 4
  %v6513 = vmax.f32 %v6511, %v6512
  %v6514 = vrot.slane %v6513, 2
  %v6515 = vmax.f32 %v6513, %v6514
  %v6516 = vrot.slane %v6515, 1
  %v6517 = vmax.f32 %v6515, %v6516
  %v6518 = vsel %vm5586, %v4758, -inf
  %v6519 = vrot.slane %v6518, 4
  %v6520 = vmax.f32 %v6518, %v6519
  %v6521 = vrot.slane %v6520, 2
  %v6522 = vmax.f32 %v6520, %v6521
  %v6523 = vrot.slane %v6522, 1
  %v6524 = vmax.f32 %v6522, %v6523
  %v6525 = vsel %vm5586, %v4757, -inf
  %v6526 = vrot.slane %v6525, 4
  %v6527 = vmax.f32 %v6525, %v6526
  %v6528 = vrot.slane %v6527, 2
  %v6529 = vmax.f32 %v6527, %v6528
  %v6530 = vrot.slane %v6529, 1
  %v6531 = vmax.f32 %v6529, %v6530
  %v6532 = vsel %vm5586, %v4759, -inf
  %v6533 = vrot.slane %v6532, 4
  %v6534 = vmax.f32 %v6532, %v6533
  %v6535 = vrot.slane %v6534, 2
  %v6536 = vmax.f32 %v6534, %v6535
  %v6537 = vrot.slane %v6536, 1
  %v6538 = vmax.f32 %v6536, %v6537
  %v6539 = vsel %vm5586, %v4775, -inf
  %v6540 = vrot.slane %v6539, 4
  %v6541 = vmax.f32 %v6539, %v6540
  %v6542 = vrot.slane %v6541, 2
  %v6543 = vmax.f32 %v6541, %v6542
  %v6544 = vrot.slane %v6543, 1
  %v6545 = vmax.f32 %v6543, %v6544
  %v6546 = vsel %vm5586, %v4774, -inf
  %v6547 = vrot.slane %v6546, 4
  %v6548 = vmax.f32 %v6546, %v6547
  %v6549 = vrot.slane %v6548, 2
  %v6550 = vmax.f32 %v6548, %v6549
  %v6551 = vrot.slane %v6550, 1
  %v6552 = vmax.f32 %v6550, %v6551
  %v6553 = vsel %vm5586, %v4776, -inf
  %v6554 = vrot.slane %v6553, 4
  %v6555 = vmax.f32 %v6553, %v6554
  %v6556 = vrot.slane %v6555, 2
  %v6557 = vmax.f32 %v6555, %v6556
  %v6558 = vrot.slane %v6557, 1
  %v6559 = vmax.f32 %v6557, %v6558
  %v6560 = vsel %vm5586, %v4784, -inf
  %v6561 = vrot.slane %v6560, 4
  %v6562 = vmax.f32 %v6560, %v6561
  %v6563 = vrot.slane %v6562, 2
  %v6564 = vmax.f32 %v6562, %v6563
  %v6565 = vrot.slane %v6564, 1
  %v6566 = vmax.f32 %v6564, %v6565
  %v6567 = vsel %vm5586, %v4792, -inf
  %v6568 = vrot.slane %v6567, 4
  %v6569 = vmax.f32 %v6567, %v6568
  %v6570 = vrot.slane %v6569, 2
  %v6571 = vmax.f32 %v6569, %v6570
  %v6572 = vrot.slane %v6571, 1
  %v6573 = vmax.f32 %v6571, %v6572
  %v6574 = vsel %vm5586, %v4791, -inf
  %v6575 = vrot.slane %v6574, 4
  %v6576 = vmax.f32 %v6574, %v6575
  %v6577 = vrot.slane %v6576, 2
  %v6578 = vmax.f32 %v6576, %v6577
  %v6579 = vrot.slane %v6578, 1
  %v6580 = vmax.f32 %v6578, %v6579
  %v6581 = vsel %vm5586, %v4793, -inf
  %v6582 = vrot.slane %v6581, 4
  %v6583 = vmax.f32 %v6581, %v6582
  %v6584 = vrot.slane %v6583, 2
  %v6585 = vmax.f32 %v6583, %v6584
  %v6586 = vrot.slane %v6585, 1
  %v6587 = vmax.f32 %v6585, %v6586
  %v6588 = vsel %vm5586, %v4801, -inf
  %v6589 = vrot.slane %v6588, 4
  %v6590 = vmax.f32 %v6588, %v6589
  %v6591 = vrot.slane %v6590, 2
  %v6592 = vmax.f32 %v6590, %v6591
  %v6593 = vrot.slane %v6592, 1
  %v6594 = vmax.f32 %v6592, %v6593
  %v6595 = vsel %vm5586, %v4808, -inf
  %v6596 = vrot.slane %v6595, 4
  %v6597 = vmax.f32 %v6595, %v6596
  %v6598 = vrot.slane %v6597, 2
  %v6599 = vmax.f32 %v6597, %v6598
  %v6600 = vrot.slane %v6599, 1
  %v6601 = vmax.f32 %v6599, %v6600
  %v6602 = vsel %vm5586, %v4809, -inf
  %v6603 = vrot.slane %v6602, 4
  %v6604 = vmax.f32 %v6602, %v6603
  %v6605 = vrot.slane %v6604, 2
  %v6606 = vmax.f32 %v6604, %v6605
  %v6607 = vrot.slane %v6606, 1
  %v6608 = vmax.f32 %v6606, %v6607
  %v6609 = vsel %vm5586, %v4817, -inf
  %v6610 = vrot.slane %v6609, 4
  %v6611 = vmax.f32 %v6609, %v6610
  %v6612 = vrot.slane %v6611, 2
  %v6613 = vmax.f32 %v6611, %v6612
  %v6614 = vrot.slane %v6613, 1
  %v6615 = vmax.f32 %v6613, %v6614
  %v6616 = vsel %vm5586, %v4825, -inf
  %v6617 = vrot.slane %v6616, 4
  %v6618 = vmax.f32 %v6616, %v6617
  %v6619 = vrot.slane %v6618, 2
  %v6620 = vmax.f32 %v6618, %v6619
  %v6621 = vrot.slane %v6620, 1
  %v6622 = vmax.f32 %v6620, %v6621
  %v6623 = vsel %vm5586, %v4824, -inf
  %v6624 = vrot.slane %v6623, 4
  %v6625 = vmax.f32 %v6623, %v6624
  %v6626 = vrot.slane %v6625, 2
  %v6627 = vmax.f32 %v6625, %v6626
  %v6628 = vrot.slane %v6627, 1
  %v6629 = vmax.f32 %v6627, %v6628
  %v6630 = vsel %vm5586, %v4826, -inf
  %v6631 = vrot.slane %v6630, 4
  %v6632 = vmax.f32 %v6630, %v6631
  %v6633 = vrot.slane %v6632, 2
  %v6634 = vmax.f32 %v6632, %v6633
  %v6635 = vrot.slane %v6634, 1
  %v6636 = vmax.f32 %v6634, %v6635
  %v6637 = vsel %vm5586, %v4834, -inf
  %v6638 = vrot.slane %v6637, 4
  %v6639 = vmax.f32 %v6637, %v6638
  %v6640 = vrot.slane %v6639, 2
  %v6641 = vmax.f32 %v6639, %v6640
  %v6642 = vrot.slane %v6641, 1
  %v6643 = vmax.f32 %v6641, %v6642
  %v6644 = vsel %vm5586, %v4842, -inf
  %v6645 = vrot.slane %v6644, 4
  %v6646 = vmax.f32 %v6644, %v6645
  %v6647 = vrot.slane %v6646, 2
  %v6648 = vmax.f32 %v6646, %v6647
  %v6649 = vrot.slane %v6648, 1
  %v6650 = vmax.f32 %v6648, %v6649
  %v6651 = vsel %vm5586, %v4843, -inf
  %v6652 = vrot.slane %v6651, 4
  %v6653 = vmax.f32 %v6651, %v6652
  %v6654 = vrot.slane %v6653, 2
  %v6655 = vmax.f32 %v6653, %v6654
  %v6656 = vrot.slane %v6655, 1
  %v6657 = vmax.f32 %v6655, %v6656
  %v6658 = vsel %vm5586, %v4851, -inf
  %v6659 = vrot.slane %v6658, 4
  %v6660 = vmax.f32 %v6658, %v6659
  %v6661 = vrot.slane %v6660, 2
  %v6662 = vmax.f32 %v6660, %v6661
  %v6663 = vrot.slane %v6662, 1
  %v6664 = vmax.f32 %v6662, %v6663
  %v6665 = vsel %vm5586, %v4859, -inf
  %v6666 = vrot.slane %v6665, 4
  %v6667 = vmax.f32 %v6665, %v6666
  %v6668 = vrot.slane %v6667, 2
  %v6669 = vmax.f32 %v6667, %v6668
  %v6670 = vrot.slane %v6669, 1
  %v6671 = vmax.f32 %v6669, %v6670
  %v6672 = vsel %vm5586, %v4858, -inf
  %v6673 = vrot.slane %v6672, 4
  %v6674 = vmax.f32 %v6672, %v6673
  %v6675 = vrot.slane %v6674, 2
  %v6676 = vmax.f32 %v6674, %v6675
  %v6677 = vrot.slane %v6676, 1
  %v6678 = vmax.f32 %v6676, %v6677
  %v6679 = vsel %vm5586, %v4860, -inf
  %v6680 = vrot.slane %v6679, 4
  %v6681 = vmax.f32 %v6679, %v6680
  %v6682 = vrot.slane %v6681, 2
  %v6683 = vmax.f32 %v6681, %v6682
  %v6684 = vrot.slane %v6683, 1
  %v6685 = vmax.f32 %v6683, %v6684
  %v6686 = vsel %vm5586, %v4868, -inf
  %v6687 = vrot.slane %v6686, 4
  %v6688 = vmax.f32 %v6686, %v6687
  %v6689 = vrot.slane %v6688, 2
  %v6690 = vmax.f32 %v6688, %v6689
  %v6691 = vrot.slane %v6690, 1
  %v6692 = vmax.f32 %v6690, %v6691
  %v6693 = vsel %vm5586, %v4876, -inf
  %v6694 = vrot.slane %v6693, 4
  %v6695 = vmax.f32 %v6693, %v6694
  %v6696 = vrot.slane %v6695, 2
  %v6697 = vmax.f32 %v6695, %v6696
  %v6698 = vrot.slane %v6697, 1
  %v6699 = vmax.f32 %v6697, %v6698
  %v6700 = vsel %vm5586, %v4875, -inf
  %v6701 = vrot.slane %v6700, 4
  %v6702 = vmax.f32 %v6700, %v6701
  %v6703 = vrot.slane %v6702, 2
  %v6704 = vmax.f32 %v6702, %v6703
  %v6705 = vrot.slane %v6704, 1
  %v6706 = vmax.f32 %v6704, %v6705
  %v6707 = vsel %vm5586, %v4884, -inf
  %v6708 = vrot.slane %v6707, 4
  %v6709 = vmax.f32 %v6707, %v6708
  %v6710 = vrot.slane %v6709, 2
  %v6711 = vmax.f32 %v6709, %v6710
  %v6712 = vrot.slane %v6711, 1
  %v6713 = vmax.f32 %v6711, %v6712
  %v6714 = vsel %vm5586, %v4892, -inf
  %v6715 = vrot.slane %v6714, 4
  %v6716 = vmax.f32 %v6714, %v6715
  %v6717 = vrot.slane %v6716, 2
  %v6718 = vmax.f32 %v6716, %v6717
  %v6719 = vrot.slane %v6718, 1
  %v6720 = vmax.f32 %v6718, %v6719
  %v6721 = vsel %vm5586, %v4891, -inf
  %v6722 = vrot.slane %v6721, 4
  %v6723 = vmax.f32 %v6721, %v6722
  %v6724 = vrot.slane %v6723, 2
  %v6725 = vmax.f32 %v6723, %v6724
  %v6726 = vrot.slane %v6725, 1
  %v6727 = vmax.f32 %v6725, %v6726
  %v6728 = vsel %vm5586, %v4893, -inf
  %v6729 = vrot.slane %v6728, 4
  %v6730 = vmax.f32 %v6728, %v6729
  %v6731 = vrot.slane %v6730, 2
  %v6732 = vmax.f32 %v6730, %v6731
  %v6733 = vrot.slane %v6732, 1
  %v6734 = vmax.f32 %v6732, %v6733
  %v6735 = vsel %vm5586, %v4901, -inf
  %v6736 = vrot.slane %v6735, 4
  %v6737 = vmax.f32 %v6735, %v6736
  %v6738 = vrot.slane %v6737, 2
  %v6739 = vmax.f32 %v6737, %v6738
  %v6740 = vrot.slane %v6739, 1
  %v6741 = vmax.f32 %v6739, %v6740
  %v6742 = vsel %vm5586, %v4909, -inf
  %v6743 = vrot.slane %v6742, 4
  %v6744 = vmax.f32 %v6742, %v6743
  %v6745 = vrot.slane %v6744, 2
  %v6746 = vmax.f32 %v6744, %v6745
  %v6747 = vrot.slane %v6746, 1
  %v6748 = vmax.f32 %v6746, %v6747
  %v6749 = vsel %vm5586, %v4908, -inf
  %v6750 = vrot.slane %v6749, 4
  %v6751 = vmax.f32 %v6749, %v6750
  %v6752 = vrot.slane %v6751, 2
  %v6753 = vmax.f32 %v6751, %v6752
  %v6754 = vrot.slane %v6753, 1
  %v6755 = vmax.f32 %v6753, %v6754
  %v6756 = vsel %vm5586, %v4910, -inf
  %v6757 = vrot.slane %v6756, 4
  %v6758 = vmax.f32 %v6756, %v6757
  %v6759 = vrot.slane %v6758, 2
  %v6760 = vmax.f32 %v6758, %v6759
  %v6761 = vrot.slane %v6760, 1
  %v6762 = vmax.f32 %v6760, %v6761
  %v6763 = vsel %vm5586, %v4926, -inf
  %v6764 = vrot.slane %v6763, 4
  %v6765 = vmax.f32 %v6763, %v6764
  %v6766 = vrot.slane %v6765, 2
  %v6767 = vmax.f32 %v6765, %v6766
  %v6768 = vrot.slane %v6767, 1
  %v6769 = vmax.f32 %v6767, %v6768
  %v6770 = vsel %vm5586, %v4925, -inf
  %v6771 = vrot.slane %v6770, 4
  %v6772 = vmax.f32 %v6770, %v6771
  %v6773 = vrot.slane %v6772, 2
  %v6774 = vmax.f32 %v6772, %v6773
  %v6775 = vrot.slane %v6774, 1
  %v6776 = vmax.f32 %v6774, %v6775
  %v6777 = vsel %vm5586, %v4927, -inf
  %v6778 = vrot.slane %v6777, 4
  %v6779 = vmax.f32 %v6777, %v6778
  %v6780 = vrot.slane %v6779, 2
  %v6781 = vmax.f32 %v6779, %v6780
  %v6782 = vrot.slane %v6781, 1
  %v6783 = vmax.f32 %v6781, %v6782
  %v6784 = vsel %vm5586, %v4935, -inf
  %v6785 = vrot.slane %v6784, 4
  %v6786 = vmax.f32 %v6784, %v6785
  %v6787 = vrot.slane %v6786, 2
  %v6788 = vmax.f32 %v6786, %v6787
  %v6789 = vrot.slane %v6788, 1
  %v6790 = vmax.f32 %v6788, %v6789
  %v6791 = vsel %vm5586, %v4943, -inf
  %v6792 = vrot.slane %v6791, 4
  %v6793 = vmax.f32 %v6791, %v6792
  %v6794 = vrot.slane %v6793, 2
  %v6795 = vmax.f32 %v6793, %v6794
  %v6796 = vrot.slane %v6795, 1
  %v6797 = vmax.f32 %v6795, %v6796
  %v6798 = vsel %vm5586, %v4942, -inf
  %v6799 = vrot.slane %v6798, 4
  %v6800 = vmax.f32 %v6798, %v6799
  %v6801 = vrot.slane %v6800, 2
  %v6802 = vmax.f32 %v6800, %v6801
  %v6803 = vrot.slane %v6802, 1
  %v6804 = vmax.f32 %v6802, %v6803
  %v6805 = vsel %vm5586, %v4944, -inf
  %v6806 = vrot.slane %v6805, 4
  %v6807 = vmax.f32 %v6805, %v6806
  %v6808 = vrot.slane %v6807, 2
  %v6809 = vmax.f32 %v6807, %v6808
  %v6810 = vrot.slane %v6809, 1
  %v6811 = vmax.f32 %v6809, %v6810
  %v6812 = vsel %vm5586, %v4952, -inf
  %v6813 = vrot.slane %v6812, 4
  %v6814 = vmax.f32 %v6812, %v6813
  %v6815 = vrot.slane %v6814, 2
  %v6816 = vmax.f32 %v6814, %v6815
  %v6817 = vrot.slane %v6816, 1
  %v6818 = vmax.f32 %v6816, %v6817
  %v6819 = vsel %vm5586, %v4959, -inf
  %v6820 = vrot.slane %v6819, 4
  %v6821 = vmax.f32 %v6819, %v6820
  %v6822 = vrot.slane %v6821, 2
  %v6823 = vmax.f32 %v6821, %v6822
  %v6824 = vrot.slane %v6823, 1
  %v6825 = vmax.f32 %v6823, %v6824
  %v6826 = vsel %vm5586, %v4960, -inf
  %v6827 = vrot.slane %v6826, 4
  %v6828 = vmax.f32 %v6826, %v6827
  %v6829 = vrot.slane %v6828, 2
  %v6830 = vmax.f32 %v6828, %v6829
  %v6831 = vrot.slane %v6830, 1
  %v6832 = vmax.f32 %v6830, %v6831
  %v6833 = vsel %vm5586, %v4968, -inf
  %v6834 = vrot.slane %v6833, 4
  %v6835 = vmax.f32 %v6833, %v6834
  %v6836 = vrot.slane %v6835, 2
  %v6837 = vmax.f32 %v6835, %v6836
  %v6838 = vrot.slane %v6837, 1
  %v6839 = vmax.f32 %v6837, %v6838
  %v6840 = vsel %vm5586, %v4976, -inf
  %v6841 = vrot.slane %v6840, 4
  %v6842 = vmax.f32 %v6840, %v6841
  %v6843 = vrot.slane %v6842, 2
  %v6844 = vmax.f32 %v6842, %v6843
  %v6845 = vrot.slane %v6844, 1
  %v6846 = vmax.f32 %v6844, %v6845
  %v6847 = vsel %vm5586, %v4975, -inf
  %v6848 = vrot.slane %v6847, 4
  %v6849 = vmax.f32 %v6847, %v6848
  %v6850 = vrot.slane %v6849, 2
  %v6851 = vmax.f32 %v6849, %v6850
  %v6852 = vrot.slane %v6851, 1
  %v6853 = vmax.f32 %v6851, %v6852
  %v6854 = vsel %vm5586, %v4977, -inf
  %v6855 = vrot.slane %v6854, 4
  %v6856 = vmax.f32 %v6854, %v6855
  %v6857 = vrot.slane %v6856, 2
  %v6858 = vmax.f32 %v6856, %v6857
  %v6859 = vrot.slane %v6858, 1
  %v6860 = vmax.f32 %v6858, %v6859
  %v6861 = vsel %vm5586, %v4985, -inf
  %v6862 = vrot.slane %v6861, 4
  %v6863 = vmax.f32 %v6861, %v6862
  %v6864 = vrot.slane %v6863, 2
  %v6865 = vmax.f32 %v6863, %v6864
  %v6866 = vrot.slane %v6865, 1
  %v6867 = vmax.f32 %v6865, %v6866
  %v6868 = vsel %vm5586, %v4993, -inf
  %v6869 = vrot.slane %v6868, 4
  %v6870 = vmax.f32 %v6868, %v6869
  %v6871 = vrot.slane %v6870, 2
  %v6872 = vmax.f32 %v6870, %v6871
  %v6873 = vrot.slane %v6872, 1
  %v6874 = vmax.f32 %v6872, %v6873
  %v6875 = vsel %vm5586, %v4994, -inf
  %v6876 = vrot.slane %v6875, 4
  %v6877 = vmax.f32 %v6875, %v6876
  %v6878 = vrot.slane %v6877, 2
  %v6879 = vmax.f32 %v6877, %v6878
  %v6880 = vrot.slane %v6879, 1
  %v6881 = vmax.f32 %v6879, %v6880
  %v6882 = vsel %vm5586, %v5002, -inf
  %v6883 = vrot.slane %v6882, 4
  %v6884 = vmax.f32 %v6882, %v6883
  %v6885 = vrot.slane %v6884, 2
  %v6886 = vmax.f32 %v6884, %v6885
  %v6887 = vrot.slane %v6886, 1
  %v6888 = vmax.f32 %v6886, %v6887
  %v6889 = vsel %vm5586, %v5010, -inf
  %v6890 = vrot.slane %v6889, 4
  %v6891 = vmax.f32 %v6889, %v6890
  %v6892 = vrot.slane %v6891, 2
  %v6893 = vmax.f32 %v6891, %v6892
  %v6894 = vrot.slane %v6893, 1
  %v6895 = vmax.f32 %v6893, %v6894
  %v6896 = vsel %vm5586, %v5009, -inf
  %v6897 = vrot.slane %v6896, 4
  %v6898 = vmax.f32 %v6896, %v6897
  %v6899 = vrot.slane %v6898, 2
  %v6900 = vmax.f32 %v6898, %v6899
  %v6901 = vrot.slane %v6900, 1
  %v6902 = vmax.f32 %v6900, %v6901
  %v6903 = vsel %vm5586, %v5011, -inf
  %v6904 = vrot.slane %v6903, 4
  %v6905 = vmax.f32 %v6903, %v6904
  %v6906 = vrot.slane %v6905, 2
  %v6907 = vmax.f32 %v6905, %v6906
  %v6908 = vrot.slane %v6907, 1
  %v6909 = vmax.f32 %v6907, %v6908
  %v6910 = vsel %vm5586, %v5019, -inf
  %v6911 = vrot.slane %v6910, 4
  %v6912 = vmax.f32 %v6910, %v6911
  %v6913 = vrot.slane %v6912, 2
  %v6914 = vmax.f32 %v6912, %v6913
  %v6915 = vrot.slane %v6914, 1
  %v6916 = vmax.f32 %v6914, %v6915
  %v6917 = vsel %vm5586, %v5027, -inf
  %v6918 = vrot.slane %v6917, 4
  %v6919 = vmax.f32 %v6917, %v6918
  %v6920 = vrot.slane %v6919, 2
  %v6921 = vmax.f32 %v6919, %v6920
  %v6922 = vrot.slane %v6921, 1
  %v6923 = vmax.f32 %v6921, %v6922
  %v6924 = vsel %vm5586, %v5026, -inf
  %v6925 = vrot.slane %v6924, 4
  %v6926 = vmax.f32 %v6924, %v6925
  %v6927 = vrot.slane %v6926, 2
  %v6928 = vmax.f32 %v6926, %v6927
  %v6929 = vrot.slane %v6928, 1
  %v6930 = vmax.f32 %v6928, %v6929
  %v6931 = vsel %vm5586, %v5035, -inf
  %v6932 = vrot.slane %v6931, 4
  %v6933 = vmax.f32 %v6931, %v6932
  %v6934 = vrot.slane %v6933, 2
  %v6935 = vmax.f32 %v6933, %v6934
  %v6936 = vrot.slane %v6935, 1
  %v6937 = vmax.f32 %v6935, %v6936
  %v6938 = vsel %vm5586, %v5043, -inf
  %v6939 = vrot.slane %v6938, 4
  %v6940 = vmax.f32 %v6938, %v6939
  %v6941 = vrot.slane %v6940, 2
  %v6942 = vmax.f32 %v6940, %v6941
  %v6943 = vrot.slane %v6942, 1
  %v6944 = vmax.f32 %v6942, %v6943
  %v6945 = vsel %vm5586, %v5042, -inf
  %v6946 = vrot.slane %v6945, 4
  %v6947 = vmax.f32 %v6945, %v6946
  %v6948 = vrot.slane %v6947, 2
  %v6949 = vmax.f32 %v6947, %v6948
  %v6950 = vrot.slane %v6949, 1
  %v6951 = vmax.f32 %v6949, %v6950
  %v6952 = vsel %vm5586, %v5044, -inf
  %v6953 = vrot.slane %v6952, 4
  %v6954 = vmax.f32 %v6952, %v6953
  %v6955 = vrot.slane %v6954, 2
  %v6956 = vmax.f32 %v6954, %v6955
  %v6957 = vrot.slane %v6956, 1
  %v6958 = vmax.f32 %v6956, %v6957
  %v6959 = vsel %vm5586, %v5052, -inf
  %v6960 = vrot.slane %v6959, 4
  %v6961 = vmax.f32 %v6959, %v6960
  %v6962 = vrot.slane %v6961, 2
  %v6963 = vmax.f32 %v6961, %v6962
  %v6964 = vrot.slane %v6963, 1
  %v6965 = vmax.f32 %v6963, %v6964
  %v6966 = vsel %vm5586, %v5060, -inf
  %v6967 = vrot.slane %v6966, 4
  %v6968 = vmax.f32 %v6966, %v6967
  %v6969 = vrot.slane %v6968, 2
  %v6970 = vmax.f32 %v6968, %v6969
  %v6971 = vrot.slane %v6970, 1
  %v6972 = vmax.f32 %v6970, %v6971
  %v6973 = vsel %vm5586, %v5059, -inf
  %v6974 = vrot.slane %v6973, 4
  %v6975 = vmax.f32 %v6973, %v6974
  %v6976 = vrot.slane %v6975, 2
  %v6977 = vmax.f32 %v6975, %v6976
  %v6978 = vrot.slane %v6977, 1
  %v6979 = vmax.f32 %v6977, %v6978
  %v6980 = vsel %vm5586, %v5061, -inf
  %v6981 = vrot.slane %v6980, 4
  %v6982 = vmax.f32 %v6980, %v6981
  %v6983 = vrot.slane %v6982, 2
  %v6984 = vmax.f32 %v6982, %v6983
  %v6985 = vrot.slane %v6984, 1
  %v6986 = vmax.f32 %v6984, %v6985
  %v6987 = vsel %vm5586, %v5077, -inf
  %v6988 = vrot.slane %v6987, 4
  %v6989 = vmax.f32 %v6987, %v6988
  %v6990 = vrot.slane %v6989, 2
  %v6991 = vmax.f32 %v6989, %v6990
  %v6992 = vrot.slane %v6991, 1
  %v6993 = vmax.f32 %v6991, %v6992
  %v6994 = vsel %vm5586, %v5076, -inf
  %v6995 = vrot.slane %v6994, 4
  %v6996 = vmax.f32 %v6994, %v6995
  %v6997 = vrot.slane %v6996, 2
  %v6998 = vmax.f32 %v6996, %v6997
  %v6999 = vrot.slane %v6998, 1
  %v7000 = vmax.f32 %v6998, %v6999
  %v7001 = vsel %vm5586, %v5078, -inf
  %v7002 = vrot.slane %v7001, 4
  %v7003 = vmax.f32 %v7001, %v7002
  %v7004 = vrot.slane %v7003, 2
  %v7005 = vmax.f32 %v7003, %v7004
  %v7006 = vrot.slane %v7005, 1
  %v7007 = vmax.f32 %v7005, %v7006
  %v7008 = vsel %vm5586, %v5086, -inf
  %v7009 = vrot.slane %v7008, 4
  %v7010 = vmax.f32 %v7008, %v7009
  %v7011 = vrot.slane %v7010, 2
  %v7012 = vmax.f32 %v7010, %v7011
  %v7013 = vrot.slane %v7012, 1
  %v7014 = vmax.f32 %v7012, %v7013
  %v7015 = vsel %vm5586, %v5094, -inf
  %v7016 = vrot.slane %v7015, 4
  %v7017 = vmax.f32 %v7015, %v7016
  %v7018 = vrot.slane %v7017, 2
  %v7019 = vmax.f32 %v7017, %v7018
  %v7020 = vrot.slane %v7019, 1
  %v7021 = vmax.f32 %v7019, %v7020
  %v7022 = vsel %vm5586, %v5093, -inf
  %v7023 = vrot.slane %v7022, 4
  %v7024 = vmax.f32 %v7022, %v7023
  %v7025 = vrot.slane %v7024, 2
  %v7026 = vmax.f32 %v7024, %v7025
  %v7027 = vrot.slane %v7026, 1
  %v7028 = vmax.f32 %v7026, %v7027
  %v7029 = vsel %vm5586, %v5095, -inf
  %v7030 = vrot.slane %v7029, 4
  %v7031 = vmax.f32 %v7029, %v7030
  %v7032 = vrot.slane %v7031, 2
  %v7033 = vmax.f32 %v7031, %v7032
  %v7034 = vrot.slane %v7033, 1
  %v7035 = vmax.f32 %v7033, %v7034
  %v7036 = vsel %vm5586, %v5103, -inf
  %v7037 = vrot.slane %v7036, 4
  %v7038 = vmax.f32 %v7036, %v7037
  %v7039 = vrot.slane %v7038, 2
  %v7040 = vmax.f32 %v7038, %v7039
  %v7041 = vrot.slane %v7040, 1
  %v7042 = vmax.f32 %v7040, %v7041
  %v7043 = vsel %vm5586, %v5110, -inf
  %v7044 = vrot.slane %v7043, 4
  %v7045 = vmax.f32 %v7043, %v7044
  %v7046 = vrot.slane %v7045, 2
  %v7047 = vmax.f32 %v7045, %v7046
  %v7048 = vrot.slane %v7047, 1
  %v7049 = vmax.f32 %v7047, %v7048
  %v7050 = vsel %vm5586, %v5111, -inf
  %v7051 = vrot.slane %v7050, 4
  %v7052 = vmax.f32 %v7050, %v7051
  %v7053 = vrot.slane %v7052, 2
  %v7054 = vmax.f32 %v7052, %v7053
  %v7055 = vrot.slane %v7054, 1
  %v7056 = vmax.f32 %v7054, %v7055
  %v7057 = vsel %vm5586, %v5119, -inf
  %v7058 = vrot.slane %v7057, 4
  %v7059 = vmax.f32 %v7057, %v7058
  %v7060 = vrot.slane %v7059, 2
  %v7061 = vmax.f32 %v7059, %v7060
  %v7062 = vrot.slane %v7061, 1
  %v7063 = vmax.f32 %v7061, %v7062
  %v7064 = vsel %vm5586, %v5127, -inf
  %v7065 = vrot.slane %v7064, 4
  %v7066 = vmax.f32 %v7064, %v7065
  %v7067 = vrot.slane %v7066, 2
  %v7068 = vmax.f32 %v7066, %v7067
  %v7069 = vrot.slane %v7068, 1
  %v7070 = vmax.f32 %v7068, %v7069
  %v7071 = vsel %vm5586, %v5126, -inf
  %v7072 = vrot.slane %v7071, 4
  %v7073 = vmax.f32 %v7071, %v7072
  %v7074 = vrot.slane %v7073, 2
  %v7075 = vmax.f32 %v7073, %v7074
  %v7076 = vrot.slane %v7075, 1
  %v7077 = vmax.f32 %v7075, %v7076
  %v7078 = vsel %vm5586, %v5128, -inf
  %v7079 = vrot.slane %v7078, 4
  %v7080 = vmax.f32 %v7078, %v7079
  %v7081 = vrot.slane %v7080, 2
  %v7082 = vmax.f32 %v7080, %v7081
  %v7083 = vrot.slane %v7082, 1
  %v7084 = vmax.f32 %v7082, %v7083
  %v7085 = vsel %vm5586, %v5136, -inf
  %v7086 = vrot.slane %v7085, 4
  %v7087 = vmax.f32 %v7085, %v7086
  %v7088 = vrot.slane %v7087, 2
  %v7089 = vmax.f32 %v7087, %v7088
  %v7090 = vrot.slane %v7089, 1
  %v7091 = vmax.f32 %v7089, %v7090
  %v7092 = vsel %vm5586, %v5144, -inf
  %v7093 = vrot.slane %v7092, 4
  %v7094 = vmax.f32 %v7092, %v7093
  %v7095 = vrot.slane %v7094, 2
  %v7096 = vmax.f32 %v7094, %v7095
  %v7097 = vrot.slane %v7096, 1
  %v7098 = vmax.f32 %v7096, %v7097
  %v7099 = vsel %vm5586, %v5145, -inf
  %v7100 = vrot.slane %v7099, 4
  %v7101 = vmax.f32 %v7099, %v7100
  %v7102 = vrot.slane %v7101, 2
  %v7103 = vmax.f32 %v7101, %v7102
  %v7104 = vrot.slane %v7103, 1
  %v7105 = vmax.f32 %v7103, %v7104
  %v7106 = vsel %vm5586, %v5153, -inf
  %v7107 = vrot.slane %v7106, 4
  %v7108 = vmax.f32 %v7106, %v7107
  %v7109 = vrot.slane %v7108, 2
  %v7110 = vmax.f32 %v7108, %v7109
  %v7111 = vrot.slane %v7110, 1
  %v7112 = vmax.f32 %v7110, %v7111
  %v7113 = vsel %vm5586, %v5161, -inf
  %v7114 = vrot.slane %v7113, 4
  %v7115 = vmax.f32 %v7113, %v7114
  %v7116 = vrot.slane %v7115, 2
  %v7117 = vmax.f32 %v7115, %v7116
  %v7118 = vrot.slane %v7117, 1
  %v7119 = vmax.f32 %v7117, %v7118
  %v7120 = vsel %vm5586, %v5160, -inf
  %v7121 = vrot.slane %v7120, 4
  %v7122 = vmax.f32 %v7120, %v7121
  %v7123 = vrot.slane %v7122, 2
  %v7124 = vmax.f32 %v7122, %v7123
  %v7125 = vrot.slane %v7124, 1
  %v7126 = vmax.f32 %v7124, %v7125
  %v7127 = vsel %vm5586, %v5162, -inf
  %v7128 = vrot.slane %v7127, 4
  %v7129 = vmax.f32 %v7127, %v7128
  %v7130 = vrot.slane %v7129, 2
  %v7131 = vmax.f32 %v7129, %v7130
  %v7132 = vrot.slane %v7131, 1
  %v7133 = vmax.f32 %v7131, %v7132
  %v7134 = vsel %vm5586, %v5170, -inf
  %v7135 = vrot.slane %v7134, 4
  %v7136 = vmax.f32 %v7134, %v7135
  %v7137 = vrot.slane %v7136, 2
  %v7138 = vmax.f32 %v7136, %v7137
  %v7139 = vrot.slane %v7138, 1
  %v7140 = vmax.f32 %v7138, %v7139
  %v7141 = vsel %vm5586, %v5178, -inf
  %v7142 = vrot.slane %v7141, 4
  %v7143 = vmax.f32 %v7141, %v7142
  %v7144 = vrot.slane %v7143, 2
  %v7145 = vmax.f32 %v7143, %v7144
  %v7146 = vrot.slane %v7145, 1
  %v7147 = vmax.f32 %v7145, %v7146
  %v7148 = vsel %vm5586, %v5177, -inf
  %v7149 = vrot.slane %v7148, 4
  %v7150 = vmax.f32 %v7148, %v7149
  %v7151 = vrot.slane %v7150, 2
  %v7152 = vmax.f32 %v7150, %v7151
  %v7153 = vrot.slane %v7152, 1
  %v7154 = vmax.f32 %v7152, %v7153
  %v7155 = vsel %vm5586, %v5186, -inf
  %v7156 = vrot.slane %v7155, 4
  %v7157 = vmax.f32 %v7155, %v7156
  %v7158 = vrot.slane %v7157, 2
  %v7159 = vmax.f32 %v7157, %v7158
  %v7160 = vrot.slane %v7159, 1
  %v7161 = vmax.f32 %v7159, %v7160
  %v7162 = vsel %vm5586, %v5194, -inf
  %v7163 = vrot.slane %v7162, 4
  %v7164 = vmax.f32 %v7162, %v7163
  %v7165 = vrot.slane %v7164, 2
  %v7166 = vmax.f32 %v7164, %v7165
  %v7167 = vrot.slane %v7166, 1
  %v7168 = vmax.f32 %v7166, %v7167
  %v7169 = vsel %vm5586, %v5193, -inf
  %v7170 = vrot.slane %v7169, 4
  %v7171 = vmax.f32 %v7169, %v7170
  %v7172 = vrot.slane %v7171, 2
  %v7173 = vmax.f32 %v7171, %v7172
  %v7174 = vrot.slane %v7173, 1
  %v7175 = vmax.f32 %v7173, %v7174
  %v7176 = vsel %vm5586, %v5195, -inf
  %v7177 = vrot.slane %v7176, 4
  %v7178 = vmax.f32 %v7176, %v7177
  %v7179 = vrot.slane %v7178, 2
  %v7180 = vmax.f32 %v7178, %v7179
  %v7181 = vrot.slane %v7180, 1
  %v7182 = vmax.f32 %v7180, %v7181
  %v7183 = vsel %vm5586, %v5203, -inf
  %v7184 = vrot.slane %v7183, 4
  %v7185 = vmax.f32 %v7183, %v7184
  %v7186 = vrot.slane %v7185, 2
  %v7187 = vmax.f32 %v7185, %v7186
  %v7188 = vrot.slane %v7187, 1
  %v7189 = vmax.f32 %v7187, %v7188
  %v7190 = vsel %vm5586, %v5211, -inf
  %v7191 = vrot.slane %v7190, 4
  %v7192 = vmax.f32 %v7190, %v7191
  %v7193 = vrot.slane %v7192, 2
  %v7194 = vmax.f32 %v7192, %v7193
  %v7195 = vrot.slane %v7194, 1
  %v7196 = vmax.f32 %v7194, %v7195
  %v7197 = vsel %vm5586, %v5210, -inf
  %v7198 = vrot.slane %v7197, 4
  %v7199 = vmax.f32 %v7197, %v7198
  %v7200 = vrot.slane %v7199, 2
  %v7201 = vmax.f32 %v7199, %v7200
  %v7202 = vrot.slane %v7201, 1
  %v7203 = vmax.f32 %v7201, %v7202
  %v7204 = vsel %vm5586, %v5212, -inf
  %v7205 = vrot.slane %v7204, 4
  %v7206 = vmax.f32 %v7204, %v7205
  %v7207 = vrot.slane %v7206, 2
  %v7208 = vmax.f32 %v7206, %v7207
  %v7209 = vrot.slane %v7208, 1
  %v7210 = vmax.f32 %v7208, %v7209
  %v7211 = vsel %vm5586, %v5228, -inf
  %v7212 = vrot.slane %v7211, 4
  %v7213 = vmax.f32 %v7211, %v7212
  %v7214 = vrot.slane %v7213, 2
  %v7215 = vmax.f32 %v7213, %v7214
  %v7216 = vrot.slane %v7215, 1
  %v7217 = vmax.f32 %v7215, %v7216
  %v7218 = vsel %vm5586, %v5227, -inf
  %v7219 = vrot.slane %v7218, 4
  %v7220 = vmax.f32 %v7218, %v7219
  %v7221 = vrot.slane %v7220, 2
  %v7222 = vmax.f32 %v7220, %v7221
  %v7223 = vrot.slane %v7222, 1
  %v7224 = vmax.f32 %v7222, %v7223
  %v7225 = vsel %vm5586, %v5229, -inf
  %v7226 = vrot.slane %v7225, 4
  %v7227 = vmax.f32 %v7225, %v7226
  %v7228 = vrot.slane %v7227, 2
  %v7229 = vmax.f32 %v7227, %v7228
  %v7230 = vrot.slane %v7229, 1
  %v7231 = vmax.f32 %v7229, %v7230
  %v7232 = vsel %vm5586, %v5237, -inf
  %v7233 = vrot.slane %v7232, 4
  %v7234 = vmax.f32 %v7232, %v7233
  %v7235 = vrot.slane %v7234, 2
  %v7236 = vmax.f32 %v7234, %v7235
  %v7237 = vrot.slane %v7236, 1
  %v7238 = vmax.f32 %v7236, %v7237
  %v7239 = vsel %vm5586, %v5245, -inf
  %v7240 = vrot.slane %v7239, 4
  %v7241 = vmax.f32 %v7239, %v7240
  %v7242 = vrot.slane %v7241, 2
  %v7243 = vmax.f32 %v7241, %v7242
  %v7244 = vrot.slane %v7243, 1
  %v7245 = vmax.f32 %v7243, %v7244
  %v7246 = vsel %vm5586, %v5244, -inf
  %v7247 = vrot.slane %v7246, 4
  %v7248 = vmax.f32 %v7246, %v7247
  %v7249 = vrot.slane %v7248, 2
  %v7250 = vmax.f32 %v7248, %v7249
  %v7251 = vrot.slane %v7250, 1
  %v7252 = vmax.f32 %v7250, %v7251
  %v7253 = vsel %vm5586, %v5246, -inf
  %v7254 = vrot.slane %v7253, 4
  %v7255 = vmax.f32 %v7253, %v7254
  %v7256 = vrot.slane %v7255, 2
  %v7257 = vmax.f32 %v7255, %v7256
  %v7258 = vrot.slane %v7257, 1
  %v7259 = vmax.f32 %v7257, %v7258
  %v7260 = vsel %vm5586, %v5254, -inf
  %v7261 = vrot.slane %v7260, 4
  %v7262 = vmax.f32 %v7260, %v7261
  %v7263 = vrot.slane %v7262, 2
  %v7264 = vmax.f32 %v7262, %v7263
  %v7265 = vrot.slane %v7264, 1
  %v7266 = vmax.f32 %v7264, %v7265
  %v7267 = vsel %vm5586, %v5261, -inf
  %v7268 = vrot.slane %v7267, 4
  %v7269 = vmax.f32 %v7267, %v7268
  %v7270 = vrot.slane %v7269, 2
  %v7271 = vmax.f32 %v7269, %v7270
  %v7272 = vrot.slane %v7271, 1
  %v7273 = vmax.f32 %v7271, %v7272
  %v7274 = vsel %vm5586, %v5262, -inf
  %v7275 = vrot.slane %v7274, 4
  %v7276 = vmax.f32 %v7274, %v7275
  %v7277 = vrot.slane %v7276, 2
  %v7278 = vmax.f32 %v7276, %v7277
  %v7279 = vrot.slane %v7278, 1
  %v7280 = vmax.f32 %v7278, %v7279
  %v7281 = vsel %vm5586, %v5270, -inf
  %v7282 = vrot.slane %v7281, 4
  %v7283 = vmax.f32 %v7281, %v7282
  %v7284 = vrot.slane %v7283, 2
  %v7285 = vmax.f32 %v7283, %v7284
  %v7286 = vrot.slane %v7285, 1
  %v7287 = vmax.f32 %v7285, %v7286
  %v7288 = vsel %vm5586, %v5278, -inf
  %v7289 = vrot.slane %v7288, 4
  %v7290 = vmax.f32 %v7288, %v7289
  %v7291 = vrot.slane %v7290, 2
  %v7292 = vmax.f32 %v7290, %v7291
  %v7293 = vrot.slane %v7292, 1
  %v7294 = vmax.f32 %v7292, %v7293
  %v7295 = vsel %vm5586, %v5277, -inf
  %v7296 = vrot.slane %v7295, 4
  %v7297 = vmax.f32 %v7295, %v7296
  %v7298 = vrot.slane %v7297, 2
  %v7299 = vmax.f32 %v7297, %v7298
  %v7300 = vrot.slane %v7299, 1
  %v7301 = vmax.f32 %v7299, %v7300
  %v7302 = vsel %vm5586, %v5279, -inf
  %v7303 = vrot.slane %v7302, 4
  %v7304 = vmax.f32 %v7302, %v7303
  %v7305 = vrot.slane %v7304, 2
  %v7306 = vmax.f32 %v7304, %v7305
  %v7307 = vrot.slane %v7306, 1
  %v7308 = vmax.f32 %v7306, %v7307
  %v7309 = vsel %vm5586, %v5287, -inf
  %v7310 = vrot.slane %v7309, 4
  %v7311 = vmax.f32 %v7309, %v7310
  %v7312 = vrot.slane %v7311, 2
  %v7313 = vmax.f32 %v7311, %v7312
  %v7314 = vrot.slane %v7313, 1
  %v7315 = vmax.f32 %v7313, %v7314
  %v7316 = vsel %vm5586, %v5295, -inf
  %v7317 = vrot.slane %v7316, 4
  %v7318 = vmax.f32 %v7316, %v7317
  %v7319 = vrot.slane %v7318, 2
  %v7320 = vmax.f32 %v7318, %v7319
  %v7321 = vrot.slane %v7320, 1
  %v7322 = vmax.f32 %v7320, %v7321
  %v7323 = vsel %vm5586, %v5296, -inf
  %v7324 = vrot.slane %v7323, 4
  %v7325 = vmax.f32 %v7323, %v7324
  %v7326 = vrot.slane %v7325, 2
  %v7327 = vmax.f32 %v7325, %v7326
  %v7328 = vrot.slane %v7327, 1
  %v7329 = vmax.f32 %v7327, %v7328
  %v7330 = vsel %vm5586, %v5304, -inf
  %v7331 = vrot.slane %v7330, 4
  %v7332 = vmax.f32 %v7330, %v7331
  %v7333 = vrot.slane %v7332, 2
  %v7334 = vmax.f32 %v7332, %v7333
  %v7335 = vrot.slane %v7334, 1
  %v7336 = vmax.f32 %v7334, %v7335
  %v7337 = vsel %vm5586, %v5312, -inf
  %v7338 = vrot.slane %v7337, 4
  %v7339 = vmax.f32 %v7337, %v7338
  %v7340 = vrot.slane %v7339, 2
  %v7341 = vmax.f32 %v7339, %v7340
  %v7342 = vrot.slane %v7341, 1
  %v7343 = vmax.f32 %v7341, %v7342
  %v7344 = vsel %vm5586, %v5311, -inf
  %v7345 = vrot.slane %v7344, 4
  %v7346 = vmax.f32 %v7344, %v7345
  %v7347 = vrot.slane %v7346, 2
  %v7348 = vmax.f32 %v7346, %v7347
  %v7349 = vrot.slane %v7348, 1
  %v7350 = vmax.f32 %v7348, %v7349
  %v7351 = vsel %vm5586, %v5313, -inf
  %v7352 = vrot.slane %v7351, 4
  %v7353 = vmax.f32 %v7351, %v7352
  %v7354 = vrot.slane %v7353, 2
  %v7355 = vmax.f32 %v7353, %v7354
  %v7356 = vrot.slane %v7355, 1
  %v7357 = vmax.f32 %v7355, %v7356
  %v7358 = vsel %vm5586, %v5321, -inf
  %v7359 = vrot.slane %v7358, 4
  %v7360 = vmax.f32 %v7358, %v7359
  %v7361 = vrot.slane %v7360, 2
  %v7362 = vmax.f32 %v7360, %v7361
  %v7363 = vrot.slane %v7362, 1
  %v7364 = vmax.f32 %v7362, %v7363
  %v7365 = vsel %vm5586, %v5329, -inf
  %v7366 = vrot.slane %v7365, 4
  %v7367 = vmax.f32 %v7365, %v7366
  %v7368 = vrot.slane %v7367, 2
  %v7369 = vmax.f32 %v7367, %v7368
  %v7370 = vrot.slane %v7369, 1
  %v7371 = vmax.f32 %v7369, %v7370
  %v7372 = vsel %vm5586, %v5328, -inf
  %v7373 = vrot.slane %v7372, 4
  %v7374 = vmax.f32 %v7372, %v7373
  %v7375 = vrot.slane %v7374, 2
  %v7376 = vmax.f32 %v7374, %v7375
  %v7377 = vrot.slane %v7376, 1
  %v7378 = vmax.f32 %v7376, %v7377
  %v7379 = vmax.f32 %v5593, %v5649
  %v7380 = vmax.f32 %v5600, %v5656
  %v7381 = vmax.f32 %v5607, %v5663
  %v7382 = vmax.f32 %v5614, %v5670
  %v7383 = vmax.f32 %v5621, %v5677
  %v7384 = vmax.f32 %v5628, %v5684
  %v7385 = vmax.f32 %v5635, %v5691
  %v7386 = vmax.f32 %v5642, %v5698
  %v7387 = vmax.f32 %v5705, %v5761
  %v7388 = vmax.f32 %v5712, %v5768
  %v7389 = vmax.f32 %v5719, %v5775
  %v7390 = vmax.f32 %v5726, %v5782
  %v7391 = vmax.f32 %v5733, %v5789
  %v7392 = vmax.f32 %v5740, %v5796
  %v7393 = vmax.f32 %v5747, %v5803
  %v7394 = vmax.f32 %v5754, %v5810
  %v7395 = vmax.f32 %v5817, %v5873
  %v7396 = vmax.f32 %v5824, %v5880
  %v7397 = vmax.f32 %v5831, %v5887
  %v7398 = vmax.f32 %v5838, %v5894
  %v7399 = vmax.f32 %v5845, %v5901
  %v7400 = vmax.f32 %v5852, %v5908
  %v7401 = vmax.f32 %v5859, %v5915
  %v7402 = vmax.f32 %v5866, %v5922
  %v7403 = vmax.f32 %v5929, %v5985
  %v7404 = vmax.f32 %v5936, %v5992
  %v7405 = vmax.f32 %v5943, %v5999
  %v7406 = vmax.f32 %v5950, %v6006
  %v7407 = vmax.f32 %v5957, %v6013
  %v7408 = vmax.f32 %v5964, %v6020
  %v7409 = vmax.f32 %v5971, %v6027
  %v7410 = vmax.f32 %v5978, %v6034
  %v7411 = vmax.f32 %v6041, %v6097
  %v7412 = vmax.f32 %v6048, %v6104
  %v7413 = vmax.f32 %v6055, %v6111
  %v7414 = vmax.f32 %v6062, %v6118
  %v7415 = vmax.f32 %v6069, %v6125
  %v7416 = vmax.f32 %v6076, %v6132
  %v7417 = vmax.f32 %v6083, %v6139
  %v7418 = vmax.f32 %v6090, %v6146
  %v7419 = vmax.f32 %v6153, %v6209
  %v7420 = vmax.f32 %v6160, %v6216
  %v7421 = vmax.f32 %v6167, %v6223
  %v7422 = vmax.f32 %v6174, %v6230
  %v7423 = vmax.f32 %v6181, %v6237
  %v7424 = vmax.f32 %v6188, %v6244
  %v7425 = vmax.f32 %v6195, %v6251
  %v7426 = vmax.f32 %v6202, %v6258
  %v7427 = vmax.f32 %v6265, %v6321
  %v7428 = vmax.f32 %v6272, %v6328
  %v7429 = vmax.f32 %v6279, %v6335
  %v7430 = vmax.f32 %v6286, %v6342
  %v7431 = vmax.f32 %v6293, %v6349
  %v7432 = vmax.f32 %v6300, %v6356
  %v7433 = vmax.f32 %v6307, %v6363
  %v7434 = vmax.f32 %v6314, %v6370
  %v7435 = vmax.f32 %v6377, %v6433
  %v7436 = vmax.f32 %v6384, %v6440
  %v7437 = vmax.f32 %v6391, %v6447
  %v7438 = vmax.f32 %v6398, %v6454
  %v7439 = vmax.f32 %v6405, %v6461
  %v7440 = vmax.f32 %v6412, %v6468
  %v7441 = vmax.f32 %v6419, %v6475
  %v7442 = vmax.f32 %v6426, %v6482
  %v7443 = vmax.f32 %v6489, %v6545
  %v7444 = vmax.f32 %v6496, %v6552
  %v7445 = vmax.f32 %v6503, %v6559
  %v7446 = vmax.f32 %v6510, %v6566
  %v7447 = vmax.f32 %v6517, %v6573
  %v7448 = vmax.f32 %v6524, %v6580
  %v7449 = vmax.f32 %v6531, %v6587
  %v7450 = vmax.f32 %v6538, %v6594
  %v7451 = vmax.f32 %v6601, %v6657
  %v7452 = vmax.f32 %v6608, %v6664
  %v7453 = vmax.f32 %v6615, %v6671
  %v7454 = vmax.f32 %v6622, %v6678
  %v7455 = vmax.f32 %v6629, %v6685
  %v7456 = vmax.f32 %v6636, %v6692
  %v7457 = vmax.f32 %v6643, %v6699
  %v7458 = vmax.f32 %v6650, %v6706
  %v7459 = vmax.f32 %v6713, %v6769
  %v7460 = vmax.f32 %v6720, %v6776
  %v7461 = vmax.f32 %v6727, %v6783
  %v7462 = vmax.f32 %v6734, %v6790
  %v7463 = vmax.f32 %v6741, %v6797
  %v7464 = vmax.f32 %v6748, %v6804
  %v7465 = vmax.f32 %v6755, %v6811
  %v7466 = vmax.f32 %v6762, %v6818
  %v7467 = vmax.f32 %v6825, %v6881
  %v7468 = vmax.f32 %v6832, %v6888
  %v7469 = vmax.f32 %v6839, %v6895
  %v7470 = vmax.f32 %v6846, %v6902
  %v7471 = vmax.f32 %v6853, %v6909
  %v7472 = vmax.f32 %v6860, %v6916
  %v7473 = vmax.f32 %v6867, %v6923
  %v7474 = vmax.f32 %v6874, %v6930
  %v7475 = vmax.f32 %v6937, %v6993
  %v7476 = vmax.f32 %v6944, %v7000
  %v7477 = vmax.f32 %v6951, %v7007
  %v7478 = vmax.f32 %v6958, %v7014
  %v7479 = vmax.f32 %v6965, %v7021
  %v7480 = vmax.f32 %v6972, %v7028
  %v7481 = vmax.f32 %v6979, %v7035
  %v7482 = vmax.f32 %v6986, %v7042
  %v7483 = vmax.f32 %v7049, %v7105
  %v7484 = vmax.f32 %v7056, %v7112
  %v7485 = vmax.f32 %v7063, %v7119
  %v7486 = vmax.f32 %v7070, %v7126
  %v7487 = vmax.f32 %v7077, %v7133
  %v7488 = vmax.f32 %v7084, %v7140
  %v7489 = vmax.f32 %v7091, %v7147
  %v7490 = vmax.f32 %v7098, %v7154
  %v7491 = vmax.f32 %v7161, %v7217
  %v7492 = vmax.f32 %v7168, %v7224
  %v7493 = vmax.f32 %v7175, %v7231
  %v7494 = vmax.f32 %v7182, %v7238
  %v7495 = vmax.f32 %v7189, %v7245
  %v7496 = vmax.f32 %v7196, %v7252
  %v7497 = vmax.f32 %v7203, %v7259
  %v7498 = vmax.f32 %v7210, %v7266
  %v7499 = vmax.f32 %v7273, %v7329
  %v7500 = vmax.f32 %v7280, %v7336
  %v7501 = vmax.f32 %v7287, %v7343
  %v7502 = vmax.f32 %v7294, %v7350
  %v7503 = vmax.f32 %v7301, %v7357
  %v7504 = vmax.f32 %v7308, %v7364
  %v7505 = vmax.f32 %v7315, %v7371
  %v7506 = vmax.f32 %v7322, %v7378
  %vm7635 = vcmask 1041409
  %v7636 = vsel %vm7635, %v7380, %v7379
  %vm7637 = vcmask 1042434
  %v7638 = vsel %vm7637, %v7381, %v7636
  %vm7639 = vcmask 1043459
  %v7640 = vsel %vm7639, %v7382, %v7638
  %vm7641 = vcmask 1044484
  %v7642 = vsel %vm7641, %v7383, %v7640
  %vm7643 = vcmask 1045509
  %v7644 = vsel %vm7643, %v7384, %v7642
  %vm7645 = vcmask 1046534
  %v7646 = vsel %vm7645, %v7385, %v7644
  %vm7647 = vcmask 1047559
  %v7648 = vsel %vm7647, %v7386, %v7646
  %v7649 = vsel %vm7635, %v7388, %v7387
  %v7650 = vsel %vm7637, %v7389, %v7649
  %v7651 = vsel %vm7639, %v7390, %v7650
  %v7652 = vsel %vm7641, %v7391, %v7651
  %v7653 = vsel %vm7643, %v7392, %v7652
  %v7654 = vsel %vm7645, %v7393, %v7653
  %v7655 = vsel %vm7647, %v7394, %v7654
  %v7656 = vsel %vm7635, %v7396, %v7395
  %v7657 = vsel %vm7637, %v7397, %v7656
  %v7658 = vsel %vm7639, %v7398, %v7657
  %v7659 = vsel %vm7641, %v7399, %v7658
  %v7660 = vsel %vm7643, %v7400, %v7659
  %v7661 = vsel %vm7645, %v7401, %v7660
  %v7662 = vsel %vm7647, %v7402, %v7661
  %v7663 = vsel %vm7635, %v7404, %v7403
  %v7664 = vsel %vm7637, %v7405, %v7663
  %v7665 = vsel %vm7639, %v7406, %v7664
  %v7666 = vsel %vm7641, %v7407, %v7665
  %v7667 = vsel %vm7643, %v7408, %v7666
  %v7668 = vsel %vm7645, %v7409, %v7667
  %v7669 = vsel %vm7647, %v7410, %v7668
  %v7670 = vsel %vm7635, %v7412, %v7411
  %v7671 = vsel %vm7637, %v7413, %v7670
  %v7672 = vsel %vm7639, %v7414, %v7671
  %v7673 = vsel %vm7641, %v7415, %v7672
  %v7674 = vsel %vm7643, %v7416, %v7673
  %v7675 = vsel %vm7645, %v7417, %v7674
  %v7676 = vsel %vm7647, %v7418, %v7675
  %v7677 = vsel %vm7635, %v7420, %v7419
  %v7678 = vsel %vm7637, %v7421, %v7677
  %v7679 = vsel %vm7639, %v7422, %v7678
  %v7680 = vsel %vm7641, %v7423, %v7679
  %v7681 = vsel %vm7643, %v7424, %v7680
  %v7682 = vsel %vm7645, %v7425, %v7681
  %v7683 = vsel %vm7647, %v7426, %v7682
  %v7684 = vsel %vm7635, %v7428, %v7427
  %v7685 = vsel %vm7637, %v7429, %v7684
  %v7686 = vsel %vm7639, %v7430, %v7685
  %v7687 = vsel %vm7641, %v7431, %v7686
  %v7688 = vsel %vm7643, %v7432, %v7687
  %v7689 = vsel %vm7645, %v7433, %v7688
  %v7690 = vsel %vm7647, %v7434, %v7689
  %v7691 = vsel %vm7635, %v7436, %v7435
  %v7692 = vsel %vm7637, %v7437, %v7691
  %v7693 = vsel %vm7639, %v7438, %v7692
  %v7694 = vsel %vm7641, %v7439, %v7693
  %v7695 = vsel %vm7643, %v7440, %v7694
  %v7696 = vsel %vm7645, %v7441, %v7695
  %v7697 = vsel %vm7647, %v7442, %v7696
  %v7698 = vsel %vm7635, %v7444, %v7443
  %v7699 = vsel %vm7637, %v7445, %v7698
  %v7700 = vsel %vm7639, %v7446, %v7699
  %v7701 = vsel %vm7641, %v7447, %v7700
  %v7702 = vsel %vm7643, %v7448, %v7701
  %v7703 = vsel %vm7645, %v7449, %v7702
  %v7704 = vsel %vm7647, %v7450, %v7703
  %v7705 = vsel %vm7635, %v7452, %v7451
  %v7706 = vsel %vm7637, %v7453, %v7705
  %v7707 = vsel %vm7639, %v7454, %v7706
  %v7708 = vsel %vm7641, %v7455, %v7707
  %v7709 = vsel %vm7643, %v7456, %v7708
  %v7710 = vsel %vm7645, %v7457, %v7709
  %v7711 = vsel %vm7647, %v7458, %v7710
  %v7712 = vsel %vm7635, %v7460, %v7459
  %v7713 = vsel %vm7637, %v7461, %v7712
  %v7714 = vsel %vm7639, %v7462, %v7713
  %v7715 = vsel %vm7641, %v7463, %v7714
  %v7716 = vsel %vm7643, %v7464, %v7715
  %v7717 = vsel %vm7645, %v7465, %v7716
  %v7718 = vsel %vm7647, %v7466, %v7717
  %v7719 = vsel %vm7635, %v7468, %v7467
  %v7720 = vsel %vm7637, %v7469, %v7719
  %v7721 = vsel %vm7639, %v7470, %v7720
  %v7722 = vsel %vm7641, %v7471, %v7721
  %v7723 = vsel %vm7643, %v7472, %v7722
  %v7724 = vsel %vm7645, %v7473, %v7723
  %v7725 = vsel %vm7647, %v7474, %v7724
  %v7726 = vsel %vm7635, %v7476, %v7475
  %v7727 = vsel %vm7637, %v7477, %v7726
  %v7728 = vsel %vm7639, %v7478, %v7727
  %v7729 = vsel %vm7641, %v7479, %v7728
  %v7730 = vsel %vm7643, %v7480, %v7729
  %v7731 = vsel %vm7645, %v7481, %v7730
  %v7732 = vsel %vm7647, %v7482, %v7731
  %v7733 = vsel %vm7635, %v7484, %v7483
  %v7734 = vsel %vm7637, %v7485, %v7733
  %v7735 = vsel %vm7639, %v7486, %v7734
  %v7736 = vsel %vm7641, %v7487, %v7735
  %v7737 = vsel %vm7643, %v7488, %v7736
  %v7738 = vsel %vm7645, %v7489, %v7737
  %v7739 = vsel %vm7647, %v7490, %v7738
  %v7740 = vsel %vm7635, %v7492, %v7491
  %v7741 = vsel %vm7637, %v7493, %v7740
  %v7742 = vsel %vm7639, %v7494, %v7741
  %v7743 = vsel %vm7641, %v7495, %v7742
  %v7744 = vsel %vm7643, %v7496, %v7743
  %v7745 = vsel %vm7645, %v7497, %v7744
  %v7746 = vsel %vm7647, %v7498, %v7745
  %v7747 = vsel %vm7635, %v7500, %v7499
  %v7748 = vsel %vm7637, %v7501, %v7747
  %v7749 = vsel %vm7639, %v7502, %v7748
  %v7750 = vsel %vm7641, %v7503, %v7749
  %v7751 = vsel %vm7643, %v7504, %v7750
  %v7752 = vsel %vm7645, %v7505, %v7751
  %v7753 = vsel %vm7647, %v7506, %v7752
  %v7770 = vcombine.low %v7648, %v7662
  %v7771 = vcombine.high %v7648, %v7662
  %v7773 = vunpack.c.l.s4 1983009808
  %v7774 = vunpack.c.0.s8 %v7773
  %v7775 = vlaneseq
  %v7776 = vshrl.u32 %v7775, 7
  %v7777 = vsub.s32 %v7774, %v7776
  %v7778 = vrot.slane %v7770, %v7777
  %v7780 = vunpack.c.l.s4 1983009808
  %v7781 = vunpack.c.0.s8 %v7780
  %v7782 = vlaneseq
  %v7783 = vshrl.u32 %v7782, 7
  %v7784 = vsub.s32 %v7781, %v7783
  %v7785 = vrot.slane %v7771, %v7784
  %v7786 = vcombine.low %v7655, %v7669
  %v7787 = vcombine.high %v7655, %v7669
  %v7789 = vunpack.c.l.s4 1983009808
  %v7790 = vunpack.c.0.s8 %v7789
  %v7791 = vlaneseq
  %v7792 = vshrl.u32 %v7791, 7
  %v7793 = vsub.s32 %v7790, %v7792
  %v7794 = vrot.slane %v7786, %v7793
  %v7796 = vunpack.c.l.s4 1983009808
  %v7797 = vunpack.c.0.s8 %v7796
  %v7798 = vlaneseq
  %v7799 = vshrl.u32 %v7798, 7
  %v7800 = vsub.s32 %v7797, %v7799
  %v7801 = vrot.slane %v7787, %v7800
  %v7802 = vcombine.low %v7676, %v7690
  %v7803 = vcombine.high %v7676, %v7690
  %v7805 = vunpack.c.l.s4 1983009808
  %v7806 = vunpack.c.0.s8 %v7805
  %v7807 = vlaneseq
  %v7808 = vshrl.u32 %v7807, 7
  %v7809 = vsub.s32 %v7806, %v7808
  %v7810 = vrot.slane %v7802, %v7809
  %v7812 = vunpack.c.l.s4 1983009808
  %v7813 = vunpack.c.0.s8 %v7812
  %v7814 = vlaneseq
  %v7815 = vshrl.u32 %v7814, 7
  %v7816 = vsub.s32 %v7813, %v7815
  %v7817 = vrot.slane %v7803, %v7816
  %v7818 = vcombine.low %v7683, %v7697
  %v7819 = vcombine.high %v7683, %v7697
  %v7821 = vunpack.c.l.s4 1983009808
  %v7822 = vunpack.c.0.s8 %v7821
  %v7823 = vlaneseq
  %v7824 = vshrl.u32 %v7823, 7
  %v7825 = vsub.s32 %v7822, %v7824
  %v7826 = vrot.slane %v7818, %v7825
  %v7828 = vunpack.c.l.s4 1983009808
  %v7829 = vunpack.c.0.s8 %v7828
  %v7830 = vlaneseq
  %v7831 = vshrl.u32 %v7830, 7
  %v7832 = vsub.s32 %v7829, %v7831
  %v7833 = vrot.slane %v7819, %v7832
  %v7834 = vcombine.low %v7778, %v7794
  %v7835 = vcombine.high %v7778, %v7794
  %v7837 = vunpack.c.l.s4 1934713408
  %v7838 = vunpack.c.0.s8 %v7837
  %v7839 = vlaneseq
  %v7840 = vshrl.u32 %v7839, 7
  %v7841 = vsub.s32 %v7838, %v7840
  %v7842 = vrot.slane %v7834, %v7841
  %v7844 = vunpack.c.l.s4 1934713408
  %v7845 = vunpack.c.0.s8 %v7844
  %v7846 = vlaneseq
  %v7847 = vshrl.u32 %v7846, 7
  %v7848 = vsub.s32 %v7845, %v7847
  %v7849 = vrot.slane %v7835, %v7848
  %v7850 = vcombine.low %v7785, %v7801
  %v7851 = vcombine.high %v7785, %v7801
  %v7853 = vunpack.c.l.s4 1934713408
  %v7854 = vunpack.c.0.s8 %v7853
  %v7855 = vlaneseq
  %v7856 = vshrl.u32 %v7855, 7
  %v7857 = vsub.s32 %v7854, %v7856
  %v7858 = vrot.slane %v7850, %v7857
  %v7860 = vunpack.c.l.s4 1934713408
  %v7861 = vunpack.c.0.s8 %v7860
  %v7862 = vlaneseq
  %v7863 = vshrl.u32 %v7862, 7
  %v7864 = vsub.s32 %v7861, %v7863
  %v7865 = vrot.slane %v7851, %v7864
  %v7866 = vcombine.low %v7810, %v7826
  %v7867 = vcombine.high %v7810, %v7826
  %v7869 = vunpack.c.l.s4 1934713408
  %v7870 = vunpack.c.0.s8 %v7869
  %v7871 = vlaneseq
  %v7872 = vshrl.u32 %v7871, 7
  %v7873 = vsub.s32 %v7870, %v7872
  %v7874 = vrot.slane %v7866, %v7873
  %v7876 = vunpack.c.l.s4 1934713408
  %v7877 = vunpack.c.0.s8 %v7876
  %v7878 = vlaneseq
  %v7879 = vshrl.u32 %v7878, 7
  %v7880 = vsub.s32 %v7877, %v7879
  %v7881 = vrot.slane %v7867, %v7880
  %v7882 = vcombine.low %v7817, %v7833
  %v7883 = vcombine.high %v7817, %v7833
  %v7885 = vunpack.c.l.s4 1934713408
  %v7886 = vunpack.c.0.s8 %v7885
  %v7887 = vlaneseq
  %v7888 = vshrl.u32 %v7887, 7
  %v7889 = vsub.s32 %v7886, %v7888
  %v7890 = vrot.slane %v7882, %v7889
  %v7892 = vunpack.c.l.s4 1934713408
  %v7893 = vunpack.c.0.s8 %v7892
  %v7894 = vlaneseq
  %v7895 = vshrl.u32 %v7894, 7
  %v7896 = vsub.s32 %v7893, %v7895
  %v7897 = vrot.slane %v7883, %v7896
  %v7898 = vcombine.low %v7842, %v7874
  %v7899 = vcombine.high %v7842, %v7874
  %v7900 = vcombine.low %v7849, %v7881
  %v7901 = vcombine.high %v7849, %v7881
  %v7902 = vcombine.low %v7858, %v7890
  %v7903 = vcombine.high %v7858, %v7890
  %v7904 = vcombine.low %v7865, %v7897
  %v7905 = vcombine.high %v7865, %v7897
  %v7906 = vcombine.low %v7704, %v7718
  %v7907 = vcombine.high %v7704, %v7718
  %v7909 = vunpack.c.l.s4 1983009808
  %v7910 = vunpack.c.0.s8 %v7909
  %v7911 = vlaneseq
  %v7912 = vshrl.u32 %v7911, 7
  %v7913 = vsub.s32 %v7910, %v7912
  %v7914 = vrot.slane %v7906, %v7913
  %v7916 = vunpack.c.l.s4 1983009808
  %v7917 = vunpack.c.0.s8 %v7916
  %v7918 = vlaneseq
  %v7919 = vshrl.u32 %v7918, 7
  %v7920 = vsub.s32 %v7917, %v7919
  %v7921 = vrot.slane %v7907, %v7920
  %v7922 = vcombine.low %v7711, %v7725
  %v7923 = vcombine.high %v7711, %v7725
  %v7925 = vunpack.c.l.s4 1983009808
  %v7926 = vunpack.c.0.s8 %v7925
  %v7927 = vlaneseq
  %v7928 = vshrl.u32 %v7927, 7
  %v7929 = vsub.s32 %v7926, %v7928
  %v7930 = vrot.slane %v7922, %v7929
  %v7932 = vunpack.c.l.s4 1983009808
  %v7933 = vunpack.c.0.s8 %v7932
  %v7934 = vlaneseq
  %v7935 = vshrl.u32 %v7934, 7
  %v7936 = vsub.s32 %v7933, %v7935
  %v7937 = vrot.slane %v7923, %v7936
  %v7938 = vcombine.low %v7732, %v7746
  %v7939 = vcombine.high %v7732, %v7746
  %v7941 = vunpack.c.l.s4 1983009808
  %v7942 = vunpack.c.0.s8 %v7941
  %v7943 = vlaneseq
  %v7944 = vshrl.u32 %v7943, 7
  %v7945 = vsub.s32 %v7942, %v7944
  %v7946 = vrot.slane %v7938, %v7945
  %v7948 = vunpack.c.l.s4 1983009808
  %v7949 = vunpack.c.0.s8 %v7948
  %v7950 = vlaneseq
  %v7951 = vshrl.u32 %v7950, 7
  %v7952 = vsub.s32 %v7949, %v7951
  %v7953 = vrot.slane %v7939, %v7952
  %v7954 = vcombine.low %v7739, %v7753
  %v7955 = vcombine.high %v7739, %v7753
  %v7957 = vunpack.c.l.s4 1983009808
  %v7958 = vunpack.c.0.s8 %v7957
  %v7959 = vlaneseq
  %v7960 = vshrl.u32 %v7959, 7
  %v7961 = vsub.s32 %v7958, %v7960
  %v7962 = vrot.slane %v7954, %v7961
  %v7964 = vunpack.c.l.s4 1983009808
  %v7965 = vunpack.c.0.s8 %v7964
  %v7966 = vlaneseq
  %v7967 = vshrl.u32 %v7966, 7
  %v7968 = vsub.s32 %v7965, %v7967
  %v7969 = vrot.slane %v7955, %v7968
  %v7970 = vcombine.low %v7914, %v7930
  %v7971 = vcombine.high %v7914, %v7930
  %v7973 = vunpack.c.l.s4 1934713408
  %v7974 = vunpack.c.0.s8 %v7973
  %v7975 = vlaneseq
  %v7976 = vshrl.u32 %v7975, 7
  %v7977 = vsub.s32 %v7974, %v7976
  %v7978 = vrot.slane %v7970, %v7977
  %v7980 = vunpack.c.l.s4 1934713408
  %v7981 = vunpack.c.0.s8 %v7980
  %v7982 = vlaneseq
  %v7983 = vshrl.u32 %v7982, 7
  %v7984 = vsub.s32 %v7981, %v7983
  %v7985 = vrot.slane %v7971, %v7984
  %v7986 = vcombine.low %v7921, %v7937
  %v7987 = vcombine.high %v7921, %v7937
  %v7989 = vunpack.c.l.s4 1934713408
  %v7990 = vunpack.c.0.s8 %v7989
  %v7991 = vlaneseq
  %v7992 = vshrl.u32 %v7991, 7
  %v7993 = vsub.s32 %v7990, %v7992
  %v7994 = vrot.slane %v7986, %v7993
  %v7996 = vunpack.c.l.s4 1934713408
  %v7997 = vunpack.c.0.s8 %v7996
  %v7998 = vlaneseq
  %v7999 = vshrl.u32 %v7998, 7
  %v8000 = vsub.s32 %v7997, %v7999
  %v8001 = vrot.slane %v7987, %v8000
  %v8002 = vcombine.low %v7946, %v7962
  %v8003 = vcombine.high %v7946, %v7962
  %v8005 = vunpack.c.l.s4 1934713408
  %v8006 = vunpack.c.0.s8 %v8005
  %v8007 = vlaneseq
  %v8008 = vshrl.u32 %v8007, 7
  %v8009 = vsub.s32 %v8006, %v8008
  %v8010 = vrot.slane %v8002, %v8009
  %v8012 = vunpack.c.l.s4 1934713408
  %v8013 = vunpack.c.0.s8 %v8012
  %v8014 = vlaneseq
  %v8015 = vshrl.u32 %v8014, 7
  %v8016 = vsub.s32 %v8013, %v8015
  %v8017 = vrot.slane %v8003, %v8016
  %v8018 = vcombine.low %v7953, %v7969
  %v8019 = vcombine.high %v7953, %v7969
  %v8021 = vunpack.c.l.s4 1934713408
  %v8022 = vunpack.c.0.s8 %v8021
  %v8023 = vlaneseq
  %v8024 = vshrl.u32 %v8023, 7
  %v8025 = vsub.s32 %v8022, %v8024
  %v8026 = vrot.slane %v8018, %v8025
  %v8028 = vunpack.c.l.s4 1934713408
  %v8029 = vunpack.c.0.s8 %v8028
  %v8030 = vlaneseq
  %v8031 = vshrl.u32 %v8030, 7
  %v8032 = vsub.s32 %v8029, %v8031
  %v8033 = vrot.slane %v8019, %v8032
  %v8034 = vcombine.low %v7978, %v8010
  %v8035 = vcombine.high %v7978, %v8010
  %v8036 = vcombine.low %v7985, %v8017
  %v8037 = vcombine.high %v7985, %v8017
  %v8038 = vcombine.low %v7994, %v8026
  %v8039 = vcombine.high %v7994, %v8026
  %v8040 = vcombine.low %v8001, %v8033
  %v8041 = vcombine.high %v8001, %v8033
  %8044 = vrot.lane.b32.xlu0 %v7899, 32
  %v8045 = vpop.permute.xlu0 %8044
  %8046 = vrot.lane.b32.xlu0 %v8035, 32
  %v8047 = vpop.permute.xlu0 %8046
  %8052 = vrot.lane.b32.xlu0 %v7900, 64
  %v8053 = vpop.permute.xlu0 %8052
  %8054 = vrot.lane.b32.xlu0 %v8036, 64
  %v8055 = vpop.permute.xlu0 %8054
  %8060 = vrot.lane.b32.xlu0 %v7901, 96
  %v8061 = vpop.permute.xlu0 %8060
  %8062 = vrot.lane.b32.xlu0 %v8037, 96
  %v8063 = vpop.permute.xlu0 %8062
  %8068 = vrot.lane.b32.xlu0 %v7903, 32
  %v8069 = vpop.permute.xlu0 %8068
  %8070 = vrot.lane.b32.xlu0 %v8039, 32
  %v8071 = vpop.permute.xlu0 %8070
  %8076 = vrot.lane.b32.xlu0 %v7904, 64
  %v8077 = vpop.permute.xlu0 %8076
  %8078 = vrot.lane.b32.xlu0 %v8040, 64
  %v8079 = vpop.permute.xlu0 %8078
  %8084 = vrot.lane.b32.xlu0 %v7905, 96
  %v8085 = vpop.permute.xlu0 %8084
  %8086 = vrot.lane.b32.xlu0 %v8041, 96
  %v8087 = vpop.permute.xlu0 %8086
  %v8090 = vsel %vm3480, %v7898, %v8045
  %v8091 = vsel %vm3480, %v8034, %v8047
  %vm8092 = vcmask 523264
  %v8093 = vsel %vm8092, %v8090, %v8053
  %v8094 = vsel %vm8092, %v8091, %v8055
  %vm8095 = vcmask 785408
  %v8096 = vsel %vm8095, %v8093, %v8061
  %v8097 = vsel %vm8095, %v8094, %v8063
  %v8098 = vsel %vm3480, %v7902, %v8069
  %v8099 = vsel %vm3480, %v8038, %v8071
  %v8100 = vsel %vm8092, %v8098, %v8077
  %v8101 = vsel %vm8092, %v8099, %v8079
  %v8102 = vsel %vm8095, %v8100, %v8085
  %v8103 = vsel %vm8095, %v8101, %v8087
  %v8104 = vpack.c.bf16 %v8096, %v8096
  %v8105 = vpack.c.bf16 %v8102, %v8102
  %v8106 = vpack.c.bf16 %v8097, %v8097
  %v8107 = vpack.c.bf16 %v8103, %v8103
  %v8112 = vunpack.c.l.b16 %v8104
  %v8113 = vunpack.c.l.b16 %v8105
  %v8114 = vunpack.c.l.b16 %v8106
  %v8115 = vunpack.c.l.b16 %v8107
  %v8116 = vpack.c.b16 %v8113, %v8112
  %v8117 = vpack.c.b16 %v8115, %v8114
  %8120 = vst [vmem:[%s3] sm:$0xff] %v8116
  %8121 = vst [vmem:[%s3 + $0x8] sm:$0xff] %v8117
  // Predicated region
  $region14: #{custom_cnn_forward.3} parent=0 // pred_check
    _
  $region15: #{custom_cnn_forward.3} parent=0 // pred_check_branch
    %8123 = sbr.rel (0) target = $region17
  $region16: #{custom_cnn_forward.3} parent=0 // pred_region
    _
  $region17: #{custom_cnn_forward.3} parent=0 // pred_fallthru
    _
  // Predicated region
  $region18: #{custom_cnn_forward.3} parent=0 // pred_check
    _
  $region19: #{custom_cnn_forward.3} parent=0 // pred_check_branch
    %8125 = sbr.rel (0) target = $region21
  $region20: #{custom_cnn_forward.3} parent=0 // pred_region
    _
  $region21: #{custom_cnn_forward.3} parent=0 // pred_fallthru
    _

</llo_original>
